<compile_context>
chip_gen: v5e
topology: v5e:2x2
jax: 0.10.0
libtpu: 0.0.40
codegen_flags: <defaults>
</compile_context>

<pallas_src>
import functools

import numpy as np
import jax
import jax.numpy as jnp
from jax import lax
from jax.experimental import pallas as pl
from jax.experimental.pallas import tpu as pltpu


# ---------------------------------------------------------------------------
# Fused Pallas kernel
# ---------------------------------------------------------------------------

def _rollout_kernel(xs_ref, w1s_ref, b1_ref, s2_ref, w2k_ref, b2_ref,
                    wft_ref, eye_ref, gr_ref, whh_ref, bhh_ref, out_ref,
                    y1_scr, y2_scr, gi_scr,
                    *, T, B, N, Cout, H, GP):
    f32 = jnp.float32

    # ---- conv1 (k=3, s=1) + LeakyReLU: ONE dense matmul ----
    # xs columns are (tap, ci, image)-major; w1s rows match, so the single
    # contraction sums over taps and input channels at once.
    y1 = jnp.dot(xs_ref[...], w1s_ref[...], preferred_element_type=f32)
    y1 = y1 + b1_ref[...]
    y1_scr[...] = jnp.maximum(y1, 0.01 * y1)               # (P1, Cout*N)

    # ---- conv2 (k=3, s=2) + LeakyReLU: per-tap select + channel-mix ----
    acc = None
    for tap in range(9):
        g = jnp.dot(s2_ref[tap], y1_scr[...], preferred_element_type=f32)  # (P2, Cout*N)
        term = jnp.dot(g, w2k_ref[tap], preferred_element_type=f32)
        acc = term if acc is None else acc + term
    y2 = acc + b2_ref[...]
    y2_scr[...] = jnp.maximum(y2, 0.01 * y2)                # (P2, Cout*N)

    # ---- GRU input projection, hoisted over all T*B timestep-rows ----
    # giT[g, n] = sum_{co,p} W_ih[g, co*P2 + p] * y2[n, co, p]
    giT = None
    for co in range(Cout):
        term = jnp.dot(wft_ref[co], y2_scr[:, co * N:(co + 1) * N],
                       preferred_element_type=f32)          # (GP, N)
        giT = term if giT is None else giT + term
    # Orientation flip (GP, N) -> (N, GP) on the MXU (I_N trans_b matmul);
    # gr already holds reward @ W_r + b_ih.
    gi_scr[...] = lax.dot_general(
        eye_ref[...], giT, (((1,), (1,)), ((), ())),
        preferred_element_type=f32) + gr_ref[...]           # (N, GP)

    # ---- GRU recurrence: only the tiny (B,H)x(H,3H) matmul is serial ----
    whh = whh_ref[...]                                      # (H, 3H)
    bhh = bhh_ref[...]                                      # (1, 3H)
    h = jnp.zeros((B, H), f32)
    for t in range(T):                                      # T small & static
        gi_t = gi_scr[t * B:(t + 1) * B, :3 * H]            # (B, 3H)
        gh = jnp.dot(h, whh, preferred_element_type=f32) + bhh
        r = jax.nn.sigmoid(gi_t[:, :H] + gh[:, :H])
        z = jax.nn.sigmoid(gi_t[:, H:2 * H] + gh[:, H:2 * H])
        n = jnp.tanh(gi_t[:, 2 * H:] + r * gh[:, 2 * H:])
        h = (1.0 - z) * n + z * h
    out_ref[...] = h


# ---------------------------------------------------------------------------
# Parameter / constant preparation (one-time, outside the hot path)
# ---------------------------------------------------------------------------

def _selection_matrices(h_in, w_in, k, stride):
    """0/1 matrices mapping flattened input positions -> output positions, per tap."""
    h_out = (h_in - k) // stride + 1
    w_out = (w_in - k) // stride + 1
    s = np.zeros((k * k, h_out * w_out, h_in * w_in), np.float32)
    for di in range(k):
        for dj in range(k):
            for oh in range(h_out):
                for ow in range(w_out):
                    s[di * k + dj, oh * w_out + ow,
                      (stride * oh + di) * w_in + (stride * ow + dj)] = 1.0
    return s, h_out, w_out


def prepare_params(params, *, in_shape, num_rewards, hidden_size, num_steps, batch):
    """Re-layout PyTorch-style params into kernel-ready arrays (done once)."""
    C, Hi, Wi = in_shape
    N = num_steps * batch
    Cout = params["w1"].shape[0]

    Ho1, Wo1 = Hi - 2, Wi - 2                                # conv1: k3, s1
    s2, Ho2, Wo2 = _selection_matrices(Ho1, Wo1, 3, 2)       # conv2: k3, s2
    P1, P2 = Ho1 * Wo1, Ho2 * Wo2

    G = 3 * hidden_size
    GP = ((G + 127) // 128) * 128                            # lane-dense gates

    eye_n = jnp.eye(N, dtype=jnp.float32)
    # conv1 channel-mix weights, kron'd over images and stacked along the
    # contraction (K) axis so conv1 is a single matmul.  Row order matches the
    # wrapper's xs column order: tap-major, then ci, then image.
    w1s = jnp.concatenate([jnp.kron(params["w1"][:, :, di, dj].T, eye_n)
                           for di in range(3) for dj in range(3)],
                          axis=0)                            # (9*C*N, Cout*N)
    # conv2 channel-mix weights, per tap (block-diagonal over images).
    w2k = jnp.stack([jnp.kron(params["w2"][:, :, di, dj].T, eye_n)
                     for di in range(3) for dj in range(3)]) # (9, Cout*N, Cout*N)
    b1c = jnp.repeat(params["b1"], N)[None, :]               # (1, Cout*N)
    b2c = jnp.repeat(params["b2"], N)[None, :]               # (1, Cout*N)

    feat = Cout * P2
    w_ih = params["w_ih"]                                    # (3H, feat + nr)
    wf = jnp.pad(w_ih[:, :feat].T, ((0, 0), (0, GP - G)))    # (feat, GP)
    wft = wf.reshape(Cout, P2, GP).transpose(0, 2, 1)        # (Cout, GP, P2)
    wr = jnp.pad(w_ih[:, feat:].T, ((0, 0), (0, GP - G)))    # (nr, GP)
    bih = jnp.pad(params["b_ih"], (0, GP - G))[None, :]      # (1, GP)

    arrs = dict(s2=jnp.asarray(s2), w1s=w1s, w2k=w2k, b1c=b1c, b2c=b2c,
                wft=wft, eye_n=eye_n, wr=wr, bih=bih,
                whh_t=params["w_hh"].T, bhh=params["b_hh"][None, :])
    dims = dict(C=C, Hi=Hi, Wi=Wi, Ho1=Ho1, Wo1=Wo1, N=N, T=num_steps, B=batch,
                Cout=Cout, P1=P1, P2=P2, H=hidden_size, GP=GP, nr=num_rewards)
    return arrs, dims


# ---------------------------------------------------------------------------
# Forward wrapper
# ---------------------------------------------------------------------------

def make_forward(dims):
    C, Hi, Wi = dims["C"], dims["Hi"], dims["Wi"]
    Ho1, Wo1 = dims["Ho1"], dims["Wo1"]
    N, T, B = dims["N"], dims["T"], dims["B"]
    Cout, P1, P2 = dims["Cout"], dims["P1"], dims["P2"]
    H, GP, nr = dims["H"], dims["GP"], dims["nr"]

    kernel = functools.partial(_rollout_kernel, T=T, B=B, N=N, Cout=Cout,
                               H=H, GP=GP)

    call = pl.pallas_call(
        kernel,
        out_shape=jax.ShapeDtypeStruct((B, H), jnp.float32),
        grid=(1,),
        in_specs=[
            pl.BlockSpec((P1, 9 * C * N), lambda i: (0, 0)),             # xs
            pl.BlockSpec((9 * C * N, Cout * N), lambda i: (0, 0)),       # w1s
            pl.BlockSpec((1, Cout * N), lambda i: (0, 0)),               # b1c
            pl.BlockSpec((9, P2, P1), lambda i: (0, 0, 0)),              # s2
            pl.BlockSpec((9, Cout * N, Cout * N), lambda i: (0, 0, 0)),  # w2k
            pl.BlockSpec((1, Cout * N), lambda i: (0, 0)),               # b2c
            pl.BlockSpec((Cout, GP, P2), lambda i: (0, 0, 0)),           # wft
            pl.BlockSpec((N, N), lambda i: (0, 0)),                      # eye_n
            pl.BlockSpec((N, GP), lambda i: (0, 0)),                     # gr
            pl.BlockSpec((H, 3 * H), lambda i: (0, 0)),                  # whh_t
            pl.BlockSpec((1, 3 * H), lambda i: (0, 0)),                  # bhh
        ],
        out_specs=pl.BlockSpec((B, H), lambda i: (0, 0)),
        scratch_shapes=[
            pltpu.VMEM((P1, Cout * N), jnp.float32),                     # y1
            pltpu.VMEM((P2, Cout * N), jnp.float32),                     # y2
            pltpu.VMEM((N, GP), jnp.float32),                            # gi
        ],
        compiler_params=pltpu.CompilerParams(
            dimension_semantics=("arbitrary",),
            vmem_limit_bytes=32 * 1024 * 1024),
    )

    @jax.jit
    def forward(state, reward, arrs):
        # conv1 tap shifts done as cheap XLA slices on the (tiny) input:
        # rows = output spatial position, lanes = (tap, channel, image).
        x3 = state.reshape(N, C, Hi, Wi)
        cols = []
        for di in range(3):
            for dj in range(3):
                t = x3[:, :, di:di + Ho1, dj:dj + Wo1]                    # (N,C,Ho1,Wo1)
                cols.append(t.reshape(N, C, P1).transpose(2, 1, 0)
                             .reshape(P1, C * N))
        xs = jnp.concatenate(cols, axis=1)                                # (P1, 9*C*N)
        # Reward part of the GRU input projection + input bias (tiny, once).
        gr = reward.reshape(N, nr) @ arrs["wr"] + arrs["bih"]             # (N, GP)
        return call(xs, arrs["w1s"], arrs["b1c"], arrs["s2"], arrs["w2k"],
                    arrs["b2c"], arrs["wft"], arrs["eye_n"], gr,
                    arrs["whh_t"], arrs["bhh"])

    return forward


# ---------------------------------------------------------------------------
# Pure-JAX reference (for validation)
# ---------------------------------------------------------------------------

def reference_forward(state, reward, params, hidden_size):
    T, B = state.shape[:2]
    x = state.reshape((-1,) + state.shape[2:])

    def conv(x, w, b, stride):
        y = lax.conv_general_dilated(
            x, w, (stride, stride), "VALID",
            dimension_numbers=("NCHW", "OIHW", "NCHW"))
        y = y + b[None, :, None, None]
        return jnp.where(y >= 0, y, 0.01 * y)

    y = conv(x, params["w1"], params["b1"], 1)
    y = conv(y, params["w2"], params["b2"], 2)
    feat = y.reshape(T, B, -1)
    rnn_in = jnp.concatenate([feat, reward], axis=2)

    Hh = hidden_size

    def step(h, x_t):
        gi = x_t @ params["w_ih"].T + params["b_ih"]
        gh = h @ params["w_hh"].T + params["b_hh"]
        i_r, i_z, i_n = gi[:, :Hh], gi[:, Hh:2 * Hh], gi[:, 2 * Hh:]
        h_r, h_z, h_n = gh[:, :Hh], gh[:, Hh:2 * Hh], gh[:, 2 * Hh:]
        r = jax.nn.sigmoid(i_r + h_r)
        z = jax.nn.sigmoid(i_z + h_z)
        n = jnp.tanh(i_n + r * h_n)
        return (1.0 - z) * n + z * h, None

    h0 = jnp.zeros((B, Hh), jnp.float32)
    h_last, _ = lax.scan(step, h0, rnn_in)
    return h_last


# ---------------------------------------------------------------------------
# Main
# ---------------------------------------------------------------------------

if __name__ == "__main__":
    num_steps, batch = 8, 2
    in_shape = (4, 16, 16)          # (C, H, W)
    num_rewards = 1
    hidden_size = 32

    C, Himg, Wimg = in_shape
    # feature size: conv1 (k3,s1): 14x14 ; conv2 (k3,s2): 6x6 ; 16 channels
    feat_size = 16 * 6 * 6
    in_size = feat_size + num_rewards

    key = jax.random.PRNGKey(0)
    ks = jax.random.split(key, 12)

    params = {
        "w1": jax.random.normal(ks[0], (16, C, 3, 3), jnp.float32) * 0.1,
        "b1": jax.random.normal(ks[1], (16,), jnp.float32) * 0.1,
        "w2": jax.random.normal(ks[2], (16, 16, 3, 3), jnp.float32) * 0.05,
        "b2": jax.random.normal(ks[3], (16,), jnp.float32) * 0.1,
        "w_ih": jax.random.normal(ks[4], (3 * hidden_size, in_size), jnp.float32) * 0.05,
        "w_hh": jax.random.normal(ks[5], (3 * hidden_size, hidden_size), jnp.float32) * 0.05,
        "b_ih": jax.random.normal(ks[6], (3 * hidden_size,), jnp.float32) * 0.05,
        "b_hh": jax.random.normal(ks[7], (3 * hidden_size,), jnp.float32) * 0.05,
    }

    state = jax.random.normal(ks[8], (num_steps, batch, C, Himg, Wimg), jnp.float32)
    reward = jax.random.normal(ks[9], (num_steps, batch, num_rewards), jnp.float32)

    arrs, dims = prepare_params(params, in_shape=in_shape, num_rewards=num_rewards,
                                hidden_size=hidden_size, num_steps=num_steps,
                                batch=batch)
    forward = make_forward(dims)

    out = jax.block_until_ready(forward(state, reward, arrs))
    ref = jax.block_until_ready(reference_forward(state, reward, params, hidden_size))

    assert out.shape == (batch, hidden_size)
    assert jnp.allclose(out, ref, rtol=2e-3, atol=2e-3), "mismatch vs reference"

    print("KERNEL_OK")
</pallas_src>

<mosaic_0001>
module attributes {stable_mosaic.version = 11 : i64} {
  func.func @_rollout_kernel(%arg0: i32, %arg1: memref<196x576xf32, #tpu.memory_space<vmem>>, %arg2: memref<576x256xf32, #tpu.memory_space<vmem>>, %arg3: memref<1x256xf32, #tpu.memory_space<vmem>>, %arg4: memref<9x36x196xf32, #tpu.memory_space<vmem>>, %arg5: memref<9x256x256xf32, #tpu.memory_space<vmem>>, %arg6: memref<1x256xf32, #tpu.memory_space<vmem>>, %arg7: memref<16x128x36xf32, #tpu.memory_space<vmem>>, %arg8: memref<16x16xf32, #tpu.memory_space<vmem>>, %arg9: memref<16x128xf32, #tpu.memory_space<vmem>>, %arg10: memref<32x96xf32, #tpu.memory_space<vmem>>, %arg11: memref<1x96xf32, #tpu.memory_space<vmem>>, %arg12: memref<2x32xf32, #tpu.memory_space<vmem>>, %arg13: memref<196x256xf32, #tpu.memory_space<vmem>>, %arg14: memref<36x256xf32, #tpu.memory_space<vmem>>, %arg15: memref<16x128xf32, #tpu.memory_space<vmem>>) attributes {dimension_semantics = [#tpu.dimension_semantics<arbitrary>], iteration_bounds = array<i64: 1>, scalar_prefetch = 0 : i64, scratch_operands = 3 : i64, tpu.core_type = #tpu.core_type<tc>, window_params = [{pipeline_mode = #tpu.pipeline_mode<synchronous>, transform_indices = @transform_0, window_bounds = array<i64: 196, 576>}, {pipeline_mode = #tpu.pipeline_mode<synchronous>, transform_indices = @transform_1, window_bounds = array<i64: 576, 256>}, {pipeline_mode = #tpu.pipeline_mode<synchronous>, transform_indices = @transform_2, window_bounds = array<i64: 1, 256>}, {pipeline_mode = #tpu.pipeline_mode<synchronous>, transform_indices = @transform_3, window_bounds = array<i64: 9, 36, 196>}, {pipeline_mode = #tpu.pipeline_mode<synchronous>, transform_indices = @transform_4, window_bounds = array<i64: 9, 256, 256>}, {pipeline_mode = #tpu.pipeline_mode<synchronous>, transform_indices = @transform_5, window_bounds = array<i64: 1, 256>}, {pipeline_mode = #tpu.pipeline_mode<synchronous>, transform_indices = @transform_6, window_bounds = array<i64: 16, 128, 36>}, {pipeline_mode = #tpu.pipeline_mode<synchronous>, transform_indices = @transform_7, window_bounds = array<i64: 16, 16>}, {pipeline_mode = #tpu.pipeline_mode<synchronous>, transform_indices = @transform_8, window_bounds = array<i64: 16, 128>}, {pipeline_mode = #tpu.pipeline_mode<synchronous>, transform_indices = @transform_9, window_bounds = array<i64: 32, 96>}, {pipeline_mode = #tpu.pipeline_mode<synchronous>, transform_indices = @transform_10, window_bounds = array<i64: 1, 96>}, {pipeline_mode = #tpu.pipeline_mode<synchronous>, transform_indices = @transform_11, window_bounds = array<i64: 2, 32>}]} {
    %c0 = arith.constant 0 : index
    %c0_0 = arith.constant 0 : index
    %0 = vector.load %arg1[%c0, %c0_0] : memref<196x576xf32, #tpu.memory_space<vmem>>, vector<196x576xf32>
    %c0_1 = arith.constant 0 : index
    %c0_2 = arith.constant 0 : index
    %1 = vector.load %arg2[%c0_1, %c0_2] : memref<576x256xf32, #tpu.memory_space<vmem>>, vector<576x256xf32>
    %cst = arith.constant dense<0.000000e+00> : vector<196x256xf32>
    %2 = tpu.matmul %0, %1, %cst {dimension_numbers = #tpu.dot_dimension_numbers<[1], [0], [0], [1], [0, 0, 1, 1], [], []>} : vector<196x576xf32>, vector<576x256xf32>, vector<196x256xf32> -> vector<196x256xf32>
    %c0_3 = arith.constant 0 : index
    %c0_4 = arith.constant 0 : index
    %3 = vector.load %arg3[%c0_3, %c0_4] : memref<1x256xf32, #tpu.memory_space<vmem>>, vector<1x256xf32>
    %4 = vector.broadcast %3 : vector<1x256xf32> to vector<196x256xf32>
    %5 = arith.addf %2, %4 : vector<196x256xf32>
    %cst_5 = arith.constant 0.00999999977 : f32
    %6 = vector.broadcast %cst_5 : f32 to vector<196x256xf32>
    %7 = arith.mulf %6, %5 : vector<196x256xf32>
    %8 = arith.maximumf %5, %7 : vector<196x256xf32>
    %c0_6 = arith.constant 0 : index
    %c0_7 = arith.constant 0 : index
    %9 = vector.load %arg13[%c0_6, %c0_7] : memref<196x256xf32, #tpu.memory_space<vmem>>, vector<196x256xf32>
    tpu.vector_store %arg13[%c0_6, %c0_7], %8 {strides = array<i32>} : memref<196x256xf32, #tpu.memory_space<vmem>>, vector<196x256xf32>,
    %c0_8 = arith.constant 0 : index
    %c0_9 = arith.constant 0 : index
    %c0_10 = arith.constant 0 : index
    %10 = vector.load %arg4[%c0_8, %c0_9, %c0_10] : memref<9x36x196xf32, #tpu.memory_space<vmem>>, vector<1x36x196xf32>
    %11 = vector.shape_cast %10 : vector<1x36x196xf32> to vector<36x196xf32>
    %c0_11 = arith.constant 0 : index
    %c0_12 = arith.constant 0 : index
    %12 = vector.load %arg13[%c0_11, %c0_12] : memref<196x256xf32, #tpu.memory_space<vmem>>, vector<196x256xf32>
    %cst_13 = arith.constant dense<0.000000e+00> : vector<36x256xf32>
    %13 = tpu.matmul %11, %12, %cst_13 {dimension_numbers = #tpu.dot_dimension_numbers<[1], [0], [0], [1], [0, 0, 1, 1], [], []>} : vector<36x196xf32>, vector<196x256xf32>, vector<36x256xf32> -> vector<36x256xf32>
    %c0_14 = arith.constant 0 : index
    %c0_15 = arith.constant 0 : index
    %c0_16 = arith.constant 0 : index
    %14 = vector.load %arg5[%c0_14, %c0_15, %c0_16] : memref<9x256x256xf32, #tpu.memory_space<vmem>>, vector<1x256x256xf32>
    %15 = vector.shape_cast %14 : vector<1x256x256xf32> to vector<256x256xf32>
    %cst_17 = arith.constant dense<0.000000e+00> : vector<36x256xf32>
    %16 = tpu.matmul %13, %15, %cst_17 {dimension_numbers = #tpu.dot_dimension_numbers<[1], [0], [0], [1], [0, 0, 1, 1], [], []>} : vector<36x256xf32>, vector<256x256xf32>, vector<36x256xf32> -> vector<36x256xf32>
    %c1 = arith.constant 1 : index
    %c0_18 = arith.constant 0 : index
    %c0_19 = arith.constant 0 : index
    %17 = vector.load %arg4[%c1, %c0_18, %c0_19] : memref<9x36x196xf32, #tpu.memory_space<vmem>>, vector<1x36x196xf32>
    %18 = vector.shape_cast %17 : vector<1x36x196xf32> to vector<36x196xf32>
    %c0_20 = arith.constant 0 : index
    %c0_21 = arith.constant 0 : index
    %19 = vector.load %arg13[%c0_20, %c0_21] : memref<196x256xf32, #tpu.memory_space<vmem>>, vector<196x256xf32>
    %cst_22 = arith.constant dense<0.000000e+00> : vector<36x256xf32>
    %20 = tpu.matmul %18, %19, %cst_22 {dimension_numbers = #tpu.dot_dimension_numbers<[1], [0], [0], [1], [0, 0, 1, 1], [], []>} : vector<36x196xf32>, vector<196x256xf32>, vector<36x256xf32> -> vector<36x256xf32>
    %c1_23 = arith.constant 1 : index
    %c0_24 = arith.constant 0 : index
    %c0_25 = arith.constant 0 : index
    %21 = vector.load %arg5[%c1_23, %c0_24, %c0_25] : memref<9x256x256xf32, #tpu.memory_space<vmem>>, vector<1x256x256xf32>
    %22 = vector.shape_cast %21 : vector<1x256x256xf32> to vector<256x256xf32>
    %cst_26 = arith.constant dense<0.000000e+00> : vector<36x256xf32>
    %23 = tpu.matmul %20, %22, %cst_26 {dimension_numbers = #tpu.dot_dimension_numbers<[1], [0], [0], [1], [0, 0, 1, 1], [], []>} : vector<36x256xf32>, vector<256x256xf32>, vector<36x256xf32> -> vector<36x256xf32>
    %24 = arith.addf %16, %23 : vector<36x256xf32>
    %c2 = arith.constant 2 : index
    %c0_27 = arith.constant 0 : index
    %c0_28 = arith.constant 0 : index
    %25 = vector.load %arg4[%c2, %c0_27, %c0_28] : memref<9x36x196xf32, #tpu.memory_space<vmem>>, vector<1x36x196xf32>
    %26 = vector.shape_cast %25 : vector<1x36x196xf32> to vector<36x196xf32>
    %c0_29 = arith.constant 0 : index
    %c0_30 = arith.constant 0 : index
    %27 = vector.load %arg13[%c0_29, %c0_30] : memref<196x256xf32, #tpu.memory_space<vmem>>, vector<196x256xf32>
    %cst_31 = arith.constant dense<0.000000e+00> : vector<36x256xf32>
    %28 = tpu.matmul %26, %27, %cst_31 {dimension_numbers = #tpu.dot_dimension_numbers<[1], [0], [0], [1], [0, 0, 1, 1], [], []>} : vector<36x196xf32>, vector<196x256xf32>, vector<36x256xf32> -> vector<36x256xf32>
    %c2_32 = arith.constant 2 : index
    %c0_33 = arith.constant 0 : index
    %c0_34 = arith.constant 0 : index
    %29 = vector.load %arg5[%c2_32, %c0_33, %c0_34] : memref<9x256x256xf32, #tpu.memory_space<vmem>>, vector<1x256x256xf32>
    %30 = vector.shape_cast %29 : vector<1x256x256xf32> to vector<256x256xf32>
    %cst_35 = arith.constant dense<0.000000e+00> : vector<36x256xf32>
    %31 = tpu.matmul %28, %30, %cst_35 {dimension_numbers = #tpu.dot_dimension_numbers<[1], [0], [0], [1], [0, 0, 1, 1], [], []>} : vector<36x256xf32>, vector<256x256xf32>, vector<36x256xf32> -> vector<36x256xf32>
    %32 = arith.addf %24, %31 : vector<36x256xf32>
    %c3 = arith.constant 3 : index
    %c0_36 = arith.constant 0 : index
    %c0_37 = arith.constant 0 : index
    %33 = vector.load %arg4[%c3, %c0_36, %c0_37] : memref<9x36x196xf32, #tpu.memory_space<vmem>>, vector<1x36x196xf32>
    %34 = vector.shape_cast %33 : vector<1x36x196xf32> to vector<36x196xf32>
    %c0_38 = arith.constant 0 : index
    %c0_39 = arith.constant 0 : index
    %35 = vector.load %arg13[%c0_38, %c0_39] : memref<196x256xf32, #tpu.memory_space<vmem>>, vector<196x256xf32>
    %cst_40 = arith.constant dense<0.000000e+00> : vector<36x256xf32>
    %36 = tpu.matmul %34, %35, %cst_40 {dimension_numbers = #tpu.dot_dimension_numbers<[1], [0], [0], [1], [0, 0, 1, 1], [], []>} : vector<36x196xf32>, vector<196x256xf32>, vector<36x256xf32> -> vector<36x256xf32>
    %c3_41 = arith.constant 3 : index
    %c0_42 = arith.constant 0 : index
    %c0_43 = arith.constant 0 : index
    %37 = vector.load %arg5[%c3_41, %c0_42, %c0_43] : memref<9x256x256xf32, #tpu.memory_space<vmem>>, vector<1x256x256xf32>
    %38 = vector.shape_cast %37 : vector<1x256x256xf32> to vector<256x256xf32>
    %cst_44 = arith.constant dense<0.000000e+00> : vector<36x256xf32>
    %39 = tpu.matmul %36, %38, %cst_44 {dimension_numbers = #tpu.dot_dimension_numbers<[1], [0], [0], [1], [0, 0, 1, 1], [], []>} : vector<36x256xf32>, vector<256x256xf32>, vector<36x256xf32> -> vector<36x256xf32>
    %40 = arith.addf %32, %39 : vector<36x256xf32>
    %c4 = arith.constant 4 : index
    %c0_45 = arith.constant 0 : index
    %c0_46 = arith.constant 0 : index
    %41 = vector.load %arg4[%c4, %c0_45, %c0_46] : memref<9x36x196xf32, #tpu.memory_space<vmem>>, vector<1x36x196xf32>
    %42 = vector.shape_cast %41 : vector<1x36x196xf32> to vector<36x196xf32>
    %c0_47 = arith.constant 0 : index
    %c0_48 = arith.constant 0 : index
    %43 = vector.load %arg13[%c0_47, %c0_48] : memref<196x256xf32, #tpu.memory_space<vmem>>, vector<196x256xf32>
    %cst_49 = arith.constant dense<0.000000e+00> : vector<36x256xf32>
    %44 = tpu.matmul %42, %43, %cst_49 {dimension_numbers = #tpu.dot_dimension_numbers<[1], [0], [0], [1], [0, 0, 1, 1], [], []>} : vector<36x196xf32>, vector<196x256xf32>, vector<36x256xf32> -> vector<36x256xf32>
    %c4_50 = arith.constant 4 : index
    %c0_51 = arith.constant 0 : index
    %c0_52 = arith.constant 0 : index
    %45 = vector.load %arg5[%c4_50, %c0_51, %c0_52] : memref<9x256x256xf32, #tpu.memory_space<vmem>>, vector<1x256x256xf32>
    %46 = vector.shape_cast %45 : vector<1x256x256xf32> to vector<256x256xf32>
    %cst_53 = arith.constant dense<0.000000e+00> : vector<36x256xf32>
    %47 = tpu.matmul %44, %46, %cst_53 {dimension_numbers = #tpu.dot_dimension_numbers<[1], [0], [0], [1], [0, 0, 1, 1], [], []>} : vector<36x256xf32>, vector<256x256xf32>, vector<36x256xf32> -> vector<36x256xf32>
    %48 = arith.addf %40, %47 : vector<36x256xf32>
    %c5 = arith.constant 5 : index
    %c0_54 = arith.constant 0 : index
    %c0_55 = arith.constant 0 : index
    %49 = vector.load %arg4[%c5, %c0_54, %c0_55] : memref<9x36x196xf32, #tpu.memory_space<vmem>>, vector<1x36x196xf32>
    %50 = vector.shape_cast %49 : vector<1x36x196xf32> to vector<36x196xf32>
    %c0_56 = arith.constant 0 : index
    %c0_57 = arith.constant 0 : index
    %51 = vector.load %arg13[%c0_56, %c0_57] : memref<196x256xf32, #tpu.memory_space<vmem>>, vector<196x256xf32>
    %cst_58 = arith.constant dense<0.000000e+00> : vector<36x256xf32>
    %52 = tpu.matmul %50, %51, %cst_58 {dimension_numbers = #tpu.dot_dimension_numbers<[1], [0], [0], [1], [0, 0, 1, 1], [], []>} : vector<36x196xf32>, vector<196x256xf32>, vector<36x256xf32> -> vector<36x256xf32>
    %c5_59 = arith.constant 5 : index
    %c0_60 = arith.constant 0 : index
    %c0_61 = arith.constant 0 : index
    %53 = vector.load %arg5[%c5_59, %c0_60, %c0_61] : memref<9x256x256xf32, #tpu.memory_space<vmem>>, vector<1x256x256xf32>
    %54 = vector.shape_cast %53 : vector<1x256x256xf32> to vector<256x256xf32>
    %cst_62 = arith.constant dense<0.000000e+00> : vector<36x256xf32>
    %55 = tpu.matmul %52, %54, %cst_62 {dimension_numbers = #tpu.dot_dimension_numbers<[1], [0], [0], [1], [0, 0, 1, 1], [], []>} : vector<36x256xf32>, vector<256x256xf32>, vector<36x256xf32> -> vector<36x256xf32>
    %56 = arith.addf %48, %55 : vector<36x256xf32>
    %c6 = arith.constant 6 : index
    %c0_63 = arith.constant 0 : index
    %c0_64 = arith.constant 0 : index
    %57 = vector.load %arg4[%c6, %c0_63, %c0_64] : memref<9x36x196xf32, #tpu.memory_space<vmem>>, vector<1x36x196xf32>
    %58 = vector.shape_cast %57 : vector<1x36x196xf32> to vector<36x196xf32>
    %c0_65 = arith.constant 0 : index
    %c0_66 = arith.constant 0 : index
    %59 = vector.load %arg13[%c0_65, %c0_66] : memref<196x256xf32, #tpu.memory_space<vmem>>, vector<196x256xf32>
    %cst_67 = arith.constant dense<0.000000e+00> : vector<36x256xf32>
    %60 = tpu.matmul %58, %59, %cst_67 {dimension_numbers = #tpu.dot_dimension_numbers<[1], [0], [0], [1], [0, 0, 1, 1], [], []>} : vector<36x196xf32>, vector<196x256xf32>, vector<36x256xf32> -> vector<36x256xf32>
    %c6_68 = arith.constant 6 : index
    %c0_69 = arith.constant 0 : index
    %c0_70 = arith.constant 0 : index
    %61 = vector.load %arg5[%c6_68, %c0_69, %c0_70] : memref<9x256x256xf32, #tpu.memory_space<vmem>>, vector<1x256x256xf32>
    %62 = vector.shape_cast %61 : vector<1x256x256xf32> to vector<256x256xf32>
    %cst_71 = arith.constant dense<0.000000e+00> : vector<36x256xf32>
    %63 = tpu.matmul %60, %62, %cst_71 {dimension_numbers = #tpu.dot_dimension_numbers<[1], [0], [0], [1], [0, 0, 1, 1], [], []>} : vector<36x256xf32>, vector<256x256xf32>, vector<36x256xf32> -> vector<36x256xf32>
    %64 = arith.addf %56, %63 : vector<36x256xf32>
    %c7 = arith.constant 7 : index
    %c0_72 = arith.constant 0 : index
    %c0_73 = arith.constant 0 : index
    %65 = vector.load %arg4[%c7, %c0_72, %c0_73] : memref<9x36x196xf32, #tpu.memory_space<vmem>>, vector<1x36x196xf32>
    %66 = vector.shape_cast %65 : vector<1x36x196xf32> to vector<36x196xf32>
    %c0_74 = arith.constant 0 : index
    %c0_75 = arith.constant 0 : index
    %67 = vector.load %arg13[%c0_74, %c0_75] : memref<196x256xf32, #tpu.memory_space<vmem>>, vector<196x256xf32>
    %cst_76 = arith.constant dense<0.000000e+00> : vector<36x256xf32>
    %68 = tpu.matmul %66, %67, %cst_76 {dimension_numbers = #tpu.dot_dimension_numbers<[1], [0], [0], [1], [0, 0, 1, 1], [], []>} : vector<36x196xf32>, vector<196x256xf32>, vector<36x256xf32> -> vector<36x256xf32>
    %c7_77 = arith.constant 7 : index
    %c0_78 = arith.constant 0 : index
    %c0_79 = arith.constant 0 : index
    %69 = vector.load %arg5[%c7_77, %c0_78, %c0_79] : memref<9x256x256xf32, #tpu.memory_space<vmem>>, vector<1x256x256xf32>
    %70 = vector.shape_cast %69 : vector<1x256x256xf32> to vector<256x256xf32>
    %cst_80 = arith.constant dense<0.000000e+00> : vector<36x256xf32>
    %71 = tpu.matmul %68, %70, %cst_80 {dimension_numbers = #tpu.dot_dimension_numbers<[1], [0], [0], [1], [0, 0, 1, 1], [], []>} : vector<36x256xf32>, vector<256x256xf32>, vector<36x256xf32> -> vector<36x256xf32>
    %72 = arith.addf %64, %71 : vector<36x256xf32>
    %c8 = arith.constant 8 : index
    %c0_81 = arith.constant 0 : index
    %c0_82 = arith.constant 0 : index
    %73 = vector.load %arg4[%c8, %c0_81, %c0_82] : memref<9x36x196xf32, #tpu.memory_space<vmem>>, vector<1x36x196xf32>
    %74 = vector.shape_cast %73 : vector<1x36x196xf32> to vector<36x196xf32>
    %c0_83 = arith.constant 0 : index
    %c0_84 = arith.constant 0 : index
    %75 = vector.load %arg13[%c0_83, %c0_84] : memref<196x256xf32, #tpu.memory_space<vmem>>, vector<196x256xf32>
    %cst_85 = arith.constant dense<0.000000e+00> : vector<36x256xf32>
    %76 = tpu.matmul %74, %75, %cst_85 {dimension_numbers = #tpu.dot_dimension_numbers<[1], [0], [0], [1], [0, 0, 1, 1], [], []>} : vector<36x196xf32>, vector<196x256xf32>, vector<36x256xf32> -> vector<36x256xf32>
    %c8_86 = arith.constant 8 : index
    %c0_87 = arith.constant 0 : index
    %c0_88 = arith.constant 0 : index
    %77 = vector.load %arg5[%c8_86, %c0_87, %c0_88] : memref<9x256x256xf32, #tpu.memory_space<vmem>>, vector<1x256x256xf32>
    %78 = vector.shape_cast %77 : vector<1x256x256xf32> to vector<256x256xf32>
    %cst_89 = arith.constant dense<0.000000e+00> : vector<36x256xf32>
    %79 = tpu.matmul %76, %78, %cst_89 {dimension_numbers = #tpu.dot_dimension_numbers<[1], [0], [0], [1], [0, 0, 1, 1], [], []>} : vector<36x256xf32>, vector<256x256xf32>, vector<36x256xf32> -> vector<36x256xf32>
    %80 = arith.addf %72, %79 : vector<36x256xf32>
    %c0_90 = arith.constant 0 : index
    %c0_91 = arith.constant 0 : index
    %81 = vector.load %arg6[%c0_90, %c0_91] : memref<1x256xf32, #tpu.memory_space<vmem>>, vector<1x256xf32>
    %82 = vector.broadcast %81 : vector<1x256xf32> to vector<36x256xf32>
    %83 = arith.addf %80, %82 : vector<36x256xf32>
    %cst_92 = arith.constant 0.00999999977 : f32
    %84 = vector.broadcast %cst_92 : f32 to vector<36x256xf32>
    %85 = arith.mulf %84, %83 : vector<36x256xf32>
    %86 = arith.maximumf %83, %85 : vector<36x256xf32>
    %c0_93 = arith.constant 0 : index
    %c0_94 = arith.constant 0 : index
    %87 = vector.load %arg14[%c0_93, %c0_94] : memref<36x256xf32, #tpu.memory_space<vmem>>, vector<36x256xf32>
    tpu.vector_store %arg14[%c0_93, %c0_94], %86 {strides = array<i32>} : memref<36x256xf32, #tpu.memory_space<vmem>>, vector<36x256xf32>,
    %c0_95 = arith.constant 0 : index
    %c0_96 = arith.constant 0 : index
    %c0_97 = arith.constant 0 : index
    %88 = vector.load %arg7[%c0_95, %c0_96, %c0_97] : memref<16x128x36xf32, #tpu.memory_space<vmem>>, vector<1x128x36xf32>
    %89 = vector.shape_cast %88 : vector<1x128x36xf32> to vector<128x36xf32>
    %c0_98 = arith.constant 0 : index
    %c0_99 = arith.constant 0 : index
    %90 = vector.load %arg14[%c0_98, %c0_99] : memref<36x256xf32, #tpu.memory_space<vmem>>, vector<36x16xf32>
    %cst_100 = arith.constant dense<0.000000e+00> : vector<128x16xf32>
    %91 = tpu.matmul %89, %90, %cst_100 {dimension_numbers = #tpu.dot_dimension_numbers<[1], [0], [0], [1], [0, 0, 1, 1], [], []>} : vector<128x36xf32>, vector<36x16xf32>, vector<128x16xf32> -> vector<128x16xf32>
    %c1_101 = arith.constant 1 : index
    %c0_102 = arith.constant 0 : index
    %c0_103 = arith.constant 0 : index
    %92 = vector.load %arg7[%c1_101, %c0_102, %c0_103] : memref<16x128x36xf32, #tpu.memory_space<vmem>>, vector<1x128x36xf32>
    %93 = vector.shape_cast %92 : vector<1x128x36xf32> to vector<128x36xf32>
    %c0_104 = arith.constant 0 : index
    %c16 = arith.constant 16 : index
    %94 = vector.load %arg14[%c0_104, %c16] : memref<36x256xf32, #tpu.memory_space<vmem>>, vector<36x16xf32>
    %cst_105 = arith.constant dense<0.000000e+00> : vector<128x16xf32>
    %95 = tpu.matmul %93, %94, %cst_105 {dimension_numbers = #tpu.dot_dimension_numbers<[1], [0], [0], [1], [0, 0, 1, 1], [], []>} : vector<128x36xf32>, vector<36x16xf32>, vector<128x16xf32> -> vector<128x16xf32>
    %96 = arith.addf %91, %95 : vector<128x16xf32>
    %c2_106 = arith.constant 2 : index
    %c0_107 = arith.constant 0 : index
    %c0_108 = arith.constant 0 : index
    %97 = vector.load %arg7[%c2_106, %c0_107, %c0_108] : memref<16x128x36xf32, #tpu.memory_space<vmem>>, vector<1x128x36xf32>
    %98 = vector.shape_cast %97 : vector<1x128x36xf32> to vector<128x36xf32>
    %c0_109 = arith.constant 0 : index
    %c32 = arith.constant 32 : index
    %99 = vector.load %arg14[%c0_109, %c32] : memref<36x256xf32, #tpu.memory_space<vmem>>, vector<36x16xf32>
    %cst_110 = arith.constant dense<0.000000e+00> : vector<128x16xf32>
    %100 = tpu.matmul %98, %99, %cst_110 {dimension_numbers = #tpu.dot_dimension_numbers<[1], [0], [0], [1], [0, 0, 1, 1], [], []>} : vector<128x36xf32>, vector<36x16xf32>, vector<128x16xf32> -> vector<128x16xf32>
    %101 = arith.addf %96, %100 : vector<128x16xf32>
    %c3_111 = arith.constant 3 : index
    %c0_112 = arith.constant 0 : index
    %c0_113 = arith.constant 0 : index
    %102 = vector.load %arg7[%c3_111, %c0_112, %c0_113] : memref<16x128x36xf32, #tpu.memory_space<vmem>>, vector<1x128x36xf32>
    %103 = vector.shape_cast %102 : vector<1x128x36xf32> to vector<128x36xf32>
    %c0_114 = arith.constant 0 : index
    %c48 = arith.constant 48 : index
    %104 = vector.load %arg14[%c0_114, %c48] : memref<36x256xf32, #tpu.memory_space<vmem>>, vector<36x16xf32>
    %cst_115 = arith.constant dense<0.000000e+00> : vector<128x16xf32>
    %105 = tpu.matmul %103, %104, %cst_115 {dimension_numbers = #tpu.dot_dimension_numbers<[1], [0], [0], [1], [0, 0, 1, 1], [], []>} : vector<128x36xf32>, vector<36x16xf32>, vector<128x16xf32> -> vector<128x16xf32>
    %106 = arith.addf %101, %105 : vector<128x16xf32>
    %c4_116 = arith.constant 4 : index
    %c0_117 = arith.constant 0 : index
    %c0_118 = arith.constant 0 : index
    %107 = vector.load %arg7[%c4_116, %c0_117, %c0_118] : memref<16x128x36xf32, #tpu.memory_space<vmem>>, vector<1x128x36xf32>
    %108 = vector.shape_cast %107 : vector<1x128x36xf32> to vector<128x36xf32>
    %c0_119 = arith.constant 0 : index
    %c64 = arith.constant 64 : index
    %109 = vector.load %arg14[%c0_119, %c64] : memref<36x256xf32, #tpu.memory_space<vmem>>, vector<36x16xf32>
    %cst_120 = arith.constant dense<0.000000e+00> : vector<128x16xf32>
    %110 = tpu.matmul %108, %109, %cst_120 {dimension_numbers = #tpu.dot_dimension_numbers<[1], [0], [0], [1], [0, 0, 1, 1], [], []>} : vector<128x36xf32>, vector<36x16xf32>, vector<128x16xf32> -> vector<128x16xf32>
    %111 = arith.addf %106, %110 : vector<128x16xf32>
    %c5_121 = arith.constant 5 : index
    %c0_122 = arith.constant 0 : index
    %c0_123 = arith.constant 0 : index
    %112 = vector.load %arg7[%c5_121, %c0_122, %c0_123] : memref<16x128x36xf32, #tpu.memory_space<vmem>>, vector<1x128x36xf32>
    %113 = vector.shape_cast %112 : vector<1x128x36xf32> to vector<128x36xf32>
    %c0_124 = arith.constant 0 : index
    %c80 = arith.constant 80 : index
    %114 = vector.load %arg14[%c0_124, %c80] : memref<36x256xf32, #tpu.memory_space<vmem>>, vector<36x16xf32>
    %cst_125 = arith.constant dense<0.000000e+00> : vector<128x16xf32>
    %115 = tpu.matmul %113, %114, %cst_125 {dimension_numbers = #tpu.dot_dimension_numbers<[1], [0], [0], [1], [0, 0, 1, 1], [], []>} : vector<128x36xf32>, vector<36x16xf32>, vector<128x16xf32> -> vector<128x16xf32>
    %116 = arith.addf %111, %115 : vector<128x16xf32>
    %c6_126 = arith.constant 6 : index
    %c0_127 = arith.constant 0 : index
    %c0_128 = arith.constant 0 : index
    %117 = vector.load %arg7[%c6_126, %c0_127, %c0_128] : memref<16x128x36xf32, #tpu.memory_space<vmem>>, vector<1x128x36xf32>
    %118 = vector.shape_cast %117 : vector<1x128x36xf32> to vector<128x36xf32>
    %c0_129 = arith.constant 0 : index
    %c96 = arith.constant 96 : index
    %119 = vector.load %arg14[%c0_129, %c96] : memref<36x256xf32, #tpu.memory_space<vmem>>, vector<36x16xf32>
    %cst_130 = arith.constant dense<0.000000e+00> : vector<128x16xf32>
    %120 = tpu.matmul %118, %119, %cst_130 {dimension_numbers = #tpu.dot_dimension_numbers<[1], [0], [0], [1], [0, 0, 1, 1], [], []>} : vector<128x36xf32>, vector<36x16xf32>, vector<128x16xf32> -> vector<128x16xf32>
    %121 = arith.addf %116, %120 : vector<128x16xf32>
    %c7_131 = arith.constant 7 : index
    %c0_132 = arith.constant 0 : index
    %c0_133 = arith.constant 0 : index
    %122 = vector.load %arg7[%c7_131, %c0_132, %c0_133] : memref<16x128x36xf32, #tpu.memory_space<vmem>>, vector<1x128x36xf32>
    %123 = vector.shape_cast %122 : vector<1x128x36xf32> to vector<128x36xf32>
    %c0_134 = arith.constant 0 : index
    %c112 = arith.constant 112 : index
    %124 = vector.load %arg14[%c0_134, %c112] : memref<36x256xf32, #tpu.memory_space<vmem>>, vector<36x16xf32>
    %cst_135 = arith.constant dense<0.000000e+00> : vector<128x16xf32>
    %125 = tpu.matmul %123, %124, %cst_135 {dimension_numbers = #tpu.dot_dimension_numbers<[1], [0], [0], [1], [0, 0, 1, 1], [], []>} : vector<128x36xf32>, vector<36x16xf32>, vector<128x16xf32> -> vector<128x16xf32>
    %126 = arith.addf %121, %125 : vector<128x16xf32>
    %c8_136 = arith.constant 8 : index
    %c0_137 = arith.constant 0 : index
    %c0_138 = arith.constant 0 : index
    %127 = vector.load %arg7[%c8_136, %c0_137, %c0_138] : memref<16x128x36xf32, #tpu.memory_space<vmem>>, vector<1x128x36xf32>
    %128 = vector.shape_cast %127 : vector<1x128x36xf32> to vector<128x36xf32>
    %c0_139 = arith.constant 0 : index
    %c128 = arith.constant 128 : index
    %129 = vector.load %arg14[%c0_139, %c128] : memref<36x256xf32, #tpu.memory_space<vmem>>, vector<36x16xf32>
    %cst_140 = arith.constant dense<0.000000e+00> : vector<128x16xf32>
    %130 = tpu.matmul %128, %129, %cst_140 {dimension_numbers = #tpu.dot_dimension_numbers<[1], [0], [0], [1], [0, 0, 1, 1], [], []>} : vector<128x36xf32>, vector<36x16xf32>, vector<128x16xf32> -> vector<128x16xf32>
    %131 = arith.addf %126, %130 : vector<128x16xf32>
    %c9 = arith.constant 9 : index
    %c0_141 = arith.constant 0 : index
    %c0_142 = arith.constant 0 : index
    %132 = vector.load %arg7[%c9, %c0_141, %c0_142] : memref<16x128x36xf32, #tpu.memory_space<vmem>>, vector<1x128x36xf32>
    %133 = vector.shape_cast %132 : vector<1x128x36xf32> to vector<128x36xf32>
    %c0_143 = arith.constant 0 : index
    %c144 = arith.constant 144 : index
    %134 = vector.load %arg14[%c0_143, %c144] : memref<36x256xf32, #tpu.memory_space<vmem>>, vector<36x16xf32>
    %cst_144 = arith.constant dense<0.000000e+00> : vector<128x16xf32>
    %135 = tpu.matmul %133, %134, %cst_144 {dimension_numbers = #tpu.dot_dimension_numbers<[1], [0], [0], [1], [0, 0, 1, 1], [], []>} : vector<128x36xf32>, vector<36x16xf32>, vector<128x16xf32> -> vector<128x16xf32>
    %136 = arith.addf %131, %135 : vector<128x16xf32>
    %c10 = arith.constant 10 : index
    %c0_145 = arith.constant 0 : index
    %c0_146 = arith.constant 0 : index
    %137 = vector.load %arg7[%c10, %c0_145, %c0_146] : memref<16x128x36xf32, #tpu.memory_space<vmem>>, vector<1x128x36xf32>
    %138 = vector.shape_cast %137 : vector<1x128x36xf32> to vector<128x36xf32>
    %c0_147 = arith.constant 0 : index
    %c160 = arith.constant 160 : index
    %139 = vector.load %arg14[%c0_147, %c160] : memref<36x256xf32, #tpu.memory_space<vmem>>, vector<36x16xf32>
    %cst_148 = arith.constant dense<0.000000e+00> : vector<128x16xf32>
    %140 = tpu.matmul %138, %139, %cst_148 {dimension_numbers = #tpu.dot_dimension_numbers<[1], [0], [0], [1], [0, 0, 1, 1], [], []>} : vector<128x36xf32>, vector<36x16xf32>, vector<128x16xf32> -> vector<128x16xf32>
    %141 = arith.addf %136, %140 : vector<128x16xf32>
    %c11 = arith.constant 11 : index
    %c0_149 = arith.constant 0 : index
    %c0_150 = arith.constant 0 : index
    %142 = vector.load %arg7[%c11, %c0_149, %c0_150] : memref<16x128x36xf32, #tpu.memory_space<vmem>>, vector<1x128x36xf32>
    %143 = vector.shape_cast %142 : vector<1x128x36xf32> to vector<128x36xf32>
    %c0_151 = arith.constant 0 : index
    %c176 = arith.constant 176 : index
    %144 = vector.load %arg14[%c0_151, %c176] : memref<36x256xf32, #tpu.memory_space<vmem>>, vector<36x16xf32>
    %cst_152 = arith.constant dense<0.000000e+00> : vector<128x16xf32>
    %145 = tpu.matmul %143, %144, %cst_152 {dimension_numbers = #tpu.dot_dimension_numbers<[1], [0], [0], [1], [0, 0, 1, 1], [], []>} : vector<128x36xf32>, vector<36x16xf32>, vector<128x16xf32> -> vector<128x16xf32>
    %146 = arith.addf %141, %145 : vector<128x16xf32>
    %c12 = arith.constant 12 : index
    %c0_153 = arith.constant 0 : index
    %c0_154 = arith.constant 0 : index
    %147 = vector.load %arg7[%c12, %c0_153, %c0_154] : memref<16x128x36xf32, #tpu.memory_space<vmem>>, vector<1x128x36xf32>
    %148 = vector.shape_cast %147 : vector<1x128x36xf32> to vector<128x36xf32>
    %c0_155 = arith.constant 0 : index
    %c192 = arith.constant 192 : index
    %149 = vector.load %arg14[%c0_155, %c192] : memref<36x256xf32, #tpu.memory_space<vmem>>, vector<36x16xf32>
    %cst_156 = arith.constant dense<0.000000e+00> : vector<128x16xf32>
    %150 = tpu.matmul %148, %149, %cst_156 {dimension_numbers = #tpu.dot_dimension_numbers<[1], [0], [0], [1], [0, 0, 1, 1], [], []>} : vector<128x36xf32>, vector<36x16xf32>, vector<128x16xf32> -> vector<128x16xf32>
    %151 = arith.addf %146, %150 : vector<128x16xf32>
    %c13 = arith.constant 13 : index
    %c0_157 = arith.constant 0 : index
    %c0_158 = arith.constant 0 : index
    %152 = vector.load %arg7[%c13, %c0_157, %c0_158] : memref<16x128x36xf32, #tpu.memory_space<vmem>>, vector<1x128x36xf32>
    %153 = vector.shape_cast %152 : vector<1x128x36xf32> to vector<128x36xf32>
    %c0_159 = arith.constant 0 : index
    %c208 = arith.constant 208 : index
    %154 = vector.load %arg14[%c0_159, %c208] : memref<36x256xf32, #tpu.memory_space<vmem>>, vector<36x16xf32>
    %cst_160 = arith.constant dense<0.000000e+00> : vector<128x16xf32>
    %155 = tpu.matmul %153, %154, %cst_160 {dimension_numbers = #tpu.dot_dimension_numbers<[1], [0], [0], [1], [0, 0, 1, 1], [], []>} : vector<128x36xf32>, vector<36x16xf32>, vector<128x16xf32> -> vector<128x16xf32>
    %156 = arith.addf %151, %155 : vector<128x16xf32>
    %c14 = arith.constant 14 : index
    %c0_161 = arith.constant 0 : index
    %c0_162 = arith.constant 0 : index
    %157 = vector.load %arg7[%c14, %c0_161, %c0_162] : memref<16x128x36xf32, #tpu.memory_space<vmem>>, vector<1x128x36xf32>
    %158 = vector.shape_cast %157 : vector<1x128x36xf32> to vector<128x36xf32>
    %c0_163 = arith.constant 0 : index
    %c224 = arith.constant 224 : index
    %159 = vector.load %arg14[%c0_163, %c224] : memref<36x256xf32, #tpu.memory_space<vmem>>, vector<36x16xf32>
    %cst_164 = arith.constant dense<0.000000e+00> : vector<128x16xf32>
    %160 = tpu.matmul %158, %159, %cst_164 {dimension_numbers = #tpu.dot_dimension_numbers<[1], [0], [0], [1], [0, 0, 1, 1], [], []>} : vector<128x36xf32>, vector<36x16xf32>, vector<128x16xf32> -> vector<128x16xf32>
    %161 = arith.addf %156, %160 : vector<128x16xf32>
    %c15 = arith.constant 15 : index
    %c0_165 = arith.constant 0 : index
    %c0_166 = arith.constant 0 : index
    %162 = vector.load %arg7[%c15, %c0_165, %c0_166] : memref<16x128x36xf32, #tpu.memory_space<vmem>>, vector<1x128x36xf32>
    %163 = vector.shape_cast %162 : vector<1x128x36xf32> to vector<128x36xf32>
    %c0_167 = arith.constant 0 : index
    %c240 = arith.constant 240 : index
    %164 = vector.load %arg14[%c0_167, %c240] : memref<36x256xf32, #tpu.memory_space<vmem>>, vector<36x16xf32>
    %cst_168 = arith.constant dense<0.000000e+00> : vector<128x16xf32>
    %165 = tpu.matmul %163, %164, %cst_168 {dimension_numbers = #tpu.dot_dimension_numbers<[1], [0], [0], [1], [0, 0, 1, 1], [], []>} : vector<128x36xf32>, vector<36x16xf32>, vector<128x16xf32> -> vector<128x16xf32>
    %166 = arith.addf %161, %165 : vector<128x16xf32>
    %c0_169 = arith.constant 0 : index
    %c0_170 = arith.constant 0 : index
    %167 = vector.load %arg8[%c0_169, %c0_170] : memref<16x16xf32, #tpu.memory_space<vmem>>, vector<16x16xf32>
    %cst_171 = arith.constant dense<0.000000e+00> : vector<16x128xf32>
    %168 = tpu.matmul %167, %166, %cst_171 {dimension_numbers = #tpu.dot_dimension_numbers<[1], [1], [0], [0], [0, 0, 1, 0], [], []>} : vector<16x16xf32>, vector<128x16xf32>, vector<16x128xf32> -> vector<16x128xf32>
    %c0_172 = arith.constant 0 : index
    %c0_173 = arith.constant 0 : index
    %169 = vector.load %arg9[%c0_172, %c0_173] : memref<16x128xf32, #tpu.memory_space<vmem>>, vector<16x128xf32>
    %170 = arith.addf %168, %169 : vector<16x128xf32>
    %c0_174 = arith.constant 0 : index
    %c0_175 = arith.constant 0 : index
    %171 = vector.load %arg15[%c0_174, %c0_175] : memref<16x128xf32, #tpu.memory_space<vmem>>, vector<16x128xf32>
    tpu.vector_store %arg15[%c0_174, %c0_175], %170 {strides = array<i32>} : memref<16x128xf32, #tpu.memory_space<vmem>>, vector<16x128xf32>,
    %c0_176 = arith.constant 0 : index
    %c0_177 = arith.constant 0 : index
    %172 = vector.load %arg10[%c0_176, %c0_177] : memref<32x96xf32, #tpu.memory_space<vmem>>, vector<32x96xf32>
    %c0_178 = arith.constant 0 : index
    %c0_179 = arith.constant 0 : index
    %173 = vector.load %arg11[%c0_178, %c0_179] : memref<1x96xf32, #tpu.memory_space<vmem>>, vector<1x96xf32>
    %cst_180 = arith.constant 0.000000e+00 : f32
    %174 = vector.broadcast %cst_180 : f32 to vector<2x32xf32>
    %c0_181 = arith.constant 0 : index
    %c0_182 = arith.constant 0 : index
    %175 = vector.load %arg15[%c0_181, %c0_182] : memref<16x128xf32, #tpu.memory_space<vmem>>, vector<2x96xf32>
    %cst_183 = arith.constant dense<0.000000e+00> : vector<2x96xf32>
    %176 = tpu.matmul %174, %172, %cst_183 {dimension_numbers = #tpu.dot_dimension_numbers<[1], [0], [0], [1], [0, 0, 1, 1], [], []>} : vector<2x32xf32>, vector<32x96xf32>, vector<2x96xf32> -> vector<2x96xf32>
    %177 = vector.broadcast %173 : vector<1x96xf32> to vector<2x96xf32>
    %178 = arith.addf %176, %177 : vector<2x96xf32>
    %179 = vector.extract_strided_slice %175 {offsets = [0, 0], sizes = [2, 32], strides = [1, 1]} : vector<2x96xf32> to vector<2x32xf32>
    %180 = vector.extract_strided_slice %178 {offsets = [0, 0], sizes = [2, 32], strides = [1, 1]} : vector<2x96xf32> to vector<2x32xf32>
    %181 = arith.addf %179, %180 : vector<2x32xf32>
    %182 = arith.negf %181 : vector<2x32xf32>
    %183 = math.exp %182 : vector<2x32xf32>
    %cst_184 = arith.constant 1.000000e+00 : f32
    %184 = vector.broadcast %cst_184 : f32 to vector<2x32xf32>
    %185 = arith.addf %184, %183 : vector<2x32xf32>
    %186 = arith.divf %184, %185 : vector<2x32xf32>
    %187 = vector.extract_strided_slice %175 {offsets = [0, 32], sizes = [2, 32], strides = [1, 1]} : vector<2x96xf32> to vector<2x32xf32>
    %188 = vector.extract_strided_slice %178 {offsets = [0, 32], sizes = [2, 32], strides = [1, 1]} : vector<2x96xf32> to vector<2x32xf32>
    %189 = arith.addf %187, %188 : vector<2x32xf32>
    %190 = arith.negf %189 : vector<2x32xf32>
    %191 = math.exp %190 : vector<2x32xf32>
    %cst_185 = arith.constant 1.000000e+00 : f32
    %192 = vector.broadcast %cst_185 : f32 to vector<2x32xf32>
    %193 = arith.addf %192, %191 : vector<2x32xf32>
    %194 = arith.divf %192, %193 : vector<2x32xf32>
    %195 = vector.extract_strided_slice %175 {offsets = [0, 64], sizes = [2, 32], strides = [1, 1]} : vector<2x96xf32> to vector<2x32xf32>
    %196 = vector.extract_strided_slice %178 {offsets = [0, 64], sizes = [2, 32], strides = [1, 1]} : vector<2x96xf32> to vector<2x32xf32>
    %197 = arith.mulf %186, %196 : vector<2x32xf32>
    %198 = arith.addf %195, %197 : vector<2x32xf32>
    %199 = math.tanh %198 : vector<2x32xf32>
    %cst_186 = arith.constant 1.000000e+00 : f32
    %200 = vector.broadcast %cst_186 : f32 to vector<2x32xf32>
    %201 = arith.subf %200, %194 : vector<2x32xf32>
    %202 = arith.mulf %201, %199 : vector<2x32xf32>
    %203 = arith.mulf %194, %174 : vector<2x32xf32>
    %204 = arith.addf %202, %203 : vector<2x32xf32>
    %c2_187 = arith.constant 2 : index
    %c0_188 = arith.constant 0 : index
    %205 = vector.load %arg15[%c2_187, %c0_188] : memref<16x128xf32, #tpu.memory_space<vmem>>, vector<2x96xf32>
    %cst_189 = arith.constant dense<0.000000e+00> : vector<2x96xf32>
    %206 = tpu.matmul %204, %172, %cst_189 {dimension_numbers = #tpu.dot_dimension_numbers<[1], [0], [0], [1], [0, 0, 1, 1], [], []>} : vector<2x32xf32>, vector<32x96xf32>, vector<2x96xf32> -> vector<2x96xf32>
    %207 = vector.broadcast %173 : vector<1x96xf32> to vector<2x96xf32>
    %208 = arith.addf %206, %207 : vector<2x96xf32>
    %209 = vector.extract_strided_slice %205 {offsets = [0, 0], sizes = [2, 32], strides = [1, 1]} : vector<2x96xf32> to vector<2x32xf32>
    %210 = vector.extract_strided_slice %208 {offsets = [0, 0], sizes = [2, 32], strides = [1, 1]} : vector<2x96xf32> to vector<2x32xf32>
    %211 = arith.addf %209, %210 : vector<2x32xf32>
    %212 = arith.negf %211 : vector<2x32xf32>
    %213 = math.exp %212 : vector<2x32xf32>
    %cst_190 = arith.constant 1.000000e+00 : f32
    %214 = vector.broadcast %cst_190 : f32 to vector<2x32xf32>
    %215 = arith.addf %214, %213 : vector<2x32xf32>
    %216 = arith.divf %214, %215 : vector<2x32xf32>
    %217 = vector.extract_strided_slice %205 {offsets = [0, 32], sizes = [2, 32], strides = [1, 1]} : vector<2x96xf32> to vector<2x32xf32>
    %218 = vector.extract_strided_slice %208 {offsets = [0, 32], sizes = [2, 32], strides = [1, 1]} : vector<2x96xf32> to vector<2x32xf32>
    %219 = arith.addf %217, %218 : vector<2x32xf32>
    %220 = arith.negf %219 : vector<2x32xf32>
    %221 = math.exp %220 : vector<2x32xf32>
    %cst_191 = arith.constant 1.000000e+00 : f32
    %222 = vector.broadcast %cst_191 : f32 to vector<2x32xf32>
    %223 = arith.addf %222, %221 : vector<2x32xf32>
    %224 = arith.divf %222, %223 : vector<2x32xf32>
    %225 = vector.extract_strided_slice %205 {offsets = [0, 64], sizes = [2, 32], strides = [1, 1]} : vector<2x96xf32> to vector<2x32xf32>
    %226 = vector.extract_strided_slice %208 {offsets = [0, 64], sizes = [2, 32], strides = [1, 1]} : vector<2x96xf32> to vector<2x32xf32>
    %227 = arith.mulf %216, %226 : vector<2x32xf32>
    %228 = arith.addf %225, %227 : vector<2x32xf32>
    %229 = math.tanh %228 : vector<2x32xf32>
    %cst_192 = arith.constant 1.000000e+00 : f32
    %230 = vector.broadcast %cst_192 : f32 to vector<2x32xf32>
    %231 = arith.subf %230, %224 : vector<2x32xf32>
    %232 = arith.mulf %231, %229 : vector<2x32xf32>
    %233 = arith.mulf %224, %204 : vector<2x32xf32>
    %234 = arith.addf %232, %233 : vector<2x32xf32>
    %c4_193 = arith.constant 4 : index
    %c0_194 = arith.constant 0 : index
    %235 = vector.load %arg15[%c4_193, %c0_194] : memref<16x128xf32, #tpu.memory_space<vmem>>, vector<2x96xf32>
    %cst_195 = arith.constant dense<0.000000e+00> : vector<2x96xf32>
    %236 = tpu.matmul %234, %172, %cst_195 {dimension_numbers = #tpu.dot_dimension_numbers<[1], [0], [0], [1], [0, 0, 1, 1], [], []>} : vector<2x32xf32>, vector<32x96xf32>, vector<2x96xf32> -> vector<2x96xf32>
    %237 = vector.broadcast %173 : vector<1x96xf32> to vector<2x96xf32>
    %238 = arith.addf %236, %237 : vector<2x96xf32>
    %239 = vector.extract_strided_slice %235 {offsets = [0, 0], sizes = [2, 32], strides = [1, 1]} : vector<2x96xf32> to vector<2x32xf32>
    %240 = vector.extract_strided_slice %238 {offsets = [0, 0], sizes = [2, 32], strides = [1, 1]} : vector<2x96xf32> to vector<2x32xf32>
    %241 = arith.addf %239, %240 : vector<2x32xf32>
    %242 = arith.negf %241 : vector<2x32xf32>
    %243 = math.exp %242 : vector<2x32xf32>
    %cst_196 = arith.constant 1.000000e+00 : f32
    %244 = vector.broadcast %cst_196 : f32 to vector<2x32xf32>
    %245 = arith.addf %244, %243 : vector<2x32xf32>
    %246 = arith.divf %244, %245 : vector<2x32xf32>
    %247 = vector.extract_strided_slice %235 {offsets = [0, 32], sizes = [2, 32], strides = [1, 1]} : vector<2x96xf32> to vector<2x32xf32>
    %248 = vector.extract_strided_slice %238 {offsets = [0, 32], sizes = [2, 32], strides = [1, 1]} : vector<2x96xf32> to vector<2x32xf32>
    %249 = arith.addf %247, %248 : vector<2x32xf32>
    %250 = arith.negf %249 : vector<2x32xf32>
    %251 = math.exp %250 : vector<2x32xf32>
    %cst_197 = arith.constant 1.000000e+00 : f32
    %252 = vector.broadcast %cst_197 : f32 to vector<2x32xf32>
    %253 = arith.addf %252, %251 : vector<2x32xf32>
    %254 = arith.divf %252, %253 : vector<2x32xf32>
    %255 = vector.extract_strided_slice %235 {offsets = [0, 64], sizes = [2, 32], strides = [1, 1]} : vector<2x96xf32> to vector<2x32xf32>
    %256 = vector.extract_strided_slice %238 {offsets = [0, 64], sizes = [2, 32], strides = [1, 1]} : vector<2x96xf32> to vector<2x32xf32>
    %257 = arith.mulf %246, %256 : vector<2x32xf32>
    %258 = arith.addf %255, %257 : vector<2x32xf32>
    %259 = math.tanh %258 : vector<2x32xf32>
    %cst_198 = arith.constant 1.000000e+00 : f32
    %260 = vector.broadcast %cst_198 : f32 to vector<2x32xf32>
    %261 = arith.subf %260, %254 : vector<2x32xf32>
    %262 = arith.mulf %261, %259 : vector<2x32xf32>
    %263 = arith.mulf %254, %234 : vector<2x32xf32>
    %264 = arith.addf %262, %263 : vector<2x32xf32>
    %c6_199 = arith.constant 6 : index
    %c0_200 = arith.constant 0 : index
    %265 = vector.load %arg15[%c6_199, %c0_200] : memref<16x128xf32, #tpu.memory_space<vmem>>, vector<2x96xf32>
    %cst_201 = arith.constant dense<0.000000e+00> : vector<2x96xf32>
    %266 = tpu.matmul %264, %172, %cst_201 {dimension_numbers = #tpu.dot_dimension_numbers<[1], [0], [0], [1], [0, 0, 1, 1], [], []>} : vector<2x32xf32>, vector<32x96xf32>, vector<2x96xf32> -> vector<2x96xf32>
    %267 = vector.broadcast %173 : vector<1x96xf32> to vector<2x96xf32>
    %268 = arith.addf %266, %267 : vector<2x96xf32>
    %269 = vector.extract_strided_slice %265 {offsets = [0, 0], sizes = [2, 32], strides = [1, 1]} : vector<2x96xf32> to vector<2x32xf32>
    %270 = vector.extract_strided_slice %268 {offsets = [0, 0], sizes = [2, 32], strides = [1, 1]} : vector<2x96xf32> to vector<2x32xf32>
    %271 = arith.addf %269, %270 : vector<2x32xf32>
    %272 = arith.negf %271 : vector<2x32xf32>
    %273 = math.exp %272 : vector<2x32xf32>
    %cst_202 = arith.constant 1.000000e+00 : f32
    %274 = vector.broadcast %cst_202 : f32 to vector<2x32xf32>
    %275 = arith.addf %274, %273 : vector<2x32xf32>
    %276 = arith.divf %274, %275 : vector<2x32xf32>
    %277 = vector.extract_strided_slice %265 {offsets = [0, 32], sizes = [2, 32], strides = [1, 1]} : vector<2x96xf32> to vector<2x32xf32>
    %278 = vector.extract_strided_slice %268 {offsets = [0, 32], sizes = [2, 32], strides = [1, 1]} : vector<2x96xf32> to vector<2x32xf32>
    %279 = arith.addf %277, %278 : vector<2x32xf32>
    %280 = arith.negf %279 : vector<2x32xf32>
    %281 = math.exp %280 : vector<2x32xf32>
    %cst_203 = arith.constant 1.000000e+00 : f32
    %282 = vector.broadcast %cst_203 : f32 to vector<2x32xf32>
    %283 = arith.addf %282, %281 : vector<2x32xf32>
    %284 = arith.divf %282, %283 : vector<2x32xf32>
    %285 = vector.extract_strided_slice %265 {offsets = [0, 64], sizes = [2, 32], strides = [1, 1]} : vector<2x96xf32> to vector<2x32xf32>
    %286 = vector.extract_strided_slice %268 {offsets = [0, 64], sizes = [2, 32], strides = [1, 1]} : vector<2x96xf32> to vector<2x32xf32>
    %287 = arith.mulf %276, %286 : vector<2x32xf32>
    %288 = arith.addf %285, %287 : vector<2x32xf32>
    %289 = math.tanh %288 : vector<2x32xf32>
    %cst_204 = arith.constant 1.000000e+00 : f32
    %290 = vector.broadcast %cst_204 : f32 to vector<2x32xf32>
    %291 = arith.subf %290, %284 : vector<2x32xf32>
    %292 = arith.mulf %291, %289 : vector<2x32xf32>
    %293 = arith.mulf %284, %264 : vector<2x32xf32>
    %294 = arith.addf %292, %293 : vector<2x32xf32>
    %c8_205 = arith.constant 8 : index
    %c0_206 = arith.constant 0 : index
    %295 = vector.load %arg15[%c8_205, %c0_206] : memref<16x128xf32, #tpu.memory_space<vmem>>, vector<2x96xf32>
    %cst_207 = arith.constant dense<0.000000e+00> : vector<2x96xf32>
    %296 = tpu.matmul %294, %172, %cst_207 {dimension_numbers = #tpu.dot_dimension_numbers<[1], [0], [0], [1], [0, 0, 1, 1], [], []>} : vector<2x32xf32>, vector<32x96xf32>, vector<2x96xf32> -> vector<2x96xf32>
    %297 = vector.broadcast %173 : vector<1x96xf32> to vector<2x96xf32>
    %298 = arith.addf %296, %297 : vector<2x96xf32>
    %299 = vector.extract_strided_slice %295 {offsets = [0, 0], sizes = [2, 32], strides = [1, 1]} : vector<2x96xf32> to vector<2x32xf32>
    %300 = vector.extract_strided_slice %298 {offsets = [0, 0], sizes = [2, 32], strides = [1, 1]} : vector<2x96xf32> to vector<2x32xf32>
    %301 = arith.addf %299, %300 : vector<2x32xf32>
    %302 = arith.negf %301 : vector<2x32xf32>
    %303 = math.exp %302 : vector<2x32xf32>
    %cst_208 = arith.constant 1.000000e+00 : f32
    %304 = vector.broadcast %cst_208 : f32 to vector<2x32xf32>
    %305 = arith.addf %304, %303 : vector<2x32xf32>
    %306 = arith.divf %304, %305 : vector<2x32xf32>
    %307 = vector.extract_strided_slice %295 {offsets = [0, 32], sizes = [2, 32], strides = [1, 1]} : vector<2x96xf32> to vector<2x32xf32>
    %308 = vector.extract_strided_slice %298 {offsets = [0, 32], sizes = [2, 32], strides = [1, 1]} : vector<2x96xf32> to vector<2x32xf32>
    %309 = arith.addf %307, %308 : vector<2x32xf32>
    %310 = arith.negf %309 : vector<2x32xf32>
    %311 = math.exp %310 : vector<2x32xf32>
    %cst_209 = arith.constant 1.000000e+00 : f32
    %312 = vector.broadcast %cst_209 : f32 to vector<2x32xf32>
    %313 = arith.addf %312, %311 : vector<2x32xf32>
    %314 = arith.divf %312, %313 : vector<2x32xf32>
    %315 = vector.extract_strided_slice %295 {offsets = [0, 64], sizes = [2, 32], strides = [1, 1]} : vector<2x96xf32> to vector<2x32xf32>
    %316 = vector.extract_strided_slice %298 {offsets = [0, 64], sizes = [2, 32], strides = [1, 1]} : vector<2x96xf32> to vector<2x32xf32>
    %317 = arith.mulf %306, %316 : vector<2x32xf32>
    %318 = arith.addf %315, %317 : vector<2x32xf32>
    %319 = math.tanh %318 : vector<2x32xf32>
    %cst_210 = arith.constant 1.000000e+00 : f32
    %320 = vector.broadcast %cst_210 : f32 to vector<2x32xf32>
    %321 = arith.subf %320, %314 : vector<2x32xf32>
    %322 = arith.mulf %321, %319 : vector<2x32xf32>
    %323 = arith.mulf %314, %294 : vector<2x32xf32>
    %324 = arith.addf %322, %323 : vector<2x32xf32>
    %c10_211 = arith.constant 10 : index
    %c0_212 = arith.constant 0 : index
    %325 = vector.load %arg15[%c10_211, %c0_212] : memref<16x128xf32, #tpu.memory_space<vmem>>, vector<2x96xf32>
    %cst_213 = arith.constant dense<0.000000e+00> : vector<2x96xf32>
    %326 = tpu.matmul %324, %172, %cst_213 {dimension_numbers = #tpu.dot_dimension_numbers<[1], [0], [0], [1], [0, 0, 1, 1], [], []>} : vector<2x32xf32>, vector<32x96xf32>, vector<2x96xf32> -> vector<2x96xf32>
    %327 = vector.broadcast %173 : vector<1x96xf32> to vector<2x96xf32>
    %328 = arith.addf %326, %327 : vector<2x96xf32>
    %329 = vector.extract_strided_slice %325 {offsets = [0, 0], sizes = [2, 32], strides = [1, 1]} : vector<2x96xf32> to vector<2x32xf32>
    %330 = vector.extract_strided_slice %328 {offsets = [0, 0], sizes = [2, 32], strides = [1, 1]} : vector<2x96xf32> to vector<2x32xf32>
    %331 = arith.addf %329, %330 : vector<2x32xf32>
    %332 = arith.negf %331 : vector<2x32xf32>
    %333 = math.exp %332 : vector<2x32xf32>
    %cst_214 = arith.constant 1.000000e+00 : f32
    %334 = vector.broadcast %cst_214 : f32 to vector<2x32xf32>
    %335 = arith.addf %334, %333 : vector<2x32xf32>
    %336 = arith.divf %334, %335 : vector<2x32xf32>
    %337 = vector.extract_strided_slice %325 {offsets = [0, 32], sizes = [2, 32], strides = [1, 1]} : vector<2x96xf32> to vector<2x32xf32>
    %338 = vector.extract_strided_slice %328 {offsets = [0, 32], sizes = [2, 32], strides = [1, 1]} : vector<2x96xf32> to vector<2x32xf32>
    %339 = arith.addf %337, %338 : vector<2x32xf32>
    %340 = arith.negf %339 : vector<2x32xf32>
    %341 = math.exp %340 : vector<2x32xf32>
    %cst_215 = arith.constant 1.000000e+00 : f32
    %342 = vector.broadcast %cst_215 : f32 to vector<2x32xf32>
    %343 = arith.addf %342, %341 : vector<2x32xf32>
    %344 = arith.divf %342, %343 : vector<2x32xf32>
    %345 = vector.extract_strided_slice %325 {offsets = [0, 64], sizes = [2, 32], strides = [1, 1]} : vector<2x96xf32> to vector<2x32xf32>
    %346 = vector.extract_strided_slice %328 {offsets = [0, 64], sizes = [2, 32], strides = [1, 1]} : vector<2x96xf32> to vector<2x32xf32>
    %347 = arith.mulf %336, %346 : vector<2x32xf32>
    %348 = arith.addf %345, %347 : vector<2x32xf32>
    %349 = math.tanh %348 : vector<2x32xf32>
    %cst_216 = arith.constant 1.000000e+00 : f32
    %350 = vector.broadcast %cst_216 : f32 to vector<2x32xf32>
    %351 = arith.subf %350, %344 : vector<2x32xf32>
    %352 = arith.mulf %351, %349 : vector<2x32xf32>
    %353 = arith.mulf %344, %324 : vector<2x32xf32>
    %354 = arith.addf %352, %353 : vector<2x32xf32>
    %c12_217 = arith.constant 12 : index
    %c0_218 = arith.constant 0 : index
    %355 = vector.load %arg15[%c12_217, %c0_218] : memref<16x128xf32, #tpu.memory_space<vmem>>, vector<2x96xf32>
    %cst_219 = arith.constant dense<0.000000e+00> : vector<2x96xf32>
    %356 = tpu.matmul %354, %172, %cst_219 {dimension_numbers = #tpu.dot_dimension_numbers<[1], [0], [0], [1], [0, 0, 1, 1], [], []>} : vector<2x32xf32>, vector<32x96xf32>, vector<2x96xf32> -> vector<2x96xf32>
    %357 = vector.broadcast %173 : vector<1x96xf32> to vector<2x96xf32>
    %358 = arith.addf %356, %357 : vector<2x96xf32>
    %359 = vector.extract_strided_slice %355 {offsets = [0, 0], sizes = [2, 32], strides = [1, 1]} : vector<2x96xf32> to vector<2x32xf32>
    %360 = vector.extract_strided_slice %358 {offsets = [0, 0], sizes = [2, 32], strides = [1, 1]} : vector<2x96xf32> to vector<2x32xf32>
    %361 = arith.addf %359, %360 : vector<2x32xf32>
    %362 = arith.negf %361 : vector<2x32xf32>
    %363 = math.exp %362 : vector<2x32xf32>
    %cst_220 = arith.constant 1.000000e+00 : f32
    %364 = vector.broadcast %cst_220 : f32 to vector<2x32xf32>
    %365 = arith.addf %364, %363 : vector<2x32xf32>
    %366 = arith.divf %364, %365 : vector<2x32xf32>
    %367 = vector.extract_strided_slice %355 {offsets = [0, 32], sizes = [2, 32], strides = [1, 1]} : vector<2x96xf32> to vector<2x32xf32>
    %368 = vector.extract_strided_slice %358 {offsets = [0, 32], sizes = [2, 32], strides = [1, 1]} : vector<2x96xf32> to vector<2x32xf32>
    %369 = arith.addf %367, %368 : vector<2x32xf32>
    %370 = arith.negf %369 : vector<2x32xf32>
    %371 = math.exp %370 : vector<2x32xf32>
    %cst_221 = arith.constant 1.000000e+00 : f32
    %372 = vector.broadcast %cst_221 : f32 to vector<2x32xf32>
    %373 = arith.addf %372, %371 : vector<2x32xf32>
    %374 = arith.divf %372, %373 : vector<2x32xf32>
    %375 = vector.extract_strided_slice %355 {offsets = [0, 64], sizes = [2, 32], strides = [1, 1]} : vector<2x96xf32> to vector<2x32xf32>
    %376 = vector.extract_strided_slice %358 {offsets = [0, 64], sizes = [2, 32], strides = [1, 1]} : vector<2x96xf32> to vector<2x32xf32>
    %377 = arith.mulf %366, %376 : vector<2x32xf32>
    %378 = arith.addf %375, %377 : vector<2x32xf32>
    %379 = math.tanh %378 : vector<2x32xf32>
    %cst_222 = arith.constant 1.000000e+00 : f32
    %380 = vector.broadcast %cst_222 : f32 to vector<2x32xf32>
    %381 = arith.subf %380, %374 : vector<2x32xf32>
    %382 = arith.mulf %381, %379 : vector<2x32xf32>
    %383 = arith.mulf %374, %354 : vector<2x32xf32>
    %384 = arith.addf %382, %383 : vector<2x32xf32>
    %c14_223 = arith.constant 14 : index
    %c0_224 = arith.constant 0 : index
    %385 = vector.load %arg15[%c14_223, %c0_224] : memref<16x128xf32, #tpu.memory_space<vmem>>, vector<2x96xf32>
    %cst_225 = arith.constant dense<0.000000e+00> : vector<2x96xf32>
    %386 = tpu.matmul %384, %172, %cst_225 {dimension_numbers = #tpu.dot_dimension_numbers<[1], [0], [0], [1], [0, 0, 1, 1], [], []>} : vector<2x32xf32>, vector<32x96xf32>, vector<2x96xf32> -> vector<2x96xf32>
    %387 = vector.broadcast %173 : vector<1x96xf32> to vector<2x96xf32>
    %388 = arith.addf %386, %387 : vector<2x96xf32>
    %389 = vector.extract_strided_slice %385 {offsets = [0, 0], sizes = [2, 32], strides = [1, 1]} : vector<2x96xf32> to vector<2x32xf32>
    %390 = vector.extract_strided_slice %388 {offsets = [0, 0], sizes = [2, 32], strides = [1, 1]} : vector<2x96xf32> to vector<2x32xf32>
    %391 = arith.addf %389, %390 : vector<2x32xf32>
    %392 = arith.negf %391 : vector<2x32xf32>
    %393 = math.exp %392 : vector<2x32xf32>
    %cst_226 = arith.constant 1.000000e+00 : f32
    %394 = vector.broadcast %cst_226 : f32 to vector<2x32xf32>
    %395 = arith.addf %394, %393 : vector<2x32xf32>
    %396 = arith.divf %394, %395 : vector<2x32xf32>
    %397 = vector.extract_strided_slice %385 {offsets = [0, 32], sizes = [2, 32], strides = [1, 1]} : vector<2x96xf32> to vector<2x32xf32>
    %398 = vector.extract_strided_slice %388 {offsets = [0, 32], sizes = [2, 32], strides = [1, 1]} : vector<2x96xf32> to vector<2x32xf32>
    %399 = arith.addf %397, %398 : vector<2x32xf32>
    %400 = arith.negf %399 : vector<2x32xf32>
    %401 = math.exp %400 : vector<2x32xf32>
    %cst_227 = arith.constant 1.000000e+00 : f32
    %402 = vector.broadcast %cst_227 : f32 to vector<2x32xf32>
    %403 = arith.addf %402, %401 : vector<2x32xf32>
    %404 = arith.divf %402, %403 : vector<2x32xf32>
    %405 = vector.extract_strided_slice %385 {offsets = [0, 64], sizes = [2, 32], strides = [1, 1]} : vector<2x96xf32> to vector<2x32xf32>
    %406 = vector.extract_strided_slice %388 {offsets = [0, 64], sizes = [2, 32], strides = [1, 1]} : vector<2x96xf32> to vector<2x32xf32>
    %407 = arith.mulf %396, %406 : vector<2x32xf32>
    %408 = arith.addf %405, %407 : vector<2x32xf32>
    %409 = math.tanh %408 : vector<2x32xf32>
    %cst_228 = arith.constant 1.000000e+00 : f32
    %410 = vector.broadcast %cst_228 : f32 to vector<2x32xf32>
    %411 = arith.subf %410, %404 : vector<2x32xf32>
    %412 = arith.mulf %411, %409 : vector<2x32xf32>
    %413 = arith.mulf %404, %384 : vector<2x32xf32>
    %414 = arith.addf %412, %413 : vector<2x32xf32>
    %c0_229 = arith.constant 0 : index
    %c0_230 = arith.constant 0 : index
    %415 = vector.load %arg12[%c0_229, %c0_230] : memref<2x32xf32, #tpu.memory_space<vmem>>, vector<2x32xf32>
    tpu.vector_store %arg12[%c0_229, %c0_230], %414 {strides = array<i32>} : memref<2x32xf32, #tpu.memory_space<vmem>>, vector<2x32xf32>,
    return
  }
  func.func @transform_0(%arg0: i32) -> (i32, i32) {
    %c0_i32 = arith.constant 0 : i32
    %c0_i32_0 = arith.constant 0 : i32
    %c0_i32_1 = arith.constant 0 : i32
    return %c0_i32, %c0_i32_0 : i32, i32
  }
  func.func @transform_1(%arg0: i32) -> (i32, i32) {
    %c0_i32 = arith.constant 0 : i32
    %c0_i32_0 = arith.constant 0 : i32
    %c0_i32_1 = arith.constant 0 : i32
    return %c0_i32, %c0_i32_0 : i32, i32
  }
  func.func @transform_2(%arg0: i32) -> (i32, i32) {
    %c0_i32 = arith.constant 0 : i32
    %c0_i32_0 = arith.constant 0 : i32
    %c0_i32_1 = arith.constant 0 : i32
    return %c0_i32, %c0_i32_0 : i32, i32
  }
  func.func @transform_3(%arg0: i32) -> (i32, i32, i32) {
    %c0_i32 = arith.constant 0 : i32
    %c0_i32_0 = arith.constant 0 : i32
    %c0_i32_1 = arith.constant 0 : i32
    %c0_i32_2 = arith.constant 0 : i32
    return %c0_i32, %c0_i32_0, %c0_i32_1 : i32, i32, i32
  }
  func.func @transform_4(%arg0: i32) -> (i32, i32, i32) {
    %c0_i32 = arith.constant 0 : i32
    %c0_i32_0 = arith.constant 0 : i32
    %c0_i32_1 = arith.constant 0 : i32
    %c0_i32_2 = arith.constant 0 : i32
    return %c0_i32, %c0_i32_0, %c0_i32_1 : i32, i32, i32
  }
  func.func @transform_5(%arg0: i32) -> (i32, i32) {
    %c0_i32 = arith.constant 0 : i32
    %c0_i32_0 = arith.constant 0 : i32
    %c0_i32_1 = arith.constant 0 : i32
    return %c0_i32, %c0_i32_0 : i32, i32
  }
  func.func @transform_6(%arg0: i32) -> (i32, i32, i32) {
    %c0_i32 = arith.constant 0 : i32
    %c0_i32_0 = arith.constant 0 : i32
    %c0_i32_1 = arith.constant 0 : i32
    %c0_i32_2 = arith.constant 0 : i32
    return %c0_i32, %c0_i32_0, %c0_i32_1 : i32, i32, i32
  }
  func.func @transform_7(%arg0: i32) -> (i32, i32) {
    %c0_i32 = arith.constant 0 : i32
    %c0_i32_0 = arith.constant 0 : i32
    %c0_i32_1 = arith.constant 0 : i32
    return %c0_i32, %c0_i32_0 : i32, i32
  }
  func.func @transform_8(%arg0: i32) -> (i32, i32) {
    %c0_i32 = arith.constant 0 : i32
    %c0_i32_0 = arith.constant 0 : i32
    %c0_i32_1 = arith.constant 0 : i32
    return %c0_i32, %c0_i32_0 : i32, i32
  }
  func.func @transform_9(%arg0: i32) -> (i32, i32) {
    %c0_i32 = arith.constant 0 : i32
    %c0_i32_0 = arith.constant 0 : i32
    %c0_i32_1 = arith.constant 0 : i32
    return %c0_i32, %c0_i32_0 : i32, i32
  }
  func.func @transform_10(%arg0: i32) -> (i32, i32) {
    %c0_i32 = arith.constant 0 : i32
    %c0_i32_0 = arith.constant 0 : i32
    %c0_i32_1 = arith.constant 0 : i32
    return %c0_i32, %c0_i32_0 : i32, i32
  }
  func.func @transform_11(%arg0: i32) -> (i32, i32) {
    %c0_i32 = arith.constant 0 : i32
    %c0_i32_0 = arith.constant 0 : i32
    %c0_i32_1 = arith.constant 0 : i32
    return %c0_i32, %c0_i32_0 : i32, i32
  }
}

</mosaic_0001>

<llo_original>
// kernel: forward.1
$region0: #{forward.1}
  #allocation0 [shape = 'u32[]', space=smem, size = 0x4, offset = 0x4, fixed_abs, tag = 'smem constant byte address 0x4 - core index']
  #allocation1 [shape = 'u32[72,128]{1,0:T(1,128)}', space=vmem, size = 0x9000, scoped, tag = 'internal scratch']
  #allocation2 [shape = 'f32[196,256]{1,0:T(8,128)}', space=vmem, size = 0x32000, scoped, tag = 'scratch operand']
  #allocation3 [shape = 'f32[36,256]{1,0:T(8,128)}', space=vmem, size = 0xa000, scoped, tag = 'scratch operand']
  #allocation4 [shape = 'f32[16,128]{1,0:T(8,128)}', space=vmem, size = 0x2000, scoped, tag = 'scratch operand']
  %s0 = inlined_call_operand.vmem [shape: f32[196,576], index: 0, kind: input, shape index: {}]
  %s1 = inlined_call_operand.vmem [shape: f32[576,256], index: 1, kind: input, shape index: {}]
  %s2 = inlined_call_operand.vmem [shape: f32[1,256], index: 2, kind: input, shape index: {}]
  %s3 = inlined_call_operand.vmem [shape: f32[9,36,196], index: 3, kind: input, shape index: {}]
  %s4 = inlined_call_operand.vmem [shape: f32[9,256,256], index: 4, kind: input, shape index: {}]
  %s5 = inlined_call_operand.vmem [shape: f32[1,256], index: 5, kind: input, shape index: {}]
  %s6 = inlined_call_operand.vmem [shape: f32[16,128,36], index: 6, kind: input, shape index: {}]
  %s7 = inlined_call_operand.vmem [shape: f32[16,16], index: 7, kind: input, shape index: {}]
  %s8 = inlined_call_operand.vmem [shape: f32[16,128], index: 8, kind: input, shape index: {}]
  %s9 = inlined_call_operand.vmem [shape: f32[32,96], index: 9, kind: input, shape index: {}]
  %s10 = inlined_call_operand.vmem [shape: f32[1,96], index: 10, kind: input, shape index: {}]
  %s11 = inlined_call_operand.hbm [shape: f32[2,32], index: 11, kind: output, shape index: {}]
  %s12 = sld [smem:[#allocation0]]
  $region54: #{forward.1} parent=0
    _
  %s14 = ssub.s32 1, %s12
  %s15 = scalar_select 0, %s14, %s12
  $region1: #{forward.1} parent=0
    #allocation5 [shape = 'u8[1024]{0}', space=vmem, size = 0x400, scoped, tag = 'output window, operand 0, single buffered']
    #allocation6 [shape = 's32[1]{0}', space=sflag, size = 0x4, scoped, tag = 'scoped memory for forward.1']
    %16 = vsyncpa [#allocation6], 0
    // Predicated region
    $region2: #{forward.1} parent=1 // pred_check
      _
    $region3: #{forward.1} parent=1 // pred_check_branch
      %18 = sbr.rel (0) target = $region5
    $region4: #{forward.1} parent=1 // pred_region
      _
    $region5: #{forward.1} parent=1 // pred_fallthru
      _
    // Predicated region
    $region6: #{forward.1} parent=1 // pred_check
      _
    $region7: #{forward.1} parent=1 // pred_check_branch
      %20 = sbr.rel (0) target = $region9
    $region8: #{forward.1} parent=1 // pred_region
      _
    $region9: #{forward.1} parent=1 // pred_fallthru
      _
    // Predicated region
    $region10: #{forward.1} parent=1 // pred_check
      _
    $region11: #{forward.1} parent=1 // pred_check_branch
      %22 = sbr.rel (0) target = $region13
    $region12: #{forward.1} parent=1 // pred_region
      _
    $region13: #{forward.1} parent=1 // pred_fallthru
      _
    // Predicated region
    $region14: #{forward.1} parent=1 // pred_check
      _
    $region15: #{forward.1} parent=1 // pred_check_branch
      %24 = sbr.rel (0) target = $region17
    $region16: #{forward.1} parent=1 // pred_region
      _
    $region17: #{forward.1} parent=1 // pred_fallthru
      _
    // Predicated region
    $region18: #{forward.1} parent=1 // pred_check
      _
    $region19: #{forward.1} parent=1 // pred_check_branch
      %26 = sbr.rel (0) target = $region21
    $region20: #{forward.1} parent=1 // pred_region
      _
    $region21: #{forward.1} parent=1 // pred_fallthru
      _
    // Predicated region
    $region22: #{forward.1} parent=1 // pred_check
      _
    $region23: #{forward.1} parent=1 // pred_check_branch
      %28 = sbr.rel (0) target = $region25
    $region24: #{forward.1} parent=1 // pred_region
      _
    $region25: #{forward.1} parent=1 // pred_fallthru
      _
    // Predicated region
    $region26: #{forward.1} parent=1 // pred_check
      _
    $region27: #{forward.1} parent=1 // pred_check_branch
      %30 = sbr.rel (0) target = $region29
    $region28: #{forward.1} parent=1 // pred_region
      _
    $region29: #{forward.1} parent=1 // pred_fallthru
      _
    // Predicated region
    $region30: #{forward.1} parent=1 // pred_check
      _
    $region31: #{forward.1} parent=1 // pred_check_branch
      %32 = sbr.rel (0) target = $region33
    $region32: #{forward.1} parent=1 // pred_region
      _
    $region33: #{forward.1} parent=1 // pred_fallthru
      _
    // Predicated region
    $region34: #{forward.1} parent=1 // pred_check
      _
    $region35: #{forward.1} parent=1 // pred_check_branch
      %34 = sbr.rel (0) target = $region37
    $region36: #{forward.1} parent=1 // pred_region
      _
    $region37: #{forward.1} parent=1 // pred_fallthru
      _
    // Predicated region
    $region38: #{forward.1} parent=1 // pred_check
      _
    $region39: #{forward.1} parent=1 // pred_check_branch
      %36 = sbr.rel (0) target = $region41
    $region40: #{forward.1} parent=1 // pred_region
      _
    $region41: #{forward.1} parent=1 // pred_fallthru
      _
    // Predicated region
    $region42: #{forward.1} parent=1 // pred_check
      _
    $region43: #{forward.1} parent=1 // pred_check_branch
      %38 = sbr.rel (0) target = $region45
    $region44: #{forward.1} parent=1 // pred_region
      _
    $region45: #{forward.1} parent=1 // pred_fallthru
      _
    %v39 = vld [vmem:[%s0] sm:$0xff]
    %v40 = vld [vmem:[%s0 + $0x8] sm:$0xff]
    %v41 = vld [vmem:[%s0 + $0x10] sm:$0xff]
    %v42 = vld [vmem:[%s0 + $0x18] sm:$0xff]
    %v43 = vld [vmem:[%s0 + $0x20] sm:$0xff]
    %v44 = vld [vmem:[%s0 + $0x28] sm:$0xff]
    %v45 = vld [vmem:[%s0 + $0x30] sm:$0xff]
    %v46 = vld [vmem:[%s0 + $0x38] sm:$0xff]
    %v47 = vld [vmem:[%s0 + $0x40] sm:$0xff]
    %v48 = vld [vmem:[%s0 + $0x48] sm:$0xff]
    %v49 = vld [vmem:[%s0 + $0x50] sm:$0xff]
    %v50 = vld [vmem:[%s0 + $0x58] sm:$0xff]
    %v51 = vld [vmem:[%s0 + $0x60] sm:$0xff]
    %v52 = vld [vmem:[%s0 + $0x68] sm:$0xff]
    %v53 = vld [vmem:[%s0 + $0x70] sm:$0xff]
    %v54 = vld [vmem:[%s0 + $0x78] sm:$0xff]
    %v55 = vld [vmem:[%s0 + $0x80] sm:$0xff]
    %v56 = vld [vmem:[%s0 + $0x88] sm:$0xff]
    %v57 = vld [vmem:[%s0 + $0x90] sm:$0xff]
    %v58 = vld [vmem:[%s0 + $0x98] sm:$0xff]
    %v59 = vld [vmem:[%s0 + $0xa0] sm:$0xff]
    %v60 = vld [vmem:[%s0 + $0xa8] sm:$0xff]
    %v61 = vld [vmem:[%s0 + $0xb0] sm:$0xff]
    %v62 = vld [vmem:[%s0 + $0xb8] sm:$0xff]
    %v63 = vld [vmem:[%s0 + $0xc0] sm:$0xff]
    %v64 = vld [vmem:[%s0 + $0xc8] sm:$0xff]
    %v65 = vld [vmem:[%s0 + $0xd0] sm:$0xff]
    %v66 = vld [vmem:[%s0 + $0xd8] sm:$0xff]
    %v67 = vld [vmem:[%s0 + $0xe0] sm:$0xff]
    %v68 = vld [vmem:[%s0 + $0xe8] sm:$0xff]
    %v69 = vld [vmem:[%s0 + $0xf0] sm:$0xff]
    %v70 = vld [vmem:[%s0 + $0xf8] sm:$0xff]
    %v71 = vld [vmem:[%s0 + $0x100] sm:$0xff]
    %v72 = vld [vmem:[%s0 + $0x108] sm:$0xff]
    %v73 = vld [vmem:[%s0 + $0x110] sm:$0xff]
    %v74 = vld [vmem:[%s0 + $0x118] sm:$0xff]
    %v75 = vld [vmem:[%s0 + $0x120] sm:$0xff]
    %v76 = vld [vmem:[%s0 + $0x128] sm:$0xff]
    %v77 = vld [vmem:[%s0 + $0x130] sm:$0xff]
    %v78 = vld [vmem:[%s0 + $0x138] sm:$0xff]
    %v79 = vld [vmem:[%s0 + $0x140] sm:$0xff]
    %v80 = vld [vmem:[%s0 + $0x148] sm:$0xff]
    %v81 = vld [vmem:[%s0 + $0x150] sm:$0xff]
    %v82 = vld [vmem:[%s0 + $0x158] sm:$0xff]
    %v83 = vld [vmem:[%s0 + $0x160] sm:$0xff]
    %v84 = vld [vmem:[%s0 + $0x168] sm:$0xff]
    %v85 = vld [vmem:[%s0 + $0x170] sm:$0xff]
    %v86 = vld [vmem:[%s0 + $0x178] sm:$0xff]
    %v87 = vld [vmem:[%s0 + $0x180] sm:$0xff]
    %v88 = vld [vmem:[%s0 + $0x188] sm:$0xff]
    %v89 = vld [vmem:[%s0 + $0x190] sm:$0xff]
    %v90 = vld [vmem:[%s0 + $0x198] sm:$0xff]
    %v91 = vld [vmem:[%s0 + $0x1a0] sm:$0xff]
    %v92 = vld [vmem:[%s0 + $0x1a8] sm:$0xff]
    %v93 = vld [vmem:[%s0 + $0x1b0] sm:$0xff]
    %v94 = vld [vmem:[%s0 + $0x1b8] sm:$0xff]
    %v95 = vld [vmem:[%s0 + $0x1c0] sm:$0xff]
    %v96 = vld [vmem:[%s0 + $0x1c8] sm:$0xff]
    %v97 = vld [vmem:[%s0 + $0x1d0] sm:$0xff]
    %v98 = vld [vmem:[%s0 + $0x1d8] sm:$0xff]
    %v99 = vld [vmem:[%s0 + $0x1e0] sm:$0xff]
    %v100 = vld [vmem:[%s0 + $0x1e8] sm:$0xff]
    %v101 = vld [vmem:[%s0 + $0x1f0] sm:$0xff]
    %v102 = vld [vmem:[%s0 + $0x1f8] sm:$0xff]
    %v103 = vld [vmem:[%s0 + $0x200] sm:$0xff]
    %v104 = vld [vmem:[%s0 + $0x208] sm:$0xff]
    %v105 = vld [vmem:[%s0 + $0x210] sm:$0xff]
    %v106 = vld [vmem:[%s0 + $0x218] sm:$0xff]
    %v107 = vld [vmem:[%s0 + $0x220] sm:$0xff]
    %v108 = vld [vmem:[%s0 + $0x228] sm:$0xff]
    %v109 = vld [vmem:[%s0 + $0x230] sm:$0xff]
    %v110 = vld [vmem:[%s0 + $0x238] sm:$0xff]
    %v111 = vld [vmem:[%s0 + $0x240] sm:$0xff]
    %v112 = vld [vmem:[%s0 + $0x248] sm:$0xff]
    %v113 = vld [vmem:[%s0 + $0x250] sm:$0xff]
    %v114 = vld [vmem:[%s0 + $0x258] sm:$0xff]
    %v115 = vld [vmem:[%s0 + $0x260] sm:$0xff]
    %v116 = vld [vmem:[%s0 + $0x268] sm:$0xff]
    %v117 = vld [vmem:[%s0 + $0x270] sm:$0xff]
    %v118 = vld [vmem:[%s0 + $0x278] sm:$0xff]
    %v119 = vld [vmem:[%s0 + $0x280] sm:$0xff]
    %v120 = vld [vmem:[%s0 + $0x288] sm:$0xff]
    %v121 = vld [vmem:[%s0 + $0x290] sm:$0xff]
    %v122 = vld [vmem:[%s0 + $0x298] sm:$0xff]
    %v123 = vld [vmem:[%s0 + $0x2a0] sm:$0xff]
    %v124 = vld [vmem:[%s0 + $0x2a8] sm:$0xff]
    %v125 = vld [vmem:[%s0 + $0x2b0] sm:$0xff]
    %v126 = vld [vmem:[%s0 + $0x2b8] sm:$0xff]
    %v127 = vld [vmem:[%s0 + $0x2c0] sm:$0xff]
    %v128 = vld [vmem:[%s0 + $0x2c8] sm:$0xff]
    %v129 = vld [vmem:[%s0 + $0x2d0] sm:$0xff]
    %v130 = vld [vmem:[%s0 + $0x2d8] sm:$0xff]
    %v131 = vld [vmem:[%s0 + $0x2e0] sm:$0xff]
    %v132 = vld [vmem:[%s0 + $0x2e8] sm:$0xff]
    %v133 = vld [vmem:[%s0 + $0x2f0] sm:$0xff]
    %v134 = vld [vmem:[%s0 + $0x2f8] sm:$0xff]
    %v135 = vld [vmem:[%s0 + $0x300] sm:$0xff]
    %v136 = vld [vmem:[%s0 + $0x308] sm:$0xff]
    %v137 = vld [vmem:[%s0 + $0x310] sm:$0xff]
    %v138 = vld [vmem:[%s0 + $0x318] sm:$0xff]
    %v139 = vld [vmem:[%s0 + $0x320] sm:$0xff]
    %v140 = vld [vmem:[%s0 + $0x328] sm:$0xff]
    %v141 = vld [vmem:[%s0 + $0x330] sm:$0xff]
    %v142 = vld [vmem:[%s0 + $0x338] sm:$0xff]
    %v143 = vld [vmem:[%s0 + $0x340] sm:$0xff]
    %v144 = vld [vmem:[%s0 + $0x348] sm:$0xff]
    %v145 = vld [vmem:[%s0 + $0x350] sm:$0xff]
    %v146 = vld [vmem:[%s0 + $0x358] sm:$0xff]
    %v147 = vld [vmem:[%s0 + $0x360] sm:$0xff]
    %v148 = vld [vmem:[%s0 + $0x368] sm:$0xff]
    %v149 = vld [vmem:[%s0 + $0x370] sm:$0xff]
    %v150 = vld [vmem:[%s0 + $0x378] sm:$0xff]
    %v151 = vld [vmem:[%s0 + $0x380] sm:$0xff]
    %v152 = vld [vmem:[%s0 + $0x388] sm:$0xff]
    %v153 = vld [vmem:[%s0 + $0x390] sm:$0xff]
    %v154 = vld [vmem:[%s0 + $0x398] sm:$0xff]
    %v155 = vld [vmem:[%s0 + $0x3a0] sm:$0xff]
    %v156 = vld [vmem:[%s0 + $0x3a8] sm:$0xff]
    %v157 = vld [vmem:[%s0 + $0x3b0] sm:$0xff]
    %v158 = vld [vmem:[%s0 + $0x3b8] sm:$0xff]
    %v159 = vld [vmem:[%s0 + $0x3c0] sm:$0xf]
    %v160 = vld [vmem:[%s0 + $0x3c8] sm:$0xf]
    %v161 = vld [vmem:[%s0 + $0x3d0] sm:$0xf]
    %v162 = vld [vmem:[%s0 + $0x3d8] sm:$0xf]
    %v163 = vld [vmem:[%s0 + $0x3e0] sm:$0xf]
    %v164 = vld [vmem:[%s1] sm:$0xff]
    %v165 = vld [vmem:[%s1 + $0x8] sm:$0xff]
    %v166 = vld [vmem:[%s1 + $0x10] sm:$0xff]
    %v167 = vld [vmem:[%s1 + $0x18] sm:$0xff]
    %v168 = vld [vmem:[%s1 + $0x20] sm:$0xff]
    %v169 = vld [vmem:[%s1 + $0x28] sm:$0xff]
    %v170 = vld [vmem:[%s1 + $0x30] sm:$0xff]
    %v171 = vld [vmem:[%s1 + $0x38] sm:$0xff]
    %v172 = vld [vmem:[%s1 + $0x40] sm:$0xff]
    %v173 = vld [vmem:[%s1 + $0x48] sm:$0xff]
    %v174 = vld [vmem:[%s1 + $0x50] sm:$0xff]
    %v175 = vld [vmem:[%s1 + $0x58] sm:$0xff]
    %v176 = vld [vmem:[%s1 + $0x60] sm:$0xff]
    %v177 = vld [vmem:[%s1 + $0x68] sm:$0xff]
    %v178 = vld [vmem:[%s1 + $0x70] sm:$0xff]
    %v179 = vld [vmem:[%s1 + $0x78] sm:$0xff]
    %v180 = vld [vmem:[%s1 + $0x80] sm:$0xff]
    %v181 = vld [vmem:[%s1 + $0x88] sm:$0xff]
    %v182 = vld [vmem:[%s1 + $0x90] sm:$0xff]
    %v183 = vld [vmem:[%s1 + $0x98] sm:$0xff]
    %v184 = vld [vmem:[%s1 + $0xa0] sm:$0xff]
    %v185 = vld [vmem:[%s1 + $0xa8] sm:$0xff]
    %v186 = vld [vmem:[%s1 + $0xb0] sm:$0xff]
    %v187 = vld [vmem:[%s1 + $0xb8] sm:$0xff]
    %v188 = vld [vmem:[%s1 + $0xc0] sm:$0xff]
    %v189 = vld [vmem:[%s1 + $0xc8] sm:$0xff]
    %v190 = vld [vmem:[%s1 + $0xd0] sm:$0xff]
    %v191 = vld [vmem:[%s1 + $0xd8] sm:$0xff]
    %v192 = vld [vmem:[%s1 + $0xe0] sm:$0xff]
    %v193 = vld [vmem:[%s1 + $0xe8] sm:$0xff]
    %v194 = vld [vmem:[%s1 + $0xf0] sm:$0xff]
    %v195 = vld [vmem:[%s1 + $0xf8] sm:$0xff]
    %v196 = vld [vmem:[%s1 + $0x100] sm:$0xff]
    %v197 = vld [vmem:[%s1 + $0x108] sm:$0xff]
    %v198 = vld [vmem:[%s1 + $0x110] sm:$0xff]
    %v199 = vld [vmem:[%s1 + $0x118] sm:$0xff]
    %v200 = vld [vmem:[%s1 + $0x120] sm:$0xff]
    %v201 = vld [vmem:[%s1 + $0x128] sm:$0xff]
    %v202 = vld [vmem:[%s1 + $0x130] sm:$0xff]
    %v203 = vld [vmem:[%s1 + $0x138] sm:$0xff]
    %v204 = vld [vmem:[%s1 + $0x140] sm:$0xff]
    %v205 = vld [vmem:[%s1 + $0x148] sm:$0xff]
    %v206 = vld [vmem:[%s1 + $0x150] sm:$0xff]
    %v207 = vld [vmem:[%s1 + $0x158] sm:$0xff]
    %v208 = vld [vmem:[%s1 + $0x160] sm:$0xff]
    %v209 = vld [vmem:[%s1 + $0x168] sm:$0xff]
    %v210 = vld [vmem:[%s1 + $0x170] sm:$0xff]
    %v211 = vld [vmem:[%s1 + $0x178] sm:$0xff]
    %v212 = vld [vmem:[%s1 + $0x180] sm:$0xff]
    %v213 = vld [vmem:[%s1 + $0x188] sm:$0xff]
    %v214 = vld [vmem:[%s1 + $0x190] sm:$0xff]
    %v215 = vld [vmem:[%s1 + $0x198] sm:$0xff]
    %v216 = vld [vmem:[%s1 + $0x1a0] sm:$0xff]
    %v217 = vld [vmem:[%s1 + $0x1a8] sm:$0xff]
    %v218 = vld [vmem:[%s1 + $0x1b0] sm:$0xff]
    %v219 = vld [vmem:[%s1 + $0x1b8] sm:$0xff]
    %v220 = vld [vmem:[%s1 + $0x1c0] sm:$0xff]
    %v221 = vld [vmem:[%s1 + $0x1c8] sm:$0xff]
    %v222 = vld [vmem:[%s1 + $0x1d0] sm:$0xff]
    %v223 = vld [vmem:[%s1 + $0x1d8] sm:$0xff]
    %v224 = vld [vmem:[%s1 + $0x1e0] sm:$0xff]
    %v225 = vld [vmem:[%s1 + $0x1e8] sm:$0xff]
    %v226 = vld [vmem:[%s1 + $0x1f0] sm:$0xff]
    %v227 = vld [vmem:[%s1 + $0x1f8] sm:$0xff]
    %v228 = vld [vmem:[%s1 + $0x200] sm:$0xff]
    %v229 = vld [vmem:[%s1 + $0x208] sm:$0xff]
    %v230 = vld [vmem:[%s1 + $0x210] sm:$0xff]
    %v231 = vld [vmem:[%s1 + $0x218] sm:$0xff]
    %v232 = vld [vmem:[%s1 + $0x220] sm:$0xff]
    %v233 = vld [vmem:[%s1 + $0x228] sm:$0xff]
    %v234 = vld [vmem:[%s1 + $0x230] sm:$0xff]
    %v235 = vld [vmem:[%s1 + $0x238] sm:$0xff]
    %v236 = vld [vmem:[%s1 + $0x240] sm:$0xff]
    %v237 = vld [vmem:[%s1 + $0x248] sm:$0xff]
    %v238 = vld [vmem:[%s1 + $0x250] sm:$0xff]
    %v239 = vld [vmem:[%s1 + $0x258] sm:$0xff]
    %v240 = vld [vmem:[%s1 + $0x260] sm:$0xff]
    %v241 = vld [vmem:[%s1 + $0x268] sm:$0xff]
    %v242 = vld [vmem:[%s1 + $0x270] sm:$0xff]
    %v243 = vld [vmem:[%s1 + $0x278] sm:$0xff]
    %v244 = vld [vmem:[%s1 + $0x280] sm:$0xff]
    %v245 = vld [vmem:[%s1 + $0x288] sm:$0xff]
    %v246 = vld [vmem:[%s1 + $0x290] sm:$0xff]
    %v247 = vld [vmem:[%s1 + $0x298] sm:$0xff]
    %v248 = vld [vmem:[%s1 + $0x2a0] sm:$0xff]
    %v249 = vld [vmem:[%s1 + $0x2a8] sm:$0xff]
    %v250 = vld [vmem:[%s1 + $0x2b0] sm:$0xff]
    %v251 = vld [vmem:[%s1 + $0x2b8] sm:$0xff]
    %v252 = vld [vmem:[%s1 + $0x2c0] sm:$0xff]
    %v253 = vld [vmem:[%s1 + $0x2c8] sm:$0xff]
    %v254 = vld [vmem:[%s1 + $0x2d0] sm:$0xff]
    %v255 = vld [vmem:[%s1 + $0x2d8] sm:$0xff]
    %v256 = vld [vmem:[%s1 + $0x2e0] sm:$0xff]
    %v257 = vld [vmem:[%s1 + $0x2e8] sm:$0xff]
    %v258 = vld [vmem:[%s1 + $0x2f0] sm:$0xff]
    %v259 = vld [vmem:[%s1 + $0x2f8] sm:$0xff]
    %v260 = vld [vmem:[%s1 + $0x300] sm:$0xff]
    %v261 = vld [vmem:[%s1 + $0x308] sm:$0xff]
    %v262 = vld [vmem:[%s1 + $0x310] sm:$0xff]
    %v263 = vld [vmem:[%s1 + $0x318] sm:$0xff]
    %v264 = vld [vmem:[%s1 + $0x320] sm:$0xff]
    %v265 = vld [vmem:[%s1 + $0x328] sm:$0xff]
    %v266 = vld [vmem:[%s1 + $0x330] sm:$0xff]
    %v267 = vld [vmem:[%s1 + $0x338] sm:$0xff]
    %v268 = vld [vmem:[%s1 + $0x340] sm:$0xff]
    %v269 = vld [vmem:[%s1 + $0x348] sm:$0xff]
    %v270 = vld [vmem:[%s1 + $0x350] sm:$0xff]
    %v271 = vld [vmem:[%s1 + $0x358] sm:$0xff]
    %v272 = vld [vmem:[%s1 + $0x360] sm:$0xff]
    %v273 = vld [vmem:[%s1 + $0x368] sm:$0xff]
    %v274 = vld [vmem:[%s1 + $0x370] sm:$0xff]
    %v275 = vld [vmem:[%s1 + $0x378] sm:$0xff]
    %v276 = vld [vmem:[%s1 + $0x380] sm:$0xff]
    %v277 = vld [vmem:[%s1 + $0x388] sm:$0xff]
    %v278 = vld [vmem:[%s1 + $0x390] sm:$0xff]
    %v279 = vld [vmem:[%s1 + $0x398] sm:$0xff]
    %v280 = vld [vmem:[%s1 + $0x3a0] sm:$0xff]
    %v281 = vld [vmem:[%s1 + $0x3a8] sm:$0xff]
    %v282 = vld [vmem:[%s1 + $0x3b0] sm:$0xff]
    %v283 = vld [vmem:[%s1 + $0x3b8] sm:$0xff]
    %v284 = vld [vmem:[%s1 + $0x3c0] sm:$0xff]
    %v285 = vld [vmem:[%s1 + $0x3c8] sm:$0xff]
    %v286 = vld [vmem:[%s1 + $0x3d0] sm:$0xff]
    %v287 = vld [vmem:[%s1 + $0x3d8] sm:$0xff]
    %v288 = vld [vmem:[%s1 + $0x3e0] sm:$0xff]
    %v289 = vld [vmem:[%s1 + $0x3e8] sm:$0xff]
    %v290 = vld [vmem:[%s1 + $0x3f0] sm:$0xff]
    %v291 = vld [vmem:[%s1 + $0x3f8] sm:$0xff]
    %v292 = vld [vmem:[%s1 + $0x400] sm:$0xff]
    %v293 = vld [vmem:[%s1 + $0x408] sm:$0xff]
    %v294 = vld [vmem:[%s1 + $0x410] sm:$0xff]
    %v295 = vld [vmem:[%s1 + $0x418] sm:$0xff]
    %v296 = vld [vmem:[%s1 + $0x420] sm:$0xff]
    %v297 = vld [vmem:[%s1 + $0x428] sm:$0xff]
    %v298 = vld [vmem:[%s1 + $0x430] sm:$0xff]
    %v299 = vld [vmem:[%s1 + $0x438] sm:$0xff]
    %v300 = vld [vmem:[%s1 + $0x440] sm:$0xff]
    %v301 = vld [vmem:[%s1 + $0x448] sm:$0xff]
    %v302 = vld [vmem:[%s1 + $0x450] sm:$0xff]
    %v303 = vld [vmem:[%s1 + $0x458] sm:$0xff]
    %v304 = vld [vmem:[%s1 + $0x460] sm:$0xff]
    %v305 = vld [vmem:[%s1 + $0x468] sm:$0xff]
    %v306 = vld [vmem:[%s1 + $0x470] sm:$0xff]
    %v307 = vld [vmem:[%s1 + $0x478] sm:$0xff]
    %v308 = vld [vmem:[%s2] sm:$0x3]
    %v310 = vperm.slane %v308, 0
    %v311 = vperm.slane %v308, 1
    %vm314 = vcmask 523264
    %v316 = vsel %vm314, %v43, 0
    %v319 = vsel %vm314, %v48, 0
    %v322 = vsel %vm314, %v53, 0
    %v325 = vsel %vm314, %v58, 0
    %v328 = vsel %vm314, %v63, 0
    %v331 = vsel %vm314, %v68, 0
    %v334 = vsel %vm314, %v73, 0
    %v337 = vsel %vm314, %v78, 0
    %v340 = vsel %vm314, %v83, 0
    %v343 = vsel %vm314, %v88, 0
    %v346 = vsel %vm314, %v93, 0
    %v349 = vsel %vm314, %v98, 0
    %v352 = vsel %vm314, %v103, 0
    %v355 = vsel %vm314, %v108, 0
    %v358 = vsel %vm314, %v113, 0
    %v361 = vsel %vm314, %v118, 0
    %v364 = vsel %vm314, %v123, 0
    %v367 = vsel %vm314, %v128, 0
    %v370 = vsel %vm314, %v133, 0
    %v373 = vsel %vm314, %v138, 0
    %v376 = vsel %vm314, %v143, 0
    %v379 = vsel %vm314, %v148, 0
    %v382 = vsel %vm314, %v153, 0
    %v385 = vsel %vm314, %v158, 0
    %v388 = vsel %vm314, %v163, 0
    %390 = vmatpush.msra.mxu0 %v194
    %391 = vmatpush.msra.mxu0 %v192
    %392 = vmatpush.msra.mxu0 %v190
    %393 = vmatpush.msra.mxu0 %v188
    %394 = vmatpush.msra.mxu0 %v186
    %395 = vmatpush.msra.mxu0 %v184
    %396 = vmatpush.msra.mxu0 %v182
    %397 = vmatpush.msra.mxu0 %v180
    %398 = vmatpush.msra.mxu0 %v178
    %399 = vmatpush.msra.mxu0 %v176
    %400 = vmatpush.msra.mxu0 %v174
    %401 = vmatpush.msra.mxu0 %v172
    %402 = vmatpush.msra.mxu0 %v170
    %403 = vmatpush.msra.mxu0 %v168
    %404 = vmatpush.msra.mxu0 %v166
    %405 = vmatpush.msra.mxu0 %v164
    %406 = vmatmul.f32.gmra.mxu0 %v39
    %v407 = vpop.f32.mrf.mxu0
    %v408 = vadd.f32 %v310, %v407
    %409 = vmatmul.f32.gmra.mxu0 %v44
    %v410 = vpop.f32.mrf.mxu0
    %v411 = vadd.f32 %v310, %v410
    %412 = vmatmul.f32.gmra.mxu0 %v49
    %v413 = vpop.f32.mrf.mxu0
    %v414 = vadd.f32 %v310, %v413
    %415 = vmatmul.f32.gmra.mxu0 %v54
    %v416 = vpop.f32.mrf.mxu0
    %v417 = vadd.f32 %v310, %v416
    %418 = vmatmul.f32.gmra.mxu0 %v59
    %v419 = vpop.f32.mrf.mxu0
    %v420 = vadd.f32 %v310, %v419
    %421 = vmatmul.f32.gmra.mxu0 %v64
    %v422 = vpop.f32.mrf.mxu0
    %v423 = vadd.f32 %v310, %v422
    %424 = vmatmul.f32.gmra.mxu0 %v69
    %v425 = vpop.f32.mrf.mxu0
    %v426 = vadd.f32 %v310, %v425
    %427 = vmatmul.f32.gmra.mxu0 %v74
    %v428 = vpop.f32.mrf.mxu0
    %v429 = vadd.f32 %v310, %v428
    %430 = vmatmul.f32.gmra.mxu0 %v79
    %v431 = vpop.f32.mrf.mxu0
    %v432 = vadd.f32 %v310, %v431
    %433 = vmatmul.f32.gmra.mxu0 %v84
    %v434 = vpop.f32.mrf.mxu0
    %v435 = vadd.f32 %v310, %v434
    %436 = vmatmul.f32.gmra.mxu0 %v89
    %v437 = vpop.f32.mrf.mxu0
    %v438 = vadd.f32 %v310, %v437
    %439 = vmatmul.f32.gmra.mxu0 %v94
    %v440 = vpop.f32.mrf.mxu0
    %v441 = vadd.f32 %v310, %v440
    %442 = vmatmul.f32.gmra.mxu0 %v99
    %v443 = vpop.f32.mrf.mxu0
    %v444 = vadd.f32 %v310, %v443
    %445 = vmatmul.f32.gmra.mxu0 %v104
    %v446 = vpop.f32.mrf.mxu0
    %v447 = vadd.f32 %v310, %v446
    %448 = vmatmul.f32.gmra.mxu0 %v109
    %v449 = vpop.f32.mrf.mxu0
    %v450 = vadd.f32 %v310, %v449
    %451 = vmatmul.f32.gmra.mxu0 %v114
    %v452 = vpop.f32.mrf.mxu0
    %v453 = vadd.f32 %v310, %v452
    %454 = vmatmul.f32.gmra.mxu0 %v119
    %v455 = vpop.f32.mrf.mxu0
    %v456 = vadd.f32 %v310, %v455
    %457 = vmatmul.f32.gmra.mxu0 %v124
    %v458 = vpop.f32.mrf.mxu0
    %v459 = vadd.f32 %v310, %v458
    %460 = vmatmul.f32.gmra.mxu0 %v129
    %v461 = vpop.f32.mrf.mxu0
    %v462 = vadd.f32 %v310, %v461
    %463 = vmatmul.f32.gmra.mxu0 %v134
    %v464 = vpop.f32.mrf.mxu0
    %v465 = vadd.f32 %v310, %v464
    %466 = vmatmul.f32.gmra.mxu0 %v139
    %v467 = vpop.f32.mrf.mxu0
    %v468 = vadd.f32 %v310, %v467
    %469 = vmatmul.f32.gmra.mxu0 %v144
    %v470 = vpop.f32.mrf.mxu0
    %v471 = vadd.f32 %v310, %v470
    %472 = vmatmul.f32.gmra.mxu0 %v149
    %v473 = vpop.f32.mrf.mxu0
    %v474 = vadd.f32 %v310, %v473
    %475 = vmatmul.f32.gmra.mxu0 %v154
    %v476 = vpop.f32.mrf.mxu0
    %v477 = vadd.f32 %v310, %v476
    %478 = vmatmul.f32.gmra.mxu0 %v159
    %v479 = vpop.f32.mrf.mxu0
    %v480 = vadd.f32 %v310, %v479
    %481 = vdwg.mxu0
    %482 = vmatpush.msra.mxu0 %v226
    %483 = vmatpush.msra.mxu0 %v224
    %484 = vmatpush.msra.mxu0 %v222
    %485 = vmatpush.msra.mxu0 %v220
    %486 = vmatpush.msra.mxu0 %v218
    %487 = vmatpush.msra.mxu0 %v216
    %488 = vmatpush.msra.mxu0 %v214
    %489 = vmatpush.msra.mxu0 %v212
    %490 = vmatpush.msra.mxu0 %v210
    %491 = vmatpush.msra.mxu0 %v208
    %492 = vmatpush.msra.mxu0 %v206
    %493 = vmatpush.msra.mxu0 %v204
    %494 = vmatpush.msra.mxu0 %v202
    %495 = vmatpush.msra.mxu0 %v200
    %496 = vmatpush.msra.mxu0 %v198
    %497 = vmatpush.msra.mxu0 %v196
    %498 = vmatmul.f32.gmra.mxu0 %v40
    %v499 = vpop.f32.mrf.mxu0
    %v500 = vadd.f32 %v408, %v499
    %501 = vmatmul.f32.gmra.mxu0 %v45
    %v502 = vpop.f32.mrf.mxu0
    %v503 = vadd.f32 %v411, %v502
    %504 = vmatmul.f32.gmra.mxu0 %v50
    %v505 = vpop.f32.mrf.mxu0
    %v506 = vadd.f32 %v414, %v505
    %507 = vmatmul.f32.gmra.mxu0 %v55
    %v508 = vpop.f32.mrf.mxu0
    %v509 = vadd.f32 %v417, %v508
    %510 = vmatmul.f32.gmra.mxu0 %v60
    %v511 = vpop.f32.mrf.mxu0
    %v512 = vadd.f32 %v420, %v511
    %513 = vmatmul.f32.gmra.mxu0 %v65
    %v514 = vpop.f32.mrf.mxu0
    %v515 = vadd.f32 %v423, %v514
    %516 = vmatmul.f32.gmra.mxu0 %v70
    %v517 = vpop.f32.mrf.mxu0
    %v518 = vadd.f32 %v426, %v517
    %519 = vmatmul.f32.gmra.mxu0 %v75
    %v520 = vpop.f32.mrf.mxu0
    %v521 = vadd.f32 %v429, %v520
    %522 = vmatmul.f32.gmra.mxu0 %v80
    %v523 = vpop.f32.mrf.mxu0
    %v524 = vadd.f32 %v432, %v523
    %525 = vmatmul.f32.gmra.mxu0 %v85
    %v526 = vpop.f32.mrf.mxu0
    %v527 = vadd.f32 %v435, %v526
    %528 = vmatmul.f32.gmra.mxu0 %v90
    %v529 = vpop.f32.mrf.mxu0
    %v530 = vadd.f32 %v438, %v529
    %531 = vmatmul.f32.gmra.mxu0 %v95
    %v532 = vpop.f32.mrf.mxu0
    %v533 = vadd.f32 %v441, %v532
    %534 = vmatmul.f32.gmra.mxu0 %v100
    %v535 = vpop.f32.mrf.mxu0
    %v536 = vadd.f32 %v444, %v535
    %537 = vmatmul.f32.gmra.mxu0 %v105
    %v538 = vpop.f32.mrf.mxu0
    %v539 = vadd.f32 %v447, %v538
    %540 = vmatmul.f32.gmra.mxu0 %v110
    %v541 = vpop.f32.mrf.mxu0
    %v542 = vadd.f32 %v450, %v541
    %543 = vmatmul.f32.gmra.mxu0 %v115
    %v544 = vpop.f32.mrf.mxu0
    %v545 = vadd.f32 %v453, %v544
    %546 = vmatmul.f32.gmra.mxu0 %v120
    %v547 = vpop.f32.mrf.mxu0
    %v548 = vadd.f32 %v456, %v547
    %549 = vmatmul.f32.gmra.mxu0 %v125
    %v550 = vpop.f32.mrf.mxu0
    %v551 = vadd.f32 %v459, %v550
    %552 = vmatmul.f32.gmra.mxu0 %v130
    %v553 = vpop.f32.mrf.mxu0
    %v554 = vadd.f32 %v462, %v553
    %555 = vmatmul.f32.gmra.mxu0 %v135
    %v556 = vpop.f32.mrf.mxu0
    %v557 = vadd.f32 %v465, %v556
    %558 = vmatmul.f32.gmra.mxu0 %v140
    %v559 = vpop.f32.mrf.mxu0
    %v560 = vadd.f32 %v468, %v559
    %561 = vmatmul.f32.gmra.mxu0 %v145
    %v562 = vpop.f32.mrf.mxu0
    %v563 = vadd.f32 %v471, %v562
    %564 = vmatmul.f32.gmra.mxu0 %v150
    %v565 = vpop.f32.mrf.mxu0
    %v566 = vadd.f32 %v474, %v565
    %567 = vmatmul.f32.gmra.mxu0 %v155
    %v568 = vpop.f32.mrf.mxu0
    %v569 = vadd.f32 %v477, %v568
    %570 = vmatmul.f32.gmra.mxu0 %v160
    %v571 = vpop.f32.mrf.mxu0
    %v572 = vadd.f32 %v480, %v571
    %573 = vdwg.mxu0
    %574 = vmatpush.msra.mxu0 %v258
    %575 = vmatpush.msra.mxu0 %v256
    %576 = vmatpush.msra.mxu0 %v254
    %577 = vmatpush.msra.mxu0 %v252
    %578 = vmatpush.msra.mxu0 %v250
    %579 = vmatpush.msra.mxu0 %v248
    %580 = vmatpush.msra.mxu0 %v246
    %581 = vmatpush.msra.mxu0 %v244
    %582 = vmatpush.msra.mxu0 %v242
    %583 = vmatpush.msra.mxu0 %v240
    %584 = vmatpush.msra.mxu0 %v238
    %585 = vmatpush.msra.mxu0 %v236
    %586 = vmatpush.msra.mxu0 %v234
    %587 = vmatpush.msra.mxu0 %v232
    %588 = vmatpush.msra.mxu0 %v230
    %589 = vmatpush.msra.mxu0 %v228
    %590 = vmatmul.f32.gmra.mxu0 %v41
    %v591 = vpop.f32.mrf.mxu0
    %v592 = vadd.f32 %v500, %v591
    %593 = vmatmul.f32.gmra.mxu0 %v46
    %v594 = vpop.f32.mrf.mxu0
    %v595 = vadd.f32 %v503, %v594
    %596 = vmatmul.f32.gmra.mxu0 %v51
    %v597 = vpop.f32.mrf.mxu0
    %v598 = vadd.f32 %v506, %v597
    %599 = vmatmul.f32.gmra.mxu0 %v56
    %v600 = vpop.f32.mrf.mxu0
    %v601 = vadd.f32 %v509, %v600
    %602 = vmatmul.f32.gmra.mxu0 %v61
    %v603 = vpop.f32.mrf.mxu0
    %v604 = vadd.f32 %v512, %v603
    %605 = vmatmul.f32.gmra.mxu0 %v66
    %v606 = vpop.f32.mrf.mxu0
    %v607 = vadd.f32 %v515, %v606
    %608 = vmatmul.f32.gmra.mxu0 %v71
    %v609 = vpop.f32.mrf.mxu0
    %v610 = vadd.f32 %v518, %v609
    %611 = vmatmul.f32.gmra.mxu0 %v76
    %v612 = vpop.f32.mrf.mxu0
    %v613 = vadd.f32 %v521, %v612
    %614 = vmatmul.f32.gmra.mxu0 %v81
    %v615 = vpop.f32.mrf.mxu0
    %v616 = vadd.f32 %v524, %v615
    %617 = vmatmul.f32.gmra.mxu0 %v86
    %v618 = vpop.f32.mrf.mxu0
    %v619 = vadd.f32 %v527, %v618
    %620 = vmatmul.f32.gmra.mxu0 %v91
    %v621 = vpop.f32.mrf.mxu0
    %v622 = vadd.f32 %v530, %v621
    %623 = vmatmul.f32.gmra.mxu0 %v96
    %v624 = vpop.f32.mrf.mxu0
    %v625 = vadd.f32 %v533, %v624
    %626 = vmatmul.f32.gmra.mxu0 %v101
    %v627 = vpop.f32.mrf.mxu0
    %v628 = vadd.f32 %v536, %v627
    %629 = vmatmul.f32.gmra.mxu0 %v106
    %v630 = vpop.f32.mrf.mxu0
    %v631 = vadd.f32 %v539, %v630
    %632 = vmatmul.f32.gmra.mxu0 %v111
    %v633 = vpop.f32.mrf.mxu0
    %v634 = vadd.f32 %v542, %v633
    %635 = vmatmul.f32.gmra.mxu0 %v116
    %v636 = vpop.f32.mrf.mxu0
    %v637 = vadd.f32 %v545, %v636
    %638 = vmatmul.f32.gmra.mxu0 %v121
    %v639 = vpop.f32.mrf.mxu0
    %v640 = vadd.f32 %v548, %v639
    %641 = vmatmul.f32.gmra.mxu0 %v126
    %v642 = vpop.f32.mrf.mxu0
    %v643 = vadd.f32 %v551, %v642
    %644 = vmatmul.f32.gmra.mxu0 %v131
    %v645 = vpop.f32.mrf.mxu0
    %v646 = vadd.f32 %v554, %v645
    %647 = vmatmul.f32.gmra.mxu0 %v136
    %v648 = vpop.f32.mrf.mxu0
    %v649 = vadd.f32 %v557, %v648
    %650 = vmatmul.f32.gmra.mxu0 %v141
    %v651 = vpop.f32.mrf.mxu0
    %v652 = vadd.f32 %v560, %v651
    %653 = vmatmul.f32.gmra.mxu0 %v146
    %v654 = vpop.f32.mrf.mxu0
    %v655 = vadd.f32 %v563, %v654
    %656 = vmatmul.f32.gmra.mxu0 %v151
    %v657 = vpop.f32.mrf.mxu0
    %v658 = vadd.f32 %v566, %v657
    %659 = vmatmul.f32.gmra.mxu0 %v156
    %v660 = vpop.f32.mrf.mxu0
    %v661 = vadd.f32 %v569, %v660
    %662 = vmatmul.f32.gmra.mxu0 %v161
    %v663 = vpop.f32.mrf.mxu0
    %v664 = vadd.f32 %v572, %v663
    %665 = vdwg.mxu0
    %666 = vmatpush.msra.mxu0 %v290
    %667 = vmatpush.msra.mxu0 %v288
    %668 = vmatpush.msra.mxu0 %v286
    %669 = vmatpush.msra.mxu0 %v284
    %670 = vmatpush.msra.mxu0 %v282
    %671 = vmatpush.msra.mxu0 %v280
    %672 = vmatpush.msra.mxu0 %v278
    %673 = vmatpush.msra.mxu0 %v276
    %674 = vmatpush.msra.mxu0 %v274
    %675 = vmatpush.msra.mxu0 %v272
    %676 = vmatpush.msra.mxu0 %v270
    %677 = vmatpush.msra.mxu0 %v268
    %678 = vmatpush.msra.mxu0 %v266
    %679 = vmatpush.msra.mxu0 %v264
    %680 = vmatpush.msra.mxu0 %v262
    %681 = vmatpush.msra.mxu0 %v260
    %682 = vmatmul.f32.gmra.mxu0 %v42
    %v683 = vpop.f32.mrf.mxu0
    %v684 = vadd.f32 %v592, %v683
    %685 = vmatmul.f32.gmra.mxu0 %v47
    %v686 = vpop.f32.mrf.mxu0
    %v687 = vadd.f32 %v595, %v686
    %688 = vmatmul.f32.gmra.mxu0 %v52
    %v689 = vpop.f32.mrf.mxu0
    %v690 = vadd.f32 %v598, %v689
    %691 = vmatmul.f32.gmra.mxu0 %v57
    %v692 = vpop.f32.mrf.mxu0
    %v693 = vadd.f32 %v601, %v692
    %694 = vmatmul.f32.gmra.mxu0 %v62
    %v695 = vpop.f32.mrf.mxu0
    %v696 = vadd.f32 %v604, %v695
    %697 = vmatmul.f32.gmra.mxu0 %v67
    %v698 = vpop.f32.mrf.mxu0
    %v699 = vadd.f32 %v607, %v698
    %700 = vmatmul.f32.gmra.mxu0 %v72
    %v701 = vpop.f32.mrf.mxu0
    %v702 = vadd.f32 %v610, %v701
    %703 = vmatmul.f32.gmra.mxu0 %v77
    %v704 = vpop.f32.mrf.mxu0
    %v705 = vadd.f32 %v613, %v704
    %706 = vmatmul.f32.gmra.mxu0 %v82
    %v707 = vpop.f32.mrf.mxu0
    %v708 = vadd.f32 %v616, %v707
    %709 = vmatmul.f32.gmra.mxu0 %v87
    %v710 = vpop.f32.mrf.mxu0
    %v711 = vadd.f32 %v619, %v710
    %712 = vmatmul.f32.gmra.mxu0 %v92
    %v713 = vpop.f32.mrf.mxu0
    %v714 = vadd.f32 %v622, %v713
    %715 = vmatmul.f32.gmra.mxu0 %v97
    %v716 = vpop.f32.mrf.mxu0
    %v717 = vadd.f32 %v625, %v716
    %718 = vmatmul.f32.gmra.mxu0 %v102
    %v719 = vpop.f32.mrf.mxu0
    %v720 = vadd.f32 %v628, %v719
    %721 = vmatmul.f32.gmra.mxu0 %v107
    %v722 = vpop.f32.mrf.mxu0
    %v723 = vadd.f32 %v631, %v722
    %724 = vmatmul.f32.gmra.mxu0 %v112
    %v725 = vpop.f32.mrf.mxu0
    %v726 = vadd.f32 %v634, %v725
    %727 = vmatmul.f32.gmra.mxu0 %v117
    %v728 = vpop.f32.mrf.mxu0
    %v729 = vadd.f32 %v637, %v728
    %730 = vmatmul.f32.gmra.mxu0 %v122
    %v731 = vpop.f32.mrf.mxu0
    %v732 = vadd.f32 %v640, %v731
    %733 = vmatmul.f32.gmra.mxu0 %v127
    %v734 = vpop.f32.mrf.mxu0
    %v735 = vadd.f32 %v643, %v734
    %736 = vmatmul.f32.gmra.mxu0 %v132
    %v737 = vpop.f32.mrf.mxu0
    %v738 = vadd.f32 %v646, %v737
    %739 = vmatmul.f32.gmra.mxu0 %v137
    %v740 = vpop.f32.mrf.mxu0
    %v741 = vadd.f32 %v649, %v740
    %742 = vmatmul.f32.gmra.mxu0 %v142
    %v743 = vpop.f32.mrf.mxu0
    %v744 = vadd.f32 %v652, %v743
    %745 = vmatmul.f32.gmra.mxu0 %v147
    %v746 = vpop.f32.mrf.mxu0
    %v747 = vadd.f32 %v655, %v746
    %748 = vmatmul.f32.gmra.mxu0 %v152
    %v749 = vpop.f32.mrf.mxu0
    %v750 = vadd.f32 %v658, %v749
    %751 = vmatmul.f32.gmra.mxu0 %v157
    %v752 = vpop.f32.mrf.mxu0
    %v753 = vadd.f32 %v661, %v752
    %754 = vmatmul.f32.gmra.mxu0 %v162
    %v755 = vpop.f32.mrf.mxu0
    %v756 = vadd.f32 %v664, %v755
    %757 = vdwg.mxu0
    %758 = vmatpush.msra.mxu0 0.0
    %759 = vmatpush.msra.mxu0 0.0
    %760 = vmatpush.msra.mxu0 0.0
    %761 = vmatpush.msra.mxu0 0.0
    %762 = vmatpush.msra.mxu0 0.0
    %763 = vmatpush.msra.mxu0 0.0
    %764 = vmatpush.msra.mxu0 0.0
    %765 = vmatpush.msra.mxu0 0.0
    %766 = vmatpush.msra.mxu0 %v306
    %767 = vmatpush.msra.mxu0 %v304
    %768 = vmatpush.msra.mxu0 %v302
    %769 = vmatpush.msra.mxu0 %v300
    %770 = vmatpush.msra.mxu0 %v298
    %771 = vmatpush.msra.mxu0 %v296
    %772 = vmatpush.msra.mxu0 %v294
    %773 = vmatpush.msra.mxu0 %v292
    %774 = vmatmul.f32.gmra.mxu0 %v316
    %v775 = vpop.f32.mrf.mxu0
    %v776 = vadd.f32 %v684, %v775
    %777 = vmatmul.f32.gmra.mxu0 %v319
    %v778 = vpop.f32.mrf.mxu0
    %v779 = vadd.f32 %v687, %v778
    %780 = vmatmul.f32.gmra.mxu0 %v322
    %v781 = vpop.f32.mrf.mxu0
    %v782 = vadd.f32 %v690, %v781
    %783 = vmatmul.f32.gmra.mxu0 %v325
    %v784 = vpop.f32.mrf.mxu0
    %v785 = vadd.f32 %v693, %v784
    %786 = vmatmul.f32.gmra.mxu0 %v328
    %v787 = vpop.f32.mrf.mxu0
    %v788 = vadd.f32 %v696, %v787
    %789 = vmatmul.f32.gmra.mxu0 %v331
    %v790 = vpop.f32.mrf.mxu0
    %v791 = vadd.f32 %v699, %v790
    %792 = vmatmul.f32.gmra.mxu0 %v334
    %v793 = vpop.f32.mrf.mxu0
    %v794 = vadd.f32 %v702, %v793
    %795 = vmatmul.f32.gmra.mxu0 %v337
    %v796 = vpop.f32.mrf.mxu0
    %v797 = vadd.f32 %v705, %v796
    %798 = vmatmul.f32.gmra.mxu0 %v340
    %v799 = vpop.f32.mrf.mxu0
    %v800 = vadd.f32 %v708, %v799
    %801 = vmatmul.f32.gmra.mxu0 %v343
    %v802 = vpop.f32.mrf.mxu0
    %v803 = vadd.f32 %v711, %v802
    %804 = vmatmul.f32.gmra.mxu0 %v346
    %v805 = vpop.f32.mrf.mxu0
    %v806 = vadd.f32 %v714, %v805
    %807 = vmatmul.f32.gmra.mxu0 %v349
    %v808 = vpop.f32.mrf.mxu0
    %v809 = vadd.f32 %v717, %v808
    %810 = vmatmul.f32.gmra.mxu0 %v352
    %v811 = vpop.f32.mrf.mxu0
    %v812 = vadd.f32 %v720, %v811
    %813 = vmatmul.f32.gmra.mxu0 %v355
    %v814 = vpop.f32.mrf.mxu0
    %v815 = vadd.f32 %v723, %v814
    %816 = vmatmul.f32.gmra.mxu0 %v358
    %v817 = vpop.f32.mrf.mxu0
    %v818 = vadd.f32 %v726, %v817
    %819 = vmatmul.f32.gmra.mxu0 %v361
    %v820 = vpop.f32.mrf.mxu0
    %v821 = vadd.f32 %v729, %v820
    %822 = vmatmul.f32.gmra.mxu0 %v364
    %v823 = vpop.f32.mrf.mxu0
    %v824 = vadd.f32 %v732, %v823
    %825 = vmatmul.f32.gmra.mxu0 %v367
    %v826 = vpop.f32.mrf.mxu0
    %v827 = vadd.f32 %v735, %v826
    %828 = vmatmul.f32.gmra.mxu0 %v370
    %v829 = vpop.f32.mrf.mxu0
    %v830 = vadd.f32 %v738, %v829
    %831 = vmatmul.f32.gmra.mxu0 %v373
    %v832 = vpop.f32.mrf.mxu0
    %v833 = vadd.f32 %v741, %v832
    %834 = vmatmul.f32.gmra.mxu0 %v376
    %v835 = vpop.f32.mrf.mxu0
    %v836 = vadd.f32 %v744, %v835
    %837 = vmatmul.f32.gmra.mxu0 %v379
    %v838 = vpop.f32.mrf.mxu0
    %v839 = vadd.f32 %v747, %v838
    %840 = vmatmul.f32.gmra.mxu0 %v382
    %v841 = vpop.f32.mrf.mxu0
    %v842 = vadd.f32 %v750, %v841
    %843 = vmatmul.f32.gmra.mxu0 %v385
    %v844 = vpop.f32.mrf.mxu0
    %v845 = vadd.f32 %v753, %v844
    %846 = vmatmul.f32.gmra.mxu0 %v388
    %v847 = vpop.f32.mrf.mxu0
    %v848 = vadd.f32 %v756, %v847
    %849 = vdwg.mxu0
    %850 = vmatpush.msra.mxu0 %v195
    %851 = vmatpush.msra.mxu0 %v193
    %852 = vmatpush.msra.mxu0 %v191
    %853 = vmatpush.msra.mxu0 %v189
    %854 = vmatpush.msra.mxu0 %v187
    %855 = vmatpush.msra.mxu0 %v185
    %856 = vmatpush.msra.mxu0 %v183
    %857 = vmatpush.msra.mxu0 %v181
    %858 = vmatpush.msra.mxu0 %v179
    %859 = vmatpush.msra.mxu0 %v177
    %860 = vmatpush.msra.mxu0 %v175
    %861 = vmatpush.msra.mxu0 %v173
    %862 = vmatpush.msra.mxu0 %v171
    %863 = vmatpush.msra.mxu0 %v169
    %864 = vmatpush.msra.mxu0 %v167
    %865 = vmatpush.msra.mxu0 %v165
    %866 = vmatmul.f32.gmra.mxu0 %v39
    %v867 = vpop.f32.mrf.mxu0
    %v868 = vadd.f32 %v311, %v867
    %869 = vmatmul.f32.gmra.mxu0 %v44
    %v870 = vpop.f32.mrf.mxu0
    %v871 = vadd.f32 %v311, %v870
    %872 = vmatmul.f32.gmra.mxu0 %v49
    %v873 = vpop.f32.mrf.mxu0
    %v874 = vadd.f32 %v311, %v873
    %875 = vmatmul.f32.gmra.mxu0 %v54
    %v876 = vpop.f32.mrf.mxu0
    %v877 = vadd.f32 %v311, %v876
    %878 = vmatmul.f32.gmra.mxu0 %v59
    %v879 = vpop.f32.mrf.mxu0
    %v880 = vadd.f32 %v311, %v879
    %881 = vmatmul.f32.gmra.mxu0 %v64
    %v882 = vpop.f32.mrf.mxu0
    %v883 = vadd.f32 %v311, %v882
    %884 = vmatmul.f32.gmra.mxu0 %v69
    %v885 = vpop.f32.mrf.mxu0
    %v886 = vadd.f32 %v311, %v885
    %887 = vmatmul.f32.gmra.mxu0 %v74
    %v888 = vpop.f32.mrf.mxu0
    %v889 = vadd.f32 %v311, %v888
    %890 = vmatmul.f32.gmra.mxu0 %v79
    %v891 = vpop.f32.mrf.mxu0
    %v892 = vadd.f32 %v311, %v891
    %893 = vmatmul.f32.gmra.mxu0 %v84
    %v894 = vpop.f32.mrf.mxu0
    %v895 = vadd.f32 %v311, %v894
    %896 = vmatmul.f32.gmra.mxu0 %v89
    %v897 = vpop.f32.mrf.mxu0
    %v898 = vadd.f32 %v311, %v897
    %899 = vmatmul.f32.gmra.mxu0 %v94
    %v900 = vpop.f32.mrf.mxu0
    %v901 = vadd.f32 %v311, %v900
    %902 = vmatmul.f32.gmra.mxu0 %v99
    %v903 = vpop.f32.mrf.mxu0
    %v904 = vadd.f32 %v311, %v903
    %905 = vmatmul.f32.gmra.mxu0 %v104
    %v906 = vpop.f32.mrf.mxu0
    %v907 = vadd.f32 %v311, %v906
    %908 = vmatmul.f32.gmra.mxu0 %v109
    %v909 = vpop.f32.mrf.mxu0
    %v910 = vadd.f32 %v311, %v909
    %911 = vmatmul.f32.gmra.mxu0 %v114
    %v912 = vpop.f32.mrf.mxu0
    %v913 = vadd.f32 %v311, %v912
    %914 = vmatmul.f32.gmra.mxu0 %v119
    %v915 = vpop.f32.mrf.mxu0
    %v916 = vadd.f32 %v311, %v915
    %917 = vmatmul.f32.gmra.mxu0 %v124
    %v918 = vpop.f32.mrf.mxu0
    %v919 = vadd.f32 %v311, %v918
    %920 = vmatmul.f32.gmra.mxu0 %v129
    %v921 = vpop.f32.mrf.mxu0
    %v922 = vadd.f32 %v311, %v921
    %923 = vmatmul.f32.gmra.mxu0 %v134
    %v924 = vpop.f32.mrf.mxu0
    %v925 = vadd.f32 %v311, %v924
    %926 = vmatmul.f32.gmra.mxu0 %v139
    %v927 = vpop.f32.mrf.mxu0
    %v928 = vadd.f32 %v311, %v927
    %929 = vmatmul.f32.gmra.mxu0 %v144
    %v930 = vpop.f32.mrf.mxu0
    %v931 = vadd.f32 %v311, %v930
    %932 = vmatmul.f32.gmra.mxu0 %v149
    %v933 = vpop.f32.mrf.mxu0
    %v934 = vadd.f32 %v311, %v933
    %935 = vmatmul.f32.gmra.mxu0 %v154
    %v936 = vpop.f32.mrf.mxu0
    %v937 = vadd.f32 %v311, %v936
    %938 = vmatmul.f32.gmra.mxu0 %v159
    %v939 = vpop.f32.mrf.mxu0
    %v940 = vadd.f32 %v311, %v939
    %941 = vdwg.mxu0
    %942 = vmatpush.msra.mxu0 %v227
    %943 = vmatpush.msra.mxu0 %v225
    %944 = vmatpush.msra.mxu0 %v223
    %945 = vmatpush.msra.mxu0 %v221
    %946 = vmatpush.msra.mxu0 %v219
    %947 = vmatpush.msra.mxu0 %v217
    %948 = vmatpush.msra.mxu0 %v215
    %949 = vmatpush.msra.mxu0 %v213
    %950 = vmatpush.msra.mxu0 %v211
    %951 = vmatpush.msra.mxu0 %v209
    %952 = vmatpush.msra.mxu0 %v207
    %953 = vmatpush.msra.mxu0 %v205
    %954 = vmatpush.msra.mxu0 %v203
    %955 = vmatpush.msra.mxu0 %v201
    %956 = vmatpush.msra.mxu0 %v199
    %957 = vmatpush.msra.mxu0 %v197
    %958 = vmatmul.f32.gmra.mxu0 %v40
    %v959 = vpop.f32.mrf.mxu0
    %v960 = vadd.f32 %v868, %v959
    %961 = vmatmul.f32.gmra.mxu0 %v45
    %v962 = vpop.f32.mrf.mxu0
    %v963 = vadd.f32 %v871, %v962
    %964 = vmatmul.f32.gmra.mxu0 %v50
    %v965 = vpop.f32.mrf.mxu0
    %v966 = vadd.f32 %v874, %v965
    %967 = vmatmul.f32.gmra.mxu0 %v55
    %v968 = vpop.f32.mrf.mxu0
    %v969 = vadd.f32 %v877, %v968
    %970 = vmatmul.f32.gmra.mxu0 %v60
    %v971 = vpop.f32.mrf.mxu0
    %v972 = vadd.f32 %v880, %v971
    %973 = vmatmul.f32.gmra.mxu0 %v65
    %v974 = vpop.f32.mrf.mxu0
    %v975 = vadd.f32 %v883, %v974
    %976 = vmatmul.f32.gmra.mxu0 %v70
    %v977 = vpop.f32.mrf.mxu0
    %v978 = vadd.f32 %v886, %v977
    %979 = vmatmul.f32.gmra.mxu0 %v75
    %v980 = vpop.f32.mrf.mxu0
    %v981 = vadd.f32 %v889, %v980
    %982 = vmatmul.f32.gmra.mxu0 %v80
    %v983 = vpop.f32.mrf.mxu0
    %v984 = vadd.f32 %v892, %v983
    %985 = vmatmul.f32.gmra.mxu0 %v85
    %v986 = vpop.f32.mrf.mxu0
    %v987 = vadd.f32 %v895, %v986
    %988 = vmatmul.f32.gmra.mxu0 %v90
    %v989 = vpop.f32.mrf.mxu0
    %v990 = vadd.f32 %v898, %v989
    %991 = vmatmul.f32.gmra.mxu0 %v95
    %v992 = vpop.f32.mrf.mxu0
    %v993 = vadd.f32 %v901, %v992
    %994 = vmatmul.f32.gmra.mxu0 %v100
    %v995 = vpop.f32.mrf.mxu0
    %v996 = vadd.f32 %v904, %v995
    %997 = vmatmul.f32.gmra.mxu0 %v105
    %v998 = vpop.f32.mrf.mxu0
    %v999 = vadd.f32 %v907, %v998
    %1000 = vmatmul.f32.gmra.mxu0 %v110
    %v1001 = vpop.f32.mrf.mxu0
    %v1002 = vadd.f32 %v910, %v1001
    %1003 = vmatmul.f32.gmra.mxu0 %v115
    %v1004 = vpop.f32.mrf.mxu0
    %v1005 = vadd.f32 %v913, %v1004
    %1006 = vmatmul.f32.gmra.mxu0 %v120
    %v1007 = vpop.f32.mrf.mxu0
    %v1008 = vadd.f32 %v916, %v1007
    %1009 = vmatmul.f32.gmra.mxu0 %v125
    %v1010 = vpop.f32.mrf.mxu0
    %v1011 = vadd.f32 %v919, %v1010
    %1012 = vmatmul.f32.gmra.mxu0 %v130
    %v1013 = vpop.f32.mrf.mxu0
    %v1014 = vadd.f32 %v922, %v1013
    %1015 = vmatmul.f32.gmra.mxu0 %v135
    %v1016 = vpop.f32.mrf.mxu0
    %v1017 = vadd.f32 %v925, %v1016
    %1018 = vmatmul.f32.gmra.mxu0 %v140
    %v1019 = vpop.f32.mrf.mxu0
    %v1020 = vadd.f32 %v928, %v1019
    %1021 = vmatmul.f32.gmra.mxu0 %v145
    %v1022 = vpop.f32.mrf.mxu0
    %v1023 = vadd.f32 %v931, %v1022
    %1024 = vmatmul.f32.gmra.mxu0 %v150
    %v1025 = vpop.f32.mrf.mxu0
    %v1026 = vadd.f32 %v934, %v1025
    %1027 = vmatmul.f32.gmra.mxu0 %v155
    %v1028 = vpop.f32.mrf.mxu0
    %v1029 = vadd.f32 %v937, %v1028
    %1030 = vmatmul.f32.gmra.mxu0 %v160
    %v1031 = vpop.f32.mrf.mxu0
    %v1032 = vadd.f32 %v940, %v1031
    %1033 = vdwg.mxu0
    %1034 = vmatpush.msra.mxu0 %v259
    %1035 = vmatpush.msra.mxu0 %v257
    %1036 = vmatpush.msra.mxu0 %v255
    %1037 = vmatpush.msra.mxu0 %v253
    %1038 = vmatpush.msra.mxu0 %v251
    %1039 = vmatpush.msra.mxu0 %v249
    %1040 = vmatpush.msra.mxu0 %v247
    %1041 = vmatpush.msra.mxu0 %v245
    %1042 = vmatpush.msra.mxu0 %v243
    %1043 = vmatpush.msra.mxu0 %v241
    %1044 = vmatpush.msra.mxu0 %v239
    %1045 = vmatpush.msra.mxu0 %v237
    %1046 = vmatpush.msra.mxu0 %v235
    %1047 = vmatpush.msra.mxu0 %v233
    %1048 = vmatpush.msra.mxu0 %v231
    %1049 = vmatpush.msra.mxu0 %v229
    %1050 = vmatmul.f32.gmra.mxu0 %v41
    %v1051 = vpop.f32.mrf.mxu0
    %v1052 = vadd.f32 %v960, %v1051
    %1053 = vmatmul.f32.gmra.mxu0 %v46
    %v1054 = vpop.f32.mrf.mxu0
    %v1055 = vadd.f32 %v963, %v1054
    %1056 = vmatmul.f32.gmra.mxu0 %v51
    %v1057 = vpop.f32.mrf.mxu0
    %v1058 = vadd.f32 %v966, %v1057
    %1059 = vmatmul.f32.gmra.mxu0 %v56
    %v1060 = vpop.f32.mrf.mxu0
    %v1061 = vadd.f32 %v969, %v1060
    %1062 = vmatmul.f32.gmra.mxu0 %v61
    %v1063 = vpop.f32.mrf.mxu0
    %v1064 = vadd.f32 %v972, %v1063
    %1065 = vmatmul.f32.gmra.mxu0 %v66
    %v1066 = vpop.f32.mrf.mxu0
    %v1067 = vadd.f32 %v975, %v1066
    %1068 = vmatmul.f32.gmra.mxu0 %v71
    %v1069 = vpop.f32.mrf.mxu0
    %v1070 = vadd.f32 %v978, %v1069
    %1071 = vmatmul.f32.gmra.mxu0 %v76
    %v1072 = vpop.f32.mrf.mxu0
    %v1073 = vadd.f32 %v981, %v1072
    %1074 = vmatmul.f32.gmra.mxu0 %v81
    %v1075 = vpop.f32.mrf.mxu0
    %v1076 = vadd.f32 %v984, %v1075
    %1077 = vmatmul.f32.gmra.mxu0 %v86
    %v1078 = vpop.f32.mrf.mxu0
    %v1079 = vadd.f32 %v987, %v1078
    %1080 = vmatmul.f32.gmra.mxu0 %v91
    %v1081 = vpop.f32.mrf.mxu0
    %v1082 = vadd.f32 %v990, %v1081
    %1083 = vmatmul.f32.gmra.mxu0 %v96
    %v1084 = vpop.f32.mrf.mxu0
    %v1085 = vadd.f32 %v993, %v1084
    %1086 = vmatmul.f32.gmra.mxu0 %v101
    %v1087 = vpop.f32.mrf.mxu0
    %v1088 = vadd.f32 %v996, %v1087
    %1089 = vmatmul.f32.gmra.mxu0 %v106
    %v1090 = vpop.f32.mrf.mxu0
    %v1091 = vadd.f32 %v999, %v1090
    %1092 = vmatmul.f32.gmra.mxu0 %v111
    %v1093 = vpop.f32.mrf.mxu0
    %v1094 = vadd.f32 %v1002, %v1093
    %1095 = vmatmul.f32.gmra.mxu0 %v116
    %v1096 = vpop.f32.mrf.mxu0
    %v1097 = vadd.f32 %v1005, %v1096
    %1098 = vmatmul.f32.gmra.mxu0 %v121
    %v1099 = vpop.f32.mrf.mxu0
    %v1100 = vadd.f32 %v1008, %v1099
    %1101 = vmatmul.f32.gmra.mxu0 %v126
    %v1102 = vpop.f32.mrf.mxu0
    %v1103 = vadd.f32 %v1011, %v1102
    %1104 = vmatmul.f32.gmra.mxu0 %v131
    %v1105 = vpop.f32.mrf.mxu0
    %v1106 = vadd.f32 %v1014, %v1105
    %1107 = vmatmul.f32.gmra.mxu0 %v136
    %v1108 = vpop.f32.mrf.mxu0
    %v1109 = vadd.f32 %v1017, %v1108
    %1110 = vmatmul.f32.gmra.mxu0 %v141
    %v1111 = vpop.f32.mrf.mxu0
    %v1112 = vadd.f32 %v1020, %v1111
    %1113 = vmatmul.f32.gmra.mxu0 %v146
    %v1114 = vpop.f32.mrf.mxu0
    %v1115 = vadd.f32 %v1023, %v1114
    %1116 = vmatmul.f32.gmra.mxu0 %v151
    %v1117 = vpop.f32.mrf.mxu0
    %v1118 = vadd.f32 %v1026, %v1117
    %1119 = vmatmul.f32.gmra.mxu0 %v156
    %v1120 = vpop.f32.mrf.mxu0
    %v1121 = vadd.f32 %v1029, %v1120
    %1122 = vmatmul.f32.gmra.mxu0 %v161
    %v1123 = vpop.f32.mrf.mxu0
    %v1124 = vadd.f32 %v1032, %v1123
    %1125 = vdwg.mxu0
    %1126 = vmatpush.msra.mxu0 %v291
    %1127 = vmatpush.msra.mxu0 %v289
    %1128 = vmatpush.msra.mxu0 %v287
    %1129 = vmatpush.msra.mxu0 %v285
    %1130 = vmatpush.msra.mxu0 %v283
    %1131 = vmatpush.msra.mxu0 %v281
    %1132 = vmatpush.msra.mxu0 %v279
    %1133 = vmatpush.msra.mxu0 %v277
    %1134 = vmatpush.msra.mxu0 %v275
    %1135 = vmatpush.msra.mxu0 %v273
    %1136 = vmatpush.msra.mxu0 %v271
    %1137 = vmatpush.msra.mxu0 %v269
    %1138 = vmatpush.msra.mxu0 %v267
    %1139 = vmatpush.msra.mxu0 %v265
    %1140 = vmatpush.msra.mxu0 %v263
    %1141 = vmatpush.msra.mxu0 %v261
    %1142 = vmatmul.f32.gmra.mxu0 %v42
    %v1143 = vpop.f32.mrf.mxu0
    %v1144 = vadd.f32 %v1052, %v1143
    %1145 = vmatmul.f32.gmra.mxu0 %v47
    %v1146 = vpop.f32.mrf.mxu0
    %v1147 = vadd.f32 %v1055, %v1146
    %1148 = vmatmul.f32.gmra.mxu0 %v52
    %v1149 = vpop.f32.mrf.mxu0
    %v1150 = vadd.f32 %v1058, %v1149
    %1151 = vmatmul.f32.gmra.mxu0 %v57
    %v1152 = vpop.f32.mrf.mxu0
    %v1153 = vadd.f32 %v1061, %v1152
    %1154 = vmatmul.f32.gmra.mxu0 %v62
    %v1155 = vpop.f32.mrf.mxu0
    %v1156 = vadd.f32 %v1064, %v1155
    %1157 = vmatmul.f32.gmra.mxu0 %v67
    %v1158 = vpop.f32.mrf.mxu0
    %v1159 = vadd.f32 %v1067, %v1158
    %1160 = vmatmul.f32.gmra.mxu0 %v72
    %v1161 = vpop.f32.mrf.mxu0
    %v1162 = vadd.f32 %v1070, %v1161
    %1163 = vmatmul.f32.gmra.mxu0 %v77
    %v1164 = vpop.f32.mrf.mxu0
    %v1165 = vadd.f32 %v1073, %v1164
    %1166 = vmatmul.f32.gmra.mxu0 %v82
    %v1167 = vpop.f32.mrf.mxu0
    %v1168 = vadd.f32 %v1076, %v1167
    %1169 = vmatmul.f32.gmra.mxu0 %v87
    %v1170 = vpop.f32.mrf.mxu0
    %v1171 = vadd.f32 %v1079, %v1170
    %1172 = vmatmul.f32.gmra.mxu0 %v92
    %v1173 = vpop.f32.mrf.mxu0
    %v1174 = vadd.f32 %v1082, %v1173
    %1175 = vmatmul.f32.gmra.mxu0 %v97
    %v1176 = vpop.f32.mrf.mxu0
    %v1177 = vadd.f32 %v1085, %v1176
    %1178 = vmatmul.f32.gmra.mxu0 %v102
    %v1179 = vpop.f32.mrf.mxu0
    %v1180 = vadd.f32 %v1088, %v1179
    %1181 = vmatmul.f32.gmra.mxu0 %v107
    %v1182 = vpop.f32.mrf.mxu0
    %v1183 = vadd.f32 %v1091, %v1182
    %1184 = vmatmul.f32.gmra.mxu0 %v112
    %v1185 = vpop.f32.mrf.mxu0
    %v1186 = vadd.f32 %v1094, %v1185
    %1187 = vmatmul.f32.gmra.mxu0 %v117
    %v1188 = vpop.f32.mrf.mxu0
    %v1189 = vadd.f32 %v1097, %v1188
    %1190 = vmatmul.f32.gmra.mxu0 %v122
    %v1191 = vpop.f32.mrf.mxu0
    %v1192 = vadd.f32 %v1100, %v1191
    %1193 = vmatmul.f32.gmra.mxu0 %v127
    %v1194 = vpop.f32.mrf.mxu0
    %v1195 = vadd.f32 %v1103, %v1194
    %1196 = vmatmul.f32.gmra.mxu0 %v132
    %v1197 = vpop.f32.mrf.mxu0
    %v1198 = vadd.f32 %v1106, %v1197
    %1199 = vmatmul.f32.gmra.mxu0 %v137
    %v1200 = vpop.f32.mrf.mxu0
    %v1201 = vadd.f32 %v1109, %v1200
    %1202 = vmatmul.f32.gmra.mxu0 %v142
    %v1203 = vpop.f32.mrf.mxu0
    %v1204 = vadd.f32 %v1112, %v1203
    %1205 = vmatmul.f32.gmra.mxu0 %v147
    %v1206 = vpop.f32.mrf.mxu0
    %v1207 = vadd.f32 %v1115, %v1206
    %1208 = vmatmul.f32.gmra.mxu0 %v152
    %v1209 = vpop.f32.mrf.mxu0
    %v1210 = vadd.f32 %v1118, %v1209
    %1211 = vmatmul.f32.gmra.mxu0 %v157
    %v1212 = vpop.f32.mrf.mxu0
    %v1213 = vadd.f32 %v1121, %v1212
    %1214 = vmatmul.f32.gmra.mxu0 %v162
    %v1215 = vpop.f32.mrf.mxu0
    %v1216 = vadd.f32 %v1124, %v1215
    %1217 = vdwg.mxu0
    %1218 = vmatpush.msra.mxu0 0.0
    %1219 = vmatpush.msra.mxu0 0.0
    %1220 = vmatpush.msra.mxu0 0.0
    %1221 = vmatpush.msra.mxu0 0.0
    %1222 = vmatpush.msra.mxu0 0.0
    %1223 = vmatpush.msra.mxu0 0.0
    %1224 = vmatpush.msra.mxu0 0.0
    %1225 = vmatpush.msra.mxu0 0.0
    %1226 = vmatpush.msra.mxu0 %v307
    %1227 = vmatpush.msra.mxu0 %v305
    %1228 = vmatpush.msra.mxu0 %v303
    %1229 = vmatpush.msra.mxu0 %v301
    %1230 = vmatpush.msra.mxu0 %v299
    %1231 = vmatpush.msra.mxu0 %v297
    %1232 = vmatpush.msra.mxu0 %v295
    %1233 = vmatpush.msra.mxu0 %v293
    %1234 = vmatmul.f32.gmra.mxu0 %v316
    %v1235 = vpop.f32.mrf.mxu0
    %v1236 = vadd.f32 %v1144, %v1235
    %1237 = vmatmul.f32.gmra.mxu0 %v319
    %v1238 = vpop.f32.mrf.mxu0
    %v1239 = vadd.f32 %v1147, %v1238
    %1240 = vmatmul.f32.gmra.mxu0 %v322
    %v1241 = vpop.f32.mrf.mxu0
    %v1242 = vadd.f32 %v1150, %v1241
    %1243 = vmatmul.f32.gmra.mxu0 %v325
    %v1244 = vpop.f32.mrf.mxu0
    %v1245 = vadd.f32 %v1153, %v1244
    %1246 = vmatmul.f32.gmra.mxu0 %v328
    %v1247 = vpop.f32.mrf.mxu0
    %v1248 = vadd.f32 %v1156, %v1247
    %1249 = vmatmul.f32.gmra.mxu0 %v331
    %v1250 = vpop.f32.mrf.mxu0
    %v1251 = vadd.f32 %v1159, %v1250
    %1252 = vmatmul.f32.gmra.mxu0 %v334
    %v1253 = vpop.f32.mrf.mxu0
    %v1254 = vadd.f32 %v1162, %v1253
    %1255 = vmatmul.f32.gmra.mxu0 %v337
    %v1256 = vpop.f32.mrf.mxu0
    %v1257 = vadd.f32 %v1165, %v1256
    %1258 = vmatmul.f32.gmra.mxu0 %v340
    %v1259 = vpop.f32.mrf.mxu0
    %v1260 = vadd.f32 %v1168, %v1259
    %1261 = vmatmul.f32.gmra.mxu0 %v343
    %v1262 = vpop.f32.mrf.mxu0
    %v1263 = vadd.f32 %v1171, %v1262
    %1264 = vmatmul.f32.gmra.mxu0 %v346
    %v1265 = vpop.f32.mrf.mxu0
    %v1266 = vadd.f32 %v1174, %v1265
    %1267 = vmatmul.f32.gmra.mxu0 %v349
    %v1268 = vpop.f32.mrf.mxu0
    %v1269 = vadd.f32 %v1177, %v1268
    %1270 = vmatmul.f32.gmra.mxu0 %v352
    %v1271 = vpop.f32.mrf.mxu0
    %v1272 = vadd.f32 %v1180, %v1271
    %1273 = vmatmul.f32.gmra.mxu0 %v355
    %v1274 = vpop.f32.mrf.mxu0
    %v1275 = vadd.f32 %v1183, %v1274
    %1276 = vmatmul.f32.gmra.mxu0 %v358
    %v1277 = vpop.f32.mrf.mxu0
    %v1278 = vadd.f32 %v1186, %v1277
    %1279 = vmatmul.f32.gmra.mxu0 %v361
    %v1280 = vpop.f32.mrf.mxu0
    %v1281 = vadd.f32 %v1189, %v1280
    %1282 = vmatmul.f32.gmra.mxu0 %v364
    %v1283 = vpop.f32.mrf.mxu0
    %v1284 = vadd.f32 %v1192, %v1283
    %1285 = vmatmul.f32.gmra.mxu0 %v367
    %v1286 = vpop.f32.mrf.mxu0
    %v1287 = vadd.f32 %v1195, %v1286
    %1288 = vmatmul.f32.gmra.mxu0 %v370
    %v1289 = vpop.f32.mrf.mxu0
    %v1290 = vadd.f32 %v1198, %v1289
    %1291 = vmatmul.f32.gmra.mxu0 %v373
    %v1292 = vpop.f32.mrf.mxu0
    %v1293 = vadd.f32 %v1201, %v1292
    %1294 = vmatmul.f32.gmra.mxu0 %v376
    %v1295 = vpop.f32.mrf.mxu0
    %v1296 = vadd.f32 %v1204, %v1295
    %1297 = vmatmul.f32.gmra.mxu0 %v379
    %v1298 = vpop.f32.mrf.mxu0
    %v1299 = vadd.f32 %v1207, %v1298
    %1300 = vmatmul.f32.gmra.mxu0 %v382
    %v1301 = vpop.f32.mrf.mxu0
    %v1302 = vadd.f32 %v1210, %v1301
    %1303 = vmatmul.f32.gmra.mxu0 %v385
    %v1304 = vpop.f32.mrf.mxu0
    %v1305 = vadd.f32 %v1213, %v1304
    %1306 = vmatmul.f32.gmra.mxu0 %v388
    %v1307 = vpop.f32.mrf.mxu0
    %v1308 = vadd.f32 %v1216, %v1307
    %1309 = vdwg.mxu0
    %v1310 = vmul.f32 %v776, 0.01
    %v1311 = vmul.f32 %v1236, 0.01
    %v1312 = vmul.f32 %v779, 0.01
    %v1313 = vmul.f32 %v1239, 0.01
    %v1314 = vmul.f32 %v782, 0.01
    %v1315 = vmul.f32 %v1242, 0.01
    %v1316 = vmul.f32 %v785, 0.01
    %v1317 = vmul.f32 %v1245, 0.01
    %v1318 = vmul.f32 %v788, 0.01
    %v1319 = vmul.f32 %v1248, 0.01
    %v1320 = vmul.f32 %v791, 0.01
    %v1321 = vmul.f32 %v1251, 0.01
    %v1322 = vmul.f32 %v794, 0.01
    %v1323 = vmul.f32 %v1254, 0.01
    %v1324 = vmul.f32 %v797, 0.01
    %v1325 = vmul.f32 %v1257, 0.01
    %v1326 = vmul.f32 %v800, 0.01
    %v1327 = vmul.f32 %v1260, 0.01
    %v1328 = vmul.f32 %v803, 0.01
    %v1329 = vmul.f32 %v1263, 0.01
    %v1330 = vmul.f32 %v806, 0.01
    %v1331 = vmul.f32 %v1266, 0.01
    %v1332 = vmul.f32 %v809, 0.01
    %v1333 = vmul.f32 %v1269, 0.01
    %v1334 = vmul.f32 %v812, 0.01
    %v1335 = vmul.f32 %v1272, 0.01
    %v1336 = vmul.f32 %v815, 0.01
    %v1337 = vmul.f32 %v1275, 0.01
    %v1338 = vmul.f32 %v818, 0.01
    %v1339 = vmul.f32 %v1278, 0.01
    %v1340 = vmul.f32 %v821, 0.01
    %v1341 = vmul.f32 %v1281, 0.01
    %v1342 = vmul.f32 %v824, 0.01
    %v1343 = vmul.f32 %v1284, 0.01
    %v1344 = vmul.f32 %v827, 0.01
    %v1345 = vmul.f32 %v1287, 0.01
    %v1346 = vmul.f32 %v830, 0.01
    %v1347 = vmul.f32 %v1290, 0.01
    %v1348 = vmul.f32 %v833, 0.01
    %v1349 = vmul.f32 %v1293, 0.01
    %v1350 = vmul.f32 %v836, 0.01
    %v1351 = vmul.f32 %v1296, 0.01
    %v1352 = vmul.f32 %v839, 0.01
    %v1353 = vmul.f32 %v1299, 0.01
    %v1354 = vmul.f32 %v842, 0.01
    %v1355 = vmul.f32 %v1302, 0.01
    %v1356 = vmul.f32 %v845, 0.01
    %v1357 = vmul.f32 %v1305, 0.01
    %v1358 = vmul.f32 %v848, 0.01
    %v1359 = vmul.f32 %v1308, 0.01
    %v1360 = vmax.f32 %v776, %v1310
    %v1361 = vmax.f32 %v1236, %v1311
    %v1362 = vmax.f32 %v779, %v1312
    %v1363 = vmax.f32 %v1239, %v1313
    %v1364 = vmax.f32 %v782, %v1314
    %v1365 = vmax.f32 %v1242, %v1315
    %v1366 = vmax.f32 %v785, %v1316
    %v1367 = vmax.f32 %v1245, %v1317
    %v1368 = vmax.f32 %v788, %v1318
    %v1369 = vmax.f32 %v1248, %v1319
    %v1370 = vmax.f32 %v791, %v1320
    %v1371 = vmax.f32 %v1251, %v1321
    %v1372 = vmax.f32 %v794, %v1322
    %v1373 = vmax.f32 %v1254, %v1323
    %v1374 = vmax.f32 %v797, %v1324
    %v1375 = vmax.f32 %v1257, %v1325
    %v1376 = vmax.f32 %v800, %v1326
    %v1377 = vmax.f32 %v1260, %v1327
    %v1378 = vmax.f32 %v803, %v1328
    %v1379 = vmax.f32 %v1263, %v1329
    %v1380 = vmax.f32 %v806, %v1330
    %v1381 = vmax.f32 %v1266, %v1331
    %v1382 = vmax.f32 %v809, %v1332
    %v1383 = vmax.f32 %v1269, %v1333
    %v1384 = vmax.f32 %v812, %v1334
    %v1385 = vmax.f32 %v1272, %v1335
    %v1386 = vmax.f32 %v815, %v1336
    %v1387 = vmax.f32 %v1275, %v1337
    %v1388 = vmax.f32 %v818, %v1338
    %v1389 = vmax.f32 %v1278, %v1339
    %v1390 = vmax.f32 %v821, %v1340
    %v1391 = vmax.f32 %v1281, %v1341
    %v1392 = vmax.f32 %v824, %v1342
    %v1393 = vmax.f32 %v1284, %v1343
    %v1394 = vmax.f32 %v827, %v1344
    %v1395 = vmax.f32 %v1287, %v1345
    %v1396 = vmax.f32 %v830, %v1346
    %v1397 = vmax.f32 %v1290, %v1347
    %v1398 = vmax.f32 %v833, %v1348
    %v1399 = vmax.f32 %v1293, %v1349
    %v1400 = vmax.f32 %v836, %v1350
    %v1401 = vmax.f32 %v1296, %v1351
    %v1402 = vmax.f32 %v839, %v1352
    %v1403 = vmax.f32 %v1299, %v1353
    %v1404 = vmax.f32 %v842, %v1354
    %v1405 = vmax.f32 %v1302, %v1355
    %v1406 = vmax.f32 %v845, %v1356
    %v1407 = vmax.f32 %v1305, %v1357
    %v1408 = vmax.f32 %v848, %v1358
    %v1409 = vmax.f32 %v1308, %v1359
    %1410 = vst [vmem:[#allocation2] sm:$0xff] %v1360
    %1411 = vst [vmem:[#allocation2 + $0x8] sm:$0xff] %v1361
    %1412 = vst [vmem:[#allocation2 + $0x10] sm:$0xff] %v1362
    %1413 = vst [vmem:[#allocation2 + $0x18] sm:$0xff] %v1363
    %1414 = vst [vmem:[#allocation2 + $0x20] sm:$0xff] %v1364
    %1415 = vst [vmem:[#allocation2 + $0x28] sm:$0xff] %v1365
    %1416 = vst [vmem:[#allocation2 + $0x30] sm:$0xff] %v1366
    %1417 = vst [vmem:[#allocation2 + $0x38] sm:$0xff] %v1367
    %1418 = vst [vmem:[#allocation2 + $0x40] sm:$0xff] %v1368
    %1419 = vst [vmem:[#allocation2 + $0x48] sm:$0xff] %v1369
    %1420 = vst [vmem:[#allocation2 + $0x50] sm:$0xff] %v1370
    %1421 = vst [vmem:[#allocation2 + $0x58] sm:$0xff] %v1371
    %1422 = vst [vmem:[#allocation2 + $0x60] sm:$0xff] %v1372
    %1423 = vst [vmem:[#allocation2 + $0x68] sm:$0xff] %v1373
    %1424 = vst [vmem:[#allocation2 + $0x70] sm:$0xff] %v1374
    %1425 = vst [vmem:[#allocation2 + $0x78] sm:$0xff] %v1375
    %1426 = vst [vmem:[#allocation2 + $0x80] sm:$0xff] %v1376
    %1427 = vst [vmem:[#allocation2 + $0x88] sm:$0xff] %v1377
    %1428 = vst [vmem:[#allocation2 + $0x90] sm:$0xff] %v1378
    %1429 = vst [vmem:[#allocation2 + $0x98] sm:$0xff] %v1379
    %1430 = vst [vmem:[#allocation2 + $0xa0] sm:$0xff] %v1380
    %1431 = vst [vmem:[#allocation2 + $0xa8] sm:$0xff] %v1381
    %1432 = vst [vmem:[#allocation2 + $0xb0] sm:$0xff] %v1382
    %1433 = vst [vmem:[#allocation2 + $0xb8] sm:$0xff] %v1383
    %1434 = vst [vmem:[#allocation2 + $0xc0] sm:$0xff] %v1384
    %1435 = vst [vmem:[#allocation2 + $0xc8] sm:$0xff] %v1385
    %1436 = vst [vmem:[#allocation2 + $0xd0] sm:$0xff] %v1386
    %1437 = vst [vmem:[#allocation2 + $0xd8] sm:$0xff] %v1387
    %1438 = vst [vmem:[#allocation2 + $0xe0] sm:$0xff] %v1388
    %1439 = vst [vmem:[#allocation2 + $0xe8] sm:$0xff] %v1389
    %1440 = vst [vmem:[#allocation2 + $0xf0] sm:$0xff] %v1390
    %1441 = vst [vmem:[#allocation2 + $0xf8] sm:$0xff] %v1391
    %1442 = vst [vmem:[#allocation2 + $0x100] sm:$0xff] %v1392
    %1443 = vst [vmem:[#allocation2 + $0x108] sm:$0xff] %v1393
    %1444 = vst [vmem:[#allocation2 + $0x110] sm:$0xff] %v1394
    %1445 = vst [vmem:[#allocation2 + $0x118] sm:$0xff] %v1395
    %1446 = vst [vmem:[#allocation2 + $0x120] sm:$0xff] %v1396
    %1447 = vst [vmem:[#allocation2 + $0x128] sm:$0xff] %v1397
    %1448 = vst [vmem:[#allocation2 + $0x130] sm:$0xff] %v1398
    %1449 = vst [vmem:[#allocation2 + $0x138] sm:$0xff] %v1399
    %1450 = vst [vmem:[#allocation2 + $0x140] sm:$0xff] %v1400
    %1451 = vst [vmem:[#allocation2 + $0x148] sm:$0xff] %v1401
    %1452 = vst [vmem:[#allocation2 + $0x150] sm:$0xff] %v1402
    %1453 = vst [vmem:[#allocation2 + $0x158] sm:$0xff] %v1403
    %1454 = vst [vmem:[#allocation2 + $0x160] sm:$0xff] %v1404
    %1455 = vst [vmem:[#allocation2 + $0x168] sm:$0xff] %v1405
    %1456 = vst [vmem:[#allocation2 + $0x170] sm:$0xff] %v1406
    %1457 = vst [vmem:[#allocation2 + $0x178] sm:$0xff] %v1407
    %1458 = vst [vmem:[#allocation2 + $0x180] sm:$0xf] %v1408
    %1459 = vst [vmem:[#allocation2 + $0x188] sm:$0xf] %v1409
    %v1460 = vld [vmem:[%s3] sm:$0xff]
    %v1461 = vld [vmem:[%s3 + $0x8] sm:$0xff]
    %v1462 = vld [vmem:[%s3 + $0x10] sm:$0xff]
    %v1463 = vld [vmem:[%s3 + $0x18] sm:$0xff]
    %v1464 = vld [vmem:[%s3 + $0x20] sm:$0xff]
    %v1465 = vld [vmem:[%s3 + $0x28] sm:$0xff]
    %v1466 = vld [vmem:[%s3 + $0x30] sm:$0xff]
    %v1467 = vld [vmem:[%s3 + $0x38] sm:$0xff]
    %v1468 = vld [vmem:[%s3 + $0x40] sm:$0xf]
    %v1469 = vld [vmem:[%s3 + $0x48] sm:$0xf]
    %v1470 = vld [vmem:[#allocation2] sm:$0xff]
    %v1471 = vld [vmem:[#allocation2 + $0x8] sm:$0xff]
    %v1472 = vld [vmem:[#allocation2 + $0x10] sm:$0xff]
    %v1473 = vld [vmem:[#allocation2 + $0x18] sm:$0xff]
    %v1474 = vld [vmem:[#allocation2 + $0x20] sm:$0xff]
    %v1475 = vld [vmem:[#allocation2 + $0x28] sm:$0xff]
    %v1476 = vld [vmem:[#allocation2 + $0x30] sm:$0xff]
    %v1477 = vld [vmem:[#allocation2 + $0x38] sm:$0xff]
    %v1478 = vld [vmem:[#allocation2 + $0x40] sm:$0xff]
    %v1479 = vld [vmem:[#allocation2 + $0x48] sm:$0xff]
    %v1480 = vld [vmem:[#allocation2 + $0x50] sm:$0xff]
    %v1481 = vld [vmem:[#allocation2 + $0x58] sm:$0xff]
    %v1482 = vld [vmem:[#allocation2 + $0x60] sm:$0xff]
    %v1483 = vld [vmem:[#allocation2 + $0x68] sm:$0xff]
    %v1484 = vld [vmem:[#allocation2 + $0x70] sm:$0xff]
    %v1485 = vld [vmem:[#allocation2 + $0x78] sm:$0xff]
    %v1486 = vld [vmem:[#allocation2 + $0x80] sm:$0xff]
    %v1487 = vld [vmem:[#allocation2 + $0x88] sm:$0xff]
    %v1488 = vld [vmem:[#allocation2 + $0x90] sm:$0xff]
    %v1489 = vld [vmem:[#allocation2 + $0x98] sm:$0xff]
    %v1490 = vld [vmem:[#allocation2 + $0xa0] sm:$0xff]
    %v1491 = vld [vmem:[#allocation2 + $0xa8] sm:$0xff]
    %v1492 = vld [vmem:[#allocation2 + $0xb0] sm:$0xff]
    %v1493 = vld [vmem:[#allocation2 + $0xb8] sm:$0xff]
    %v1494 = vld [vmem:[#allocation2 + $0xc0] sm:$0xff]
    %v1495 = vld [vmem:[#allocation2 + $0xc8] sm:$0xff]
    %v1496 = vld [vmem:[#allocation2 + $0xd0] sm:$0xff]
    %v1497 = vld [vmem:[#allocation2 + $0xd8] sm:$0xff]
    %v1498 = vld [vmem:[#allocation2 + $0xe0] sm:$0xff]
    %v1499 = vld [vmem:[#allocation2 + $0xe8] sm:$0xff]
    %v1500 = vld [vmem:[#allocation2 + $0xf0] sm:$0xff]
    %v1501 = vld [vmem:[#allocation2 + $0xf8] sm:$0xff]
    %v1502 = vld [vmem:[#allocation2 + $0x100] sm:$0xff]
    %v1503 = vld [vmem:[#allocation2 + $0x108] sm:$0xff]
    %v1504 = vld [vmem:[#allocation2 + $0x110] sm:$0xff]
    %v1505 = vld [vmem:[#allocation2 + $0x118] sm:$0xff]
    %v1506 = vld [vmem:[#allocation2 + $0x120] sm:$0xff]
    %v1507 = vld [vmem:[#allocation2 + $0x128] sm:$0xff]
    %v1508 = vld [vmem:[#allocation2 + $0x130] sm:$0xff]
    %v1509 = vld [vmem:[#allocation2 + $0x138] sm:$0xff]
    %v1510 = vld [vmem:[#allocation2 + $0x140] sm:$0xff]
    %v1511 = vld [vmem:[#allocation2 + $0x148] sm:$0xff]
    %v1512 = vld [vmem:[#allocation2 + $0x150] sm:$0xff]
    %v1513 = vld [vmem:[#allocation2 + $0x158] sm:$0xff]
    %v1514 = vld [vmem:[#allocation2 + $0x160] sm:$0xff]
    %v1515 = vld [vmem:[#allocation2 + $0x168] sm:$0xff]
    %v1516 = vld [vmem:[#allocation2 + $0x170] sm:$0xff]
    %v1517 = vld [vmem:[#allocation2 + $0x178] sm:$0xff]
    %v1518 = vld [vmem:[#allocation2 + $0x180] sm:$0xf]
    %v1519 = vld [vmem:[#allocation2 + $0x188] sm:$0xf]
    %vm1520 = vcmask 556032
    %v1522 = vsel %vm1520, %v1461, 0
    %v1525 = vsel %vm1520, %v1463, 0
    %v1528 = vsel %vm1520, %v1465, 0
    %v1531 = vsel %vm1520, %v1467, 0
    %v1534 = vsel %vm1520, %v1469, 0
    %vm1536 = vcmask 1043456
    %v1538 = vsel %vm1536, %v1518, 0
    %v1541 = vsel %vm1536, %v1519, 0
    %1543 = vmatpush.msra.mxu0 %v1500
    %1544 = vmatpush.msra.mxu0 %v1498
    %1545 = vmatpush.msra.mxu0 %v1496
    %1546 = vmatpush.msra.mxu0 %v1494
    %1547 = vmatpush.msra.mxu0 %v1492
    %1548 = vmatpush.msra.mxu0 %v1490
    %1549 = vmatpush.msra.mxu0 %v1488
    %1550 = vmatpush.msra.mxu0 %v1486
    %1551 = vmatpush.msra.mxu0 %v1484
    %1552 = vmatpush.msra.mxu0 %v1482
    %1553 = vmatpush.msra.mxu0 %v1480
    %1554 = vmatpush.msra.mxu0 %v1478
    %1555 = vmatpush.msra.mxu0 %v1476
    %1556 = vmatpush.msra.mxu0 %v1474
    %1557 = vmatpush.msra.mxu0 %v1472
    %1558 = vmatpush.msra.mxu0 %v1470
    %1559 = vmatmul.f32.gmra.mxu0 %v1460
    %v1560 = vpop.f32.mrf.mxu0
    %v1561 = vadd.f32 0.0, %v1560
    %1562 = vmatmul.f32.gmra.mxu0 %v1462
    %v1563 = vpop.f32.mrf.mxu0
    %v1564 = vadd.f32 0.0, %v1563
    %1565 = vmatmul.f32.gmra.mxu0 %v1464
    %v1566 = vpop.f32.mrf.mxu0
    %v1567 = vadd.f32 0.0, %v1566
    %1568 = vmatmul.f32.gmra.mxu0 %v1466
    %v1569 = vpop.f32.mrf.mxu0
    %v1570 = vadd.f32 0.0, %v1569
    %1571 = vmatmul.f32.gmra.mxu0 %v1468
    %v1572 = vpop.f32.mrf.mxu0
    %v1573 = vadd.f32 0.0, %v1572
    %1574 = vdwg.mxu0
    %1575 = vmatpush.msra.mxu0 0.0
    %1576 = vmatpush.msra.mxu0 0.0
    %1577 = vmatpush.msra.mxu0 0.0
    %1578 = vmatpush.msra.mxu0 0.0
    %1579 = vmatpush.msra.mxu0 0.0
    %1580 = vmatpush.msra.mxu0 0.0
    %1581 = vmatpush.msra.mxu0 0.0
    %1582 = vmatpush.msra.mxu0 %v1538
    %1583 = vmatpush.msra.mxu0 %v1516
    %1584 = vmatpush.msra.mxu0 %v1514
    %1585 = vmatpush.msra.mxu0 %v1512
    %1586 = vmatpush.msra.mxu0 %v1510
    %1587 = vmatpush.msra.mxu0 %v1508
    %1588 = vmatpush.msra.mxu0 %v1506
    %1589 = vmatpush.msra.mxu0 %v1504
    %1590 = vmatpush.msra.mxu0 %v1502
    %1591 = vmatmul.f32.gmra.mxu0 %v1522
    %v1592 = vpop.f32.mrf.mxu0
    %v1593 = vadd.f32 %v1561, %v1592
    %1594 = vmatmul.f32.gmra.mxu0 %v1525
    %v1595 = vpop.f32.mrf.mxu0
    %v1596 = vadd.f32 %v1564, %v1595
    %1597 = vmatmul.f32.gmra.mxu0 %v1528
    %v1598 = vpop.f32.mrf.mxu0
    %v1599 = vadd.f32 %v1567, %v1598
    %1600 = vmatmul.f32.gmra.mxu0 %v1531
    %v1601 = vpop.f32.mrf.mxu0
    %v1602 = vadd.f32 %v1570, %v1601
    %1603 = vmatmul.f32.gmra.mxu0 %v1534
    %v1604 = vpop.f32.mrf.mxu0
    %v1605 = vadd.f32 %v1573, %v1604
    %1606 = vdwg.mxu0
    %1607 = vmatpush.msra.mxu0 %v1501
    %1608 = vmatpush.msra.mxu0 %v1499
    %1609 = vmatpush.msra.mxu0 %v1497
    %1610 = vmatpush.msra.mxu0 %v1495
    %1611 = vmatpush.msra.mxu0 %v1493
    %1612 = vmatpush.msra.mxu0 %v1491
    %1613 = vmatpush.msra.mxu0 %v1489
    %1614 = vmatpush.msra.mxu0 %v1487
    %1615 = vmatpush.msra.mxu0 %v1485
    %1616 = vmatpush.msra.mxu0 %v1483
    %1617 = vmatpush.msra.mxu0 %v1481
    %1618 = vmatpush.msra.mxu0 %v1479
    %1619 = vmatpush.msra.mxu0 %v1477
    %1620 = vmatpush.msra.mxu0 %v1475
    %1621 = vmatpush.msra.mxu0 %v1473
    %1622 = vmatpush.msra.mxu0 %v1471
    %1623 = vmatmul.f32.gmra.mxu0 %v1460
    %v1624 = vpop.f32.mrf.mxu0
    %v1625 = vadd.f32 0.0, %v1624
    %1626 = vmatmul.f32.gmra.mxu0 %v1462
    %v1627 = vpop.f32.mrf.mxu0
    %v1628 = vadd.f32 0.0, %v1627
    %1629 = vmatmul.f32.gmra.mxu0 %v1464
    %v1630 = vpop.f32.mrf.mxu0
    %v1631 = vadd.f32 0.0, %v1630
    %1632 = vmatmul.f32.gmra.mxu0 %v1466
    %v1633 = vpop.f32.mrf.mxu0
    %v1634 = vadd.f32 0.0, %v1633
    %1635 = vmatmul.f32.gmra.mxu0 %v1468
    %v1636 = vpop.f32.mrf.mxu0
    %v1637 = vadd.f32 0.0, %v1636
    %1638 = vdwg.mxu0
    %1639 = vmatpush.msra.mxu0 0.0
    %1640 = vmatpush.msra.mxu0 0.0
    %1641 = vmatpush.msra.mxu0 0.0
    %1642 = vmatpush.msra.mxu0 0.0
    %1643 = vmatpush.msra.mxu0 0.0
    %1644 = vmatpush.msra.mxu0 0.0
    %1645 = vmatpush.msra.mxu0 0.0
    %1646 = vmatpush.msra.mxu0 %v1541
    %1647 = vmatpush.msra.mxu0 %v1517
    %1648 = vmatpush.msra.mxu0 %v1515
    %1649 = vmatpush.msra.mxu0 %v1513
    %1650 = vmatpush.msra.mxu0 %v1511
    %1651 = vmatpush.msra.mxu0 %v1509
    %1652 = vmatpush.msra.mxu0 %v1507
    %1653 = vmatpush.msra.mxu0 %v1505
    %1654 = vmatpush.msra.mxu0 %v1503
    %1655 = vmatmul.f32.gmra.mxu0 %v1522
    %v1656 = vpop.f32.mrf.mxu0
    %v1657 = vadd.f32 %v1625, %v1656
    %1658 = vmatmul.f32.gmra.mxu0 %v1525
    %v1659 = vpop.f32.mrf.mxu0
    %v1660 = vadd.f32 %v1628, %v1659
    %1661 = vmatmul.f32.gmra.mxu0 %v1528
    %v1662 = vpop.f32.mrf.mxu0
    %v1663 = vadd.f32 %v1631, %v1662
    %1664 = vmatmul.f32.gmra.mxu0 %v1531
    %v1665 = vpop.f32.mrf.mxu0
    %v1666 = vadd.f32 %v1634, %v1665
    %1667 = vmatmul.f32.gmra.mxu0 %v1534
    %v1668 = vpop.f32.mrf.mxu0
    %v1669 = vadd.f32 %v1637, %v1668
    %1670 = vdwg.mxu0
    %v1671 = vld [vmem:[%s4] sm:$0xff]
    %v1672 = vld [vmem:[%s4 + $0x8] sm:$0xff]
    %v1673 = vld [vmem:[%s4 + $0x10] sm:$0xff]
    %v1674 = vld [vmem:[%s4 + $0x18] sm:$0xff]
    %v1675 = vld [vmem:[%s4 + $0x20] sm:$0xff]
    %v1676 = vld [vmem:[%s4 + $0x28] sm:$0xff]
    %v1677 = vld [vmem:[%s4 + $0x30] sm:$0xff]
    %v1678 = vld [vmem:[%s4 + $0x38] sm:$0xff]
    %v1679 = vld [vmem:[%s4 + $0x40] sm:$0xff]
    %v1680 = vld [vmem:[%s4 + $0x48] sm:$0xff]
    %v1681 = vld [vmem:[%s4 + $0x50] sm:$0xff]
    %v1682 = vld [vmem:[%s4 + $0x58] sm:$0xff]
    %v1683 = vld [vmem:[%s4 + $0x60] sm:$0xff]
    %v1684 = vld [vmem:[%s4 + $0x68] sm:$0xff]
    %v1685 = vld [vmem:[%s4 + $0x70] sm:$0xff]
    %v1686 = vld [vmem:[%s4 + $0x78] sm:$0xff]
    %v1687 = vld [vmem:[%s4 + $0x80] sm:$0xff]
    %v1688 = vld [vmem:[%s4 + $0x88] sm:$0xff]
    %v1689 = vld [vmem:[%s4 + $0x90] sm:$0xff]
    %v1690 = vld [vmem:[%s4 + $0x98] sm:$0xff]
    %v1691 = vld [vmem:[%s4 + $0xa0] sm:$0xff]
    %v1692 = vld [vmem:[%s4 + $0xa8] sm:$0xff]
    %v1693 = vld [vmem:[%s4 + $0xb0] sm:$0xff]
    %v1694 = vld [vmem:[%s4 + $0xb8] sm:$0xff]
    %v1695 = vld [vmem:[%s4 + $0xc0] sm:$0xff]
    %v1696 = vld [vmem:[%s4 + $0xc8] sm:$0xff]
    %v1697 = vld [vmem:[%s4 + $0xd0] sm:$0xff]
    %v1698 = vld [vmem:[%s4 + $0xd8] sm:$0xff]
    %v1699 = vld [vmem:[%s4 + $0xe0] sm:$0xff]
    %v1700 = vld [vmem:[%s4 + $0xe8] sm:$0xff]
    %v1701 = vld [vmem:[%s4 + $0xf0] sm:$0xff]
    %v1702 = vld [vmem:[%s4 + $0xf8] sm:$0xff]
    %v1703 = vld [vmem:[%s4 + $0x100] sm:$0xff]
    %v1704 = vld [vmem:[%s4 + $0x108] sm:$0xff]
    %v1705 = vld [vmem:[%s4 + $0x110] sm:$0xff]
    %v1706 = vld [vmem:[%s4 + $0x118] sm:$0xff]
    %v1707 = vld [vmem:[%s4 + $0x120] sm:$0xff]
    %v1708 = vld [vmem:[%s4 + $0x128] sm:$0xff]
    %v1709 = vld [vmem:[%s4 + $0x130] sm:$0xff]
    %v1710 = vld [vmem:[%s4 + $0x138] sm:$0xff]
    %v1711 = vld [vmem:[%s4 + $0x140] sm:$0xff]
    %v1712 = vld [vmem:[%s4 + $0x148] sm:$0xff]
    %v1713 = vld [vmem:[%s4 + $0x150] sm:$0xff]
    %v1714 = vld [vmem:[%s4 + $0x158] sm:$0xff]
    %v1715 = vld [vmem:[%s4 + $0x160] sm:$0xff]
    %v1716 = vld [vmem:[%s4 + $0x168] sm:$0xff]
    %v1717 = vld [vmem:[%s4 + $0x170] sm:$0xff]
    %v1718 = vld [vmem:[%s4 + $0x178] sm:$0xff]
    %v1719 = vld [vmem:[%s4 + $0x180] sm:$0xff]
    %v1720 = vld [vmem:[%s4 + $0x188] sm:$0xff]
    %v1721 = vld [vmem:[%s4 + $0x190] sm:$0xff]
    %v1722 = vld [vmem:[%s4 + $0x198] sm:$0xff]
    %v1723 = vld [vmem:[%s4 + $0x1a0] sm:$0xff]
    %v1724 = vld [vmem:[%s4 + $0x1a8] sm:$0xff]
    %v1725 = vld [vmem:[%s4 + $0x1b0] sm:$0xff]
    %v1726 = vld [vmem:[%s4 + $0x1b8] sm:$0xff]
    %v1727 = vld [vmem:[%s4 + $0x1c0] sm:$0xff]
    %v1728 = vld [vmem:[%s4 + $0x1c8] sm:$0xff]
    %v1729 = vld [vmem:[%s4 + $0x1d0] sm:$0xff]
    %v1730 = vld [vmem:[%s4 + $0x1d8] sm:$0xff]
    %v1731 = vld [vmem:[%s4 + $0x1e0] sm:$0xff]
    %v1732 = vld [vmem:[%s4 + $0x1e8] sm:$0xff]
    %v1733 = vld [vmem:[%s4 + $0x1f0] sm:$0xff]
    %v1734 = vld [vmem:[%s4 + $0x1f8] sm:$0xff]
    %s1735 = scalar_lea.vmem %s3, 80
    %v1736 = vld [vmem:[%s1735] sm:$0xff]
    %v1737 = vld [vmem:[%s1735 + $0x8] sm:$0xff]
    %v1738 = vld [vmem:[%s1735 + $0x10] sm:$0xff]
    %v1739 = vld [vmem:[%s1735 + $0x18] sm:$0xff]
    %v1740 = vld [vmem:[%s1735 + $0x20] sm:$0xff]
    %v1741 = vld [vmem:[%s1735 + $0x28] sm:$0xff]
    %v1742 = vld [vmem:[%s1735 + $0x30] sm:$0xff]
    %v1743 = vld [vmem:[%s1735 + $0x38] sm:$0xff]
    %v1744 = vld [vmem:[%s1735 + $0x40] sm:$0xf]
    %v1745 = vld [vmem:[%s1735 + $0x48] sm:$0xf]
    %v1747 = vsel %vm1520, %v1737, 0
    %v1750 = vsel %vm1520, %v1739, 0
    %v1753 = vsel %vm1520, %v1741, 0
    %v1756 = vsel %vm1520, %v1743, 0
    %v1759 = vsel %vm1520, %v1745, 0
    %1761 = vmatpush.msra.mxu0 %v1500
    %1762 = vmatpush.msra.mxu0 %v1498
    %1763 = vmatpush.msra.mxu0 %v1496
    %1764 = vmatpush.msra.mxu0 %v1494
    %1765 = vmatpush.msra.mxu0 %v1492
    %1766 = vmatpush.msra.mxu0 %v1490
    %1767 = vmatpush.msra.mxu0 %v1488
    %1768 = vmatpush.msra.mxu0 %v1486
    %1769 = vmatpush.msra.mxu0 %v1484
    %1770 = vmatpush.msra.mxu0 %v1482
    %1771 = vmatpush.msra.mxu0 %v1480
    %1772 = vmatpush.msra.mxu0 %v1478
    %1773 = vmatpush.msra.mxu0 %v1476
    %1774 = vmatpush.msra.mxu0 %v1474
    %1775 = vmatpush.msra.mxu0 %v1472
    %1776 = vmatpush.msra.mxu0 %v1470
    %1777 = vmatmul.f32.gmra.mxu0 %v1736
    %v1778 = vpop.f32.mrf.mxu0
    %v1779 = vadd.f32 0.0, %v1778
    %1780 = vmatmul.f32.gmra.mxu0 %v1738
    %v1781 = vpop.f32.mrf.mxu0
    %v1782 = vadd.f32 0.0, %v1781
    %1783 = vmatmul.f32.gmra.mxu0 %v1740
    %v1784 = vpop.f32.mrf.mxu0
    %v1785 = vadd.f32 0.0, %v1784
    %1786 = vmatmul.f32.gmra.mxu0 %v1742
    %v1787 = vpop.f32.mrf.mxu0
    %v1788 = vadd.f32 0.0, %v1787
    %1789 = vmatmul.f32.gmra.mxu0 %v1744
    %v1790 = vpop.f32.mrf.mxu0
    %v1791 = vadd.f32 0.0, %v1790
    %1792 = vdwg.mxu0
    %1793 = vmatpush.msra.mxu0 0.0
    %1794 = vmatpush.msra.mxu0 0.0
    %1795 = vmatpush.msra.mxu0 0.0
    %1796 = vmatpush.msra.mxu0 0.0
    %1797 = vmatpush.msra.mxu0 0.0
    %1798 = vmatpush.msra.mxu0 0.0
    %1799 = vmatpush.msra.mxu0 0.0
    %1800 = vmatpush.msra.mxu0 %v1538
    %1801 = vmatpush.msra.mxu0 %v1516
    %1802 = vmatpush.msra.mxu0 %v1514
    %1803 = vmatpush.msra.mxu0 %v1512
    %1804 = vmatpush.msra.mxu0 %v1510
    %1805 = vmatpush.msra.mxu0 %v1508
    %1806 = vmatpush.msra.mxu0 %v1506
    %1807 = vmatpush.msra.mxu0 %v1504
    %1808 = vmatpush.msra.mxu0 %v1502
    %1809 = vmatmul.f32.gmra.mxu0 %v1747
    %v1810 = vpop.f32.mrf.mxu0
    %v1811 = vadd.f32 %v1779, %v1810
    %1812 = vmatmul.f32.gmra.mxu0 %v1750
    %v1813 = vpop.f32.mrf.mxu0
    %v1814 = vadd.f32 %v1782, %v1813
    %1815 = vmatmul.f32.gmra.mxu0 %v1753
    %v1816 = vpop.f32.mrf.mxu0
    %v1817 = vadd.f32 %v1785, %v1816
    %1818 = vmatmul.f32.gmra.mxu0 %v1756
    %v1819 = vpop.f32.mrf.mxu0
    %v1820 = vadd.f32 %v1788, %v1819
    %1821 = vmatmul.f32.gmra.mxu0 %v1759
    %v1822 = vpop.f32.mrf.mxu0
    %v1823 = vadd.f32 %v1791, %v1822
    %1824 = vdwg.mxu0
    %1825 = vmatpush.msra.mxu0 %v1501
    %1826 = vmatpush.msra.mxu0 %v1499
    %1827 = vmatpush.msra.mxu0 %v1497
    %1828 = vmatpush.msra.mxu0 %v1495
    %1829 = vmatpush.msra.mxu0 %v1493
    %1830 = vmatpush.msra.mxu0 %v1491
    %1831 = vmatpush.msra.mxu0 %v1489
    %1832 = vmatpush.msra.mxu0 %v1487
    %1833 = vmatpush.msra.mxu0 %v1485
    %1834 = vmatpush.msra.mxu0 %v1483
    %1835 = vmatpush.msra.mxu0 %v1481
    %1836 = vmatpush.msra.mxu0 %v1479
    %1837 = vmatpush.msra.mxu0 %v1477
    %1838 = vmatpush.msra.mxu0 %v1475
    %1839 = vmatpush.msra.mxu0 %v1473
    %1840 = vmatpush.msra.mxu0 %v1471
    %1841 = vmatmul.f32.gmra.mxu0 %v1736
    %v1842 = vpop.f32.mrf.mxu0
    %v1843 = vadd.f32 0.0, %v1842
    %1844 = vmatmul.f32.gmra.mxu0 %v1738
    %v1845 = vpop.f32.mrf.mxu0
    %v1846 = vadd.f32 0.0, %v1845
    %1847 = vmatmul.f32.gmra.mxu0 %v1740
    %v1848 = vpop.f32.mrf.mxu0
    %v1849 = vadd.f32 0.0, %v1848
    %1850 = vmatmul.f32.gmra.mxu0 %v1742
    %v1851 = vpop.f32.mrf.mxu0
    %v1852 = vadd.f32 0.0, %v1851
    %1853 = vmatmul.f32.gmra.mxu0 %v1744
    %v1854 = vpop.f32.mrf.mxu0
    %v1855 = vadd.f32 0.0, %v1854
    %1856 = vdwg.mxu0
    %1857 = vmatpush.msra.mxu0 0.0
    %1858 = vmatpush.msra.mxu0 0.0
    %1859 = vmatpush.msra.mxu0 0.0
    %1860 = vmatpush.msra.mxu0 0.0
    %1861 = vmatpush.msra.mxu0 0.0
    %1862 = vmatpush.msra.mxu0 0.0
    %1863 = vmatpush.msra.mxu0 0.0
    %1864 = vmatpush.msra.mxu0 %v1541
    %1865 = vmatpush.msra.mxu0 %v1517
    %1866 = vmatpush.msra.mxu0 %v1515
    %1867 = vmatpush.msra.mxu0 %v1513
    %1868 = vmatpush.msra.mxu0 %v1511
    %1869 = vmatpush.msra.mxu0 %v1509
    %1870 = vmatpush.msra.mxu0 %v1507
    %1871 = vmatpush.msra.mxu0 %v1505
    %1872 = vmatpush.msra.mxu0 %v1503
    %1873 = vmatmul.f32.gmra.mxu0 %v1747
    %v1874 = vpop.f32.mrf.mxu0
    %v1875 = vadd.f32 %v1843, %v1874
    %1876 = vmatmul.f32.gmra.mxu0 %v1750
    %v1877 = vpop.f32.mrf.mxu0
    %v1878 = vadd.f32 %v1846, %v1877
    %1879 = vmatmul.f32.gmra.mxu0 %v1753
    %v1880 = vpop.f32.mrf.mxu0
    %v1881 = vadd.f32 %v1849, %v1880
    %1882 = vmatmul.f32.gmra.mxu0 %v1756
    %v1883 = vpop.f32.mrf.mxu0
    %v1884 = vadd.f32 %v1852, %v1883
    %1885 = vmatmul.f32.gmra.mxu0 %v1759
    %v1886 = vpop.f32.mrf.mxu0
    %v1887 = vadd.f32 %v1855, %v1886
    %1888 = vdwg.mxu0
    %s1889 = scalar_lea.vmem %s4, 512
    %v1890 = vld [vmem:[%s1889] sm:$0xff]
    %v1891 = vld [vmem:[%s1889 + $0x8] sm:$0xff]
    %v1892 = vld [vmem:[%s1889 + $0x10] sm:$0xff]
    %v1893 = vld [vmem:[%s1889 + $0x18] sm:$0xff]
    %v1894 = vld [vmem:[%s1889 + $0x20] sm:$0xff]
    %v1895 = vld [vmem:[%s1889 + $0x28] sm:$0xff]
    %v1896 = vld [vmem:[%s1889 + $0x30] sm:$0xff]
    %v1897 = vld [vmem:[%s1889 + $0x38] sm:$0xff]
    %v1898 = vld [vmem:[%s1889 + $0x40] sm:$0xff]
    %v1899 = vld [vmem:[%s1889 + $0x48] sm:$0xff]
    %v1900 = vld [vmem:[%s1889 + $0x50] sm:$0xff]
    %v1901 = vld [vmem:[%s1889 + $0x58] sm:$0xff]
    %v1902 = vld [vmem:[%s1889 + $0x60] sm:$0xff]
    %v1903 = vld [vmem:[%s1889 + $0x68] sm:$0xff]
    %v1904 = vld [vmem:[%s1889 + $0x70] sm:$0xff]
    %v1905 = vld [vmem:[%s1889 + $0x78] sm:$0xff]
    %v1906 = vld [vmem:[%s1889 + $0x80] sm:$0xff]
    %v1907 = vld [vmem:[%s1889 + $0x88] sm:$0xff]
    %v1908 = vld [vmem:[%s1889 + $0x90] sm:$0xff]
    %v1909 = vld [vmem:[%s1889 + $0x98] sm:$0xff]
    %v1910 = vld [vmem:[%s1889 + $0xa0] sm:$0xff]
    %v1911 = vld [vmem:[%s1889 + $0xa8] sm:$0xff]
    %v1912 = vld [vmem:[%s1889 + $0xb0] sm:$0xff]
    %v1913 = vld [vmem:[%s1889 + $0xb8] sm:$0xff]
    %v1914 = vld [vmem:[%s1889 + $0xc0] sm:$0xff]
    %v1915 = vld [vmem:[%s1889 + $0xc8] sm:$0xff]
    %v1916 = vld [vmem:[%s1889 + $0xd0] sm:$0xff]
    %v1917 = vld [vmem:[%s1889 + $0xd8] sm:$0xff]
    %v1918 = vld [vmem:[%s1889 + $0xe0] sm:$0xff]
    %v1919 = vld [vmem:[%s1889 + $0xe8] sm:$0xff]
    %v1920 = vld [vmem:[%s1889 + $0xf0] sm:$0xff]
    %v1921 = vld [vmem:[%s1889 + $0xf8] sm:$0xff]
    %v1922 = vld [vmem:[%s1889 + $0x100] sm:$0xff]
    %v1923 = vld [vmem:[%s1889 + $0x108] sm:$0xff]
    %v1924 = vld [vmem:[%s1889 + $0x110] sm:$0xff]
    %v1925 = vld [vmem:[%s1889 + $0x118] sm:$0xff]
    %v1926 = vld [vmem:[%s1889 + $0x120] sm:$0xff]
    %v1927 = vld [vmem:[%s1889 + $0x128] sm:$0xff]
    %v1928 = vld [vmem:[%s1889 + $0x130] sm:$0xff]
    %v1929 = vld [vmem:[%s1889 + $0x138] sm:$0xff]
    %v1930 = vld [vmem:[%s1889 + $0x140] sm:$0xff]
    %v1931 = vld [vmem:[%s1889 + $0x148] sm:$0xff]
    %v1932 = vld [vmem:[%s1889 + $0x150] sm:$0xff]
    %v1933 = vld [vmem:[%s1889 + $0x158] sm:$0xff]
    %v1934 = vld [vmem:[%s1889 + $0x160] sm:$0xff]
    %v1935 = vld [vmem:[%s1889 + $0x168] sm:$0xff]
    %v1936 = vld [vmem:[%s1889 + $0x170] sm:$0xff]
    %v1937 = vld [vmem:[%s1889 + $0x178] sm:$0xff]
    %v1938 = vld [vmem:[%s1889 + $0x180] sm:$0xff]
    %v1939 = vld [vmem:[%s1889 + $0x188] sm:$0xff]
    %v1940 = vld [vmem:[%s1889 + $0x190] sm:$0xff]
    %v1941 = vld [vmem:[%s1889 + $0x198] sm:$0xff]
    %v1942 = vld [vmem:[%s1889 + $0x1a0] sm:$0xff]
    %v1943 = vld [vmem:[%s1889 + $0x1a8] sm:$0xff]
    %v1944 = vld [vmem:[%s1889 + $0x1b0] sm:$0xff]
    %v1945 = vld [vmem:[%s1889 + $0x1b8] sm:$0xff]
    %v1946 = vld [vmem:[%s1889 + $0x1c0] sm:$0xff]
    %v1947 = vld [vmem:[%s1889 + $0x1c8] sm:$0xff]
    %v1948 = vld [vmem:[%s1889 + $0x1d0] sm:$0xff]
    %v1949 = vld [vmem:[%s1889 + $0x1d8] sm:$0xff]
    %v1950 = vld [vmem:[%s1889 + $0x1e0] sm:$0xff]
    %v1951 = vld [vmem:[%s1889 + $0x1e8] sm:$0xff]
    %v1952 = vld [vmem:[%s1889 + $0x1f0] sm:$0xff]
    %v1953 = vld [vmem:[%s1889 + $0x1f8] sm:$0xff]
    %1954 = vmatpush.msra.mxu0 %v1920
    %1955 = vmatpush.msra.mxu0 %v1918
    %1956 = vmatpush.msra.mxu0 %v1916
    %1957 = vmatpush.msra.mxu0 %v1914
    %1958 = vmatpush.msra.mxu0 %v1912
    %1959 = vmatpush.msra.mxu0 %v1910
    %1960 = vmatpush.msra.mxu0 %v1908
    %1961 = vmatpush.msra.mxu0 %v1906
    %1962 = vmatpush.msra.mxu0 %v1904
    %1963 = vmatpush.msra.mxu0 %v1902
    %1964 = vmatpush.msra.mxu0 %v1900
    %1965 = vmatpush.msra.mxu0 %v1898
    %1966 = vmatpush.msra.mxu0 %v1896
    %1967 = vmatpush.msra.mxu0 %v1894
    %1968 = vmatpush.msra.mxu0 %v1892
    %1969 = vmatpush.msra.mxu0 %v1890
    %1970 = vmatmul.f32.gmra.mxu0 %v1811
    %v1971 = vpop.f32.mrf.mxu0
    %v1972 = vadd.f32 0.0, %v1971
    %1973 = vmatmul.f32.gmra.mxu0 %v1814
    %v1974 = vpop.f32.mrf.mxu0
    %v1975 = vadd.f32 0.0, %v1974
    %1976 = vmatmul.f32.gmra.mxu0 %v1817
    %v1977 = vpop.f32.mrf.mxu0
    %v1978 = vadd.f32 0.0, %v1977
    %1979 = vmatmul.f32.gmra.mxu0 %v1820
    %v1980 = vpop.f32.mrf.mxu0
    %v1981 = vadd.f32 0.0, %v1980
    %1982 = vmatmul.f32.gmra.mxu0 %v1823
    %v1983 = vpop.f32.mrf.mxu0
    %v1984 = vadd.f32 0.0, %v1983
    %1985 = vdwg.mxu0
    %1986 = vmatpush.msra.mxu0 %v1952
    %1987 = vmatpush.msra.mxu0 %v1950
    %1988 = vmatpush.msra.mxu0 %v1948
    %1989 = vmatpush.msra.mxu0 %v1946
    %1990 = vmatpush.msra.mxu0 %v1944
    %1991 = vmatpush.msra.mxu0 %v1942
    %1992 = vmatpush.msra.mxu0 %v1940
    %1993 = vmatpush.msra.mxu0 %v1938
    %1994 = vmatpush.msra.mxu0 %v1936
    %1995 = vmatpush.msra.mxu0 %v1934
    %1996 = vmatpush.msra.mxu0 %v1932
    %1997 = vmatpush.msra.mxu0 %v1930
    %1998 = vmatpush.msra.mxu0 %v1928
    %1999 = vmatpush.msra.mxu0 %v1926
    %2000 = vmatpush.msra.mxu0 %v1924
    %2001 = vmatpush.msra.mxu0 %v1922
    %2002 = vmatmul.f32.gmra.mxu0 %v1875
    %v2003 = vpop.f32.mrf.mxu0
    %v2004 = vadd.f32 %v1972, %v2003
    %2005 = vmatmul.f32.gmra.mxu0 %v1878
    %v2006 = vpop.f32.mrf.mxu0
    %v2007 = vadd.f32 %v1975, %v2006
    %2008 = vmatmul.f32.gmra.mxu0 %v1881
    %v2009 = vpop.f32.mrf.mxu0
    %v2010 = vadd.f32 %v1978, %v2009
    %2011 = vmatmul.f32.gmra.mxu0 %v1884
    %v2012 = vpop.f32.mrf.mxu0
    %v2013 = vadd.f32 %v1981, %v2012
    %2014 = vmatmul.f32.gmra.mxu0 %v1887
    %v2015 = vpop.f32.mrf.mxu0
    %v2016 = vadd.f32 %v1984, %v2015
    %2017 = vdwg.mxu0
    %2018 = vmatpush.msra.mxu0 %v1921
    %2019 = vmatpush.msra.mxu0 %v1919
    %2020 = vmatpush.msra.mxu0 %v1917
    %2021 = vmatpush.msra.mxu0 %v1915
    %2022 = vmatpush.msra.mxu0 %v1913
    %2023 = vmatpush.msra.mxu0 %v1911
    %2024 = vmatpush.msra.mxu0 %v1909
    %2025 = vmatpush.msra.mxu0 %v1907
    %2026 = vmatpush.msra.mxu0 %v1905
    %2027 = vmatpush.msra.mxu0 %v1903
    %2028 = vmatpush.msra.mxu0 %v1901
    %2029 = vmatpush.msra.mxu0 %v1899
    %2030 = vmatpush.msra.mxu0 %v1897
    %2031 = vmatpush.msra.mxu0 %v1895
    %2032 = vmatpush.msra.mxu0 %v1893
    %2033 = vmatpush.msra.mxu0 %v1891
    %2034 = vmatmul.f32.gmra.mxu0 %v1811
    %v2035 = vpop.f32.mrf.mxu0
    %v2036 = vadd.f32 0.0, %v2035
    %2037 = vmatmul.f32.gmra.mxu0 %v1814
    %v2038 = vpop.f32.mrf.mxu0
    %v2039 = vadd.f32 0.0, %v2038
    %2040 = vmatmul.f32.gmra.mxu0 %v1817
    %v2041 = vpop.f32.mrf.mxu0
    %v2042 = vadd.f32 0.0, %v2041
    %2043 = vmatmul.f32.gmra.mxu0 %v1820
    %v2044 = vpop.f32.mrf.mxu0
    %v2045 = vadd.f32 0.0, %v2044
    %2046 = vmatmul.f32.gmra.mxu0 %v1823
    %v2047 = vpop.f32.mrf.mxu0
    %v2048 = vadd.f32 0.0, %v2047
    %2049 = vdwg.mxu0
    %2050 = vmatpush.msra.mxu0 %v1953
    %2051 = vmatpush.msra.mxu0 %v1951
    %2052 = vmatpush.msra.mxu0 %v1949
    %2053 = vmatpush.msra.mxu0 %v1947
    %2054 = vmatpush.msra.mxu0 %v1945
    %2055 = vmatpush.msra.mxu0 %v1943
    %2056 = vmatpush.msra.mxu0 %v1941
    %2057 = vmatpush.msra.mxu0 %v1939
    %2058 = vmatpush.msra.mxu0 %v1937
    %2059 = vmatpush.msra.mxu0 %v1935
    %2060 = vmatpush.msra.mxu0 %v1933
    %2061 = vmatpush.msra.mxu0 %v1931
    %2062 = vmatpush.msra.mxu0 %v1929
    %2063 = vmatpush.msra.mxu0 %v1927
    %2064 = vmatpush.msra.mxu0 %v1925
    %2065 = vmatpush.msra.mxu0 %v1923
    %2066 = vmatmul.f32.gmra.mxu0 %v1875
    %v2067 = vpop.f32.mrf.mxu0
    %v2068 = vadd.f32 %v2036, %v2067
    %2069 = vmatmul.f32.gmra.mxu0 %v1878
    %v2070 = vpop.f32.mrf.mxu0
    %v2071 = vadd.f32 %v2039, %v2070
    %2072 = vmatmul.f32.gmra.mxu0 %v1881
    %v2073 = vpop.f32.mrf.mxu0
    %v2074 = vadd.f32 %v2042, %v2073
    %2075 = vmatmul.f32.gmra.mxu0 %v1884
    %v2076 = vpop.f32.mrf.mxu0
    %v2077 = vadd.f32 %v2045, %v2076
    %2078 = vmatmul.f32.gmra.mxu0 %v1887
    %v2079 = vpop.f32.mrf.mxu0
    %v2080 = vadd.f32 %v2048, %v2079
    %2081 = vdwg.mxu0
    %2082 = vmatpush.msra.mxu0 %v1701
    %2083 = vmatpush.msra.mxu0 %v1699
    %2084 = vmatpush.msra.mxu0 %v1697
    %2085 = vmatpush.msra.mxu0 %v1695
    %2086 = vmatpush.msra.mxu0 %v1693
    %2087 = vmatpush.msra.mxu0 %v1691
    %2088 = vmatpush.msra.mxu0 %v1689
    %2089 = vmatpush.msra.mxu0 %v1687
    %2090 = vmatpush.msra.mxu0 %v1685
    %2091 = vmatpush.msra.mxu0 %v1683
    %2092 = vmatpush.msra.mxu0 %v1681
    %2093 = vmatpush.msra.mxu0 %v1679
    %2094 = vmatpush.msra.mxu0 %v1677
    %2095 = vmatpush.msra.mxu0 %v1675
    %2096 = vmatpush.msra.mxu0 %v1673
    %2097 = vmatpush.msra.mxu0 %v1671
    %2098 = vmatmul.f32.gmra.mxu0 %v1593
    %v2099 = vpop.f32.mrf.mxu0
    %v2100 = vadd.f32 %v2004, %v2099
    %2101 = vmatmul.f32.gmra.mxu0 %v1596
    %v2102 = vpop.f32.mrf.mxu0
    %v2103 = vadd.f32 %v2007, %v2102
    %2104 = vmatmul.f32.gmra.mxu0 %v1599
    %v2105 = vpop.f32.mrf.mxu0
    %v2106 = vadd.f32 %v2010, %v2105
    %2107 = vmatmul.f32.gmra.mxu0 %v1602
    %v2108 = vpop.f32.mrf.mxu0
    %v2109 = vadd.f32 %v2013, %v2108
    %2110 = vmatmul.f32.gmra.mxu0 %v1605
    %v2111 = vpop.f32.mrf.mxu0
    %v2112 = vadd.f32 %v2016, %v2111
    %2113 = vdwg.mxu0
    %2114 = vmatpush.msra.mxu0 %v1733
    %2115 = vmatpush.msra.mxu0 %v1731
    %2116 = vmatpush.msra.mxu0 %v1729
    %2117 = vmatpush.msra.mxu0 %v1727
    %2118 = vmatpush.msra.mxu0 %v1725
    %2119 = vmatpush.msra.mxu0 %v1723
    %2120 = vmatpush.msra.mxu0 %v1721
    %2121 = vmatpush.msra.mxu0 %v1719
    %2122 = vmatpush.msra.mxu0 %v1717
    %2123 = vmatpush.msra.mxu0 %v1715
    %2124 = vmatpush.msra.mxu0 %v1713
    %2125 = vmatpush.msra.mxu0 %v1711
    %2126 = vmatpush.msra.mxu0 %v1709
    %2127 = vmatpush.msra.mxu0 %v1707
    %2128 = vmatpush.msra.mxu0 %v1705
    %2129 = vmatpush.msra.mxu0 %v1703
    %2130 = vmatmul.f32.gmra.mxu0 %v1657
    %v2131 = vpop.f32.mrf.mxu0
    %v2132 = vadd.f32 %v2100, %v2131
    %2133 = vmatmul.f32.gmra.mxu0 %v1660
    %v2134 = vpop.f32.mrf.mxu0
    %v2135 = vadd.f32 %v2103, %v2134
    %2136 = vmatmul.f32.gmra.mxu0 %v1663
    %v2137 = vpop.f32.mrf.mxu0
    %v2138 = vadd.f32 %v2106, %v2137
    %2139 = vmatmul.f32.gmra.mxu0 %v1666
    %v2140 = vpop.f32.mrf.mxu0
    %v2141 = vadd.f32 %v2109, %v2140
    %2142 = vmatmul.f32.gmra.mxu0 %v1669
    %v2143 = vpop.f32.mrf.mxu0
    %v2144 = vadd.f32 %v2112, %v2143
    %2145 = vdwg.mxu0
    %2146 = vmatpush.msra.mxu0 %v1702
    %2147 = vmatpush.msra.mxu0 %v1700
    %2148 = vmatpush.msra.mxu0 %v1698
    %2149 = vmatpush.msra.mxu0 %v1696
    %2150 = vmatpush.msra.mxu0 %v1694
    %2151 = vmatpush.msra.mxu0 %v1692
    %2152 = vmatpush.msra.mxu0 %v1690
    %2153 = vmatpush.msra.mxu0 %v1688
    %2154 = vmatpush.msra.mxu0 %v1686
    %2155 = vmatpush.msra.mxu0 %v1684
    %2156 = vmatpush.msra.mxu0 %v1682
    %2157 = vmatpush.msra.mxu0 %v1680
    %2158 = vmatpush.msra.mxu0 %v1678
    %2159 = vmatpush.msra.mxu0 %v1676
    %2160 = vmatpush.msra.mxu0 %v1674
    %2161 = vmatpush.msra.mxu0 %v1672
    %2162 = vmatmul.f32.gmra.mxu0 %v1593
    %v2163 = vpop.f32.mrf.mxu0
    %v2164 = vadd.f32 %v2068, %v2163
    %2165 = vmatmul.f32.gmra.mxu0 %v1596
    %v2166 = vpop.f32.mrf.mxu0
    %v2167 = vadd.f32 %v2071, %v2166
    %2168 = vmatmul.f32.gmra.mxu0 %v1599
    %v2169 = vpop.f32.mrf.mxu0
    %v2170 = vadd.f32 %v2074, %v2169
    %2171 = vmatmul.f32.gmra.mxu0 %v1602
    %v2172 = vpop.f32.mrf.mxu0
    %v2173 = vadd.f32 %v2077, %v2172
    %2174 = vmatmul.f32.gmra.mxu0 %v1605
    %v2175 = vpop.f32.mrf.mxu0
    %v2176 = vadd.f32 %v2080, %v2175
    %2177 = vdwg.mxu0
    %2178 = vmatpush.msra.mxu0 %v1734
    %2179 = vmatpush.msra.mxu0 %v1732
    %2180 = vmatpush.msra.mxu0 %v1730
    %2181 = vmatpush.msra.mxu0 %v1728
    %2182 = vmatpush.msra.mxu0 %v1726
    %2183 = vmatpush.msra.mxu0 %v1724
    %2184 = vmatpush.msra.mxu0 %v1722
    %2185 = vmatpush.msra.mxu0 %v1720
    %2186 = vmatpush.msra.mxu0 %v1718
    %2187 = vmatpush.msra.mxu0 %v1716
    %2188 = vmatpush.msra.mxu0 %v1714
    %2189 = vmatpush.msra.mxu0 %v1712
    %2190 = vmatpush.msra.mxu0 %v1710
    %2191 = vmatpush.msra.mxu0 %v1708
    %2192 = vmatpush.msra.mxu0 %v1706
    %2193 = vmatpush.msra.mxu0 %v1704
    %2194 = vmatmul.f32.gmra.mxu0 %v1657
    %v2195 = vpop.f32.mrf.mxu0
    %v2196 = vadd.f32 %v2164, %v2195
    %2197 = vmatmul.f32.gmra.mxu0 %v1660
    %v2198 = vpop.f32.mrf.mxu0
    %v2199 = vadd.f32 %v2167, %v2198
    %2200 = vmatmul.f32.gmra.mxu0 %v1663
    %v2201 = vpop.f32.mrf.mxu0
    %v2202 = vadd.f32 %v2170, %v2201
    %2203 = vmatmul.f32.gmra.mxu0 %v1666
    %v2204 = vpop.f32.mrf.mxu0
    %v2205 = vadd.f32 %v2173, %v2204
    %2206 = vmatmul.f32.gmra.mxu0 %v1669
    %v2207 = vpop.f32.mrf.mxu0
    %v2208 = vadd.f32 %v2176, %v2207
    %2209 = vdwg.mxu0
    %s2210 = scalar_lea.vmem %s3, 160
    %v2211 = vld [vmem:[%s2210] sm:$0xff]
    %v2212 = vld [vmem:[%s2210 + $0x8] sm:$0xff]
    %v2213 = vld [vmem:[%s2210 + $0x10] sm:$0xff]
    %v2214 = vld [vmem:[%s2210 + $0x18] sm:$0xff]
    %v2215 = vld [vmem:[%s2210 + $0x20] sm:$0xff]
    %v2216 = vld [vmem:[%s2210 + $0x28] sm:$0xff]
    %v2217 = vld [vmem:[%s2210 + $0x30] sm:$0xff]
    %v2218 = vld [vmem:[%s2210 + $0x38] sm:$0xff]
    %v2219 = vld [vmem:[%s2210 + $0x40] sm:$0xf]
    %v2220 = vld [vmem:[%s2210 + $0x48] sm:$0xf]
    %v2222 = vsel %vm1520, %v2212, 0
    %v2225 = vsel %vm1520, %v2214, 0
    %v2228 = vsel %vm1520, %v2216, 0
    %v2231 = vsel %vm1520, %v2218, 0
    %v2234 = vsel %vm1520, %v2220, 0
    %2236 = vmatpush.msra.mxu0 %v1500
    %2237 = vmatpush.msra.mxu0 %v1498
    %2238 = vmatpush.msra.mxu0 %v1496
    %2239 = vmatpush.msra.mxu0 %v1494
    %2240 = vmatpush.msra.mxu0 %v1492
    %2241 = vmatpush.msra.mxu0 %v1490
    %2242 = vmatpush.msra.mxu0 %v1488
    %2243 = vmatpush.msra.mxu0 %v1486
    %2244 = vmatpush.msra.mxu0 %v1484
    %2245 = vmatpush.msra.mxu0 %v1482
    %2246 = vmatpush.msra.mxu0 %v1480
    %2247 = vmatpush.msra.mxu0 %v1478
    %2248 = vmatpush.msra.mxu0 %v1476
    %2249 = vmatpush.msra.mxu0 %v1474
    %2250 = vmatpush.msra.mxu0 %v1472
    %2251 = vmatpush.msra.mxu0 %v1470
    %2252 = vmatmul.f32.gmra.mxu0 %v2211
    %v2253 = vpop.f32.mrf.mxu0
    %v2254 = vadd.f32 0.0, %v2253
    %2255 = vmatmul.f32.gmra.mxu0 %v2213
    %v2256 = vpop.f32.mrf.mxu0
    %v2257 = vadd.f32 0.0, %v2256
    %2258 = vmatmul.f32.gmra.mxu0 %v2215
    %v2259 = vpop.f32.mrf.mxu0
    %v2260 = vadd.f32 0.0, %v2259
    %2261 = vmatmul.f32.gmra.mxu0 %v2217
    %v2262 = vpop.f32.mrf.mxu0
    %v2263 = vadd.f32 0.0, %v2262
    %2264 = vmatmul.f32.gmra.mxu0 %v2219
    %v2265 = vpop.f32.mrf.mxu0
    %v2266 = vadd.f32 0.0, %v2265
    %2267 = vdwg.mxu0
    %2268 = vmatpush.msra.mxu0 0.0
    %2269 = vmatpush.msra.mxu0 0.0
    %2270 = vmatpush.msra.mxu0 0.0
    %2271 = vmatpush.msra.mxu0 0.0
    %2272 = vmatpush.msra.mxu0 0.0
    %2273 = vmatpush.msra.mxu0 0.0
    %2274 = vmatpush.msra.mxu0 0.0
    %2275 = vmatpush.msra.mxu0 %v1538
    %2276 = vmatpush.msra.mxu0 %v1516
    %2277 = vmatpush.msra.mxu0 %v1514
    %2278 = vmatpush.msra.mxu0 %v1512
    %2279 = vmatpush.msra.mxu0 %v1510
    %2280 = vmatpush.msra.mxu0 %v1508
    %2281 = vmatpush.msra.mxu0 %v1506
    %2282 = vmatpush.msra.mxu0 %v1504
    %2283 = vmatpush.msra.mxu0 %v1502
    %2284 = vmatmul.f32.gmra.mxu0 %v2222
    %v2285 = vpop.f32.mrf.mxu0
    %v2286 = vadd.f32 %v2254, %v2285
    %2287 = vmatmul.f32.gmra.mxu0 %v2225
    %v2288 = vpop.f32.mrf.mxu0
    %v2289 = vadd.f32 %v2257, %v2288
    %2290 = vmatmul.f32.gmra.mxu0 %v2228
    %v2291 = vpop.f32.mrf.mxu0
    %v2292 = vadd.f32 %v2260, %v2291
    %2293 = vmatmul.f32.gmra.mxu0 %v2231
    %v2294 = vpop.f32.mrf.mxu0
    %v2295 = vadd.f32 %v2263, %v2294
    %2296 = vmatmul.f32.gmra.mxu0 %v2234
    %v2297 = vpop.f32.mrf.mxu0
    %v2298 = vadd.f32 %v2266, %v2297
    %2299 = vdwg.mxu0
    %2300 = vmatpush.msra.mxu0 %v1501
    %2301 = vmatpush.msra.mxu0 %v1499
    %2302 = vmatpush.msra.mxu0 %v1497
    %2303 = vmatpush.msra.mxu0 %v1495
    %2304 = vmatpush.msra.mxu0 %v1493
    %2305 = vmatpush.msra.mxu0 %v1491
    %2306 = vmatpush.msra.mxu0 %v1489
    %2307 = vmatpush.msra.mxu0 %v1487
    %2308 = vmatpush.msra.mxu0 %v1485
    %2309 = vmatpush.msra.mxu0 %v1483
    %2310 = vmatpush.msra.mxu0 %v1481
    %2311 = vmatpush.msra.mxu0 %v1479
    %2312 = vmatpush.msra.mxu0 %v1477
    %2313 = vmatpush.msra.mxu0 %v1475
    %2314 = vmatpush.msra.mxu0 %v1473
    %2315 = vmatpush.msra.mxu0 %v1471
    %2316 = vmatmul.f32.gmra.mxu0 %v2211
    %v2317 = vpop.f32.mrf.mxu0
    %v2318 = vadd.f32 0.0, %v2317
    %2319 = vmatmul.f32.gmra.mxu0 %v2213
    %v2320 = vpop.f32.mrf.mxu0
    %v2321 = vadd.f32 0.0, %v2320
    %2322 = vmatmul.f32.gmra.mxu0 %v2215
    %v2323 = vpop.f32.mrf.mxu0
    %v2324 = vadd.f32 0.0, %v2323
    %2325 = vmatmul.f32.gmra.mxu0 %v2217
    %v2326 = vpop.f32.mrf.mxu0
    %v2327 = vadd.f32 0.0, %v2326
    %2328 = vmatmul.f32.gmra.mxu0 %v2219
    %v2329 = vpop.f32.mrf.mxu0
    %v2330 = vadd.f32 0.0, %v2329
    %2331 = vdwg.mxu0
    %2332 = vmatpush.msra.mxu0 0.0
    %2333 = vmatpush.msra.mxu0 0.0
    %2334 = vmatpush.msra.mxu0 0.0
    %2335 = vmatpush.msra.mxu0 0.0
    %2336 = vmatpush.msra.mxu0 0.0
    %2337 = vmatpush.msra.mxu0 0.0
    %2338 = vmatpush.msra.mxu0 0.0
    %2339 = vmatpush.msra.mxu0 %v1541
    %2340 = vmatpush.msra.mxu0 %v1517
    %2341 = vmatpush.msra.mxu0 %v1515
    %2342 = vmatpush.msra.mxu0 %v1513
    %2343 = vmatpush.msra.mxu0 %v1511
    %2344 = vmatpush.msra.mxu0 %v1509
    %2345 = vmatpush.msra.mxu0 %v1507
    %2346 = vmatpush.msra.mxu0 %v1505
    %2347 = vmatpush.msra.mxu0 %v1503
    %2348 = vmatmul.f32.gmra.mxu0 %v2222
    %v2349 = vpop.f32.mrf.mxu0
    %v2350 = vadd.f32 %v2318, %v2349
    %2351 = vmatmul.f32.gmra.mxu0 %v2225
    %v2352 = vpop.f32.mrf.mxu0
    %v2353 = vadd.f32 %v2321, %v2352
    %2354 = vmatmul.f32.gmra.mxu0 %v2228
    %v2355 = vpop.f32.mrf.mxu0
    %v2356 = vadd.f32 %v2324, %v2355
    %2357 = vmatmul.f32.gmra.mxu0 %v2231
    %v2358 = vpop.f32.mrf.mxu0
    %v2359 = vadd.f32 %v2327, %v2358
    %2360 = vmatmul.f32.gmra.mxu0 %v2234
    %v2361 = vpop.f32.mrf.mxu0
    %v2362 = vadd.f32 %v2330, %v2361
    %2363 = vdwg.mxu0
    %s2364 = scalar_lea.vmem %s4, 1024
    %v2365 = vld [vmem:[%s2364] sm:$0xff]
    %v2366 = vld [vmem:[%s2364 + $0x8] sm:$0xff]
    %v2367 = vld [vmem:[%s2364 + $0x10] sm:$0xff]
    %v2368 = vld [vmem:[%s2364 + $0x18] sm:$0xff]
    %v2369 = vld [vmem:[%s2364 + $0x20] sm:$0xff]
    %v2370 = vld [vmem:[%s2364 + $0x28] sm:$0xff]
    %v2371 = vld [vmem:[%s2364 + $0x30] sm:$0xff]
    %v2372 = vld [vmem:[%s2364 + $0x38] sm:$0xff]
    %v2373 = vld [vmem:[%s2364 + $0x40] sm:$0xff]
    %v2374 = vld [vmem:[%s2364 + $0x48] sm:$0xff]
    %v2375 = vld [vmem:[%s2364 + $0x50] sm:$0xff]
    %v2376 = vld [vmem:[%s2364 + $0x58] sm:$0xff]
    %v2377 = vld [vmem:[%s2364 + $0x60] sm:$0xff]
    %v2378 = vld [vmem:[%s2364 + $0x68] sm:$0xff]
    %v2379 = vld [vmem:[%s2364 + $0x70] sm:$0xff]
    %v2380 = vld [vmem:[%s2364 + $0x78] sm:$0xff]
    %v2381 = vld [vmem:[%s2364 + $0x80] sm:$0xff]
    %v2382 = vld [vmem:[%s2364 + $0x88] sm:$0xff]
    %v2383 = vld [vmem:[%s2364 + $0x90] sm:$0xff]
    %v2384 = vld [vmem:[%s2364 + $0x98] sm:$0xff]
    %v2385 = vld [vmem:[%s2364 + $0xa0] sm:$0xff]
    %v2386 = vld [vmem:[%s2364 + $0xa8] sm:$0xff]
    %v2387 = vld [vmem:[%s2364 + $0xb0] sm:$0xff]
    %v2388 = vld [vmem:[%s2364 + $0xb8] sm:$0xff]
    %v2389 = vld [vmem:[%s2364 + $0xc0] sm:$0xff]
    %v2390 = vld [vmem:[%s2364 + $0xc8] sm:$0xff]
    %v2391 = vld [vmem:[%s2364 + $0xd0] sm:$0xff]
    %v2392 = vld [vmem:[%s2364 + $0xd8] sm:$0xff]
    %v2393 = vld [vmem:[%s2364 + $0xe0] sm:$0xff]
    %v2394 = vld [vmem:[%s2364 + $0xe8] sm:$0xff]
    %v2395 = vld [vmem:[%s2364 + $0xf0] sm:$0xff]
    %v2396 = vld [vmem:[%s2364 + $0xf8] sm:$0xff]
    %v2397 = vld [vmem:[%s2364 + $0x100] sm:$0xff]
    %v2398 = vld [vmem:[%s2364 + $0x108] sm:$0xff]
    %v2399 = vld [vmem:[%s2364 + $0x110] sm:$0xff]
    %v2400 = vld [vmem:[%s2364 + $0x118] sm:$0xff]
    %v2401 = vld [vmem:[%s2364 + $0x120] sm:$0xff]
    %v2402 = vld [vmem:[%s2364 + $0x128] sm:$0xff]
    %v2403 = vld [vmem:[%s2364 + $0x130] sm:$0xff]
    %v2404 = vld [vmem:[%s2364 + $0x138] sm:$0xff]
    %v2405 = vld [vmem:[%s2364 + $0x140] sm:$0xff]
    %v2406 = vld [vmem:[%s2364 + $0x148] sm:$0xff]
    %v2407 = vld [vmem:[%s2364 + $0x150] sm:$0xff]
    %v2408 = vld [vmem:[%s2364 + $0x158] sm:$0xff]
    %v2409 = vld [vmem:[%s2364 + $0x160] sm:$0xff]
    %v2410 = vld [vmem:[%s2364 + $0x168] sm:$0xff]
    %v2411 = vld [vmem:[%s2364 + $0x170] sm:$0xff]
    %v2412 = vld [vmem:[%s2364 + $0x178] sm:$0xff]
    %v2413 = vld [vmem:[%s2364 + $0x180] sm:$0xff]
    %v2414 = vld [vmem:[%s2364 + $0x188] sm:$0xff]
    %v2415 = vld [vmem:[%s2364 + $0x190] sm:$0xff]
    %v2416 = vld [vmem:[%s2364 + $0x198] sm:$0xff]
    %v2417 = vld [vmem:[%s2364 + $0x1a0] sm:$0xff]
    %v2418 = vld [vmem:[%s2364 + $0x1a8] sm:$0xff]
    %v2419 = vld [vmem:[%s2364 + $0x1b0] sm:$0xff]
    %v2420 = vld [vmem:[%s2364 + $0x1b8] sm:$0xff]
    %v2421 = vld [vmem:[%s2364 + $0x1c0] sm:$0xff]
    %v2422 = vld [vmem:[%s2364 + $0x1c8] sm:$0xff]
    %v2423 = vld [vmem:[%s2364 + $0x1d0] sm:$0xff]
    %v2424 = vld [vmem:[%s2364 + $0x1d8] sm:$0xff]
    %v2425 = vld [vmem:[%s2364 + $0x1e0] sm:$0xff]
    %v2426 = vld [vmem:[%s2364 + $0x1e8] sm:$0xff]
    %v2427 = vld [vmem:[%s2364 + $0x1f0] sm:$0xff]
    %v2428 = vld [vmem:[%s2364 + $0x1f8] sm:$0xff]
    %2429 = vmatpush.msra.mxu0 %v2395
    %2430 = vmatpush.msra.mxu0 %v2393
    %2431 = vmatpush.msra.mxu0 %v2391
    %2432 = vmatpush.msra.mxu0 %v2389
    %2433 = vmatpush.msra.mxu0 %v2387
    %2434 = vmatpush.msra.mxu0 %v2385
    %2435 = vmatpush.msra.mxu0 %v2383
    %2436 = vmatpush.msra.mxu0 %v2381
    %2437 = vmatpush.msra.mxu0 %v2379
    %2438 = vmatpush.msra.mxu0 %v2377
    %2439 = vmatpush.msra.mxu0 %v2375
    %2440 = vmatpush.msra.mxu0 %v2373
    %2441 = vmatpush.msra.mxu0 %v2371
    %2442 = vmatpush.msra.mxu0 %v2369
    %2443 = vmatpush.msra.mxu0 %v2367
    %2444 = vmatpush.msra.mxu0 %v2365
    %2445 = vmatmul.f32.gmra.mxu0 %v2286
    %v2446 = vpop.f32.mrf.mxu0
    %v2447 = vadd.f32 0.0, %v2446
    %2448 = vmatmul.f32.gmra.mxu0 %v2289
    %v2449 = vpop.f32.mrf.mxu0
    %v2450 = vadd.f32 0.0, %v2449
    %2451 = vmatmul.f32.gmra.mxu0 %v2292
    %v2452 = vpop.f32.mrf.mxu0
    %v2453 = vadd.f32 0.0, %v2452
    %2454 = vmatmul.f32.gmra.mxu0 %v2295
    %v2455 = vpop.f32.mrf.mxu0
    %v2456 = vadd.f32 0.0, %v2455
    %2457 = vmatmul.f32.gmra.mxu0 %v2298
    %v2458 = vpop.f32.mrf.mxu0
    %v2459 = vadd.f32 0.0, %v2458
    %2460 = vdwg.mxu0
    %2461 = vmatpush.msra.mxu0 %v2427
    %2462 = vmatpush.msra.mxu0 %v2425
    %2463 = vmatpush.msra.mxu0 %v2423
    %2464 = vmatpush.msra.mxu0 %v2421
    %2465 = vmatpush.msra.mxu0 %v2419
    %2466 = vmatpush.msra.mxu0 %v2417
    %2467 = vmatpush.msra.mxu0 %v2415
    %2468 = vmatpush.msra.mxu0 %v2413
    %2469 = vmatpush.msra.mxu0 %v2411
    %2470 = vmatpush.msra.mxu0 %v2409
    %2471 = vmatpush.msra.mxu0 %v2407
    %2472 = vmatpush.msra.mxu0 %v2405
    %2473 = vmatpush.msra.mxu0 %v2403
    %2474 = vmatpush.msra.mxu0 %v2401
    %2475 = vmatpush.msra.mxu0 %v2399
    %2476 = vmatpush.msra.mxu0 %v2397
    %2477 = vmatmul.f32.gmra.mxu0 %v2350
    %v2478 = vpop.f32.mrf.mxu0
    %v2479 = vadd.f32 %v2447, %v2478
    %2480 = vmatmul.f32.gmra.mxu0 %v2353
    %v2481 = vpop.f32.mrf.mxu0
    %v2482 = vadd.f32 %v2450, %v2481
    %2483 = vmatmul.f32.gmra.mxu0 %v2356
    %v2484 = vpop.f32.mrf.mxu0
    %v2485 = vadd.f32 %v2453, %v2484
    %2486 = vmatmul.f32.gmra.mxu0 %v2359
    %v2487 = vpop.f32.mrf.mxu0
    %v2488 = vadd.f32 %v2456, %v2487
    %2489 = vmatmul.f32.gmra.mxu0 %v2362
    %v2490 = vpop.f32.mrf.mxu0
    %v2491 = vadd.f32 %v2459, %v2490
    %2492 = vdwg.mxu0
    %2493 = vmatpush.msra.mxu0 %v2396
    %2494 = vmatpush.msra.mxu0 %v2394
    %2495 = vmatpush.msra.mxu0 %v2392
    %2496 = vmatpush.msra.mxu0 %v2390
    %2497 = vmatpush.msra.mxu0 %v2388
    %2498 = vmatpush.msra.mxu0 %v2386
    %2499 = vmatpush.msra.mxu0 %v2384
    %2500 = vmatpush.msra.mxu0 %v2382
    %2501 = vmatpush.msra.mxu0 %v2380
    %2502 = vmatpush.msra.mxu0 %v2378
    %2503 = vmatpush.msra.mxu0 %v2376
    %2504 = vmatpush.msra.mxu0 %v2374
    %2505 = vmatpush.msra.mxu0 %v2372
    %2506 = vmatpush.msra.mxu0 %v2370
    %2507 = vmatpush.msra.mxu0 %v2368
    %2508 = vmatpush.msra.mxu0 %v2366
    %2509 = vmatmul.f32.gmra.mxu0 %v2286
    %v2510 = vpop.f32.mrf.mxu0
    %v2511 = vadd.f32 0.0, %v2510
    %2512 = vmatmul.f32.gmra.mxu0 %v2289
    %v2513 = vpop.f32.mrf.mxu0
    %v2514 = vadd.f32 0.0, %v2513
    %2515 = vmatmul.f32.gmra.mxu0 %v2292
    %v2516 = vpop.f32.mrf.mxu0
    %v2517 = vadd.f32 0.0, %v2516
    %2518 = vmatmul.f32.gmra.mxu0 %v2295
    %v2519 = vpop.f32.mrf.mxu0
    %v2520 = vadd.f32 0.0, %v2519
    %2521 = vmatmul.f32.gmra.mxu0 %v2298
    %v2522 = vpop.f32.mrf.mxu0
    %v2523 = vadd.f32 0.0, %v2522
    %2524 = vdwg.mxu0
    %2525 = vmatpush.msra.mxu0 %v2428
    %2526 = vmatpush.msra.mxu0 %v2426
    %2527 = vmatpush.msra.mxu0 %v2424
    %2528 = vmatpush.msra.mxu0 %v2422
    %2529 = vmatpush.msra.mxu0 %v2420
    %2530 = vmatpush.msra.mxu0 %v2418
    %2531 = vmatpush.msra.mxu0 %v2416
    %2532 = vmatpush.msra.mxu0 %v2414
    %2533 = vmatpush.msra.mxu0 %v2412
    %2534 = vmatpush.msra.mxu0 %v2410
    %2535 = vmatpush.msra.mxu0 %v2408
    %2536 = vmatpush.msra.mxu0 %v2406
    %2537 = vmatpush.msra.mxu0 %v2404
    %2538 = vmatpush.msra.mxu0 %v2402
    %2539 = vmatpush.msra.mxu0 %v2400
    %2540 = vmatpush.msra.mxu0 %v2398
    %2541 = vmatmul.f32.gmra.mxu0 %v2350
    %v2542 = vpop.f32.mrf.mxu0
    %v2543 = vadd.f32 %v2511, %v2542
    %2544 = vmatmul.f32.gmra.mxu0 %v2353
    %v2545 = vpop.f32.mrf.mxu0
    %v2546 = vadd.f32 %v2514, %v2545
    %2547 = vmatmul.f32.gmra.mxu0 %v2356
    %v2548 = vpop.f32.mrf.mxu0
    %v2549 = vadd.f32 %v2517, %v2548
    %2550 = vmatmul.f32.gmra.mxu0 %v2359
    %v2551 = vpop.f32.mrf.mxu0
    %v2552 = vadd.f32 %v2520, %v2551
    %2553 = vmatmul.f32.gmra.mxu0 %v2362
    %v2554 = vpop.f32.mrf.mxu0
    %v2555 = vadd.f32 %v2523, %v2554
    %2556 = vdwg.mxu0
    %v2557 = vadd.f32 %v2132, %v2479
    %v2558 = vadd.f32 %v2196, %v2543
    %v2559 = vadd.f32 %v2135, %v2482
    %v2560 = vadd.f32 %v2199, %v2546
    %v2561 = vadd.f32 %v2138, %v2485
    %v2562 = vadd.f32 %v2202, %v2549
    %v2563 = vadd.f32 %v2141, %v2488
    %v2564 = vadd.f32 %v2205, %v2552
    %v2565 = vadd.f32 %v2144, %v2491
    %v2566 = vadd.f32 %v2208, %v2555
    %s2567 = scalar_lea.vmem %s3, 240
    %v2568 = vld [vmem:[%s2567] sm:$0xff]
    %v2569 = vld [vmem:[%s2567 + $0x8] sm:$0xff]
    %v2570 = vld [vmem:[%s2567 + $0x10] sm:$0xff]
    %v2571 = vld [vmem:[%s2567 + $0x18] sm:$0xff]
    %v2572 = vld [vmem:[%s2567 + $0x20] sm:$0xff]
    %v2573 = vld [vmem:[%s2567 + $0x28] sm:$0xff]
    %v2574 = vld [vmem:[%s2567 + $0x30] sm:$0xff]
    %v2575 = vld [vmem:[%s2567 + $0x38] sm:$0xff]
    %v2576 = vld [vmem:[%s2567 + $0x40] sm:$0xf]
    %v2577 = vld [vmem:[%s2567 + $0x48] sm:$0xf]
    %v2579 = vsel %vm1520, %v2569, 0
    %v2582 = vsel %vm1520, %v2571, 0
    %v2585 = vsel %vm1520, %v2573, 0
    %v2588 = vsel %vm1520, %v2575, 0
    %v2591 = vsel %vm1520, %v2577, 0
    %2593 = vmatpush.msra.mxu0 %v1500
    %2594 = vmatpush.msra.mxu0 %v1498
    %2595 = vmatpush.msra.mxu0 %v1496
    %2596 = vmatpush.msra.mxu0 %v1494
    %2597 = vmatpush.msra.mxu0 %v1492
    %2598 = vmatpush.msra.mxu0 %v1490
    %2599 = vmatpush.msra.mxu0 %v1488
    %2600 = vmatpush.msra.mxu0 %v1486
    %2601 = vmatpush.msra.mxu0 %v1484
    %2602 = vmatpush.msra.mxu0 %v1482
    %2603 = vmatpush.msra.mxu0 %v1480
    %2604 = vmatpush.msra.mxu0 %v1478
    %2605 = vmatpush.msra.mxu0 %v1476
    %2606 = vmatpush.msra.mxu0 %v1474
    %2607 = vmatpush.msra.mxu0 %v1472
    %2608 = vmatpush.msra.mxu0 %v1470
    %2609 = vmatmul.f32.gmra.mxu0 %v2568
    %v2610 = vpop.f32.mrf.mxu0
    %v2611 = vadd.f32 0.0, %v2610
    %2612 = vmatmul.f32.gmra.mxu0 %v2570
    %v2613 = vpop.f32.mrf.mxu0
    %v2614 = vadd.f32 0.0, %v2613
    %2615 = vmatmul.f32.gmra.mxu0 %v2572
    %v2616 = vpop.f32.mrf.mxu0
    %v2617 = vadd.f32 0.0, %v2616
    %2618 = vmatmul.f32.gmra.mxu0 %v2574
    %v2619 = vpop.f32.mrf.mxu0
    %v2620 = vadd.f32 0.0, %v2619
    %2621 = vmatmul.f32.gmra.mxu0 %v2576
    %v2622 = vpop.f32.mrf.mxu0
    %v2623 = vadd.f32 0.0, %v2622
    %2624 = vdwg.mxu0
    %2625 = vmatpush.msra.mxu0 0.0
    %2626 = vmatpush.msra.mxu0 0.0
    %2627 = vmatpush.msra.mxu0 0.0
    %2628 = vmatpush.msra.mxu0 0.0
    %2629 = vmatpush.msra.mxu0 0.0
    %2630 = vmatpush.msra.mxu0 0.0
    %2631 = vmatpush.msra.mxu0 0.0
    %2632 = vmatpush.msra.mxu0 %v1538
    %2633 = vmatpush.msra.mxu0 %v1516
    %2634 = vmatpush.msra.mxu0 %v1514
    %2635 = vmatpush.msra.mxu0 %v1512
    %2636 = vmatpush.msra.mxu0 %v1510
    %2637 = vmatpush.msra.mxu0 %v1508
    %2638 = vmatpush.msra.mxu0 %v1506
    %2639 = vmatpush.msra.mxu0 %v1504
    %2640 = vmatpush.msra.mxu0 %v1502
    %2641 = vmatmul.f32.gmra.mxu0 %v2579
    %v2642 = vpop.f32.mrf.mxu0
    %v2643 = vadd.f32 %v2611, %v2642
    %2644 = vmatmul.f32.gmra.mxu0 %v2582
    %v2645 = vpop.f32.mrf.mxu0
    %v2646 = vadd.f32 %v2614, %v2645
    %2647 = vmatmul.f32.gmra.mxu0 %v2585
    %v2648 = vpop.f32.mrf.mxu0
    %v2649 = vadd.f32 %v2617, %v2648
    %2650 = vmatmul.f32.gmra.mxu0 %v2588
    %v2651 = vpop.f32.mrf.mxu0
    %v2652 = vadd.f32 %v2620, %v2651
    %2653 = vmatmul.f32.gmra.mxu0 %v2591
    %v2654 = vpop.f32.mrf.mxu0
    %v2655 = vadd.f32 %v2623, %v2654
    %2656 = vdwg.mxu0
    %2657 = vmatpush.msra.mxu0 %v1501
    %2658 = vmatpush.msra.mxu0 %v1499
    %2659 = vmatpush.msra.mxu0 %v1497
    %2660 = vmatpush.msra.mxu0 %v1495
    %2661 = vmatpush.msra.mxu0 %v1493
    %2662 = vmatpush.msra.mxu0 %v1491
    %2663 = vmatpush.msra.mxu0 %v1489
    %2664 = vmatpush.msra.mxu0 %v1487
    %2665 = vmatpush.msra.mxu0 %v1485
    %2666 = vmatpush.msra.mxu0 %v1483
    %2667 = vmatpush.msra.mxu0 %v1481
    %2668 = vmatpush.msra.mxu0 %v1479
    %2669 = vmatpush.msra.mxu0 %v1477
    %2670 = vmatpush.msra.mxu0 %v1475
    %2671 = vmatpush.msra.mxu0 %v1473
    %2672 = vmatpush.msra.mxu0 %v1471
    %2673 = vmatmul.f32.gmra.mxu0 %v2568
    %v2674 = vpop.f32.mrf.mxu0
    %v2675 = vadd.f32 0.0, %v2674
    %2676 = vmatmul.f32.gmra.mxu0 %v2570
    %v2677 = vpop.f32.mrf.mxu0
    %v2678 = vadd.f32 0.0, %v2677
    %2679 = vmatmul.f32.gmra.mxu0 %v2572
    %v2680 = vpop.f32.mrf.mxu0
    %v2681 = vadd.f32 0.0, %v2680
    %2682 = vmatmul.f32.gmra.mxu0 %v2574
    %v2683 = vpop.f32.mrf.mxu0
    %v2684 = vadd.f32 0.0, %v2683
    %2685 = vmatmul.f32.gmra.mxu0 %v2576
    %v2686 = vpop.f32.mrf.mxu0
    %v2687 = vadd.f32 0.0, %v2686
    %2688 = vdwg.mxu0
    %2689 = vmatpush.msra.mxu0 0.0
    %2690 = vmatpush.msra.mxu0 0.0
    %2691 = vmatpush.msra.mxu0 0.0
    %2692 = vmatpush.msra.mxu0 0.0
    %2693 = vmatpush.msra.mxu0 0.0
    %2694 = vmatpush.msra.mxu0 0.0
    %2695 = vmatpush.msra.mxu0 0.0
    %2696 = vmatpush.msra.mxu0 %v1541
    %2697 = vmatpush.msra.mxu0 %v1517
    %2698 = vmatpush.msra.mxu0 %v1515
    %2699 = vmatpush.msra.mxu0 %v1513
    %2700 = vmatpush.msra.mxu0 %v1511
    %2701 = vmatpush.msra.mxu0 %v1509
    %2702 = vmatpush.msra.mxu0 %v1507
    %2703 = vmatpush.msra.mxu0 %v1505
    %2704 = vmatpush.msra.mxu0 %v1503
    %2705 = vmatmul.f32.gmra.mxu0 %v2579
    %v2706 = vpop.f32.mrf.mxu0
    %v2707 = vadd.f32 %v2675, %v2706
    %2708 = vmatmul.f32.gmra.mxu0 %v2582
    %v2709 = vpop.f32.mrf.mxu0
    %v2710 = vadd.f32 %v2678, %v2709
    %2711 = vmatmul.f32.gmra.mxu0 %v2585
    %v2712 = vpop.f32.mrf.mxu0
    %v2713 = vadd.f32 %v2681, %v2712
    %2714 = vmatmul.f32.gmra.mxu0 %v2588
    %v2715 = vpop.f32.mrf.mxu0
    %v2716 = vadd.f32 %v2684, %v2715
    %2717 = vmatmul.f32.gmra.mxu0 %v2591
    %v2718 = vpop.f32.mrf.mxu0
    %v2719 = vadd.f32 %v2687, %v2718
    %2720 = vdwg.mxu0
    %s2721 = scalar_lea.vmem %s4, 1536
    %v2722 = vld [vmem:[%s2721] sm:$0xff]
    %v2723 = vld [vmem:[%s2721 + $0x8] sm:$0xff]
    %v2724 = vld [vmem:[%s2721 + $0x10] sm:$0xff]
    %v2725 = vld [vmem:[%s2721 + $0x18] sm:$0xff]
    %v2726 = vld [vmem:[%s2721 + $0x20] sm:$0xff]
    %v2727 = vld [vmem:[%s2721 + $0x28] sm:$0xff]
    %v2728 = vld [vmem:[%s2721 + $0x30] sm:$0xff]
    %v2729 = vld [vmem:[%s2721 + $0x38] sm:$0xff]
    %v2730 = vld [vmem:[%s2721 + $0x40] sm:$0xff]
    %v2731 = vld [vmem:[%s2721 + $0x48] sm:$0xff]
    %v2732 = vld [vmem:[%s2721 + $0x50] sm:$0xff]
    %v2733 = vld [vmem:[%s2721 + $0x58] sm:$0xff]
    %v2734 = vld [vmem:[%s2721 + $0x60] sm:$0xff]
    %v2735 = vld [vmem:[%s2721 + $0x68] sm:$0xff]
    %v2736 = vld [vmem:[%s2721 + $0x70] sm:$0xff]
    %v2737 = vld [vmem:[%s2721 + $0x78] sm:$0xff]
    %v2738 = vld [vmem:[%s2721 + $0x80] sm:$0xff]
    %v2739 = vld [vmem:[%s2721 + $0x88] sm:$0xff]
    %v2740 = vld [vmem:[%s2721 + $0x90] sm:$0xff]
    %v2741 = vld [vmem:[%s2721 + $0x98] sm:$0xff]
    %v2742 = vld [vmem:[%s2721 + $0xa0] sm:$0xff]
    %v2743 = vld [vmem:[%s2721 + $0xa8] sm:$0xff]
    %v2744 = vld [vmem:[%s2721 + $0xb0] sm:$0xff]
    %v2745 = vld [vmem:[%s2721 + $0xb8] sm:$0xff]
    %v2746 = vld [vmem:[%s2721 + $0xc0] sm:$0xff]
    %v2747 = vld [vmem:[%s2721 + $0xc8] sm:$0xff]
    %v2748 = vld [vmem:[%s2721 + $0xd0] sm:$0xff]
    %v2749 = vld [vmem:[%s2721 + $0xd8] sm:$0xff]
    %v2750 = vld [vmem:[%s2721 + $0xe0] sm:$0xff]
    %v2751 = vld [vmem:[%s2721 + $0xe8] sm:$0xff]
    %v2752 = vld [vmem:[%s2721 + $0xf0] sm:$0xff]
    %v2753 = vld [vmem:[%s2721 + $0xf8] sm:$0xff]
    %v2754 = vld [vmem:[%s2721 + $0x100] sm:$0xff]
    %v2755 = vld [vmem:[%s2721 + $0x108] sm:$0xff]
    %v2756 = vld [vmem:[%s2721 + $0x110] sm:$0xff]
    %v2757 = vld [vmem:[%s2721 + $0x118] sm:$0xff]
    %v2758 = vld [vmem:[%s2721 + $0x120] sm:$0xff]
    %v2759 = vld [vmem:[%s2721 + $0x128] sm:$0xff]
    %v2760 = vld [vmem:[%s2721 + $0x130] sm:$0xff]
    %v2761 = vld [vmem:[%s2721 + $0x138] sm:$0xff]
    %v2762 = vld [vmem:[%s2721 + $0x140] sm:$0xff]
    %v2763 = vld [vmem:[%s2721 + $0x148] sm:$0xff]
    %v2764 = vld [vmem:[%s2721 + $0x150] sm:$0xff]
    %v2765 = vld [vmem:[%s2721 + $0x158] sm:$0xff]
    %v2766 = vld [vmem:[%s2721 + $0x160] sm:$0xff]
    %v2767 = vld [vmem:[%s2721 + $0x168] sm:$0xff]
    %v2768 = vld [vmem:[%s2721 + $0x170] sm:$0xff]
    %v2769 = vld [vmem:[%s2721 + $0x178] sm:$0xff]
    %v2770 = vld [vmem:[%s2721 + $0x180] sm:$0xff]
    %v2771 = vld [vmem:[%s2721 + $0x188] sm:$0xff]
    %v2772 = vld [vmem:[%s2721 + $0x190] sm:$0xff]
    %v2773 = vld [vmem:[%s2721 + $0x198] sm:$0xff]
    %v2774 = vld [vmem:[%s2721 + $0x1a0] sm:$0xff]
    %v2775 = vld [vmem:[%s2721 + $0x1a8] sm:$0xff]
    %v2776 = vld [vmem:[%s2721 + $0x1b0] sm:$0xff]
    %v2777 = vld [vmem:[%s2721 + $0x1b8] sm:$0xff]
    %v2778 = vld [vmem:[%s2721 + $0x1c0] sm:$0xff]
    %v2779 = vld [vmem:[%s2721 + $0x1c8] sm:$0xff]
    %v2780 = vld [vmem:[%s2721 + $0x1d0] sm:$0xff]
    %v2781 = vld [vmem:[%s2721 + $0x1d8] sm:$0xff]
    %v2782 = vld [vmem:[%s2721 + $0x1e0] sm:$0xff]
    %v2783 = vld [vmem:[%s2721 + $0x1e8] sm:$0xff]
    %v2784 = vld [vmem:[%s2721 + $0x1f0] sm:$0xff]
    %v2785 = vld [vmem:[%s2721 + $0x1f8] sm:$0xff]
    %2786 = vmatpush.msra.mxu0 %v2752
    %2787 = vmatpush.msra.mxu0 %v2750
    %2788 = vmatpush.msra.mxu0 %v2748
    %2789 = vmatpush.msra.mxu0 %v2746
    %2790 = vmatpush.msra.mxu0 %v2744
    %2791 = vmatpush.msra.mxu0 %v2742
    %2792 = vmatpush.msra.mxu0 %v2740
    %2793 = vmatpush.msra.mxu0 %v2738
    %2794 = vmatpush.msra.mxu0 %v2736
    %2795 = vmatpush.msra.mxu0 %v2734
    %2796 = vmatpush.msra.mxu0 %v2732
    %2797 = vmatpush.msra.mxu0 %v2730
    %2798 = vmatpush.msra.mxu0 %v2728
    %2799 = vmatpush.msra.mxu0 %v2726
    %2800 = vmatpush.msra.mxu0 %v2724
    %2801 = vmatpush.msra.mxu0 %v2722
    %2802 = vmatmul.f32.gmra.mxu0 %v2643
    %v2803 = vpop.f32.mrf.mxu0
    %v2804 = vadd.f32 0.0, %v2803
    %2805 = vmatmul.f32.gmra.mxu0 %v2646
    %v2806 = vpop.f32.mrf.mxu0
    %v2807 = vadd.f32 0.0, %v2806
    %2808 = vmatmul.f32.gmra.mxu0 %v2649
    %v2809 = vpop.f32.mrf.mxu0
    %v2810 = vadd.f32 0.0, %v2809
    %2811 = vmatmul.f32.gmra.mxu0 %v2652
    %v2812 = vpop.f32.mrf.mxu0
    %v2813 = vadd.f32 0.0, %v2812
    %2814 = vmatmul.f32.gmra.mxu0 %v2655
    %v2815 = vpop.f32.mrf.mxu0
    %v2816 = vadd.f32 0.0, %v2815
    %2817 = vdwg.mxu0
    %2818 = vmatpush.msra.mxu0 %v2784
    %2819 = vmatpush.msra.mxu0 %v2782
    %2820 = vmatpush.msra.mxu0 %v2780
    %2821 = vmatpush.msra.mxu0 %v2778
    %2822 = vmatpush.msra.mxu0 %v2776
    %2823 = vmatpush.msra.mxu0 %v2774
    %2824 = vmatpush.msra.mxu0 %v2772
    %2825 = vmatpush.msra.mxu0 %v2770
    %2826 = vmatpush.msra.mxu0 %v2768
    %2827 = vmatpush.msra.mxu0 %v2766
    %2828 = vmatpush.msra.mxu0 %v2764
    %2829 = vmatpush.msra.mxu0 %v2762
    %2830 = vmatpush.msra.mxu0 %v2760
    %2831 = vmatpush.msra.mxu0 %v2758
    %2832 = vmatpush.msra.mxu0 %v2756
    %2833 = vmatpush.msra.mxu0 %v2754
    %2834 = vmatmul.f32.gmra.mxu0 %v2707
    %v2835 = vpop.f32.mrf.mxu0
    %v2836 = vadd.f32 %v2804, %v2835
    %2837 = vmatmul.f32.gmra.mxu0 %v2710
    %v2838 = vpop.f32.mrf.mxu0
    %v2839 = vadd.f32 %v2807, %v2838
    %2840 = vmatmul.f32.gmra.mxu0 %v2713
    %v2841 = vpop.f32.mrf.mxu0
    %v2842 = vadd.f32 %v2810, %v2841
    %2843 = vmatmul.f32.gmra.mxu0 %v2716
    %v2844 = vpop.f32.mrf.mxu0
    %v2845 = vadd.f32 %v2813, %v2844
    %2846 = vmatmul.f32.gmra.mxu0 %v2719
    %v2847 = vpop.f32.mrf.mxu0
    %v2848 = vadd.f32 %v2816, %v2847
    %2849 = vdwg.mxu0
    %2850 = vmatpush.msra.mxu0 %v2753
    %2851 = vmatpush.msra.mxu0 %v2751
    %2852 = vmatpush.msra.mxu0 %v2749
    %2853 = vmatpush.msra.mxu0 %v2747
    %2854 = vmatpush.msra.mxu0 %v2745
    %2855 = vmatpush.msra.mxu0 %v2743
    %2856 = vmatpush.msra.mxu0 %v2741
    %2857 = vmatpush.msra.mxu0 %v2739
    %2858 = vmatpush.msra.mxu0 %v2737
    %2859 = vmatpush.msra.mxu0 %v2735
    %2860 = vmatpush.msra.mxu0 %v2733
    %2861 = vmatpush.msra.mxu0 %v2731
    %2862 = vmatpush.msra.mxu0 %v2729
    %2863 = vmatpush.msra.mxu0 %v2727
    %2864 = vmatpush.msra.mxu0 %v2725
    %2865 = vmatpush.msra.mxu0 %v2723
    %2866 = vmatmul.f32.gmra.mxu0 %v2643
    %v2867 = vpop.f32.mrf.mxu0
    %v2868 = vadd.f32 0.0, %v2867
    %2869 = vmatmul.f32.gmra.mxu0 %v2646
    %v2870 = vpop.f32.mrf.mxu0
    %v2871 = vadd.f32 0.0, %v2870
    %2872 = vmatmul.f32.gmra.mxu0 %v2649
    %v2873 = vpop.f32.mrf.mxu0
    %v2874 = vadd.f32 0.0, %v2873
    %2875 = vmatmul.f32.gmra.mxu0 %v2652
    %v2876 = vpop.f32.mrf.mxu0
    %v2877 = vadd.f32 0.0, %v2876
    %2878 = vmatmul.f32.gmra.mxu0 %v2655
    %v2879 = vpop.f32.mrf.mxu0
    %v2880 = vadd.f32 0.0, %v2879
    %2881 = vdwg.mxu0
    %2882 = vmatpush.msra.mxu0 %v2785
    %2883 = vmatpush.msra.mxu0 %v2783
    %2884 = vmatpush.msra.mxu0 %v2781
    %2885 = vmatpush.msra.mxu0 %v2779
    %2886 = vmatpush.msra.mxu0 %v2777
    %2887 = vmatpush.msra.mxu0 %v2775
    %2888 = vmatpush.msra.mxu0 %v2773
    %2889 = vmatpush.msra.mxu0 %v2771
    %2890 = vmatpush.msra.mxu0 %v2769
    %2891 = vmatpush.msra.mxu0 %v2767
    %2892 = vmatpush.msra.mxu0 %v2765
    %2893 = vmatpush.msra.mxu0 %v2763
    %2894 = vmatpush.msra.mxu0 %v2761
    %2895 = vmatpush.msra.mxu0 %v2759
    %2896 = vmatpush.msra.mxu0 %v2757
    %2897 = vmatpush.msra.mxu0 %v2755
    %2898 = vmatmul.f32.gmra.mxu0 %v2707
    %v2899 = vpop.f32.mrf.mxu0
    %v2900 = vadd.f32 %v2868, %v2899
    %2901 = vmatmul.f32.gmra.mxu0 %v2710
    %v2902 = vpop.f32.mrf.mxu0
    %v2903 = vadd.f32 %v2871, %v2902
    %2904 = vmatmul.f32.gmra.mxu0 %v2713
    %v2905 = vpop.f32.mrf.mxu0
    %v2906 = vadd.f32 %v2874, %v2905
    %2907 = vmatmul.f32.gmra.mxu0 %v2716
    %v2908 = vpop.f32.mrf.mxu0
    %v2909 = vadd.f32 %v2877, %v2908
    %2910 = vmatmul.f32.gmra.mxu0 %v2719
    %v2911 = vpop.f32.mrf.mxu0
    %v2912 = vadd.f32 %v2880, %v2911
    %2913 = vdwg.mxu0
    %v2914 = vadd.f32 %v2557, %v2836
    %v2915 = vadd.f32 %v2558, %v2900
    %v2916 = vadd.f32 %v2559, %v2839
    %v2917 = vadd.f32 %v2560, %v2903
    %v2918 = vadd.f32 %v2561, %v2842
    %v2919 = vadd.f32 %v2562, %v2906
    %v2920 = vadd.f32 %v2563, %v2845
    %v2921 = vadd.f32 %v2564, %v2909
    %v2922 = vadd.f32 %v2565, %v2848
    %v2923 = vadd.f32 %v2566, %v2912
    %s2924 = scalar_lea.vmem %s3, 320
    %v2925 = vld [vmem:[%s2924] sm:$0xff]
    %v2926 = vld [vmem:[%s2924 + $0x8] sm:$0xff]
    %v2927 = vld [vmem:[%s2924 + $0x10] sm:$0xff]
    %v2928 = vld [vmem:[%s2924 + $0x18] sm:$0xff]
    %v2929 = vld [vmem:[%s2924 + $0x20] sm:$0xff]
    %v2930 = vld [vmem:[%s2924 + $0x28] sm:$0xff]
    %v2931 = vld [vmem:[%s2924 + $0x30] sm:$0xff]
    %v2932 = vld [vmem:[%s2924 + $0x38] sm:$0xff]
    %v2933 = vld [vmem:[%s2924 + $0x40] sm:$0xf]
    %v2934 = vld [vmem:[%s2924 + $0x48] sm:$0xf]
    %v2936 = vsel %vm1520, %v2926, 0
    %v2939 = vsel %vm1520, %v2928, 0
    %v2942 = vsel %vm1520, %v2930, 0
    %v2945 = vsel %vm1520, %v2932, 0
    %v2948 = vsel %vm1520, %v2934, 0
    %2950 = vmatpush.msra.mxu0 %v1500
    %2951 = vmatpush.msra.mxu0 %v1498
    %2952 = vmatpush.msra.mxu0 %v1496
    %2953 = vmatpush.msra.mxu0 %v1494
    %2954 = vmatpush.msra.mxu0 %v1492
    %2955 = vmatpush.msra.mxu0 %v1490
    %2956 = vmatpush.msra.mxu0 %v1488
    %2957 = vmatpush.msra.mxu0 %v1486
    %2958 = vmatpush.msra.mxu0 %v1484
    %2959 = vmatpush.msra.mxu0 %v1482
    %2960 = vmatpush.msra.mxu0 %v1480
    %2961 = vmatpush.msra.mxu0 %v1478
    %2962 = vmatpush.msra.mxu0 %v1476
    %2963 = vmatpush.msra.mxu0 %v1474
    %2964 = vmatpush.msra.mxu0 %v1472
    %2965 = vmatpush.msra.mxu0 %v1470
    %2966 = vmatmul.f32.gmra.mxu0 %v2925
    %v2967 = vpop.f32.mrf.mxu0
    %v2968 = vadd.f32 0.0, %v2967
    %2969 = vmatmul.f32.gmra.mxu0 %v2927
    %v2970 = vpop.f32.mrf.mxu0
    %v2971 = vadd.f32 0.0, %v2970
    %2972 = vmatmul.f32.gmra.mxu0 %v2929
    %v2973 = vpop.f32.mrf.mxu0
    %v2974 = vadd.f32 0.0, %v2973
    %2975 = vmatmul.f32.gmra.mxu0 %v2931
    %v2976 = vpop.f32.mrf.mxu0
    %v2977 = vadd.f32 0.0, %v2976
    %2978 = vmatmul.f32.gmra.mxu0 %v2933
    %v2979 = vpop.f32.mrf.mxu0
    %v2980 = vadd.f32 0.0, %v2979
    %2981 = vdwg.mxu0
    %2982 = vmatpush.msra.mxu0 0.0
    %2983 = vmatpush.msra.mxu0 0.0
    %2984 = vmatpush.msra.mxu0 0.0
    %2985 = vmatpush.msra.mxu0 0.0
    %2986 = vmatpush.msra.mxu0 0.0
    %2987 = vmatpush.msra.mxu0 0.0
    %2988 = vmatpush.msra.mxu0 0.0
    %2989 = vmatpush.msra.mxu0 %v1538
    %2990 = vmatpush.msra.mxu0 %v1516
    %2991 = vmatpush.msra.mxu0 %v1514
    %2992 = vmatpush.msra.mxu0 %v1512
    %2993 = vmatpush.msra.mxu0 %v1510
    %2994 = vmatpush.msra.mxu0 %v1508
    %2995 = vmatpush.msra.mxu0 %v1506
    %2996 = vmatpush.msra.mxu0 %v1504
    %2997 = vmatpush.msra.mxu0 %v1502
    %2998 = vmatmul.f32.gmra.mxu0 %v2936
    %v2999 = vpop.f32.mrf.mxu0
    %v3000 = vadd.f32 %v2968, %v2999
    %3001 = vmatmul.f32.gmra.mxu0 %v2939
    %v3002 = vpop.f32.mrf.mxu0
    %v3003 = vadd.f32 %v2971, %v3002
    %3004 = vmatmul.f32.gmra.mxu0 %v2942
    %v3005 = vpop.f32.mrf.mxu0
    %v3006 = vadd.f32 %v2974, %v3005
    %3007 = vmatmul.f32.gmra.mxu0 %v2945
    %v3008 = vpop.f32.mrf.mxu0
    %v3009 = vadd.f32 %v2977, %v3008
    %3010 = vmatmul.f32.gmra.mxu0 %v2948
    %v3011 = vpop.f32.mrf.mxu0
    %v3012 = vadd.f32 %v2980, %v3011
    %3013 = vdwg.mxu0
    %3014 = vmatpush.msra.mxu0 %v1501
    %3015 = vmatpush.msra.mxu0 %v1499
    %3016 = vmatpush.msra.mxu0 %v1497
    %3017 = vmatpush.msra.mxu0 %v1495
    %3018 = vmatpush.msra.mxu0 %v1493
    %3019 = vmatpush.msra.mxu0 %v1491
    %3020 = vmatpush.msra.mxu0 %v1489
    %3021 = vmatpush.msra.mxu0 %v1487
    %3022 = vmatpush.msra.mxu0 %v1485
    %3023 = vmatpush.msra.mxu0 %v1483
    %3024 = vmatpush.msra.mxu0 %v1481
    %3025 = vmatpush.msra.mxu0 %v1479
    %3026 = vmatpush.msra.mxu0 %v1477
    %3027 = vmatpush.msra.mxu0 %v1475
    %3028 = vmatpush.msra.mxu0 %v1473
    %3029 = vmatpush.msra.mxu0 %v1471
    %3030 = vmatmul.f32.gmra.mxu0 %v2925
    %v3031 = vpop.f32.mrf.mxu0
    %v3032 = vadd.f32 0.0, %v3031
    %3033 = vmatmul.f32.gmra.mxu0 %v2927
    %v3034 = vpop.f32.mrf.mxu0
    %v3035 = vadd.f32 0.0, %v3034
    %3036 = vmatmul.f32.gmra.mxu0 %v2929
    %v3037 = vpop.f32.mrf.mxu0
    %v3038 = vadd.f32 0.0, %v3037
    %3039 = vmatmul.f32.gmra.mxu0 %v2931
    %v3040 = vpop.f32.mrf.mxu0
    %v3041 = vadd.f32 0.0, %v3040
    %3042 = vmatmul.f32.gmra.mxu0 %v2933
    %v3043 = vpop.f32.mrf.mxu0
    %v3044 = vadd.f32 0.0, %v3043
    %3045 = vdwg.mxu0
    %3046 = vmatpush.msra.mxu0 0.0
    %3047 = vmatpush.msra.mxu0 0.0
    %3048 = vmatpush.msra.mxu0 0.0
    %3049 = vmatpush.msra.mxu0 0.0
    %3050 = vmatpush.msra.mxu0 0.0
    %3051 = vmatpush.msra.mxu0 0.0
    %3052 = vmatpush.msra.mxu0 0.0
    %3053 = vmatpush.msra.mxu0 %v1541
    %3054 = vmatpush.msra.mxu0 %v1517
    %3055 = vmatpush.msra.mxu0 %v1515
    %3056 = vmatpush.msra.mxu0 %v1513
    %3057 = vmatpush.msra.mxu0 %v1511
    %3058 = vmatpush.msra.mxu0 %v1509
    %3059 = vmatpush.msra.mxu0 %v1507
    %3060 = vmatpush.msra.mxu0 %v1505
    %3061 = vmatpush.msra.mxu0 %v1503
    %3062 = vmatmul.f32.gmra.mxu0 %v2936
    %v3063 = vpop.f32.mrf.mxu0
    %v3064 = vadd.f32 %v3032, %v3063
    %3065 = vmatmul.f32.gmra.mxu0 %v2939
    %v3066 = vpop.f32.mrf.mxu0
    %v3067 = vadd.f32 %v3035, %v3066
    %3068 = vmatmul.f32.gmra.mxu0 %v2942
    %v3069 = vpop.f32.mrf.mxu0
    %v3070 = vadd.f32 %v3038, %v3069
    %3071 = vmatmul.f32.gmra.mxu0 %v2945
    %v3072 = vpop.f32.mrf.mxu0
    %v3073 = vadd.f32 %v3041, %v3072
    %3074 = vmatmul.f32.gmra.mxu0 %v2948
    %v3075 = vpop.f32.mrf.mxu0
    %v3076 = vadd.f32 %v3044, %v3075
    %3077 = vdwg.mxu0
    %s3078 = scalar_lea.vmem %s4, 2048
    %v3079 = vld [vmem:[%s3078] sm:$0xff]
    %v3080 = vld [vmem:[%s3078 + $0x8] sm:$0xff]
    %v3081 = vld [vmem:[%s3078 + $0x10] sm:$0xff]
    %v3082 = vld [vmem:[%s3078 + $0x18] sm:$0xff]
    %v3083 = vld [vmem:[%s3078 + $0x20] sm:$0xff]
    %v3084 = vld [vmem:[%s3078 + $0x28] sm:$0xff]
    %v3085 = vld [vmem:[%s3078 + $0x30] sm:$0xff]
    %v3086 = vld [vmem:[%s3078 + $0x38] sm:$0xff]
    %v3087 = vld [vmem:[%s3078 + $0x40] sm:$0xff]
    %v3088 = vld [vmem:[%s3078 + $0x48] sm:$0xff]
    %v3089 = vld [vmem:[%s3078 + $0x50] sm:$0xff]
    %v3090 = vld [vmem:[%s3078 + $0x58] sm:$0xff]
    %v3091 = vld [vmem:[%s3078 + $0x60] sm:$0xff]
    %v3092 = vld [vmem:[%s3078 + $0x68] sm:$0xff]
    %v3093 = vld [vmem:[%s3078 + $0x70] sm:$0xff]
    %v3094 = vld [vmem:[%s3078 + $0x78] sm:$0xff]
    %v3095 = vld [vmem:[%s3078 + $0x80] sm:$0xff]
    %v3096 = vld [vmem:[%s3078 + $0x88] sm:$0xff]
    %v3097 = vld [vmem:[%s3078 + $0x90] sm:$0xff]
    %v3098 = vld [vmem:[%s3078 + $0x98] sm:$0xff]
    %v3099 = vld [vmem:[%s3078 + $0xa0] sm:$0xff]
    %v3100 = vld [vmem:[%s3078 + $0xa8] sm:$0xff]
    %v3101 = vld [vmem:[%s3078 + $0xb0] sm:$0xff]
    %v3102 = vld [vmem:[%s3078 + $0xb8] sm:$0xff]
    %v3103 = vld [vmem:[%s3078 + $0xc0] sm:$0xff]
    %v3104 = vld [vmem:[%s3078 + $0xc8] sm:$0xff]
    %v3105 = vld [vmem:[%s3078 + $0xd0] sm:$0xff]
    %v3106 = vld [vmem:[%s3078 + $0xd8] sm:$0xff]
    %v3107 = vld [vmem:[%s3078 + $0xe0] sm:$0xff]
    %v3108 = vld [vmem:[%s3078 + $0xe8] sm:$0xff]
    %v3109 = vld [vmem:[%s3078 + $0xf0] sm:$0xff]
    %v3110 = vld [vmem:[%s3078 + $0xf8] sm:$0xff]
    %v3111 = vld [vmem:[%s3078 + $0x100] sm:$0xff]
    %v3112 = vld [vmem:[%s3078 + $0x108] sm:$0xff]
    %v3113 = vld [vmem:[%s3078 + $0x110] sm:$0xff]
    %v3114 = vld [vmem:[%s3078 + $0x118] sm:$0xff]
    %v3115 = vld [vmem:[%s3078 + $0x120] sm:$0xff]
    %v3116 = vld [vmem:[%s3078 + $0x128] sm:$0xff]
    %v3117 = vld [vmem:[%s3078 + $0x130] sm:$0xff]
    %v3118 = vld [vmem:[%s3078 + $0x138] sm:$0xff]
    %v3119 = vld [vmem:[%s3078 + $0x140] sm:$0xff]
    %v3120 = vld [vmem:[%s3078 + $0x148] sm:$0xff]
    %v3121 = vld [vmem:[%s3078 + $0x150] sm:$0xff]
    %v3122 = vld [vmem:[%s3078 + $0x158] sm:$0xff]
    %v3123 = vld [vmem:[%s3078 + $0x160] sm:$0xff]
    %v3124 = vld [vmem:[%s3078 + $0x168] sm:$0xff]
    %v3125 = vld [vmem:[%s3078 + $0x170] sm:$0xff]
    %v3126 = vld [vmem:[%s3078 + $0x178] sm:$0xff]
    %v3127 = vld [vmem:[%s3078 + $0x180] sm:$0xff]
    %v3128 = vld [vmem:[%s3078 + $0x188] sm:$0xff]
    %v3129 = vld [vmem:[%s3078 + $0x190] sm:$0xff]
    %v3130 = vld [vmem:[%s3078 + $0x198] sm:$0xff]
    %v3131 = vld [vmem:[%s3078 + $0x1a0] sm:$0xff]
    %v3132 = vld [vmem:[%s3078 + $0x1a8] sm:$0xff]
    %v3133 = vld [vmem:[%s3078 + $0x1b0] sm:$0xff]
    %v3134 = vld [vmem:[%s3078 + $0x1b8] sm:$0xff]
    %v3135 = vld [vmem:[%s3078 + $0x1c0] sm:$0xff]
    %v3136 = vld [vmem:[%s3078 + $0x1c8] sm:$0xff]
    %v3137 = vld [vmem:[%s3078 + $0x1d0] sm:$0xff]
    %v3138 = vld [vmem:[%s3078 + $0x1d8] sm:$0xff]
    %v3139 = vld [vmem:[%s3078 + $0x1e0] sm:$0xff]
    %v3140 = vld [vmem:[%s3078 + $0x1e8] sm:$0xff]
    %v3141 = vld [vmem:[%s3078 + $0x1f0] sm:$0xff]
    %v3142 = vld [vmem:[%s3078 + $0x1f8] sm:$0xff]
    %3143 = vmatpush.msra.mxu0 %v3109
    %3144 = vmatpush.msra.mxu0 %v3107
    %3145 = vmatpush.msra.mxu0 %v3105
    %3146 = vmatpush.msra.mxu0 %v3103
    %3147 = vmatpush.msra.mxu0 %v3101
    %3148 = vmatpush.msra.mxu0 %v3099
    %3149 = vmatpush.msra.mxu0 %v3097
    %3150 = vmatpush.msra.mxu0 %v3095
    %3151 = vmatpush.msra.mxu0 %v3093
    %3152 = vmatpush.msra.mxu0 %v3091
    %3153 = vmatpush.msra.mxu0 %v3089
    %3154 = vmatpush.msra.mxu0 %v3087
    %3155 = vmatpush.msra.mxu0 %v3085
    %3156 = vmatpush.msra.mxu0 %v3083
    %3157 = vmatpush.msra.mxu0 %v3081
    %3158 = vmatpush.msra.mxu0 %v3079
    %3159 = vmatmul.f32.gmra.mxu0 %v3000
    %v3160 = vpop.f32.mrf.mxu0
    %v3161 = vadd.f32 0.0, %v3160
    %3162 = vmatmul.f32.gmra.mxu0 %v3003
    %v3163 = vpop.f32.mrf.mxu0
    %v3164 = vadd.f32 0.0, %v3163
    %3165 = vmatmul.f32.gmra.mxu0 %v3006
    %v3166 = vpop.f32.mrf.mxu0
    %v3167 = vadd.f32 0.0, %v3166
    %3168 = vmatmul.f32.gmra.mxu0 %v3009
    %v3169 = vpop.f32.mrf.mxu0
    %v3170 = vadd.f32 0.0, %v3169
    %3171 = vmatmul.f32.gmra.mxu0 %v3012
    %v3172 = vpop.f32.mrf.mxu0
    %v3173 = vadd.f32 0.0, %v3172
    %3174 = vdwg.mxu0
    %3175 = vmatpush.msra.mxu0 %v3141
    %3176 = vmatpush.msra.mxu0 %v3139
    %3177 = vmatpush.msra.mxu0 %v3137
    %3178 = vmatpush.msra.mxu0 %v3135
    %3179 = vmatpush.msra.mxu0 %v3133
    %3180 = vmatpush.msra.mxu0 %v3131
    %3181 = vmatpush.msra.mxu0 %v3129
    %3182 = vmatpush.msra.mxu0 %v3127
    %3183 = vmatpush.msra.mxu0 %v3125
    %3184 = vmatpush.msra.mxu0 %v3123
    %3185 = vmatpush.msra.mxu0 %v3121
    %3186 = vmatpush.msra.mxu0 %v3119
    %3187 = vmatpush.msra.mxu0 %v3117
    %3188 = vmatpush.msra.mxu0 %v3115
    %3189 = vmatpush.msra.mxu0 %v3113
    %3190 = vmatpush.msra.mxu0 %v3111
    %3191 = vmatmul.f32.gmra.mxu0 %v3064
    %v3192 = vpop.f32.mrf.mxu0
    %v3193 = vadd.f32 %v3161, %v3192
    %3194 = vmatmul.f32.gmra.mxu0 %v3067
    %v3195 = vpop.f32.mrf.mxu0
    %v3196 = vadd.f32 %v3164, %v3195
    %3197 = vmatmul.f32.gmra.mxu0 %v3070
    %v3198 = vpop.f32.mrf.mxu0
    %v3199 = vadd.f32 %v3167, %v3198
    %3200 = vmatmul.f32.gmra.mxu0 %v3073
    %v3201 = vpop.f32.mrf.mxu0
    %v3202 = vadd.f32 %v3170, %v3201
    %3203 = vmatmul.f32.gmra.mxu0 %v3076
    %v3204 = vpop.f32.mrf.mxu0
    %v3205 = vadd.f32 %v3173, %v3204
    %3206 = vdwg.mxu0
    %3207 = vmatpush.msra.mxu0 %v3110
    %3208 = vmatpush.msra.mxu0 %v3108
    %3209 = vmatpush.msra.mxu0 %v3106
    %3210 = vmatpush.msra.mxu0 %v3104
    %3211 = vmatpush.msra.mxu0 %v3102
    %3212 = vmatpush.msra.mxu0 %v3100
    %3213 = vmatpush.msra.mxu0 %v3098
    %3214 = vmatpush.msra.mxu0 %v3096
    %3215 = vmatpush.msra.mxu0 %v3094
    %3216 = vmatpush.msra.mxu0 %v3092
    %3217 = vmatpush.msra.mxu0 %v3090
    %3218 = vmatpush.msra.mxu0 %v3088
    %3219 = vmatpush.msra.mxu0 %v3086
    %3220 = vmatpush.msra.mxu0 %v3084
    %3221 = vmatpush.msra.mxu0 %v3082
    %3222 = vmatpush.msra.mxu0 %v3080
    %3223 = vmatmul.f32.gmra.mxu0 %v3000
    %v3224 = vpop.f32.mrf.mxu0
    %v3225 = vadd.f32 0.0, %v3224
    %3226 = vmatmul.f32.gmra.mxu0 %v3003
    %v3227 = vpop.f32.mrf.mxu0
    %v3228 = vadd.f32 0.0, %v3227
    %3229 = vmatmul.f32.gmra.mxu0 %v3006
    %v3230 = vpop.f32.mrf.mxu0
    %v3231 = vadd.f32 0.0, %v3230
    %3232 = vmatmul.f32.gmra.mxu0 %v3009
    %v3233 = vpop.f32.mrf.mxu0
    %v3234 = vadd.f32 0.0, %v3233
    %3235 = vmatmul.f32.gmra.mxu0 %v3012
    %v3236 = vpop.f32.mrf.mxu0
    %v3237 = vadd.f32 0.0, %v3236
    %3238 = vdwg.mxu0
    %3239 = vmatpush.msra.mxu0 %v3142
    %3240 = vmatpush.msra.mxu0 %v3140
    %3241 = vmatpush.msra.mxu0 %v3138
    %3242 = vmatpush.msra.mxu0 %v3136
    %3243 = vmatpush.msra.mxu0 %v3134
    %3244 = vmatpush.msra.mxu0 %v3132
    %3245 = vmatpush.msra.mxu0 %v3130
    %3246 = vmatpush.msra.mxu0 %v3128
    %3247 = vmatpush.msra.mxu0 %v3126
    %3248 = vmatpush.msra.mxu0 %v3124
    %3249 = vmatpush.msra.mxu0 %v3122
    %3250 = vmatpush.msra.mxu0 %v3120
    %3251 = vmatpush.msra.mxu0 %v3118
    %3252 = vmatpush.msra.mxu0 %v3116
    %3253 = vmatpush.msra.mxu0 %v3114
    %3254 = vmatpush.msra.mxu0 %v3112
    %3255 = vmatmul.f32.gmra.mxu0 %v3064
    %v3256 = vpop.f32.mrf.mxu0
    %v3257 = vadd.f32 %v3225, %v3256
    %3258 = vmatmul.f32.gmra.mxu0 %v3067
    %v3259 = vpop.f32.mrf.mxu0
    %v3260 = vadd.f32 %v3228, %v3259
    %3261 = vmatmul.f32.gmra.mxu0 %v3070
    %v3262 = vpop.f32.mrf.mxu0
    %v3263 = vadd.f32 %v3231, %v3262
    %3264 = vmatmul.f32.gmra.mxu0 %v3073
    %v3265 = vpop.f32.mrf.mxu0
    %v3266 = vadd.f32 %v3234, %v3265
    %3267 = vmatmul.f32.gmra.mxu0 %v3076
    %v3268 = vpop.f32.mrf.mxu0
    %v3269 = vadd.f32 %v3237, %v3268
    %3270 = vdwg.mxu0
    %v3271 = vadd.f32 %v2914, %v3193
    %v3272 = vadd.f32 %v2915, %v3257
    %v3273 = vadd.f32 %v2916, %v3196
    %v3274 = vadd.f32 %v2917, %v3260
    %v3275 = vadd.f32 %v2918, %v3199
    %v3276 = vadd.f32 %v2919, %v3263
    %v3277 = vadd.f32 %v2920, %v3202
    %v3278 = vadd.f32 %v2921, %v3266
    %v3279 = vadd.f32 %v2922, %v3205
    %v3280 = vadd.f32 %v2923, %v3269
    %s3281 = scalar_lea.vmem %s3, 400
    %v3282 = vld [vmem:[%s3281] sm:$0xff]
    %v3283 = vld [vmem:[%s3281 + $0x8] sm:$0xff]
    %v3284 = vld [vmem:[%s3281 + $0x10] sm:$0xff]
    %v3285 = vld [vmem:[%s3281 + $0x18] sm:$0xff]
    %v3286 = vld [vmem:[%s3281 + $0x20] sm:$0xff]
    %v3287 = vld [vmem:[%s3281 + $0x28] sm:$0xff]
    %v3288 = vld [vmem:[%s3281 + $0x30] sm:$0xff]
    %v3289 = vld [vmem:[%s3281 + $0x38] sm:$0xff]
    %v3290 = vld [vmem:[%s3281 + $0x40] sm:$0xf]
    %v3291 = vld [vmem:[%s3281 + $0x48] sm:$0xf]
    %v3293 = vsel %vm1520, %v3283, 0
    %v3296 = vsel %vm1520, %v3285, 0
    %v3299 = vsel %vm1520, %v3287, 0
    %v3302 = vsel %vm1520, %v3289, 0
    %v3305 = vsel %vm1520, %v3291, 0
    %3307 = vmatpush.msra.mxu0 %v1500
    %3308 = vmatpush.msra.mxu0 %v1498
    %3309 = vmatpush.msra.mxu0 %v1496
    %3310 = vmatpush.msra.mxu0 %v1494
    %3311 = vmatpush.msra.mxu0 %v1492
    %3312 = vmatpush.msra.mxu0 %v1490
    %3313 = vmatpush.msra.mxu0 %v1488
    %3314 = vmatpush.msra.mxu0 %v1486
    %3315 = vmatpush.msra.mxu0 %v1484
    %3316 = vmatpush.msra.mxu0 %v1482
    %3317 = vmatpush.msra.mxu0 %v1480
    %3318 = vmatpush.msra.mxu0 %v1478
    %3319 = vmatpush.msra.mxu0 %v1476
    %3320 = vmatpush.msra.mxu0 %v1474
    %3321 = vmatpush.msra.mxu0 %v1472
    %3322 = vmatpush.msra.mxu0 %v1470
    %3323 = vmatmul.f32.gmra.mxu0 %v3282
    %v3324 = vpop.f32.mrf.mxu0
    %v3325 = vadd.f32 0.0, %v3324
    %3326 = vmatmul.f32.gmra.mxu0 %v3284
    %v3327 = vpop.f32.mrf.mxu0
    %v3328 = vadd.f32 0.0, %v3327
    %3329 = vmatmul.f32.gmra.mxu0 %v3286
    %v3330 = vpop.f32.mrf.mxu0
    %v3331 = vadd.f32 0.0, %v3330
    %3332 = vmatmul.f32.gmra.mxu0 %v3288
    %v3333 = vpop.f32.mrf.mxu0
    %v3334 = vadd.f32 0.0, %v3333
    %3335 = vmatmul.f32.gmra.mxu0 %v3290
    %v3336 = vpop.f32.mrf.mxu0
    %v3337 = vadd.f32 0.0, %v3336
    %3338 = vdwg.mxu0
    %3339 = vmatpush.msra.mxu0 0.0
    %3340 = vmatpush.msra.mxu0 0.0
    %3341 = vmatpush.msra.mxu0 0.0
    %3342 = vmatpush.msra.mxu0 0.0
    %3343 = vmatpush.msra.mxu0 0.0
    %3344 = vmatpush.msra.mxu0 0.0
    %3345 = vmatpush.msra.mxu0 0.0
    %3346 = vmatpush.msra.mxu0 %v1538
    %3347 = vmatpush.msra.mxu0 %v1516
    %3348 = vmatpush.msra.mxu0 %v1514
    %3349 = vmatpush.msra.mxu0 %v1512
    %3350 = vmatpush.msra.mxu0 %v1510
    %3351 = vmatpush.msra.mxu0 %v1508
    %3352 = vmatpush.msra.mxu0 %v1506
    %3353 = vmatpush.msra.mxu0 %v1504
    %3354 = vmatpush.msra.mxu0 %v1502
    %3355 = vmatmul.f32.gmra.mxu0 %v3293
    %v3356 = vpop.f32.mrf.mxu0
    %v3357 = vadd.f32 %v3325, %v3356
    %3358 = vmatmul.f32.gmra.mxu0 %v3296
    %v3359 = vpop.f32.mrf.mxu0
    %v3360 = vadd.f32 %v3328, %v3359
    %3361 = vmatmul.f32.gmra.mxu0 %v3299
    %v3362 = vpop.f32.mrf.mxu0
    %v3363 = vadd.f32 %v3331, %v3362
    %3364 = vmatmul.f32.gmra.mxu0 %v3302
    %v3365 = vpop.f32.mrf.mxu0
    %v3366 = vadd.f32 %v3334, %v3365
    %3367 = vmatmul.f32.gmra.mxu0 %v3305
    %v3368 = vpop.f32.mrf.mxu0
    %v3369 = vadd.f32 %v3337, %v3368
    %3370 = vdwg.mxu0
    %3371 = vmatpush.msra.mxu0 %v1501
    %3372 = vmatpush.msra.mxu0 %v1499
    %3373 = vmatpush.msra.mxu0 %v1497
    %3374 = vmatpush.msra.mxu0 %v1495
    %3375 = vmatpush.msra.mxu0 %v1493
    %3376 = vmatpush.msra.mxu0 %v1491
    %3377 = vmatpush.msra.mxu0 %v1489
    %3378 = vmatpush.msra.mxu0 %v1487
    %3379 = vmatpush.msra.mxu0 %v1485
    %3380 = vmatpush.msra.mxu0 %v1483
    %3381 = vmatpush.msra.mxu0 %v1481
    %3382 = vmatpush.msra.mxu0 %v1479
    %3383 = vmatpush.msra.mxu0 %v1477
    %3384 = vmatpush.msra.mxu0 %v1475
    %3385 = vmatpush.msra.mxu0 %v1473
    %3386 = vmatpush.msra.mxu0 %v1471
    %3387 = vmatmul.f32.gmra.mxu0 %v3282
    %v3388 = vpop.f32.mrf.mxu0
    %v3389 = vadd.f32 0.0, %v3388
    %3390 = vmatmul.f32.gmra.mxu0 %v3284
    %v3391 = vpop.f32.mrf.mxu0
    %v3392 = vadd.f32 0.0, %v3391
    %3393 = vmatmul.f32.gmra.mxu0 %v3286
    %v3394 = vpop.f32.mrf.mxu0
    %v3395 = vadd.f32 0.0, %v3394
    %3396 = vmatmul.f32.gmra.mxu0 %v3288
    %v3397 = vpop.f32.mrf.mxu0
    %v3398 = vadd.f32 0.0, %v3397
    %3399 = vmatmul.f32.gmra.mxu0 %v3290
    %v3400 = vpop.f32.mrf.mxu0
    %v3401 = vadd.f32 0.0, %v3400
    %3402 = vdwg.mxu0
    %3403 = vmatpush.msra.mxu0 0.0
    %3404 = vmatpush.msra.mxu0 0.0
    %3405 = vmatpush.msra.mxu0 0.0
    %3406 = vmatpush.msra.mxu0 0.0
    %3407 = vmatpush.msra.mxu0 0.0
    %3408 = vmatpush.msra.mxu0 0.0
    %3409 = vmatpush.msra.mxu0 0.0
    %3410 = vmatpush.msra.mxu0 %v1541
    %3411 = vmatpush.msra.mxu0 %v1517
    %3412 = vmatpush.msra.mxu0 %v1515
    %3413 = vmatpush.msra.mxu0 %v1513
    %3414 = vmatpush.msra.mxu0 %v1511
    %3415 = vmatpush.msra.mxu0 %v1509
    %3416 = vmatpush.msra.mxu0 %v1507
    %3417 = vmatpush.msra.mxu0 %v1505
    %3418 = vmatpush.msra.mxu0 %v1503
    %3419 = vmatmul.f32.gmra.mxu0 %v3293
    %v3420 = vpop.f32.mrf.mxu0
    %v3421 = vadd.f32 %v3389, %v3420
    %3422 = vmatmul.f32.gmra.mxu0 %v3296
    %v3423 = vpop.f32.mrf.mxu0
    %v3424 = vadd.f32 %v3392, %v3423
    %3425 = vmatmul.f32.gmra.mxu0 %v3299
    %v3426 = vpop.f32.mrf.mxu0
    %v3427 = vadd.f32 %v3395, %v3426
    %3428 = vmatmul.f32.gmra.mxu0 %v3302
    %v3429 = vpop.f32.mrf.mxu0
    %v3430 = vadd.f32 %v3398, %v3429
    %3431 = vmatmul.f32.gmra.mxu0 %v3305
    %v3432 = vpop.f32.mrf.mxu0
    %v3433 = vadd.f32 %v3401, %v3432
    %3434 = vdwg.mxu0
    %s3435 = scalar_lea.vmem %s4, 2560
    %v3436 = vld [vmem:[%s3435] sm:$0xff]
    %v3437 = vld [vmem:[%s3435 + $0x8] sm:$0xff]
    %v3438 = vld [vmem:[%s3435 + $0x10] sm:$0xff]
    %v3439 = vld [vmem:[%s3435 + $0x18] sm:$0xff]
    %v3440 = vld [vmem:[%s3435 + $0x20] sm:$0xff]
    %v3441 = vld [vmem:[%s3435 + $0x28] sm:$0xff]
    %v3442 = vld [vmem:[%s3435 + $0x30] sm:$0xff]
    %v3443 = vld [vmem:[%s3435 + $0x38] sm:$0xff]
    %v3444 = vld [vmem:[%s3435 + $0x40] sm:$0xff]
    %v3445 = vld [vmem:[%s3435 + $0x48] sm:$0xff]
    %v3446 = vld [vmem:[%s3435 + $0x50] sm:$0xff]
    %v3447 = vld [vmem:[%s3435 + $0x58] sm:$0xff]
    %v3448 = vld [vmem:[%s3435 + $0x60] sm:$0xff]
    %v3449 = vld [vmem:[%s3435 + $0x68] sm:$0xff]
    %v3450 = vld [vmem:[%s3435 + $0x70] sm:$0xff]
    %v3451 = vld [vmem:[%s3435 + $0x78] sm:$0xff]
    %v3452 = vld [vmem:[%s3435 + $0x80] sm:$0xff]
    %v3453 = vld [vmem:[%s3435 + $0x88] sm:$0xff]
    %v3454 = vld [vmem:[%s3435 + $0x90] sm:$0xff]
    %v3455 = vld [vmem:[%s3435 + $0x98] sm:$0xff]
    %v3456 = vld [vmem:[%s3435 + $0xa0] sm:$0xff]
    %v3457 = vld [vmem:[%s3435 + $0xa8] sm:$0xff]
    %v3458 = vld [vmem:[%s3435 + $0xb0] sm:$0xff]
    %v3459 = vld [vmem:[%s3435 + $0xb8] sm:$0xff]
    %v3460 = vld [vmem:[%s3435 + $0xc0] sm:$0xff]
    %v3461 = vld [vmem:[%s3435 + $0xc8] sm:$0xff]
    %v3462 = vld [vmem:[%s3435 + $0xd0] sm:$0xff]
    %v3463 = vld [vmem:[%s3435 + $0xd8] sm:$0xff]
    %v3464 = vld [vmem:[%s3435 + $0xe0] sm:$0xff]
    %v3465 = vld [vmem:[%s3435 + $0xe8] sm:$0xff]
    %v3466 = vld [vmem:[%s3435 + $0xf0] sm:$0xff]
    %v3467 = vld [vmem:[%s3435 + $0xf8] sm:$0xff]
    %v3468 = vld [vmem:[%s3435 + $0x100] sm:$0xff]
    %v3469 = vld [vmem:[%s3435 + $0x108] sm:$0xff]
    %v3470 = vld [vmem:[%s3435 + $0x110] sm:$0xff]
    %v3471 = vld [vmem:[%s3435 + $0x118] sm:$0xff]
    %v3472 = vld [vmem:[%s3435 + $0x120] sm:$0xff]
    %v3473 = vld [vmem:[%s3435 + $0x128] sm:$0xff]
    %v3474 = vld [vmem:[%s3435 + $0x130] sm:$0xff]
    %v3475 = vld [vmem:[%s3435 + $0x138] sm:$0xff]
    %v3476 = vld [vmem:[%s3435 + $0x140] sm:$0xff]
    %v3477 = vld [vmem:[%s3435 + $0x148] sm:$0xff]
    %v3478 = vld [vmem:[%s3435 + $0x150] sm:$0xff]
    %v3479 = vld [vmem:[%s3435 + $0x158] sm:$0xff]
    %v3480 = vld [vmem:[%s3435 + $0x160] sm:$0xff]
    %v3481 = vld [vmem:[%s3435 + $0x168] sm:$0xff]
    %v3482 = vld [vmem:[%s3435 + $0x170] sm:$0xff]
    %v3483 = vld [vmem:[%s3435 + $0x178] sm:$0xff]
    %v3484 = vld [vmem:[%s3435 + $0x180] sm:$0xff]
    %v3485 = vld [vmem:[%s3435 + $0x188] sm:$0xff]
    %v3486 = vld [vmem:[%s3435 + $0x190] sm:$0xff]
    %v3487 = vld [vmem:[%s3435 + $0x198] sm:$0xff]
    %v3488 = vld [vmem:[%s3435 + $0x1a0] sm:$0xff]
    %v3489 = vld [vmem:[%s3435 + $0x1a8] sm:$0xff]
    %v3490 = vld [vmem:[%s3435 + $0x1b0] sm:$0xff]
    %v3491 = vld [vmem:[%s3435 + $0x1b8] sm:$0xff]
    %v3492 = vld [vmem:[%s3435 + $0x1c0] sm:$0xff]
    %v3493 = vld [vmem:[%s3435 + $0x1c8] sm:$0xff]
    %v3494 = vld [vmem:[%s3435 + $0x1d0] sm:$0xff]
    %v3495 = vld [vmem:[%s3435 + $0x1d8] sm:$0xff]
    %v3496 = vld [vmem:[%s3435 + $0x1e0] sm:$0xff]
    %v3497 = vld [vmem:[%s3435 + $0x1e8] sm:$0xff]
    %v3498 = vld [vmem:[%s3435 + $0x1f0] sm:$0xff]
    %v3499 = vld [vmem:[%s3435 + $0x1f8] sm:$0xff]
    %3500 = vmatpush.msra.mxu0 %v3466
    %3501 = vmatpush.msra.mxu0 %v3464
    %3502 = vmatpush.msra.mxu0 %v3462
    %3503 = vmatpush.msra.mxu0 %v3460
    %3504 = vmatpush.msra.mxu0 %v3458
    %3505 = vmatpush.msra.mxu0 %v3456
    %3506 = vmatpush.msra.mxu0 %v3454
    %3507 = vmatpush.msra.mxu0 %v3452
    %3508 = vmatpush.msra.mxu0 %v3450
    %3509 = vmatpush.msra.mxu0 %v3448
    %3510 = vmatpush.msra.mxu0 %v3446
    %3511 = vmatpush.msra.mxu0 %v3444
    %3512 = vmatpush.msra.mxu0 %v3442
    %3513 = vmatpush.msra.mxu0 %v3440
    %3514 = vmatpush.msra.mxu0 %v3438
    %3515 = vmatpush.msra.mxu0 %v3436
    %3516 = vmatmul.f32.gmra.mxu0 %v3357
    %v3517 = vpop.f32.mrf.mxu0
    %v3518 = vadd.f32 0.0, %v3517
    %3519 = vmatmul.f32.gmra.mxu0 %v3360
    %v3520 = vpop.f32.mrf.mxu0
    %v3521 = vadd.f32 0.0, %v3520
    %3522 = vmatmul.f32.gmra.mxu0 %v3363
    %v3523 = vpop.f32.mrf.mxu0
    %v3524 = vadd.f32 0.0, %v3523
    %3525 = vmatmul.f32.gmra.mxu0 %v3366
    %v3526 = vpop.f32.mrf.mxu0
    %v3527 = vadd.f32 0.0, %v3526
    %3528 = vmatmul.f32.gmra.mxu0 %v3369
    %v3529 = vpop.f32.mrf.mxu0
    %v3530 = vadd.f32 0.0, %v3529
    %3531 = vdwg.mxu0
    %3532 = vmatpush.msra.mxu0 %v3498
    %3533 = vmatpush.msra.mxu0 %v3496
    %3534 = vmatpush.msra.mxu0 %v3494
    %3535 = vmatpush.msra.mxu0 %v3492
    %3536 = vmatpush.msra.mxu0 %v3490
    %3537 = vmatpush.msra.mxu0 %v3488
    %3538 = vmatpush.msra.mxu0 %v3486
    %3539 = vmatpush.msra.mxu0 %v3484
    %3540 = vmatpush.msra.mxu0 %v3482
    %3541 = vmatpush.msra.mxu0 %v3480
    %3542 = vmatpush.msra.mxu0 %v3478
    %3543 = vmatpush.msra.mxu0 %v3476
    %3544 = vmatpush.msra.mxu0 %v3474
    %3545 = vmatpush.msra.mxu0 %v3472
    %3546 = vmatpush.msra.mxu0 %v3470
    %3547 = vmatpush.msra.mxu0 %v3468
    %3548 = vmatmul.f32.gmra.mxu0 %v3421
    %v3549 = vpop.f32.mrf.mxu0
    %v3550 = vadd.f32 %v3518, %v3549
    %3551 = vmatmul.f32.gmra.mxu0 %v3424
    %v3552 = vpop.f32.mrf.mxu0
    %v3553 = vadd.f32 %v3521, %v3552
    %3554 = vmatmul.f32.gmra.mxu0 %v3427
    %v3555 = vpop.f32.mrf.mxu0
    %v3556 = vadd.f32 %v3524, %v3555
    %3557 = vmatmul.f32.gmra.mxu0 %v3430
    %v3558 = vpop.f32.mrf.mxu0
    %v3559 = vadd.f32 %v3527, %v3558
    %3560 = vmatmul.f32.gmra.mxu0 %v3433
    %v3561 = vpop.f32.mrf.mxu0
    %v3562 = vadd.f32 %v3530, %v3561
    %3563 = vdwg.mxu0
    %3564 = vmatpush.msra.mxu0 %v3467
    %3565 = vmatpush.msra.mxu0 %v3465
    %3566 = vmatpush.msra.mxu0 %v3463
    %3567 = vmatpush.msra.mxu0 %v3461
    %3568 = vmatpush.msra.mxu0 %v3459
    %3569 = vmatpush.msra.mxu0 %v3457
    %3570 = vmatpush.msra.mxu0 %v3455
    %3571 = vmatpush.msra.mxu0 %v3453
    %3572 = vmatpush.msra.mxu0 %v3451
    %3573 = vmatpush.msra.mxu0 %v3449
    %3574 = vmatpush.msra.mxu0 %v3447
    %3575 = vmatpush.msra.mxu0 %v3445
    %3576 = vmatpush.msra.mxu0 %v3443
    %3577 = vmatpush.msra.mxu0 %v3441
    %3578 = vmatpush.msra.mxu0 %v3439
    %3579 = vmatpush.msra.mxu0 %v3437
    %3580 = vmatmul.f32.gmra.mxu0 %v3357
    %v3581 = vpop.f32.mrf.mxu0
    %v3582 = vadd.f32 0.0, %v3581
    %3583 = vmatmul.f32.gmra.mxu0 %v3360
    %v3584 = vpop.f32.mrf.mxu0
    %v3585 = vadd.f32 0.0, %v3584
    %3586 = vmatmul.f32.gmra.mxu0 %v3363
    %v3587 = vpop.f32.mrf.mxu0
    %v3588 = vadd.f32 0.0, %v3587
    %3589 = vmatmul.f32.gmra.mxu0 %v3366
    %v3590 = vpop.f32.mrf.mxu0
    %v3591 = vadd.f32 0.0, %v3590
    %3592 = vmatmul.f32.gmra.mxu0 %v3369
    %v3593 = vpop.f32.mrf.mxu0
    %v3594 = vadd.f32 0.0, %v3593
    %3595 = vdwg.mxu0
    %3596 = vmatpush.msra.mxu0 %v3499
    %3597 = vmatpush.msra.mxu0 %v3497
    %3598 = vmatpush.msra.mxu0 %v3495
    %3599 = vmatpush.msra.mxu0 %v3493
    %3600 = vmatpush.msra.mxu0 %v3491
    %3601 = vmatpush.msra.mxu0 %v3489
    %3602 = vmatpush.msra.mxu0 %v3487
    %3603 = vmatpush.msra.mxu0 %v3485
    %3604 = vmatpush.msra.mxu0 %v3483
    %3605 = vmatpush.msra.mxu0 %v3481
    %3606 = vmatpush.msra.mxu0 %v3479
    %3607 = vmatpush.msra.mxu0 %v3477
    %3608 = vmatpush.msra.mxu0 %v3475
    %3609 = vmatpush.msra.mxu0 %v3473
    %3610 = vmatpush.msra.mxu0 %v3471
    %3611 = vmatpush.msra.mxu0 %v3469
    %3612 = vmatmul.f32.gmra.mxu0 %v3421
    %v3613 = vpop.f32.mrf.mxu0
    %v3614 = vadd.f32 %v3582, %v3613
    %3615 = vmatmul.f32.gmra.mxu0 %v3424
    %v3616 = vpop.f32.mrf.mxu0
    %v3617 = vadd.f32 %v3585, %v3616
    %3618 = vmatmul.f32.gmra.mxu0 %v3427
    %v3619 = vpop.f32.mrf.mxu0
    %v3620 = vadd.f32 %v3588, %v3619
    %3621 = vmatmul.f32.gmra.mxu0 %v3430
    %v3622 = vpop.f32.mrf.mxu0
    %v3623 = vadd.f32 %v3591, %v3622
    %3624 = vmatmul.f32.gmra.mxu0 %v3433
    %v3625 = vpop.f32.mrf.mxu0
    %v3626 = vadd.f32 %v3594, %v3625
    %3627 = vdwg.mxu0
    %v3628 = vadd.f32 %v3271, %v3550
    %v3629 = vadd.f32 %v3272, %v3614
    %v3630 = vadd.f32 %v3273, %v3553
    %v3631 = vadd.f32 %v3274, %v3617
    %v3632 = vadd.f32 %v3275, %v3556
    %v3633 = vadd.f32 %v3276, %v3620
    %v3634 = vadd.f32 %v3277, %v3559
    %v3635 = vadd.f32 %v3278, %v3623
    %v3636 = vadd.f32 %v3279, %v3562
    %v3637 = vadd.f32 %v3280, %v3626
    %s3638 = scalar_lea.vmem %s3, 480
    %v3639 = vld [vmem:[%s3638] sm:$0xff]
    %v3640 = vld [vmem:[%s3638 + $0x8] sm:$0xff]
    %v3641 = vld [vmem:[%s3638 + $0x10] sm:$0xff]
    %v3642 = vld [vmem:[%s3638 + $0x18] sm:$0xff]
    %v3643 = vld [vmem:[%s3638 + $0x20] sm:$0xff]
    %v3644 = vld [vmem:[%s3638 + $0x28] sm:$0xff]
    %v3645 = vld [vmem:[%s3638 + $0x30] sm:$0xff]
    %v3646 = vld [vmem:[%s3638 + $0x38] sm:$0xff]
    %v3647 = vld [vmem:[%s3638 + $0x40] sm:$0xf]
    %v3648 = vld [vmem:[%s3638 + $0x48] sm:$0xf]
    %v3650 = vsel %vm1520, %v3640, 0
    %v3653 = vsel %vm1520, %v3642, 0
    %v3656 = vsel %vm1520, %v3644, 0
    %v3659 = vsel %vm1520, %v3646, 0
    %v3662 = vsel %vm1520, %v3648, 0
    %3664 = vmatpush.msra.mxu0 %v1500
    %3665 = vmatpush.msra.mxu0 %v1498
    %3666 = vmatpush.msra.mxu0 %v1496
    %3667 = vmatpush.msra.mxu0 %v1494
    %3668 = vmatpush.msra.mxu0 %v1492
    %3669 = vmatpush.msra.mxu0 %v1490
    %3670 = vmatpush.msra.mxu0 %v1488
    %3671 = vmatpush.msra.mxu0 %v1486
    %3672 = vmatpush.msra.mxu0 %v1484
    %3673 = vmatpush.msra.mxu0 %v1482
    %3674 = vmatpush.msra.mxu0 %v1480
    %3675 = vmatpush.msra.mxu0 %v1478
    %3676 = vmatpush.msra.mxu0 %v1476
    %3677 = vmatpush.msra.mxu0 %v1474
    %3678 = vmatpush.msra.mxu0 %v1472
    %3679 = vmatpush.msra.mxu0 %v1470
    %3680 = vmatmul.f32.gmra.mxu0 %v3639
    %v3681 = vpop.f32.mrf.mxu0
    %v3682 = vadd.f32 0.0, %v3681
    %3683 = vmatmul.f32.gmra.mxu0 %v3641
    %v3684 = vpop.f32.mrf.mxu0
    %v3685 = vadd.f32 0.0, %v3684
    %3686 = vmatmul.f32.gmra.mxu0 %v3643
    %v3687 = vpop.f32.mrf.mxu0
    %v3688 = vadd.f32 0.0, %v3687
    %3689 = vmatmul.f32.gmra.mxu0 %v3645
    %v3690 = vpop.f32.mrf.mxu0
    %v3691 = vadd.f32 0.0, %v3690
    %3692 = vmatmul.f32.gmra.mxu0 %v3647
    %v3693 = vpop.f32.mrf.mxu0
    %v3694 = vadd.f32 0.0, %v3693
    %3695 = vdwg.mxu0
    %3696 = vmatpush.msra.mxu0 0.0
    %3697 = vmatpush.msra.mxu0 0.0
    %3698 = vmatpush.msra.mxu0 0.0
    %3699 = vmatpush.msra.mxu0 0.0
    %3700 = vmatpush.msra.mxu0 0.0
    %3701 = vmatpush.msra.mxu0 0.0
    %3702 = vmatpush.msra.mxu0 0.0
    %3703 = vmatpush.msra.mxu0 %v1538
    %3704 = vmatpush.msra.mxu0 %v1516
    %3705 = vmatpush.msra.mxu0 %v1514
    %3706 = vmatpush.msra.mxu0 %v1512
    %3707 = vmatpush.msra.mxu0 %v1510
    %3708 = vmatpush.msra.mxu0 %v1508
    %3709 = vmatpush.msra.mxu0 %v1506
    %3710 = vmatpush.msra.mxu0 %v1504
    %3711 = vmatpush.msra.mxu0 %v1502
    %3712 = vmatmul.f32.gmra.mxu0 %v3650
    %v3713 = vpop.f32.mrf.mxu0
    %v3714 = vadd.f32 %v3682, %v3713
    %3715 = vmatmul.f32.gmra.mxu0 %v3653
    %v3716 = vpop.f32.mrf.mxu0
    %v3717 = vadd.f32 %v3685, %v3716
    %3718 = vmatmul.f32.gmra.mxu0 %v3656
    %v3719 = vpop.f32.mrf.mxu0
    %v3720 = vadd.f32 %v3688, %v3719
    %3721 = vmatmul.f32.gmra.mxu0 %v3659
    %v3722 = vpop.f32.mrf.mxu0
    %v3723 = vadd.f32 %v3691, %v3722
    %3724 = vmatmul.f32.gmra.mxu0 %v3662
    %v3725 = vpop.f32.mrf.mxu0
    %v3726 = vadd.f32 %v3694, %v3725
    %3727 = vdwg.mxu0
    %3728 = vmatpush.msra.mxu0 %v1501
    %3729 = vmatpush.msra.mxu0 %v1499
    %3730 = vmatpush.msra.mxu0 %v1497
    %3731 = vmatpush.msra.mxu0 %v1495
    %3732 = vmatpush.msra.mxu0 %v1493
    %3733 = vmatpush.msra.mxu0 %v1491
    %3734 = vmatpush.msra.mxu0 %v1489
    %3735 = vmatpush.msra.mxu0 %v1487
    %3736 = vmatpush.msra.mxu0 %v1485
    %3737 = vmatpush.msra.mxu0 %v1483
    %3738 = vmatpush.msra.mxu0 %v1481
    %3739 = vmatpush.msra.mxu0 %v1479
    %3740 = vmatpush.msra.mxu0 %v1477
    %3741 = vmatpush.msra.mxu0 %v1475
    %3742 = vmatpush.msra.mxu0 %v1473
    %3743 = vmatpush.msra.mxu0 %v1471
    %3744 = vmatmul.f32.gmra.mxu0 %v3639
    %v3745 = vpop.f32.mrf.mxu0
    %v3746 = vadd.f32 0.0, %v3745
    %3747 = vmatmul.f32.gmra.mxu0 %v3641
    %v3748 = vpop.f32.mrf.mxu0
    %v3749 = vadd.f32 0.0, %v3748
    %3750 = vmatmul.f32.gmra.mxu0 %v3643
    %v3751 = vpop.f32.mrf.mxu0
    %v3752 = vadd.f32 0.0, %v3751
    %3753 = vmatmul.f32.gmra.mxu0 %v3645
    %v3754 = vpop.f32.mrf.mxu0
    %v3755 = vadd.f32 0.0, %v3754
    %3756 = vmatmul.f32.gmra.mxu0 %v3647
    %v3757 = vpop.f32.mrf.mxu0
    %v3758 = vadd.f32 0.0, %v3757
    %3759 = vdwg.mxu0
    %3760 = vmatpush.msra.mxu0 0.0
    %3761 = vmatpush.msra.mxu0 0.0
    %3762 = vmatpush.msra.mxu0 0.0
    %3763 = vmatpush.msra.mxu0 0.0
    %3764 = vmatpush.msra.mxu0 0.0
    %3765 = vmatpush.msra.mxu0 0.0
    %3766 = vmatpush.msra.mxu0 0.0
    %3767 = vmatpush.msra.mxu0 %v1541
    %3768 = vmatpush.msra.mxu0 %v1517
    %3769 = vmatpush.msra.mxu0 %v1515
    %3770 = vmatpush.msra.mxu0 %v1513
    %3771 = vmatpush.msra.mxu0 %v1511
    %3772 = vmatpush.msra.mxu0 %v1509
    %3773 = vmatpush.msra.mxu0 %v1507
    %3774 = vmatpush.msra.mxu0 %v1505
    %3775 = vmatpush.msra.mxu0 %v1503
    %3776 = vmatmul.f32.gmra.mxu0 %v3650
    %v3777 = vpop.f32.mrf.mxu0
    %v3778 = vadd.f32 %v3746, %v3777
    %3779 = vmatmul.f32.gmra.mxu0 %v3653
    %v3780 = vpop.f32.mrf.mxu0
    %v3781 = vadd.f32 %v3749, %v3780
    %3782 = vmatmul.f32.gmra.mxu0 %v3656
    %v3783 = vpop.f32.mrf.mxu0
    %v3784 = vadd.f32 %v3752, %v3783
    %3785 = vmatmul.f32.gmra.mxu0 %v3659
    %v3786 = vpop.f32.mrf.mxu0
    %v3787 = vadd.f32 %v3755, %v3786
    %3788 = vmatmul.f32.gmra.mxu0 %v3662
    %v3789 = vpop.f32.mrf.mxu0
    %v3790 = vadd.f32 %v3758, %v3789
    %3791 = vdwg.mxu0
    %s3792 = scalar_lea.vmem %s4, 3072
    %v3793 = vld [vmem:[%s3792] sm:$0xff]
    %v3794 = vld [vmem:[%s3792 + $0x8] sm:$0xff]
    %v3795 = vld [vmem:[%s3792 + $0x10] sm:$0xff]
    %v3796 = vld [vmem:[%s3792 + $0x18] sm:$0xff]
    %v3797 = vld [vmem:[%s3792 + $0x20] sm:$0xff]
    %v3798 = vld [vmem:[%s3792 + $0x28] sm:$0xff]
    %v3799 = vld [vmem:[%s3792 + $0x30] sm:$0xff]
    %v3800 = vld [vmem:[%s3792 + $0x38] sm:$0xff]
    %v3801 = vld [vmem:[%s3792 + $0x40] sm:$0xff]
    %v3802 = vld [vmem:[%s3792 + $0x48] sm:$0xff]
    %v3803 = vld [vmem:[%s3792 + $0x50] sm:$0xff]
    %v3804 = vld [vmem:[%s3792 + $0x58] sm:$0xff]
    %v3805 = vld [vmem:[%s3792 + $0x60] sm:$0xff]
    %v3806 = vld [vmem:[%s3792 + $0x68] sm:$0xff]
    %v3807 = vld [vmem:[%s3792 + $0x70] sm:$0xff]
    %v3808 = vld [vmem:[%s3792 + $0x78] sm:$0xff]
    %v3809 = vld [vmem:[%s3792 + $0x80] sm:$0xff]
    %v3810 = vld [vmem:[%s3792 + $0x88] sm:$0xff]
    %v3811 = vld [vmem:[%s3792 + $0x90] sm:$0xff]
    %v3812 = vld [vmem:[%s3792 + $0x98] sm:$0xff]
    %v3813 = vld [vmem:[%s3792 + $0xa0] sm:$0xff]
    %v3814 = vld [vmem:[%s3792 + $0xa8] sm:$0xff]
    %v3815 = vld [vmem:[%s3792 + $0xb0] sm:$0xff]
    %v3816 = vld [vmem:[%s3792 + $0xb8] sm:$0xff]
    %v3817 = vld [vmem:[%s3792 + $0xc0] sm:$0xff]
    %v3818 = vld [vmem:[%s3792 + $0xc8] sm:$0xff]
    %v3819 = vld [vmem:[%s3792 + $0xd0] sm:$0xff]
    %v3820 = vld [vmem:[%s3792 + $0xd8] sm:$0xff]
    %v3821 = vld [vmem:[%s3792 + $0xe0] sm:$0xff]
    %v3822 = vld [vmem:[%s3792 + $0xe8] sm:$0xff]
    %v3823 = vld [vmem:[%s3792 + $0xf0] sm:$0xff]
    %v3824 = vld [vmem:[%s3792 + $0xf8] sm:$0xff]
    %v3825 = vld [vmem:[%s3792 + $0x100] sm:$0xff]
    %v3826 = vld [vmem:[%s3792 + $0x108] sm:$0xff]
    %v3827 = vld [vmem:[%s3792 + $0x110] sm:$0xff]
    %v3828 = vld [vmem:[%s3792 + $0x118] sm:$0xff]
    %v3829 = vld [vmem:[%s3792 + $0x120] sm:$0xff]
    %v3830 = vld [vmem:[%s3792 + $0x128] sm:$0xff]
    %v3831 = vld [vmem:[%s3792 + $0x130] sm:$0xff]
    %v3832 = vld [vmem:[%s3792 + $0x138] sm:$0xff]
    %v3833 = vld [vmem:[%s3792 + $0x140] sm:$0xff]
    %v3834 = vld [vmem:[%s3792 + $0x148] sm:$0xff]
    %v3835 = vld [vmem:[%s3792 + $0x150] sm:$0xff]
    %v3836 = vld [vmem:[%s3792 + $0x158] sm:$0xff]
    %v3837 = vld [vmem:[%s3792 + $0x160] sm:$0xff]
    %v3838 = vld [vmem:[%s3792 + $0x168] sm:$0xff]
    %v3839 = vld [vmem:[%s3792 + $0x170] sm:$0xff]
    %v3840 = vld [vmem:[%s3792 + $0x178] sm:$0xff]
    %v3841 = vld [vmem:[%s3792 + $0x180] sm:$0xff]
    %v3842 = vld [vmem:[%s3792 + $0x188] sm:$0xff]
    %v3843 = vld [vmem:[%s3792 + $0x190] sm:$0xff]
    %v3844 = vld [vmem:[%s3792 + $0x198] sm:$0xff]
    %v3845 = vld [vmem:[%s3792 + $0x1a0] sm:$0xff]
    %v3846 = vld [vmem:[%s3792 + $0x1a8] sm:$0xff]
    %v3847 = vld [vmem:[%s3792 + $0x1b0] sm:$0xff]
    %v3848 = vld [vmem:[%s3792 + $0x1b8] sm:$0xff]
    %v3849 = vld [vmem:[%s3792 + $0x1c0] sm:$0xff]
    %v3850 = vld [vmem:[%s3792 + $0x1c8] sm:$0xff]
    %v3851 = vld [vmem:[%s3792 + $0x1d0] sm:$0xff]
    %v3852 = vld [vmem:[%s3792 + $0x1d8] sm:$0xff]
    %v3853 = vld [vmem:[%s3792 + $0x1e0] sm:$0xff]
    %v3854 = vld [vmem:[%s3792 + $0x1e8] sm:$0xff]
    %v3855 = vld [vmem:[%s3792 + $0x1f0] sm:$0xff]
    %v3856 = vld [vmem:[%s3792 + $0x1f8] sm:$0xff]
    %3857 = vmatpush.msra.mxu0 %v3823
    %3858 = vmatpush.msra.mxu0 %v3821
    %3859 = vmatpush.msra.mxu0 %v3819
    %3860 = vmatpush.msra.mxu0 %v3817
    %3861 = vmatpush.msra.mxu0 %v3815
    %3862 = vmatpush.msra.mxu0 %v3813
    %3863 = vmatpush.msra.mxu0 %v3811
    %3864 = vmatpush.msra.mxu0 %v3809
    %3865 = vmatpush.msra.mxu0 %v3807
    %3866 = vmatpush.msra.mxu0 %v3805
    %3867 = vmatpush.msra.mxu0 %v3803
    %3868 = vmatpush.msra.mxu0 %v3801
    %3869 = vmatpush.msra.mxu0 %v3799
    %3870 = vmatpush.msra.mxu0 %v3797
    %3871 = vmatpush.msra.mxu0 %v3795
    %3872 = vmatpush.msra.mxu0 %v3793
    %3873 = vmatmul.f32.gmra.mxu0 %v3714
    %v3874 = vpop.f32.mrf.mxu0
    %v3875 = vadd.f32 0.0, %v3874
    %3876 = vmatmul.f32.gmra.mxu0 %v3717
    %v3877 = vpop.f32.mrf.mxu0
    %v3878 = vadd.f32 0.0, %v3877
    %3879 = vmatmul.f32.gmra.mxu0 %v3720
    %v3880 = vpop.f32.mrf.mxu0
    %v3881 = vadd.f32 0.0, %v3880
    %3882 = vmatmul.f32.gmra.mxu0 %v3723
    %v3883 = vpop.f32.mrf.mxu0
    %v3884 = vadd.f32 0.0, %v3883
    %3885 = vmatmul.f32.gmra.mxu0 %v3726
    %v3886 = vpop.f32.mrf.mxu0
    %v3887 = vadd.f32 0.0, %v3886
    %3888 = vdwg.mxu0
    %3889 = vmatpush.msra.mxu0 %v3855
    %3890 = vmatpush.msra.mxu0 %v3853
    %3891 = vmatpush.msra.mxu0 %v3851
    %3892 = vmatpush.msra.mxu0 %v3849
    %3893 = vmatpush.msra.mxu0 %v3847
    %3894 = vmatpush.msra.mxu0 %v3845
    %3895 = vmatpush.msra.mxu0 %v3843
    %3896 = vmatpush.msra.mxu0 %v3841
    %3897 = vmatpush.msra.mxu0 %v3839
    %3898 = vmatpush.msra.mxu0 %v3837
    %3899 = vmatpush.msra.mxu0 %v3835
    %3900 = vmatpush.msra.mxu0 %v3833
    %3901 = vmatpush.msra.mxu0 %v3831
    %3902 = vmatpush.msra.mxu0 %v3829
    %3903 = vmatpush.msra.mxu0 %v3827
    %3904 = vmatpush.msra.mxu0 %v3825
    %3905 = vmatmul.f32.gmra.mxu0 %v3778
    %v3906 = vpop.f32.mrf.mxu0
    %v3907 = vadd.f32 %v3875, %v3906
    %3908 = vmatmul.f32.gmra.mxu0 %v3781
    %v3909 = vpop.f32.mrf.mxu0
    %v3910 = vadd.f32 %v3878, %v3909
    %3911 = vmatmul.f32.gmra.mxu0 %v3784
    %v3912 = vpop.f32.mrf.mxu0
    %v3913 = vadd.f32 %v3881, %v3912
    %3914 = vmatmul.f32.gmra.mxu0 %v3787
    %v3915 = vpop.f32.mrf.mxu0
    %v3916 = vadd.f32 %v3884, %v3915
    %3917 = vmatmul.f32.gmra.mxu0 %v3790
    %v3918 = vpop.f32.mrf.mxu0
    %v3919 = vadd.f32 %v3887, %v3918
    %3920 = vdwg.mxu0
    %3921 = vmatpush.msra.mxu0 %v3824
    %3922 = vmatpush.msra.mxu0 %v3822
    %3923 = vmatpush.msra.mxu0 %v3820
    %3924 = vmatpush.msra.mxu0 %v3818
    %3925 = vmatpush.msra.mxu0 %v3816
    %3926 = vmatpush.msra.mxu0 %v3814
    %3927 = vmatpush.msra.mxu0 %v3812
    %3928 = vmatpush.msra.mxu0 %v3810
    %3929 = vmatpush.msra.mxu0 %v3808
    %3930 = vmatpush.msra.mxu0 %v3806
    %3931 = vmatpush.msra.mxu0 %v3804
    %3932 = vmatpush.msra.mxu0 %v3802
    %3933 = vmatpush.msra.mxu0 %v3800
    %3934 = vmatpush.msra.mxu0 %v3798
    %3935 = vmatpush.msra.mxu0 %v3796
    %3936 = vmatpush.msra.mxu0 %v3794
    %3937 = vmatmul.f32.gmra.mxu0 %v3714
    %v3938 = vpop.f32.mrf.mxu0
    %v3939 = vadd.f32 0.0, %v3938
    %3940 = vmatmul.f32.gmra.mxu0 %v3717
    %v3941 = vpop.f32.mrf.mxu0
    %v3942 = vadd.f32 0.0, %v3941
    %3943 = vmatmul.f32.gmra.mxu0 %v3720
    %v3944 = vpop.f32.mrf.mxu0
    %v3945 = vadd.f32 0.0, %v3944
    %3946 = vmatmul.f32.gmra.mxu0 %v3723
    %v3947 = vpop.f32.mrf.mxu0
    %v3948 = vadd.f32 0.0, %v3947
    %3949 = vmatmul.f32.gmra.mxu0 %v3726
    %v3950 = vpop.f32.mrf.mxu0
    %v3951 = vadd.f32 0.0, %v3950
    %3952 = vdwg.mxu0
    %3953 = vmatpush.msra.mxu0 %v3856
    %3954 = vmatpush.msra.mxu0 %v3854
    %3955 = vmatpush.msra.mxu0 %v3852
    %3956 = vmatpush.msra.mxu0 %v3850
    %3957 = vmatpush.msra.mxu0 %v3848
    %3958 = vmatpush.msra.mxu0 %v3846
    %3959 = vmatpush.msra.mxu0 %v3844
    %3960 = vmatpush.msra.mxu0 %v3842
    %3961 = vmatpush.msra.mxu0 %v3840
    %3962 = vmatpush.msra.mxu0 %v3838
    %3963 = vmatpush.msra.mxu0 %v3836
    %3964 = vmatpush.msra.mxu0 %v3834
    %3965 = vmatpush.msra.mxu0 %v3832
    %3966 = vmatpush.msra.mxu0 %v3830
    %3967 = vmatpush.msra.mxu0 %v3828
    %3968 = vmatpush.msra.mxu0 %v3826
    %3969 = vmatmul.f32.gmra.mxu0 %v3778
    %v3970 = vpop.f32.mrf.mxu0
    %v3971 = vadd.f32 %v3939, %v3970
    %3972 = vmatmul.f32.gmra.mxu0 %v3781
    %v3973 = vpop.f32.mrf.mxu0
    %v3974 = vadd.f32 %v3942, %v3973
    %3975 = vmatmul.f32.gmra.mxu0 %v3784
    %v3976 = vpop.f32.mrf.mxu0
    %v3977 = vadd.f32 %v3945, %v3976
    %3978 = vmatmul.f32.gmra.mxu0 %v3787
    %v3979 = vpop.f32.mrf.mxu0
    %v3980 = vadd.f32 %v3948, %v3979
    %3981 = vmatmul.f32.gmra.mxu0 %v3790
    %v3982 = vpop.f32.mrf.mxu0
    %v3983 = vadd.f32 %v3951, %v3982
    %3984 = vdwg.mxu0
    %v3985 = vadd.f32 %v3628, %v3907
    %v3986 = vadd.f32 %v3629, %v3971
    %v3987 = vadd.f32 %v3630, %v3910
    %v3988 = vadd.f32 %v3631, %v3974
    %v3989 = vadd.f32 %v3632, %v3913
    %v3990 = vadd.f32 %v3633, %v3977
    %v3991 = vadd.f32 %v3634, %v3916
    %v3992 = vadd.f32 %v3635, %v3980
    %v3993 = vadd.f32 %v3636, %v3919
    %v3994 = vadd.f32 %v3637, %v3983
    %s3995 = scalar_lea.vmem %s3, 560
    %v3996 = vld [vmem:[%s3995] sm:$0xff]
    %v3997 = vld [vmem:[%s3995 + $0x8] sm:$0xff]
    %v3998 = vld [vmem:[%s3995 + $0x10] sm:$0xff]
    %v3999 = vld [vmem:[%s3995 + $0x18] sm:$0xff]
    %v4000 = vld [vmem:[%s3995 + $0x20] sm:$0xff]
    %v4001 = vld [vmem:[%s3995 + $0x28] sm:$0xff]
    %v4002 = vld [vmem:[%s3995 + $0x30] sm:$0xff]
    %v4003 = vld [vmem:[%s3995 + $0x38] sm:$0xff]
    %v4004 = vld [vmem:[%s3995 + $0x40] sm:$0xf]
    %v4005 = vld [vmem:[%s3995 + $0x48] sm:$0xf]
    %v4007 = vsel %vm1520, %v3997, 0
    %v4010 = vsel %vm1520, %v3999, 0
    %v4013 = vsel %vm1520, %v4001, 0
    %v4016 = vsel %vm1520, %v4003, 0
    %v4019 = vsel %vm1520, %v4005, 0
    %4021 = vmatpush.msra.mxu0 %v1500
    %4022 = vmatpush.msra.mxu0 %v1498
    %4023 = vmatpush.msra.mxu0 %v1496
    %4024 = vmatpush.msra.mxu0 %v1494
    %4025 = vmatpush.msra.mxu0 %v1492
    %4026 = vmatpush.msra.mxu0 %v1490
    %4027 = vmatpush.msra.mxu0 %v1488
    %4028 = vmatpush.msra.mxu0 %v1486
    %4029 = vmatpush.msra.mxu0 %v1484
    %4030 = vmatpush.msra.mxu0 %v1482
    %4031 = vmatpush.msra.mxu0 %v1480
    %4032 = vmatpush.msra.mxu0 %v1478
    %4033 = vmatpush.msra.mxu0 %v1476
    %4034 = vmatpush.msra.mxu0 %v1474
    %4035 = vmatpush.msra.mxu0 %v1472
    %4036 = vmatpush.msra.mxu0 %v1470
    %4037 = vmatmul.f32.gmra.mxu0 %v3996
    %v4038 = vpop.f32.mrf.mxu0
    %v4039 = vadd.f32 0.0, %v4038
    %4040 = vmatmul.f32.gmra.mxu0 %v3998
    %v4041 = vpop.f32.mrf.mxu0
    %v4042 = vadd.f32 0.0, %v4041
    %4043 = vmatmul.f32.gmra.mxu0 %v4000
    %v4044 = vpop.f32.mrf.mxu0
    %v4045 = vadd.f32 0.0, %v4044
    %4046 = vmatmul.f32.gmra.mxu0 %v4002
    %v4047 = vpop.f32.mrf.mxu0
    %v4048 = vadd.f32 0.0, %v4047
    %4049 = vmatmul.f32.gmra.mxu0 %v4004
    %v4050 = vpop.f32.mrf.mxu0
    %v4051 = vadd.f32 0.0, %v4050
    %4052 = vdwg.mxu0
    %4053 = vmatpush.msra.mxu0 0.0
    %4054 = vmatpush.msra.mxu0 0.0
    %4055 = vmatpush.msra.mxu0 0.0
    %4056 = vmatpush.msra.mxu0 0.0
    %4057 = vmatpush.msra.mxu0 0.0
    %4058 = vmatpush.msra.mxu0 0.0
    %4059 = vmatpush.msra.mxu0 0.0
    %4060 = vmatpush.msra.mxu0 %v1538
    %4061 = vmatpush.msra.mxu0 %v1516
    %4062 = vmatpush.msra.mxu0 %v1514
    %4063 = vmatpush.msra.mxu0 %v1512
    %4064 = vmatpush.msra.mxu0 %v1510
    %4065 = vmatpush.msra.mxu0 %v1508
    %4066 = vmatpush.msra.mxu0 %v1506
    %4067 = vmatpush.msra.mxu0 %v1504
    %4068 = vmatpush.msra.mxu0 %v1502
    %4069 = vmatmul.f32.gmra.mxu0 %v4007
    %v4070 = vpop.f32.mrf.mxu0
    %v4071 = vadd.f32 %v4039, %v4070
    %4072 = vmatmul.f32.gmra.mxu0 %v4010
    %v4073 = vpop.f32.mrf.mxu0
    %v4074 = vadd.f32 %v4042, %v4073
    %4075 = vmatmul.f32.gmra.mxu0 %v4013
    %v4076 = vpop.f32.mrf.mxu0
    %v4077 = vadd.f32 %v4045, %v4076
    %4078 = vmatmul.f32.gmra.mxu0 %v4016
    %v4079 = vpop.f32.mrf.mxu0
    %v4080 = vadd.f32 %v4048, %v4079
    %4081 = vmatmul.f32.gmra.mxu0 %v4019
    %v4082 = vpop.f32.mrf.mxu0
    %v4083 = vadd.f32 %v4051, %v4082
    %4084 = vdwg.mxu0
    %4085 = vmatpush.msra.mxu0 %v1501
    %4086 = vmatpush.msra.mxu0 %v1499
    %4087 = vmatpush.msra.mxu0 %v1497
    %4088 = vmatpush.msra.mxu0 %v1495
    %4089 = vmatpush.msra.mxu0 %v1493
    %4090 = vmatpush.msra.mxu0 %v1491
    %4091 = vmatpush.msra.mxu0 %v1489
    %4092 = vmatpush.msra.mxu0 %v1487
    %4093 = vmatpush.msra.mxu0 %v1485
    %4094 = vmatpush.msra.mxu0 %v1483
    %4095 = vmatpush.msra.mxu0 %v1481
    %4096 = vmatpush.msra.mxu0 %v1479
    %4097 = vmatpush.msra.mxu0 %v1477
    %4098 = vmatpush.msra.mxu0 %v1475
    %4099 = vmatpush.msra.mxu0 %v1473
    %4100 = vmatpush.msra.mxu0 %v1471
    %4101 = vmatmul.f32.gmra.mxu0 %v3996
    %v4102 = vpop.f32.mrf.mxu0
    %v4103 = vadd.f32 0.0, %v4102
    %4104 = vmatmul.f32.gmra.mxu0 %v3998
    %v4105 = vpop.f32.mrf.mxu0
    %v4106 = vadd.f32 0.0, %v4105
    %4107 = vmatmul.f32.gmra.mxu0 %v4000
    %v4108 = vpop.f32.mrf.mxu0
    %v4109 = vadd.f32 0.0, %v4108
    %4110 = vmatmul.f32.gmra.mxu0 %v4002
    %v4111 = vpop.f32.mrf.mxu0
    %v4112 = vadd.f32 0.0, %v4111
    %4113 = vmatmul.f32.gmra.mxu0 %v4004
    %v4114 = vpop.f32.mrf.mxu0
    %v4115 = vadd.f32 0.0, %v4114
    %4116 = vdwg.mxu0
    %4117 = vmatpush.msra.mxu0 0.0
    %4118 = vmatpush.msra.mxu0 0.0
    %4119 = vmatpush.msra.mxu0 0.0
    %4120 = vmatpush.msra.mxu0 0.0
    %4121 = vmatpush.msra.mxu0 0.0
    %4122 = vmatpush.msra.mxu0 0.0
    %4123 = vmatpush.msra.mxu0 0.0
    %4124 = vmatpush.msra.mxu0 %v1541
    %4125 = vmatpush.msra.mxu0 %v1517
    %4126 = vmatpush.msra.mxu0 %v1515
    %4127 = vmatpush.msra.mxu0 %v1513
    %4128 = vmatpush.msra.mxu0 %v1511
    %4129 = vmatpush.msra.mxu0 %v1509
    %4130 = vmatpush.msra.mxu0 %v1507
    %4131 = vmatpush.msra.mxu0 %v1505
    %4132 = vmatpush.msra.mxu0 %v1503
    %4133 = vmatmul.f32.gmra.mxu0 %v4007
    %v4134 = vpop.f32.mrf.mxu0
    %v4135 = vadd.f32 %v4103, %v4134
    %4136 = vmatmul.f32.gmra.mxu0 %v4010
    %v4137 = vpop.f32.mrf.mxu0
    %v4138 = vadd.f32 %v4106, %v4137
    %4139 = vmatmul.f32.gmra.mxu0 %v4013
    %v4140 = vpop.f32.mrf.mxu0
    %v4141 = vadd.f32 %v4109, %v4140
    %4142 = vmatmul.f32.gmra.mxu0 %v4016
    %v4143 = vpop.f32.mrf.mxu0
    %v4144 = vadd.f32 %v4112, %v4143
    %4145 = vmatmul.f32.gmra.mxu0 %v4019
    %v4146 = vpop.f32.mrf.mxu0
    %v4147 = vadd.f32 %v4115, %v4146
    %4148 = vdwg.mxu0
    %s4149 = scalar_lea.vmem %s4, 3584
    %v4150 = vld [vmem:[%s4149] sm:$0xff]
    %v4151 = vld [vmem:[%s4149 + $0x8] sm:$0xff]
    %v4152 = vld [vmem:[%s4149 + $0x10] sm:$0xff]
    %v4153 = vld [vmem:[%s4149 + $0x18] sm:$0xff]
    %v4154 = vld [vmem:[%s4149 + $0x20] sm:$0xff]
    %v4155 = vld [vmem:[%s4149 + $0x28] sm:$0xff]
    %v4156 = vld [vmem:[%s4149 + $0x30] sm:$0xff]
    %v4157 = vld [vmem:[%s4149 + $0x38] sm:$0xff]
    %v4158 = vld [vmem:[%s4149 + $0x40] sm:$0xff]
    %v4159 = vld [vmem:[%s4149 + $0x48] sm:$0xff]
    %v4160 = vld [vmem:[%s4149 + $0x50] sm:$0xff]
    %v4161 = vld [vmem:[%s4149 + $0x58] sm:$0xff]
    %v4162 = vld [vmem:[%s4149 + $0x60] sm:$0xff]
    %v4163 = vld [vmem:[%s4149 + $0x68] sm:$0xff]
    %v4164 = vld [vmem:[%s4149 + $0x70] sm:$0xff]
    %v4165 = vld [vmem:[%s4149 + $0x78] sm:$0xff]
    %v4166 = vld [vmem:[%s4149 + $0x80] sm:$0xff]
    %v4167 = vld [vmem:[%s4149 + $0x88] sm:$0xff]
    %v4168 = vld [vmem:[%s4149 + $0x90] sm:$0xff]
    %v4169 = vld [vmem:[%s4149 + $0x98] sm:$0xff]
    %v4170 = vld [vmem:[%s4149 + $0xa0] sm:$0xff]
    %v4171 = vld [vmem:[%s4149 + $0xa8] sm:$0xff]
    %v4172 = vld [vmem:[%s4149 + $0xb0] sm:$0xff]
    %v4173 = vld [vmem:[%s4149 + $0xb8] sm:$0xff]
    %v4174 = vld [vmem:[%s4149 + $0xc0] sm:$0xff]
    %v4175 = vld [vmem:[%s4149 + $0xc8] sm:$0xff]
    %v4176 = vld [vmem:[%s4149 + $0xd0] sm:$0xff]
    %v4177 = vld [vmem:[%s4149 + $0xd8] sm:$0xff]
    %v4178 = vld [vmem:[%s4149 + $0xe0] sm:$0xff]
    %v4179 = vld [vmem:[%s4149 + $0xe8] sm:$0xff]
    %v4180 = vld [vmem:[%s4149 + $0xf0] sm:$0xff]
    %v4181 = vld [vmem:[%s4149 + $0xf8] sm:$0xff]
    %v4182 = vld [vmem:[%s4149 + $0x100] sm:$0xff]
    %v4183 = vld [vmem:[%s4149 + $0x108] sm:$0xff]
    %v4184 = vld [vmem:[%s4149 + $0x110] sm:$0xff]
    %v4185 = vld [vmem:[%s4149 + $0x118] sm:$0xff]
    %v4186 = vld [vmem:[%s4149 + $0x120] sm:$0xff]
    %v4187 = vld [vmem:[%s4149 + $0x128] sm:$0xff]
    %v4188 = vld [vmem:[%s4149 + $0x130] sm:$0xff]
    %v4189 = vld [vmem:[%s4149 + $0x138] sm:$0xff]
    %v4190 = vld [vmem:[%s4149 + $0x140] sm:$0xff]
    %v4191 = vld [vmem:[%s4149 + $0x148] sm:$0xff]
    %v4192 = vld [vmem:[%s4149 + $0x150] sm:$0xff]
    %v4193 = vld [vmem:[%s4149 + $0x158] sm:$0xff]
    %v4194 = vld [vmem:[%s4149 + $0x160] sm:$0xff]
    %v4195 = vld [vmem:[%s4149 + $0x168] sm:$0xff]
    %v4196 = vld [vmem:[%s4149 + $0x170] sm:$0xff]
    %v4197 = vld [vmem:[%s4149 + $0x178] sm:$0xff]
    %v4198 = vld [vmem:[%s4149 + $0x180] sm:$0xff]
    %v4199 = vld [vmem:[%s4149 + $0x188] sm:$0xff]
    %v4200 = vld [vmem:[%s4149 + $0x190] sm:$0xff]
    %v4201 = vld [vmem:[%s4149 + $0x198] sm:$0xff]
    %v4202 = vld [vmem:[%s4149 + $0x1a0] sm:$0xff]
    %v4203 = vld [vmem:[%s4149 + $0x1a8] sm:$0xff]
    %v4204 = vld [vmem:[%s4149 + $0x1b0] sm:$0xff]
    %v4205 = vld [vmem:[%s4149 + $0x1b8] sm:$0xff]
    %v4206 = vld [vmem:[%s4149 + $0x1c0] sm:$0xff]
    %v4207 = vld [vmem:[%s4149 + $0x1c8] sm:$0xff]
    %v4208 = vld [vmem:[%s4149 + $0x1d0] sm:$0xff]
    %v4209 = vld [vmem:[%s4149 + $0x1d8] sm:$0xff]
    %v4210 = vld [vmem:[%s4149 + $0x1e0] sm:$0xff]
    %v4211 = vld [vmem:[%s4149 + $0x1e8] sm:$0xff]
    %v4212 = vld [vmem:[%s4149 + $0x1f0] sm:$0xff]
    %v4213 = vld [vmem:[%s4149 + $0x1f8] sm:$0xff]
    %4214 = vmatpush.msra.mxu0 %v4180
    %4215 = vmatpush.msra.mxu0 %v4178
    %4216 = vmatpush.msra.mxu0 %v4176
    %4217 = vmatpush.msra.mxu0 %v4174
    %4218 = vmatpush.msra.mxu0 %v4172
    %4219 = vmatpush.msra.mxu0 %v4170
    %4220 = vmatpush.msra.mxu0 %v4168
    %4221 = vmatpush.msra.mxu0 %v4166
    %4222 = vmatpush.msra.mxu0 %v4164
    %4223 = vmatpush.msra.mxu0 %v4162
    %4224 = vmatpush.msra.mxu0 %v4160
    %4225 = vmatpush.msra.mxu0 %v4158
    %4226 = vmatpush.msra.mxu0 %v4156
    %4227 = vmatpush.msra.mxu0 %v4154
    %4228 = vmatpush.msra.mxu0 %v4152
    %4229 = vmatpush.msra.mxu0 %v4150
    %4230 = vmatmul.f32.gmra.mxu0 %v4071
    %v4231 = vpop.f32.mrf.mxu0
    %v4232 = vadd.f32 0.0, %v4231
    %4233 = vmatmul.f32.gmra.mxu0 %v4074
    %v4234 = vpop.f32.mrf.mxu0
    %v4235 = vadd.f32 0.0, %v4234
    %4236 = vmatmul.f32.gmra.mxu0 %v4077
    %v4237 = vpop.f32.mrf.mxu0
    %v4238 = vadd.f32 0.0, %v4237
    %4239 = vmatmul.f32.gmra.mxu0 %v4080
    %v4240 = vpop.f32.mrf.mxu0
    %v4241 = vadd.f32 0.0, %v4240
    %4242 = vmatmul.f32.gmra.mxu0 %v4083
    %v4243 = vpop.f32.mrf.mxu0
    %v4244 = vadd.f32 0.0, %v4243
    %4245 = vdwg.mxu0
    %4246 = vmatpush.msra.mxu0 %v4212
    %4247 = vmatpush.msra.mxu0 %v4210
    %4248 = vmatpush.msra.mxu0 %v4208
    %4249 = vmatpush.msra.mxu0 %v4206
    %4250 = vmatpush.msra.mxu0 %v4204
    %4251 = vmatpush.msra.mxu0 %v4202
    %4252 = vmatpush.msra.mxu0 %v4200
    %4253 = vmatpush.msra.mxu0 %v4198
    %4254 = vmatpush.msra.mxu0 %v4196
    %4255 = vmatpush.msra.mxu0 %v4194
    %4256 = vmatpush.msra.mxu0 %v4192
    %4257 = vmatpush.msra.mxu0 %v4190
    %4258 = vmatpush.msra.mxu0 %v4188
    %4259 = vmatpush.msra.mxu0 %v4186
    %4260 = vmatpush.msra.mxu0 %v4184
    %4261 = vmatpush.msra.mxu0 %v4182
    %4262 = vmatmul.f32.gmra.mxu0 %v4135
    %v4263 = vpop.f32.mrf.mxu0
    %v4264 = vadd.f32 %v4232, %v4263
    %4265 = vmatmul.f32.gmra.mxu0 %v4138
    %v4266 = vpop.f32.mrf.mxu0
    %v4267 = vadd.f32 %v4235, %v4266
    %4268 = vmatmul.f32.gmra.mxu0 %v4141
    %v4269 = vpop.f32.mrf.mxu0
    %v4270 = vadd.f32 %v4238, %v4269
    %4271 = vmatmul.f32.gmra.mxu0 %v4144
    %v4272 = vpop.f32.mrf.mxu0
    %v4273 = vadd.f32 %v4241, %v4272
    %4274 = vmatmul.f32.gmra.mxu0 %v4147
    %v4275 = vpop.f32.mrf.mxu0
    %v4276 = vadd.f32 %v4244, %v4275
    %4277 = vdwg.mxu0
    %4278 = vmatpush.msra.mxu0 %v4181
    %4279 = vmatpush.msra.mxu0 %v4179
    %4280 = vmatpush.msra.mxu0 %v4177
    %4281 = vmatpush.msra.mxu0 %v4175
    %4282 = vmatpush.msra.mxu0 %v4173
    %4283 = vmatpush.msra.mxu0 %v4171
    %4284 = vmatpush.msra.mxu0 %v4169
    %4285 = vmatpush.msra.mxu0 %v4167
    %4286 = vmatpush.msra.mxu0 %v4165
    %4287 = vmatpush.msra.mxu0 %v4163
    %4288 = vmatpush.msra.mxu0 %v4161
    %4289 = vmatpush.msra.mxu0 %v4159
    %4290 = vmatpush.msra.mxu0 %v4157
    %4291 = vmatpush.msra.mxu0 %v4155
    %4292 = vmatpush.msra.mxu0 %v4153
    %4293 = vmatpush.msra.mxu0 %v4151
    %4294 = vmatmul.f32.gmra.mxu0 %v4071
    %v4295 = vpop.f32.mrf.mxu0
    %v4296 = vadd.f32 0.0, %v4295
    %4297 = vmatmul.f32.gmra.mxu0 %v4074
    %v4298 = vpop.f32.mrf.mxu0
    %v4299 = vadd.f32 0.0, %v4298
    %4300 = vmatmul.f32.gmra.mxu0 %v4077
    %v4301 = vpop.f32.mrf.mxu0
    %v4302 = vadd.f32 0.0, %v4301
    %4303 = vmatmul.f32.gmra.mxu0 %v4080
    %v4304 = vpop.f32.mrf.mxu0
    %v4305 = vadd.f32 0.0, %v4304
    %4306 = vmatmul.f32.gmra.mxu0 %v4083
    %v4307 = vpop.f32.mrf.mxu0
    %v4308 = vadd.f32 0.0, %v4307
    %4309 = vdwg.mxu0
    %4310 = vmatpush.msra.mxu0 %v4213
    %4311 = vmatpush.msra.mxu0 %v4211
    %4312 = vmatpush.msra.mxu0 %v4209
    %4313 = vmatpush.msra.mxu0 %v4207
    %4314 = vmatpush.msra.mxu0 %v4205
    %4315 = vmatpush.msra.mxu0 %v4203
    %4316 = vmatpush.msra.mxu0 %v4201
    %4317 = vmatpush.msra.mxu0 %v4199
    %4318 = vmatpush.msra.mxu0 %v4197
    %4319 = vmatpush.msra.mxu0 %v4195
    %4320 = vmatpush.msra.mxu0 %v4193
    %4321 = vmatpush.msra.mxu0 %v4191
    %4322 = vmatpush.msra.mxu0 %v4189
    %4323 = vmatpush.msra.mxu0 %v4187
    %4324 = vmatpush.msra.mxu0 %v4185
    %4325 = vmatpush.msra.mxu0 %v4183
    %4326 = vmatmul.f32.gmra.mxu0 %v4135
    %v4327 = vpop.f32.mrf.mxu0
    %v4328 = vadd.f32 %v4296, %v4327
    %4329 = vmatmul.f32.gmra.mxu0 %v4138
    %v4330 = vpop.f32.mrf.mxu0
    %v4331 = vadd.f32 %v4299, %v4330
    %4332 = vmatmul.f32.gmra.mxu0 %v4141
    %v4333 = vpop.f32.mrf.mxu0
    %v4334 = vadd.f32 %v4302, %v4333
    %4335 = vmatmul.f32.gmra.mxu0 %v4144
    %v4336 = vpop.f32.mrf.mxu0
    %v4337 = vadd.f32 %v4305, %v4336
    %4338 = vmatmul.f32.gmra.mxu0 %v4147
    %v4339 = vpop.f32.mrf.mxu0
    %v4340 = vadd.f32 %v4308, %v4339
    %4341 = vdwg.mxu0
    %v4342 = vadd.f32 %v3985, %v4264
    %v4343 = vadd.f32 %v3986, %v4328
    %v4344 = vadd.f32 %v3987, %v4267
    %v4345 = vadd.f32 %v3988, %v4331
    %v4346 = vadd.f32 %v3989, %v4270
    %v4347 = vadd.f32 %v3990, %v4334
    %v4348 = vadd.f32 %v3991, %v4273
    %v4349 = vadd.f32 %v3992, %v4337
    %v4350 = vadd.f32 %v3993, %v4276
    %v4351 = vadd.f32 %v3994, %v4340
    %s4352 = scalar_lea.vmem %s3, 640
    %v4353 = vld [vmem:[%s4352] sm:$0xff]
    %v4354 = vld [vmem:[%s4352 + $0x8] sm:$0xff]
    %v4355 = vld [vmem:[%s4352 + $0x10] sm:$0xff]
    %v4356 = vld [vmem:[%s4352 + $0x18] sm:$0xff]
    %v4357 = vld [vmem:[%s4352 + $0x20] sm:$0xff]
    %v4358 = vld [vmem:[%s4352 + $0x28] sm:$0xff]
    %v4359 = vld [vmem:[%s4352 + $0x30] sm:$0xff]
    %v4360 = vld [vmem:[%s4352 + $0x38] sm:$0xff]
    %v4361 = vld [vmem:[%s4352 + $0x40] sm:$0xf]
    %v4362 = vld [vmem:[%s4352 + $0x48] sm:$0xf]
    %v4364 = vsel %vm1520, %v4354, 0
    %v4367 = vsel %vm1520, %v4356, 0
    %v4370 = vsel %vm1520, %v4358, 0
    %v4373 = vsel %vm1520, %v4360, 0
    %v4376 = vsel %vm1520, %v4362, 0
    %4378 = vmatpush.msra.mxu0 %v1500
    %4379 = vmatpush.msra.mxu0 %v1498
    %4380 = vmatpush.msra.mxu0 %v1496
    %4381 = vmatpush.msra.mxu0 %v1494
    %4382 = vmatpush.msra.mxu0 %v1492
    %4383 = vmatpush.msra.mxu0 %v1490
    %4384 = vmatpush.msra.mxu0 %v1488
    %4385 = vmatpush.msra.mxu0 %v1486
    %4386 = vmatpush.msra.mxu0 %v1484
    %4387 = vmatpush.msra.mxu0 %v1482
    %4388 = vmatpush.msra.mxu0 %v1480
    %4389 = vmatpush.msra.mxu0 %v1478
    %4390 = vmatpush.msra.mxu0 %v1476
    %4391 = vmatpush.msra.mxu0 %v1474
    %4392 = vmatpush.msra.mxu0 %v1472
    %4393 = vmatpush.msra.mxu0 %v1470
    %4394 = vmatmul.f32.gmra.mxu0 %v4353
    %v4395 = vpop.f32.mrf.mxu0
    %v4396 = vadd.f32 0.0, %v4395
    %4397 = vmatmul.f32.gmra.mxu0 %v4355
    %v4398 = vpop.f32.mrf.mxu0
    %v4399 = vadd.f32 0.0, %v4398
    %4400 = vmatmul.f32.gmra.mxu0 %v4357
    %v4401 = vpop.f32.mrf.mxu0
    %v4402 = vadd.f32 0.0, %v4401
    %4403 = vmatmul.f32.gmra.mxu0 %v4359
    %v4404 = vpop.f32.mrf.mxu0
    %v4405 = vadd.f32 0.0, %v4404
    %4406 = vmatmul.f32.gmra.mxu0 %v4361
    %v4407 = vpop.f32.mrf.mxu0
    %v4408 = vadd.f32 0.0, %v4407
    %4409 = vdwg.mxu0
    %4410 = vmatpush.msra.mxu0 0.0
    %4411 = vmatpush.msra.mxu0 0.0
    %4412 = vmatpush.msra.mxu0 0.0
    %4413 = vmatpush.msra.mxu0 0.0
    %4414 = vmatpush.msra.mxu0 0.0
    %4415 = vmatpush.msra.mxu0 0.0
    %4416 = vmatpush.msra.mxu0 0.0
    %4417 = vmatpush.msra.mxu0 %v1538
    %4418 = vmatpush.msra.mxu0 %v1516
    %4419 = vmatpush.msra.mxu0 %v1514
    %4420 = vmatpush.msra.mxu0 %v1512
    %4421 = vmatpush.msra.mxu0 %v1510
    %4422 = vmatpush.msra.mxu0 %v1508
    %4423 = vmatpush.msra.mxu0 %v1506
    %4424 = vmatpush.msra.mxu0 %v1504
    %4425 = vmatpush.msra.mxu0 %v1502
    %4426 = vmatmul.f32.gmra.mxu0 %v4364
    %v4427 = vpop.f32.mrf.mxu0
    %v4428 = vadd.f32 %v4396, %v4427
    %4429 = vmatmul.f32.gmra.mxu0 %v4367
    %v4430 = vpop.f32.mrf.mxu0
    %v4431 = vadd.f32 %v4399, %v4430
    %4432 = vmatmul.f32.gmra.mxu0 %v4370
    %v4433 = vpop.f32.mrf.mxu0
    %v4434 = vadd.f32 %v4402, %v4433
    %4435 = vmatmul.f32.gmra.mxu0 %v4373
    %v4436 = vpop.f32.mrf.mxu0
    %v4437 = vadd.f32 %v4405, %v4436
    %4438 = vmatmul.f32.gmra.mxu0 %v4376
    %v4439 = vpop.f32.mrf.mxu0
    %v4440 = vadd.f32 %v4408, %v4439
    %4441 = vdwg.mxu0
    %4442 = vmatpush.msra.mxu0 %v1501
    %4443 = vmatpush.msra.mxu0 %v1499
    %4444 = vmatpush.msra.mxu0 %v1497
    %4445 = vmatpush.msra.mxu0 %v1495
    %4446 = vmatpush.msra.mxu0 %v1493
    %4447 = vmatpush.msra.mxu0 %v1491
    %4448 = vmatpush.msra.mxu0 %v1489
    %4449 = vmatpush.msra.mxu0 %v1487
    %4450 = vmatpush.msra.mxu0 %v1485
    %4451 = vmatpush.msra.mxu0 %v1483
    %4452 = vmatpush.msra.mxu0 %v1481
    %4453 = vmatpush.msra.mxu0 %v1479
    %4454 = vmatpush.msra.mxu0 %v1477
    %4455 = vmatpush.msra.mxu0 %v1475
    %4456 = vmatpush.msra.mxu0 %v1473
    %4457 = vmatpush.msra.mxu0 %v1471
    %4458 = vmatmul.f32.gmra.mxu0 %v4353
    %v4459 = vpop.f32.mrf.mxu0
    %v4460 = vadd.f32 0.0, %v4459
    %4461 = vmatmul.f32.gmra.mxu0 %v4355
    %v4462 = vpop.f32.mrf.mxu0
    %v4463 = vadd.f32 0.0, %v4462
    %4464 = vmatmul.f32.gmra.mxu0 %v4357
    %v4465 = vpop.f32.mrf.mxu0
    %v4466 = vadd.f32 0.0, %v4465
    %4467 = vmatmul.f32.gmra.mxu0 %v4359
    %v4468 = vpop.f32.mrf.mxu0
    %v4469 = vadd.f32 0.0, %v4468
    %4470 = vmatmul.f32.gmra.mxu0 %v4361
    %v4471 = vpop.f32.mrf.mxu0
    %v4472 = vadd.f32 0.0, %v4471
    %4473 = vdwg.mxu0
    %4474 = vmatpush.msra.mxu0 0.0
    %4475 = vmatpush.msra.mxu0 0.0
    %4476 = vmatpush.msra.mxu0 0.0
    %4477 = vmatpush.msra.mxu0 0.0
    %4478 = vmatpush.msra.mxu0 0.0
    %4479 = vmatpush.msra.mxu0 0.0
    %4480 = vmatpush.msra.mxu0 0.0
    %4481 = vmatpush.msra.mxu0 %v1541
    %4482 = vmatpush.msra.mxu0 %v1517
    %4483 = vmatpush.msra.mxu0 %v1515
    %4484 = vmatpush.msra.mxu0 %v1513
    %4485 = vmatpush.msra.mxu0 %v1511
    %4486 = vmatpush.msra.mxu0 %v1509
    %4487 = vmatpush.msra.mxu0 %v1507
    %4488 = vmatpush.msra.mxu0 %v1505
    %4489 = vmatpush.msra.mxu0 %v1503
    %4490 = vmatmul.f32.gmra.mxu0 %v4364
    %v4491 = vpop.f32.mrf.mxu0
    %v4492 = vadd.f32 %v4460, %v4491
    %4493 = vmatmul.f32.gmra.mxu0 %v4367
    %v4494 = vpop.f32.mrf.mxu0
    %v4495 = vadd.f32 %v4463, %v4494
    %4496 = vmatmul.f32.gmra.mxu0 %v4370
    %v4497 = vpop.f32.mrf.mxu0
    %v4498 = vadd.f32 %v4466, %v4497
    %4499 = vmatmul.f32.gmra.mxu0 %v4373
    %v4500 = vpop.f32.mrf.mxu0
    %v4501 = vadd.f32 %v4469, %v4500
    %4502 = vmatmul.f32.gmra.mxu0 %v4376
    %v4503 = vpop.f32.mrf.mxu0
    %v4504 = vadd.f32 %v4472, %v4503
    %4505 = vdwg.mxu0
    %s4506 = scalar_lea.vmem %s4, 4096
    %v4507 = vld [vmem:[%s4506] sm:$0xff]
    %v4508 = vld [vmem:[%s4506 + $0x8] sm:$0xff]
    %v4509 = vld [vmem:[%s4506 + $0x10] sm:$0xff]
    %v4510 = vld [vmem:[%s4506 + $0x18] sm:$0xff]
    %v4511 = vld [vmem:[%s4506 + $0x20] sm:$0xff]
    %v4512 = vld [vmem:[%s4506 + $0x28] sm:$0xff]
    %v4513 = vld [vmem:[%s4506 + $0x30] sm:$0xff]
    %v4514 = vld [vmem:[%s4506 + $0x38] sm:$0xff]
    %v4515 = vld [vmem:[%s4506 + $0x40] sm:$0xff]
    %v4516 = vld [vmem:[%s4506 + $0x48] sm:$0xff]
    %v4517 = vld [vmem:[%s4506 + $0x50] sm:$0xff]
    %v4518 = vld [vmem:[%s4506 + $0x58] sm:$0xff]
    %v4519 = vld [vmem:[%s4506 + $0x60] sm:$0xff]
    %v4520 = vld [vmem:[%s4506 + $0x68] sm:$0xff]
    %v4521 = vld [vmem:[%s4506 + $0x70] sm:$0xff]
    %v4522 = vld [vmem:[%s4506 + $0x78] sm:$0xff]
    %v4523 = vld [vmem:[%s4506 + $0x80] sm:$0xff]
    %v4524 = vld [vmem:[%s4506 + $0x88] sm:$0xff]
    %v4525 = vld [vmem:[%s4506 + $0x90] sm:$0xff]
    %v4526 = vld [vmem:[%s4506 + $0x98] sm:$0xff]
    %v4527 = vld [vmem:[%s4506 + $0xa0] sm:$0xff]
    %v4528 = vld [vmem:[%s4506 + $0xa8] sm:$0xff]
    %v4529 = vld [vmem:[%s4506 + $0xb0] sm:$0xff]
    %v4530 = vld [vmem:[%s4506 + $0xb8] sm:$0xff]
    %v4531 = vld [vmem:[%s4506 + $0xc0] sm:$0xff]
    %v4532 = vld [vmem:[%s4506 + $0xc8] sm:$0xff]
    %v4533 = vld [vmem:[%s4506 + $0xd0] sm:$0xff]
    %v4534 = vld [vmem:[%s4506 + $0xd8] sm:$0xff]
    %v4535 = vld [vmem:[%s4506 + $0xe0] sm:$0xff]
    %v4536 = vld [vmem:[%s4506 + $0xe8] sm:$0xff]
    %v4537 = vld [vmem:[%s4506 + $0xf0] sm:$0xff]
    %v4538 = vld [vmem:[%s4506 + $0xf8] sm:$0xff]
    %v4539 = vld [vmem:[%s4506 + $0x100] sm:$0xff]
    %v4540 = vld [vmem:[%s4506 + $0x108] sm:$0xff]
    %v4541 = vld [vmem:[%s4506 + $0x110] sm:$0xff]
    %v4542 = vld [vmem:[%s4506 + $0x118] sm:$0xff]
    %v4543 = vld [vmem:[%s4506 + $0x120] sm:$0xff]
    %v4544 = vld [vmem:[%s4506 + $0x128] sm:$0xff]
    %v4545 = vld [vmem:[%s4506 + $0x130] sm:$0xff]
    %v4546 = vld [vmem:[%s4506 + $0x138] sm:$0xff]
    %v4547 = vld [vmem:[%s4506 + $0x140] sm:$0xff]
    %v4548 = vld [vmem:[%s4506 + $0x148] sm:$0xff]
    %v4549 = vld [vmem:[%s4506 + $0x150] sm:$0xff]
    %v4550 = vld [vmem:[%s4506 + $0x158] sm:$0xff]
    %v4551 = vld [vmem:[%s4506 + $0x160] sm:$0xff]
    %v4552 = vld [vmem:[%s4506 + $0x168] sm:$0xff]
    %v4553 = vld [vmem:[%s4506 + $0x170] sm:$0xff]
    %v4554 = vld [vmem:[%s4506 + $0x178] sm:$0xff]
    %v4555 = vld [vmem:[%s4506 + $0x180] sm:$0xff]
    %v4556 = vld [vmem:[%s4506 + $0x188] sm:$0xff]
    %v4557 = vld [vmem:[%s4506 + $0x190] sm:$0xff]
    %v4558 = vld [vmem:[%s4506 + $0x198] sm:$0xff]
    %v4559 = vld [vmem:[%s4506 + $0x1a0] sm:$0xff]
    %v4560 = vld [vmem:[%s4506 + $0x1a8] sm:$0xff]
    %v4561 = vld [vmem:[%s4506 + $0x1b0] sm:$0xff]
    %v4562 = vld [vmem:[%s4506 + $0x1b8] sm:$0xff]
    %v4563 = vld [vmem:[%s4506 + $0x1c0] sm:$0xff]
    %v4564 = vld [vmem:[%s4506 + $0x1c8] sm:$0xff]
    %v4565 = vld [vmem:[%s4506 + $0x1d0] sm:$0xff]
    %v4566 = vld [vmem:[%s4506 + $0x1d8] sm:$0xff]
    %v4567 = vld [vmem:[%s4506 + $0x1e0] sm:$0xff]
    %v4568 = vld [vmem:[%s4506 + $0x1e8] sm:$0xff]
    %v4569 = vld [vmem:[%s4506 + $0x1f0] sm:$0xff]
    %v4570 = vld [vmem:[%s4506 + $0x1f8] sm:$0xff]
    %4571 = vmatpush.msra.mxu0 %v4537
    %4572 = vmatpush.msra.mxu0 %v4535
    %4573 = vmatpush.msra.mxu0 %v4533
    %4574 = vmatpush.msra.mxu0 %v4531
    %4575 = vmatpush.msra.mxu0 %v4529
    %4576 = vmatpush.msra.mxu0 %v4527
    %4577 = vmatpush.msra.mxu0 %v4525
    %4578 = vmatpush.msra.mxu0 %v4523
    %4579 = vmatpush.msra.mxu0 %v4521
    %4580 = vmatpush.msra.mxu0 %v4519
    %4581 = vmatpush.msra.mxu0 %v4517
    %4582 = vmatpush.msra.mxu0 %v4515
    %4583 = vmatpush.msra.mxu0 %v4513
    %4584 = vmatpush.msra.mxu0 %v4511
    %4585 = vmatpush.msra.mxu0 %v4509
    %4586 = vmatpush.msra.mxu0 %v4507
    %4587 = vmatmul.f32.gmra.mxu0 %v4428
    %v4588 = vpop.f32.mrf.mxu0
    %v4589 = vadd.f32 0.0, %v4588
    %4590 = vmatmul.f32.gmra.mxu0 %v4431
    %v4591 = vpop.f32.mrf.mxu0
    %v4592 = vadd.f32 0.0, %v4591
    %4593 = vmatmul.f32.gmra.mxu0 %v4434
    %v4594 = vpop.f32.mrf.mxu0
    %v4595 = vadd.f32 0.0, %v4594
    %4596 = vmatmul.f32.gmra.mxu0 %v4437
    %v4597 = vpop.f32.mrf.mxu0
    %v4598 = vadd.f32 0.0, %v4597
    %4599 = vmatmul.f32.gmra.mxu0 %v4440
    %v4600 = vpop.f32.mrf.mxu0
    %v4601 = vadd.f32 0.0, %v4600
    %4602 = vdwg.mxu0
    %4603 = vmatpush.msra.mxu0 %v4569
    %4604 = vmatpush.msra.mxu0 %v4567
    %4605 = vmatpush.msra.mxu0 %v4565
    %4606 = vmatpush.msra.mxu0 %v4563
    %4607 = vmatpush.msra.mxu0 %v4561
    %4608 = vmatpush.msra.mxu0 %v4559
    %4609 = vmatpush.msra.mxu0 %v4557
    %4610 = vmatpush.msra.mxu0 %v4555
    %4611 = vmatpush.msra.mxu0 %v4553
    %4612 = vmatpush.msra.mxu0 %v4551
    %4613 = vmatpush.msra.mxu0 %v4549
    %4614 = vmatpush.msra.mxu0 %v4547
    %4615 = vmatpush.msra.mxu0 %v4545
    %4616 = vmatpush.msra.mxu0 %v4543
    %4617 = vmatpush.msra.mxu0 %v4541
    %4618 = vmatpush.msra.mxu0 %v4539
    %4619 = vmatmul.f32.gmra.mxu0 %v4492
    %v4620 = vpop.f32.mrf.mxu0
    %v4621 = vadd.f32 %v4589, %v4620
    %4622 = vmatmul.f32.gmra.mxu0 %v4495
    %v4623 = vpop.f32.mrf.mxu0
    %v4624 = vadd.f32 %v4592, %v4623
    %4625 = vmatmul.f32.gmra.mxu0 %v4498
    %v4626 = vpop.f32.mrf.mxu0
    %v4627 = vadd.f32 %v4595, %v4626
    %4628 = vmatmul.f32.gmra.mxu0 %v4501
    %v4629 = vpop.f32.mrf.mxu0
    %v4630 = vadd.f32 %v4598, %v4629
    %4631 = vmatmul.f32.gmra.mxu0 %v4504
    %v4632 = vpop.f32.mrf.mxu0
    %v4633 = vadd.f32 %v4601, %v4632
    %4634 = vdwg.mxu0
    %4635 = vmatpush.msra.mxu0 %v4538
    %4636 = vmatpush.msra.mxu0 %v4536
    %4637 = vmatpush.msra.mxu0 %v4534
    %4638 = vmatpush.msra.mxu0 %v4532
    %4639 = vmatpush.msra.mxu0 %v4530
    %4640 = vmatpush.msra.mxu0 %v4528
    %4641 = vmatpush.msra.mxu0 %v4526
    %4642 = vmatpush.msra.mxu0 %v4524
    %4643 = vmatpush.msra.mxu0 %v4522
    %4644 = vmatpush.msra.mxu0 %v4520
    %4645 = vmatpush.msra.mxu0 %v4518
    %4646 = vmatpush.msra.mxu0 %v4516
    %4647 = vmatpush.msra.mxu0 %v4514
    %4648 = vmatpush.msra.mxu0 %v4512
    %4649 = vmatpush.msra.mxu0 %v4510
    %4650 = vmatpush.msra.mxu0 %v4508
    %4651 = vmatmul.f32.gmra.mxu0 %v4428
    %v4652 = vpop.f32.mrf.mxu0
    %v4653 = vadd.f32 0.0, %v4652
    %4654 = vmatmul.f32.gmra.mxu0 %v4431
    %v4655 = vpop.f32.mrf.mxu0
    %v4656 = vadd.f32 0.0, %v4655
    %4657 = vmatmul.f32.gmra.mxu0 %v4434
    %v4658 = vpop.f32.mrf.mxu0
    %v4659 = vadd.f32 0.0, %v4658
    %4660 = vmatmul.f32.gmra.mxu0 %v4437
    %v4661 = vpop.f32.mrf.mxu0
    %v4662 = vadd.f32 0.0, %v4661
    %4663 = vmatmul.f32.gmra.mxu0 %v4440
    %v4664 = vpop.f32.mrf.mxu0
    %v4665 = vadd.f32 0.0, %v4664
    %4666 = vdwg.mxu0
    %4667 = vmatpush.msra.mxu0 %v4570
    %4668 = vmatpush.msra.mxu0 %v4568
    %4669 = vmatpush.msra.mxu0 %v4566
    %4670 = vmatpush.msra.mxu0 %v4564
    %4671 = vmatpush.msra.mxu0 %v4562
    %4672 = vmatpush.msra.mxu0 %v4560
    %4673 = vmatpush.msra.mxu0 %v4558
    %4674 = vmatpush.msra.mxu0 %v4556
    %4675 = vmatpush.msra.mxu0 %v4554
    %4676 = vmatpush.msra.mxu0 %v4552
    %4677 = vmatpush.msra.mxu0 %v4550
    %4678 = vmatpush.msra.mxu0 %v4548
    %4679 = vmatpush.msra.mxu0 %v4546
    %4680 = vmatpush.msra.mxu0 %v4544
    %4681 = vmatpush.msra.mxu0 %v4542
    %4682 = vmatpush.msra.mxu0 %v4540
    %4683 = vmatmul.f32.gmra.mxu0 %v4492
    %v4684 = vpop.f32.mrf.mxu0
    %v4685 = vadd.f32 %v4653, %v4684
    %4686 = vmatmul.f32.gmra.mxu0 %v4495
    %v4687 = vpop.f32.mrf.mxu0
    %v4688 = vadd.f32 %v4656, %v4687
    %4689 = vmatmul.f32.gmra.mxu0 %v4498
    %v4690 = vpop.f32.mrf.mxu0
    %v4691 = vadd.f32 %v4659, %v4690
    %4692 = vmatmul.f32.gmra.mxu0 %v4501
    %v4693 = vpop.f32.mrf.mxu0
    %v4694 = vadd.f32 %v4662, %v4693
    %4695 = vmatmul.f32.gmra.mxu0 %v4504
    %v4696 = vpop.f32.mrf.mxu0
    %v4697 = vadd.f32 %v4665, %v4696
    %4698 = vdwg.mxu0
    %v4699 = vadd.f32 %v4342, %v4621
    %v4700 = vadd.f32 %v4343, %v4685
    %v4701 = vadd.f32 %v4344, %v4624
    %v4702 = vadd.f32 %v4345, %v4688
    %v4703 = vadd.f32 %v4346, %v4627
    %v4704 = vadd.f32 %v4347, %v4691
    %v4705 = vadd.f32 %v4348, %v4630
    %v4706 = vadd.f32 %v4349, %v4694
    %v4707 = vadd.f32 %v4350, %v4633
    %v4708 = vadd.f32 %v4351, %v4697
    %v4709 = vld [vmem:[%s5] sm:$0x3]
    %v4711 = vperm.slane %v4709, 0
    %v4712 = vperm.slane %v4709, 1
    %v4715 = vadd.f32 %v4699, %v4711
    %v4716 = vadd.f32 %v4700, %v4712
    %v4717 = vadd.f32 %v4701, %v4711
    %v4718 = vadd.f32 %v4702, %v4712
    %v4719 = vadd.f32 %v4703, %v4711
    %v4720 = vadd.f32 %v4704, %v4712
    %v4721 = vadd.f32 %v4705, %v4711
    %v4722 = vadd.f32 %v4706, %v4712
    %v4723 = vadd.f32 %v4707, %v4711
    %v4724 = vadd.f32 %v4708, %v4712
    %v4725 = vmul.f32 %v4715, 0.01
    %v4726 = vmul.f32 %v4716, 0.01
    %v4727 = vmul.f32 %v4717, 0.01
    %v4728 = vmul.f32 %v4718, 0.01
    %v4729 = vmul.f32 %v4719, 0.01
    %v4730 = vmul.f32 %v4720, 0.01
    %v4731 = vmul.f32 %v4721, 0.01
    %v4732 = vmul.f32 %v4722, 0.01
    %v4733 = vmul.f32 %v4723, 0.01
    %v4734 = vmul.f32 %v4724, 0.01
    %v4735 = vmax.f32 %v4715, %v4725
    %v4736 = vmax.f32 %v4716, %v4726
    %v4737 = vmax.f32 %v4717, %v4727
    %v4738 = vmax.f32 %v4718, %v4728
    %v4739 = vmax.f32 %v4719, %v4729
    %v4740 = vmax.f32 %v4720, %v4730
    %v4741 = vmax.f32 %v4721, %v4731
    %v4742 = vmax.f32 %v4722, %v4732
    %v4743 = vmax.f32 %v4723, %v4733
    %v4744 = vmax.f32 %v4724, %v4734
    %4745 = vst [vmem:[#allocation3] sm:$0xff] %v4735
    %4746 = vst [vmem:[#allocation3 + $0x8] sm:$0xff] %v4736
    %4747 = vst [vmem:[#allocation3 + $0x10] sm:$0xff] %v4737
    %4748 = vst [vmem:[#allocation3 + $0x18] sm:$0xff] %v4738
    %4749 = vst [vmem:[#allocation3 + $0x20] sm:$0xff] %v4739
    %4750 = vst [vmem:[#allocation3 + $0x28] sm:$0xff] %v4740
    %4751 = vst [vmem:[#allocation3 + $0x30] sm:$0xff] %v4741
    %4752 = vst [vmem:[#allocation3 + $0x38] sm:$0xff] %v4742
    %4753 = vst [vmem:[#allocation3 + $0x40] sm:$0xf] %v4743
    %4754 = vst [vmem:[#allocation3 + $0x48] sm:$0xf] %v4744
    %v4755 = vld [vmem:[%s6] sm:$0xff]
    %v4756 = vld [vmem:[%s6 + $0x8] sm:$0xff]
    %v4757 = vld [vmem:[%s6 + $0x10] sm:$0xff]
    %v4758 = vld [vmem:[%s6 + $0x18] sm:$0xff]
    %v4759 = vld [vmem:[%s6 + $0x20] sm:$0xff]
    %v4760 = vld [vmem:[%s6 + $0x28] sm:$0xff]
    %v4761 = vld [vmem:[%s6 + $0x30] sm:$0xff]
    %v4762 = vld [vmem:[%s6 + $0x38] sm:$0xff]
    %v4763 = vld [vmem:[%s6 + $0x40] sm:$0xff]
    %v4764 = vld [vmem:[%s6 + $0x48] sm:$0xff]
    %v4765 = vld [vmem:[%s6 + $0x50] sm:$0xff]
    %v4766 = vld [vmem:[%s6 + $0x58] sm:$0xff]
    %v4767 = vld [vmem:[%s6 + $0x60] sm:$0xff]
    %v4768 = vld [vmem:[%s6 + $0x68] sm:$0xff]
    %v4769 = vld [vmem:[%s6 + $0x70] sm:$0xff]
    %v4770 = vld [vmem:[%s6 + $0x78] sm:$0xff]
    %v4771 = vld [vmem:[#allocation3] sm:$0xff]
    %v4772 = vld [vmem:[#allocation3 + $0x10] sm:$0xff]
    %v4773 = vld [vmem:[#allocation3 + $0x20] sm:$0xff]
    %v4774 = vld [vmem:[#allocation3 + $0x30] sm:$0xff]
    %v4775 = vld [vmem:[#allocation3 + $0x40] sm:$0xf]
    %s4776 = scalar_lea.vmem %s6, 128
    %v4777 = vld [vmem:[%s4776] sm:$0xff]
    %v4778 = vld [vmem:[%s4776 + $0x8] sm:$0xff]
    %v4779 = vld [vmem:[%s4776 + $0x10] sm:$0xff]
    %v4780 = vld [vmem:[%s4776 + $0x18] sm:$0xff]
    %v4781 = vld [vmem:[%s4776 + $0x20] sm:$0xff]
    %v4782 = vld [vmem:[%s4776 + $0x28] sm:$0xff]
    %v4783 = vld [vmem:[%s4776 + $0x30] sm:$0xff]
    %v4784 = vld [vmem:[%s4776 + $0x38] sm:$0xff]
    %v4785 = vld [vmem:[%s4776 + $0x40] sm:$0xff]
    %v4786 = vld [vmem:[%s4776 + $0x48] sm:$0xff]
    %v4787 = vld [vmem:[%s4776 + $0x50] sm:$0xff]
    %v4788 = vld [vmem:[%s4776 + $0x58] sm:$0xff]
    %v4789 = vld [vmem:[%s4776 + $0x60] sm:$0xff]
    %v4790 = vld [vmem:[%s4776 + $0x68] sm:$0xff]
    %v4791 = vld [vmem:[%s4776 + $0x70] sm:$0xff]
    %v4792 = vld [vmem:[%s4776 + $0x78] sm:$0xff]
    %4798 = vrot.lane.b32.xlu0 %v4771, 112
    %v4799 = vpop.permute.xlu0 %4798
    %4800 = vrot.lane.b32.xlu0 %v4772, 112
    %v4801 = vpop.permute.xlu0 %4800
    %4802 = vrot.lane.b32.xlu0 %v4773, 112
    %v4803 = vpop.permute.xlu0 %4802
    %4804 = vrot.lane.b32.xlu0 %v4774, 112
    %v4805 = vpop.permute.xlu0 %4804
    %4806 = vrot.lane.b32.xlu0 %v4775, 112
    %v4807 = vpop.permute.xlu0 %4806
    %vm4812 = vcmask 293888
    %v4814 = vsel %vm4812, %v4777, 0
    %v4817 = vsel %vm4812, %v4778, 0
    %v4820 = vsel %vm4812, %v4779, 0
    %v4823 = vsel %vm4812, %v4780, 0
    %v4826 = vsel %vm4812, %v4781, 0
    %v4829 = vsel %vm4812, %v4782, 0
    %v4832 = vsel %vm4812, %v4783, 0
    %v4835 = vsel %vm4812, %v4784, 0
    %v4838 = vsel %vm4812, %v4785, 0
    %v4841 = vsel %vm4812, %v4786, 0
    %v4844 = vsel %vm4812, %v4787, 0
    %v4847 = vsel %vm4812, %v4788, 0
    %v4850 = vsel %vm4812, %v4789, 0
    %v4853 = vsel %vm4812, %v4790, 0
    %v4856 = vsel %vm4812, %v4791, 0
    %v4859 = vsel %vm4812, %v4792, 0
    %v4861 = vsel %vm1536, %v4807, 0
    %4863 = vmatpush.msra.mxu0 0.0
    %4864 = vmatpush.msra.mxu0 0.0
    %4865 = vmatpush.msra.mxu0 0.0
    %4866 = vmatpush.msra.mxu0 0.0
    %4867 = vmatpush.msra.mxu0 0.0
    %4868 = vmatpush.msra.mxu0 0.0
    %4869 = vmatpush.msra.mxu0 0.0
    %4870 = vmatpush.msra.mxu0 0.0
    %4871 = vmatpush.msra.mxu0 0.0
    %4872 = vmatpush.msra.mxu0 0.0
    %4873 = vmatpush.msra.mxu0 0.0
    %4874 = vmatpush.msra.mxu0 %v4861
    %4875 = vmatpush.msra.mxu0 %v4805
    %4876 = vmatpush.msra.mxu0 %v4803
    %4877 = vmatpush.msra.mxu0 %v4801
    %4878 = vmatpush.msra.mxu0 %v4799
    %4879 = vmatmul.f32.gmra.mxu0 %v4814
    %v4880 = vpop.f32.mrf.mxu0
    %v4881 = vadd.f32 0.0, %v4880
    %4882 = vmatmul.f32.gmra.mxu0 %v4817
    %v4883 = vpop.f32.mrf.mxu0
    %v4884 = vadd.f32 0.0, %v4883
    %4885 = vmatmul.f32.gmra.mxu0 %v4820
    %v4886 = vpop.f32.mrf.mxu0
    %v4887 = vadd.f32 0.0, %v4886
    %4888 = vmatmul.f32.gmra.mxu0 %v4823
    %v4889 = vpop.f32.mrf.mxu0
    %v4890 = vadd.f32 0.0, %v4889
    %4891 = vmatmul.f32.gmra.mxu0 %v4826
    %v4892 = vpop.f32.mrf.mxu0
    %v4893 = vadd.f32 0.0, %v4892
    %4894 = vmatmul.f32.gmra.mxu0 %v4829
    %v4895 = vpop.f32.mrf.mxu0
    %v4896 = vadd.f32 0.0, %v4895
    %4897 = vmatmul.f32.gmra.mxu0 %v4832
    %v4898 = vpop.f32.mrf.mxu0
    %v4899 = vadd.f32 0.0, %v4898
    %4900 = vmatmul.f32.gmra.mxu0 %v4835
    %v4901 = vpop.f32.mrf.mxu0
    %v4902 = vadd.f32 0.0, %v4901
    %4903 = vmatmul.f32.gmra.mxu0 %v4838
    %v4904 = vpop.f32.mrf.mxu0
    %v4905 = vadd.f32 0.0, %v4904
    %4906 = vmatmul.f32.gmra.mxu0 %v4841
    %v4907 = vpop.f32.mrf.mxu0
    %v4908 = vadd.f32 0.0, %v4907
    %4909 = vmatmul.f32.gmra.mxu0 %v4844
    %v4910 = vpop.f32.mrf.mxu0
    %v4911 = vadd.f32 0.0, %v4910
    %4912 = vmatmul.f32.gmra.mxu0 %v4847
    %v4913 = vpop.f32.mrf.mxu0
    %v4914 = vadd.f32 0.0, %v4913
    %4915 = vmatmul.f32.gmra.mxu0 %v4850
    %v4916 = vpop.f32.mrf.mxu0
    %v4917 = vadd.f32 0.0, %v4916
    %4918 = vmatmul.f32.gmra.mxu0 %v4853
    %v4919 = vpop.f32.mrf.mxu0
    %v4920 = vadd.f32 0.0, %v4919
    %4921 = vmatmul.f32.gmra.mxu0 %v4856
    %v4922 = vpop.f32.mrf.mxu0
    %v4923 = vadd.f32 0.0, %v4922
    %4924 = vmatmul.f32.gmra.mxu0 %v4859
    %v4925 = vpop.f32.mrf.mxu0
    %v4926 = vadd.f32 0.0, %v4925
    %4927 = vdwg.mxu0
    %v4929 = vsel %vm4812, %v4755, 0
    %v4932 = vsel %vm4812, %v4756, 0
    %v4935 = vsel %vm4812, %v4757, 0
    %v4938 = vsel %vm4812, %v4758, 0
    %v4941 = vsel %vm4812, %v4759, 0
    %v4944 = vsel %vm4812, %v4760, 0
    %v4947 = vsel %vm4812, %v4761, 0
    %v4950 = vsel %vm4812, %v4762, 0
    %v4953 = vsel %vm4812, %v4763, 0
    %v4956 = vsel %vm4812, %v4764, 0
    %v4959 = vsel %vm4812, %v4765, 0
    %v4962 = vsel %vm4812, %v4766, 0
    %v4965 = vsel %vm4812, %v4767, 0
    %v4968 = vsel %vm4812, %v4768, 0
    %v4971 = vsel %vm4812, %v4769, 0
    %v4974 = vsel %vm4812, %v4770, 0
    %v4976 = vsel %vm1536, %v4775, 0
    %4978 = vmatpush.msra.mxu0 0.0
    %4979 = vmatpush.msra.mxu0 0.0
    %4980 = vmatpush.msra.mxu0 0.0
    %4981 = vmatpush.msra.mxu0 0.0
    %4982 = vmatpush.msra.mxu0 0.0
    %4983 = vmatpush.msra.mxu0 0.0
    %4984 = vmatpush.msra.mxu0 0.0
    %4985 = vmatpush.msra.mxu0 0.0
    %4986 = vmatpush.msra.mxu0 0.0
    %4987 = vmatpush.msra.mxu0 0.0
    %4988 = vmatpush.msra.mxu0 0.0
    %4989 = vmatpush.msra.mxu0 %v4976
    %4990 = vmatpush.msra.mxu0 %v4774
    %4991 = vmatpush.msra.mxu0 %v4773
    %4992 = vmatpush.msra.mxu0 %v4772
    %4993 = vmatpush.msra.mxu0 %v4771
    %4994 = vmatmul.f32.gmra.mxu0 %v4929
    %v4995 = vpop.f32.mrf.mxu0
    %v4996 = vadd.f32 %v4881, %v4995
    %4997 = vmatmul.f32.gmra.mxu0 %v4932
    %v4998 = vpop.f32.mrf.mxu0
    %v4999 = vadd.f32 %v4884, %v4998
    %5000 = vmatmul.f32.gmra.mxu0 %v4935
    %v5001 = vpop.f32.mrf.mxu0
    %v5002 = vadd.f32 %v4887, %v5001
    %5003 = vmatmul.f32.gmra.mxu0 %v4938
    %v5004 = vpop.f32.mrf.mxu0
    %v5005 = vadd.f32 %v4890, %v5004
    %5006 = vmatmul.f32.gmra.mxu0 %v4941
    %v5007 = vpop.f32.mrf.mxu0
    %v5008 = vadd.f32 %v4893, %v5007
    %5009 = vmatmul.f32.gmra.mxu0 %v4944
    %v5010 = vpop.f32.mrf.mxu0
    %v5011 = vadd.f32 %v4896, %v5010
    %5012 = vmatmul.f32.gmra.mxu0 %v4947
    %v5013 = vpop.f32.mrf.mxu0
    %v5014 = vadd.f32 %v4899, %v5013
    %5015 = vmatmul.f32.gmra.mxu0 %v4950
    %v5016 = vpop.f32.mrf.mxu0
    %v5017 = vadd.f32 %v4902, %v5016
    %5018 = vmatmul.f32.gmra.mxu0 %v4953
    %v5019 = vpop.f32.mrf.mxu0
    %v5020 = vadd.f32 %v4905, %v5019
    %5021 = vmatmul.f32.gmra.mxu0 %v4956
    %v5022 = vpop.f32.mrf.mxu0
    %v5023 = vadd.f32 %v4908, %v5022
    %5024 = vmatmul.f32.gmra.mxu0 %v4959
    %v5025 = vpop.f32.mrf.mxu0
    %v5026 = vadd.f32 %v4911, %v5025
    %5027 = vmatmul.f32.gmra.mxu0 %v4962
    %v5028 = vpop.f32.mrf.mxu0
    %v5029 = vadd.f32 %v4914, %v5028
    %5030 = vmatmul.f32.gmra.mxu0 %v4965
    %v5031 = vpop.f32.mrf.mxu0
    %v5032 = vadd.f32 %v4917, %v5031
    %5033 = vmatmul.f32.gmra.mxu0 %v4968
    %v5034 = vpop.f32.mrf.mxu0
    %v5035 = vadd.f32 %v4920, %v5034
    %5036 = vmatmul.f32.gmra.mxu0 %v4971
    %v5037 = vpop.f32.mrf.mxu0
    %v5038 = vadd.f32 %v4923, %v5037
    %5039 = vmatmul.f32.gmra.mxu0 %v4974
    %v5040 = vpop.f32.mrf.mxu0
    %v5041 = vadd.f32 %v4926, %v5040
    %5042 = vdwg.mxu0
    %s5043 = scalar_lea.vmem %s6, 256
    %v5044 = vld [vmem:[%s5043] sm:$0xff]
    %v5045 = vld [vmem:[%s5043 + $0x8] sm:$0xff]
    %v5046 = vld [vmem:[%s5043 + $0x10] sm:$0xff]
    %v5047 = vld [vmem:[%s5043 + $0x18] sm:$0xff]
    %v5048 = vld [vmem:[%s5043 + $0x20] sm:$0xff]
    %v5049 = vld [vmem:[%s5043 + $0x28] sm:$0xff]
    %v5050 = vld [vmem:[%s5043 + $0x30] sm:$0xff]
    %v5051 = vld [vmem:[%s5043 + $0x38] sm:$0xff]
    %v5052 = vld [vmem:[%s5043 + $0x40] sm:$0xff]
    %v5053 = vld [vmem:[%s5043 + $0x48] sm:$0xff]
    %v5054 = vld [vmem:[%s5043 + $0x50] sm:$0xff]
    %v5055 = vld [vmem:[%s5043 + $0x58] sm:$0xff]
    %v5056 = vld [vmem:[%s5043 + $0x60] sm:$0xff]
    %v5057 = vld [vmem:[%s5043 + $0x68] sm:$0xff]
    %v5058 = vld [vmem:[%s5043 + $0x70] sm:$0xff]
    %v5059 = vld [vmem:[%s5043 + $0x78] sm:$0xff]
    %5060 = vrot.lane.b32.xlu0 %v4771, 96
    %v5061 = vpop.permute.xlu0 %5060
    %5062 = vrot.lane.b32.xlu0 %v4772, 96
    %v5063 = vpop.permute.xlu0 %5062
    %5064 = vrot.lane.b32.xlu0 %v4773, 96
    %v5065 = vpop.permute.xlu0 %5064
    %5066 = vrot.lane.b32.xlu0 %v4774, 96
    %v5067 = vpop.permute.xlu0 %5066
    %5068 = vrot.lane.b32.xlu0 %v4775, 96
    %v5069 = vpop.permute.xlu0 %5068
    %v5075 = vsel %vm4812, %v5044, 0
    %v5078 = vsel %vm4812, %v5045, 0
    %v5081 = vsel %vm4812, %v5046, 0
    %v5084 = vsel %vm4812, %v5047, 0
    %v5087 = vsel %vm4812, %v5048, 0
    %v5090 = vsel %vm4812, %v5049, 0
    %v5093 = vsel %vm4812, %v5050, 0
    %v5096 = vsel %vm4812, %v5051, 0
    %v5099 = vsel %vm4812, %v5052, 0
    %v5102 = vsel %vm4812, %v5053, 0
    %v5105 = vsel %vm4812, %v5054, 0
    %v5108 = vsel %vm4812, %v5055, 0
    %v5111 = vsel %vm4812, %v5056, 0
    %v5114 = vsel %vm4812, %v5057, 0
    %v5117 = vsel %vm4812, %v5058, 0
    %v5120 = vsel %vm4812, %v5059, 0
    %v5122 = vsel %vm1536, %v5069, 0
    %5124 = vmatpush.msra.mxu0 0.0
    %5125 = vmatpush.msra.mxu0 0.0
    %5126 = vmatpush.msra.mxu0 0.0
    %5127 = vmatpush.msra.mxu0 0.0
    %5128 = vmatpush.msra.mxu0 0.0
    %5129 = vmatpush.msra.mxu0 0.0
    %5130 = vmatpush.msra.mxu0 0.0
    %5131 = vmatpush.msra.mxu0 0.0
    %5132 = vmatpush.msra.mxu0 0.0
    %5133 = vmatpush.msra.mxu0 0.0
    %5134 = vmatpush.msra.mxu0 0.0
    %5135 = vmatpush.msra.mxu0 %v5122
    %5136 = vmatpush.msra.mxu0 %v5067
    %5137 = vmatpush.msra.mxu0 %v5065
    %5138 = vmatpush.msra.mxu0 %v5063
    %5139 = vmatpush.msra.mxu0 %v5061
    %5140 = vmatmul.f32.gmra.mxu0 %v5075
    %v5141 = vpop.f32.mrf.mxu0
    %v5142 = vadd.f32 0.0, %v5141
    %5143 = vmatmul.f32.gmra.mxu0 %v5078
    %v5144 = vpop.f32.mrf.mxu0
    %v5145 = vadd.f32 0.0, %v5144
    %5146 = vmatmul.f32.gmra.mxu0 %v5081
    %v5147 = vpop.f32.mrf.mxu0
    %v5148 = vadd.f32 0.0, %v5147
    %5149 = vmatmul.f32.gmra.mxu0 %v5084
    %v5150 = vpop.f32.mrf.mxu0
    %v5151 = vadd.f32 0.0, %v5150
    %5152 = vmatmul.f32.gmra.mxu0 %v5087
    %v5153 = vpop.f32.mrf.mxu0
    %v5154 = vadd.f32 0.0, %v5153
    %5155 = vmatmul.f32.gmra.mxu0 %v5090
    %v5156 = vpop.f32.mrf.mxu0
    %v5157 = vadd.f32 0.0, %v5156
    %5158 = vmatmul.f32.gmra.mxu0 %v5093
    %v5159 = vpop.f32.mrf.mxu0
    %v5160 = vadd.f32 0.0, %v5159
    %5161 = vmatmul.f32.gmra.mxu0 %v5096
    %v5162 = vpop.f32.mrf.mxu0
    %v5163 = vadd.f32 0.0, %v5162
    %5164 = vmatmul.f32.gmra.mxu0 %v5099
    %v5165 = vpop.f32.mrf.mxu0
    %v5166 = vadd.f32 0.0, %v5165
    %5167 = vmatmul.f32.gmra.mxu0 %v5102
    %v5168 = vpop.f32.mrf.mxu0
    %v5169 = vadd.f32 0.0, %v5168
    %5170 = vmatmul.f32.gmra.mxu0 %v5105
    %v5171 = vpop.f32.mrf.mxu0
    %v5172 = vadd.f32 0.0, %v5171
    %5173 = vmatmul.f32.gmra.mxu0 %v5108
    %v5174 = vpop.f32.mrf.mxu0
    %v5175 = vadd.f32 0.0, %v5174
    %5176 = vmatmul.f32.gmra.mxu0 %v5111
    %v5177 = vpop.f32.mrf.mxu0
    %v5178 = vadd.f32 0.0, %v5177
    %5179 = vmatmul.f32.gmra.mxu0 %v5114
    %v5180 = vpop.f32.mrf.mxu0
    %v5181 = vadd.f32 0.0, %v5180
    %5182 = vmatmul.f32.gmra.mxu0 %v5117
    %v5183 = vpop.f32.mrf.mxu0
    %v5184 = vadd.f32 0.0, %v5183
    %5185 = vmatmul.f32.gmra.mxu0 %v5120
    %v5186 = vpop.f32.mrf.mxu0
    %v5187 = vadd.f32 0.0, %v5186
    %5188 = vdwg.mxu0
    %v5189 = vadd.f32 %v4996, %v5142
    %v5190 = vadd.f32 %v4999, %v5145
    %v5191 = vadd.f32 %v5002, %v5148
    %v5192 = vadd.f32 %v5005, %v5151
    %v5193 = vadd.f32 %v5008, %v5154
    %v5194 = vadd.f32 %v5011, %v5157
    %v5195 = vadd.f32 %v5014, %v5160
    %v5196 = vadd.f32 %v5017, %v5163
    %v5197 = vadd.f32 %v5020, %v5166
    %v5198 = vadd.f32 %v5023, %v5169
    %v5199 = vadd.f32 %v5026, %v5172
    %v5200 = vadd.f32 %v5029, %v5175
    %v5201 = vadd.f32 %v5032, %v5178
    %v5202 = vadd.f32 %v5035, %v5181
    %v5203 = vadd.f32 %v5038, %v5184
    %v5204 = vadd.f32 %v5041, %v5187
    %s5205 = scalar_lea.vmem %s6, 384
    %v5206 = vld [vmem:[%s5205] sm:$0xff]
    %v5207 = vld [vmem:[%s5205 + $0x8] sm:$0xff]
    %v5208 = vld [vmem:[%s5205 + $0x10] sm:$0xff]
    %v5209 = vld [vmem:[%s5205 + $0x18] sm:$0xff]
    %v5210 = vld [vmem:[%s5205 + $0x20] sm:$0xff]
    %v5211 = vld [vmem:[%s5205 + $0x28] sm:$0xff]
    %v5212 = vld [vmem:[%s5205 + $0x30] sm:$0xff]
    %v5213 = vld [vmem:[%s5205 + $0x38] sm:$0xff]
    %v5214 = vld [vmem:[%s5205 + $0x40] sm:$0xff]
    %v5215 = vld [vmem:[%s5205 + $0x48] sm:$0xff]
    %v5216 = vld [vmem:[%s5205 + $0x50] sm:$0xff]
    %v5217 = vld [vmem:[%s5205 + $0x58] sm:$0xff]
    %v5218 = vld [vmem:[%s5205 + $0x60] sm:$0xff]
    %v5219 = vld [vmem:[%s5205 + $0x68] sm:$0xff]
    %v5220 = vld [vmem:[%s5205 + $0x70] sm:$0xff]
    %v5221 = vld [vmem:[%s5205 + $0x78] sm:$0xff]
    %5222 = vrot.lane.b32.xlu0 %v4771, 80
    %v5223 = vpop.permute.xlu0 %5222
    %5224 = vrot.lane.b32.xlu0 %v4772, 80
    %v5225 = vpop.permute.xlu0 %5224
    %5226 = vrot.lane.b32.xlu0 %v4773, 80
    %v5227 = vpop.permute.xlu0 %5226
    %5228 = vrot.lane.b32.xlu0 %v4774, 80
    %v5229 = vpop.permute.xlu0 %5228
    %5230 = vrot.lane.b32.xlu0 %v4775, 80
    %v5231 = vpop.permute.xlu0 %5230
    %v5237 = vsel %vm4812, %v5206, 0
    %v5240 = vsel %vm4812, %v5207, 0
    %v5243 = vsel %vm4812, %v5208, 0
    %v5246 = vsel %vm4812, %v5209, 0
    %v5249 = vsel %vm4812, %v5210, 0
    %v5252 = vsel %vm4812, %v5211, 0
    %v5255 = vsel %vm4812, %v5212, 0
    %v5258 = vsel %vm4812, %v5213, 0
    %v5261 = vsel %vm4812, %v5214, 0
    %v5264 = vsel %vm4812, %v5215, 0
    %v5267 = vsel %vm4812, %v5216, 0
    %v5270 = vsel %vm4812, %v5217, 0
    %v5273 = vsel %vm4812, %v5218, 0
    %v5276 = vsel %vm4812, %v5219, 0
    %v5279 = vsel %vm4812, %v5220, 0
    %v5282 = vsel %vm4812, %v5221, 0
    %v5284 = vsel %vm1536, %v5231, 0
    %5286 = vmatpush.msra.mxu0 0.0
    %5287 = vmatpush.msra.mxu0 0.0
    %5288 = vmatpush.msra.mxu0 0.0
    %5289 = vmatpush.msra.mxu0 0.0
    %5290 = vmatpush.msra.mxu0 0.0
    %5291 = vmatpush.msra.mxu0 0.0
    %5292 = vmatpush.msra.mxu0 0.0
    %5293 = vmatpush.msra.mxu0 0.0
    %5294 = vmatpush.msra.mxu0 0.0
    %5295 = vmatpush.msra.mxu0 0.0
    %5296 = vmatpush.msra.mxu0 0.0
    %5297 = vmatpush.msra.mxu0 %v5284
    %5298 = vmatpush.msra.mxu0 %v5229
    %5299 = vmatpush.msra.mxu0 %v5227
    %5300 = vmatpush.msra.mxu0 %v5225
    %5301 = vmatpush.msra.mxu0 %v5223
    %5302 = vmatmul.f32.gmra.mxu0 %v5237
    %v5303 = vpop.f32.mrf.mxu0
    %v5304 = vadd.f32 0.0, %v5303
    %5305 = vmatmul.f32.gmra.mxu0 %v5240
    %v5306 = vpop.f32.mrf.mxu0
    %v5307 = vadd.f32 0.0, %v5306
    %5308 = vmatmul.f32.gmra.mxu0 %v5243
    %v5309 = vpop.f32.mrf.mxu0
    %v5310 = vadd.f32 0.0, %v5309
    %5311 = vmatmul.f32.gmra.mxu0 %v5246
    %v5312 = vpop.f32.mrf.mxu0
    %v5313 = vadd.f32 0.0, %v5312
    %5314 = vmatmul.f32.gmra.mxu0 %v5249
    %v5315 = vpop.f32.mrf.mxu0
    %v5316 = vadd.f32 0.0, %v5315
    %5317 = vmatmul.f32.gmra.mxu0 %v5252
    %v5318 = vpop.f32.mrf.mxu0
    %v5319 = vadd.f32 0.0, %v5318
    %5320 = vmatmul.f32.gmra.mxu0 %v5255
    %v5321 = vpop.f32.mrf.mxu0
    %v5322 = vadd.f32 0.0, %v5321
    %5323 = vmatmul.f32.gmra.mxu0 %v5258
    %v5324 = vpop.f32.mrf.mxu0
    %v5325 = vadd.f32 0.0, %v5324
    %5326 = vmatmul.f32.gmra.mxu0 %v5261
    %v5327 = vpop.f32.mrf.mxu0
    %v5328 = vadd.f32 0.0, %v5327
    %5329 = vmatmul.f32.gmra.mxu0 %v5264
    %v5330 = vpop.f32.mrf.mxu0
    %v5331 = vadd.f32 0.0, %v5330
    %5332 = vmatmul.f32.gmra.mxu0 %v5267
    %v5333 = vpop.f32.mrf.mxu0
    %v5334 = vadd.f32 0.0, %v5333
    %5335 = vmatmul.f32.gmra.mxu0 %v5270
    %v5336 = vpop.f32.mrf.mxu0
    %v5337 = vadd.f32 0.0, %v5336
    %5338 = vmatmul.f32.gmra.mxu0 %v5273
    %v5339 = vpop.f32.mrf.mxu0
    %v5340 = vadd.f32 0.0, %v5339
    %5341 = vmatmul.f32.gmra.mxu0 %v5276
    %v5342 = vpop.f32.mrf.mxu0
    %v5343 = vadd.f32 0.0, %v5342
    %5344 = vmatmul.f32.gmra.mxu0 %v5279
    %v5345 = vpop.f32.mrf.mxu0
    %v5346 = vadd.f32 0.0, %v5345
    %5347 = vmatmul.f32.gmra.mxu0 %v5282
    %v5348 = vpop.f32.mrf.mxu0
    %v5349 = vadd.f32 0.0, %v5348
    %5350 = vdwg.mxu0
    %v5351 = vadd.f32 %v5189, %v5304
    %v5352 = vadd.f32 %v5190, %v5307
    %v5353 = vadd.f32 %v5191, %v5310
    %v5354 = vadd.f32 %v5192, %v5313
    %v5355 = vadd.f32 %v5193, %v5316
    %v5356 = vadd.f32 %v5194, %v5319
    %v5357 = vadd.f32 %v5195, %v5322
    %v5358 = vadd.f32 %v5196, %v5325
    %v5359 = vadd.f32 %v5197, %v5328
    %v5360 = vadd.f32 %v5198, %v5331
    %v5361 = vadd.f32 %v5199, %v5334
    %v5362 = vadd.f32 %v5200, %v5337
    %v5363 = vadd.f32 %v5201, %v5340
    %v5364 = vadd.f32 %v5202, %v5343
    %v5365 = vadd.f32 %v5203, %v5346
    %v5366 = vadd.f32 %v5204, %v5349
    %s5367 = scalar_lea.vmem %s6, 512
    %v5368 = vld [vmem:[%s5367] sm:$0xff]
    %v5369 = vld [vmem:[%s5367 + $0x8] sm:$0xff]
    %v5370 = vld [vmem:[%s5367 + $0x10] sm:$0xff]
    %v5371 = vld [vmem:[%s5367 + $0x18] sm:$0xff]
    %v5372 = vld [vmem:[%s5367 + $0x20] sm:$0xff]
    %v5373 = vld [vmem:[%s5367 + $0x28] sm:$0xff]
    %v5374 = vld [vmem:[%s5367 + $0x30] sm:$0xff]
    %v5375 = vld [vmem:[%s5367 + $0x38] sm:$0xff]
    %v5376 = vld [vmem:[%s5367 + $0x40] sm:$0xff]
    %v5377 = vld [vmem:[%s5367 + $0x48] sm:$0xff]
    %v5378 = vld [vmem:[%s5367 + $0x50] sm:$0xff]
    %v5379 = vld [vmem:[%s5367 + $0x58] sm:$0xff]
    %v5380 = vld [vmem:[%s5367 + $0x60] sm:$0xff]
    %v5381 = vld [vmem:[%s5367 + $0x68] sm:$0xff]
    %v5382 = vld [vmem:[%s5367 + $0x70] sm:$0xff]
    %v5383 = vld [vmem:[%s5367 + $0x78] sm:$0xff]
    %5384 = vrot.lane.b32.xlu0 %v4771, 64
    %v5385 = vpop.permute.xlu0 %5384
    %5386 = vrot.lane.b32.xlu0 %v4772, 64
    %v5387 = vpop.permute.xlu0 %5386
    %5388 = vrot.lane.b32.xlu0 %v4773, 64
    %v5389 = vpop.permute.xlu0 %5388
    %5390 = vrot.lane.b32.xlu0 %v4774, 64
    %v5391 = vpop.permute.xlu0 %5390
    %5392 = vrot.lane.b32.xlu0 %v4775, 64
    %v5393 = vpop.permute.xlu0 %5392
    %v5399 = vsel %vm4812, %v5368, 0
    %v5402 = vsel %vm4812, %v5369, 0
    %v5405 = vsel %vm4812, %v5370, 0
    %v5408 = vsel %vm4812, %v5371, 0
    %v5411 = vsel %vm4812, %v5372, 0
    %v5414 = vsel %vm4812, %v5373, 0
    %v5417 = vsel %vm4812, %v5374, 0
    %v5420 = vsel %vm4812, %v5375, 0
    %v5423 = vsel %vm4812, %v5376, 0
    %v5426 = vsel %vm4812, %v5377, 0
    %v5429 = vsel %vm4812, %v5378, 0
    %v5432 = vsel %vm4812, %v5379, 0
    %v5435 = vsel %vm4812, %v5380, 0
    %v5438 = vsel %vm4812, %v5381, 0
    %v5441 = vsel %vm4812, %v5382, 0
    %v5444 = vsel %vm4812, %v5383, 0
    %v5446 = vsel %vm1536, %v5393, 0
    %5448 = vmatpush.msra.mxu0 0.0
    %5449 = vmatpush.msra.mxu0 0.0
    %5450 = vmatpush.msra.mxu0 0.0
    %5451 = vmatpush.msra.mxu0 0.0
    %5452 = vmatpush.msra.mxu0 0.0
    %5453 = vmatpush.msra.mxu0 0.0
    %5454 = vmatpush.msra.mxu0 0.0
    %5455 = vmatpush.msra.mxu0 0.0
    %5456 = vmatpush.msra.mxu0 0.0
    %5457 = vmatpush.msra.mxu0 0.0
    %5458 = vmatpush.msra.mxu0 0.0
    %5459 = vmatpush.msra.mxu0 %v5446
    %5460 = vmatpush.msra.mxu0 %v5391
    %5461 = vmatpush.msra.mxu0 %v5389
    %5462 = vmatpush.msra.mxu0 %v5387
    %5463 = vmatpush.msra.mxu0 %v5385
    %5464 = vmatmul.f32.gmra.mxu0 %v5399
    %v5465 = vpop.f32.mrf.mxu0
    %v5466 = vadd.f32 0.0, %v5465
    %5467 = vmatmul.f32.gmra.mxu0 %v5402
    %v5468 = vpop.f32.mrf.mxu0
    %v5469 = vadd.f32 0.0, %v5468
    %5470 = vmatmul.f32.gmra.mxu0 %v5405
    %v5471 = vpop.f32.mrf.mxu0
    %v5472 = vadd.f32 0.0, %v5471
    %5473 = vmatmul.f32.gmra.mxu0 %v5408
    %v5474 = vpop.f32.mrf.mxu0
    %v5475 = vadd.f32 0.0, %v5474
    %5476 = vmatmul.f32.gmra.mxu0 %v5411
    %v5477 = vpop.f32.mrf.mxu0
    %v5478 = vadd.f32 0.0, %v5477
    %5479 = vmatmul.f32.gmra.mxu0 %v5414
    %v5480 = vpop.f32.mrf.mxu0
    %v5481 = vadd.f32 0.0, %v5480
    %5482 = vmatmul.f32.gmra.mxu0 %v5417
    %v5483 = vpop.f32.mrf.mxu0
    %v5484 = vadd.f32 0.0, %v5483
    %5485 = vmatmul.f32.gmra.mxu0 %v5420
    %v5486 = vpop.f32.mrf.mxu0
    %v5487 = vadd.f32 0.0, %v5486
    %5488 = vmatmul.f32.gmra.mxu0 %v5423
    %v5489 = vpop.f32.mrf.mxu0
    %v5490 = vadd.f32 0.0, %v5489
    %5491 = vmatmul.f32.gmra.mxu0 %v5426
    %v5492 = vpop.f32.mrf.mxu0
    %v5493 = vadd.f32 0.0, %v5492
    %5494 = vmatmul.f32.gmra.mxu0 %v5429
    %v5495 = vpop.f32.mrf.mxu0
    %v5496 = vadd.f32 0.0, %v5495
    %5497 = vmatmul.f32.gmra.mxu0 %v5432
    %v5498 = vpop.f32.mrf.mxu0
    %v5499 = vadd.f32 0.0, %v5498
    %5500 = vmatmul.f32.gmra.mxu0 %v5435
    %v5501 = vpop.f32.mrf.mxu0
    %v5502 = vadd.f32 0.0, %v5501
    %5503 = vmatmul.f32.gmra.mxu0 %v5438
    %v5504 = vpop.f32.mrf.mxu0
    %v5505 = vadd.f32 0.0, %v5504
    %5506 = vmatmul.f32.gmra.mxu0 %v5441
    %v5507 = vpop.f32.mrf.mxu0
    %v5508 = vadd.f32 0.0, %v5507
    %5509 = vmatmul.f32.gmra.mxu0 %v5444
    %v5510 = vpop.f32.mrf.mxu0
    %v5511 = vadd.f32 0.0, %v5510
    %5512 = vdwg.mxu0
    %v5513 = vadd.f32 %v5351, %v5466
    %v5514 = vadd.f32 %v5352, %v5469
    %v5515 = vadd.f32 %v5353, %v5472
    %v5516 = vadd.f32 %v5354, %v5475
    %v5517 = vadd.f32 %v5355, %v5478
    %v5518 = vadd.f32 %v5356, %v5481
    %v5519 = vadd.f32 %v5357, %v5484
    %v5520 = vadd.f32 %v5358, %v5487
    %v5521 = vadd.f32 %v5359, %v5490
    %v5522 = vadd.f32 %v5360, %v5493
    %v5523 = vadd.f32 %v5361, %v5496
    %v5524 = vadd.f32 %v5362, %v5499
    %v5525 = vadd.f32 %v5363, %v5502
    %v5526 = vadd.f32 %v5364, %v5505
    %v5527 = vadd.f32 %v5365, %v5508
    %v5528 = vadd.f32 %v5366, %v5511
    %s5529 = scalar_lea.vmem %s6, 640
    %v5530 = vld [vmem:[%s5529] sm:$0xff]
    %v5531 = vld [vmem:[%s5529 + $0x8] sm:$0xff]
    %v5532 = vld [vmem:[%s5529 + $0x10] sm:$0xff]
    %v5533 = vld [vmem:[%s5529 + $0x18] sm:$0xff]
    %v5534 = vld [vmem:[%s5529 + $0x20] sm:$0xff]
    %v5535 = vld [vmem:[%s5529 + $0x28] sm:$0xff]
    %v5536 = vld [vmem:[%s5529 + $0x30] sm:$0xff]
    %v5537 = vld [vmem:[%s5529 + $0x38] sm:$0xff]
    %v5538 = vld [vmem:[%s5529 + $0x40] sm:$0xff]
    %v5539 = vld [vmem:[%s5529 + $0x48] sm:$0xff]
    %v5540 = vld [vmem:[%s5529 + $0x50] sm:$0xff]
    %v5541 = vld [vmem:[%s5529 + $0x58] sm:$0xff]
    %v5542 = vld [vmem:[%s5529 + $0x60] sm:$0xff]
    %v5543 = vld [vmem:[%s5529 + $0x68] sm:$0xff]
    %v5544 = vld [vmem:[%s5529 + $0x70] sm:$0xff]
    %v5545 = vld [vmem:[%s5529 + $0x78] sm:$0xff]
    %5546 = vrot.lane.b32.xlu0 %v4771, 48
    %v5547 = vpop.permute.xlu0 %5546
    %5548 = vrot.lane.b32.xlu0 %v4772, 48
    %v5549 = vpop.permute.xlu0 %5548
    %5550 = vrot.lane.b32.xlu0 %v4773, 48
    %v5551 = vpop.permute.xlu0 %5550
    %5552 = vrot.lane.b32.xlu0 %v4774, 48
    %v5553 = vpop.permute.xlu0 %5552
    %5554 = vrot.lane.b32.xlu0 %v4775, 48
    %v5555 = vpop.permute.xlu0 %5554
    %v5561 = vsel %vm4812, %v5530, 0
    %v5564 = vsel %vm4812, %v5531, 0
    %v5567 = vsel %vm4812, %v5532, 0
    %v5570 = vsel %vm4812, %v5533, 0
    %v5573 = vsel %vm4812, %v5534, 0
    %v5576 = vsel %vm4812, %v5535, 0
    %v5579 = vsel %vm4812, %v5536, 0
    %v5582 = vsel %vm4812, %v5537, 0
    %v5585 = vsel %vm4812, %v5538, 0
    %v5588 = vsel %vm4812, %v5539, 0
    %v5591 = vsel %vm4812, %v5540, 0
    %v5594 = vsel %vm4812, %v5541, 0
    %v5597 = vsel %vm4812, %v5542, 0
    %v5600 = vsel %vm4812, %v5543, 0
    %v5603 = vsel %vm4812, %v5544, 0
    %v5606 = vsel %vm4812, %v5545, 0
    %v5608 = vsel %vm1536, %v5555, 0
    %5610 = vmatpush.msra.mxu0 0.0
    %5611 = vmatpush.msra.mxu0 0.0
    %5612 = vmatpush.msra.mxu0 0.0
    %5613 = vmatpush.msra.mxu0 0.0
    %5614 = vmatpush.msra.mxu0 0.0
    %5615 = vmatpush.msra.mxu0 0.0
    %5616 = vmatpush.msra.mxu0 0.0
    %5617 = vmatpush.msra.mxu0 0.0
    %5618 = vmatpush.msra.mxu0 0.0
    %5619 = vmatpush.msra.mxu0 0.0
    %5620 = vmatpush.msra.mxu0 0.0
    %5621 = vmatpush.msra.mxu0 %v5608
    %5622 = vmatpush.msra.mxu0 %v5553
    %5623 = vmatpush.msra.mxu0 %v5551
    %5624 = vmatpush.msra.mxu0 %v5549
    %5625 = vmatpush.msra.mxu0 %v5547
    %5626 = vmatmul.f32.gmra.mxu0 %v5561
    %v5627 = vpop.f32.mrf.mxu0
    %v5628 = vadd.f32 0.0, %v5627
    %5629 = vmatmul.f32.gmra.mxu0 %v5564
    %v5630 = vpop.f32.mrf.mxu0
    %v5631 = vadd.f32 0.0, %v5630
    %5632 = vmatmul.f32.gmra.mxu0 %v5567
    %v5633 = vpop.f32.mrf.mxu0
    %v5634 = vadd.f32 0.0, %v5633
    %5635 = vmatmul.f32.gmra.mxu0 %v5570
    %v5636 = vpop.f32.mrf.mxu0
    %v5637 = vadd.f32 0.0, %v5636
    %5638 = vmatmul.f32.gmra.mxu0 %v5573
    %v5639 = vpop.f32.mrf.mxu0
    %v5640 = vadd.f32 0.0, %v5639
    %5641 = vmatmul.f32.gmra.mxu0 %v5576
    %v5642 = vpop.f32.mrf.mxu0
    %v5643 = vadd.f32 0.0, %v5642
    %5644 = vmatmul.f32.gmra.mxu0 %v5579
    %v5645 = vpop.f32.mrf.mxu0
    %v5646 = vadd.f32 0.0, %v5645
    %5647 = vmatmul.f32.gmra.mxu0 %v5582
    %v5648 = vpop.f32.mrf.mxu0
    %v5649 = vadd.f32 0.0, %v5648
    %5650 = vmatmul.f32.gmra.mxu0 %v5585
    %v5651 = vpop.f32.mrf.mxu0
    %v5652 = vadd.f32 0.0, %v5651
    %5653 = vmatmul.f32.gmra.mxu0 %v5588
    %v5654 = vpop.f32.mrf.mxu0
    %v5655 = vadd.f32 0.0, %v5654
    %5656 = vmatmul.f32.gmra.mxu0 %v5591
    %v5657 = vpop.f32.mrf.mxu0
    %v5658 = vadd.f32 0.0, %v5657
    %5659 = vmatmul.f32.gmra.mxu0 %v5594
    %v5660 = vpop.f32.mrf.mxu0
    %v5661 = vadd.f32 0.0, %v5660
    %5662 = vmatmul.f32.gmra.mxu0 %v5597
    %v5663 = vpop.f32.mrf.mxu0
    %v5664 = vadd.f32 0.0, %v5663
    %5665 = vmatmul.f32.gmra.mxu0 %v5600
    %v5666 = vpop.f32.mrf.mxu0
    %v5667 = vadd.f32 0.0, %v5666
    %5668 = vmatmul.f32.gmra.mxu0 %v5603
    %v5669 = vpop.f32.mrf.mxu0
    %v5670 = vadd.f32 0.0, %v5669
    %5671 = vmatmul.f32.gmra.mxu0 %v5606
    %v5672 = vpop.f32.mrf.mxu0
    %v5673 = vadd.f32 0.0, %v5672
    %5674 = vdwg.mxu0
    %v5675 = vadd.f32 %v5513, %v5628
    %v5676 = vadd.f32 %v5514, %v5631
    %v5677 = vadd.f32 %v5515, %v5634
    %v5678 = vadd.f32 %v5516, %v5637
    %v5679 = vadd.f32 %v5517, %v5640
    %v5680 = vadd.f32 %v5518, %v5643
    %v5681 = vadd.f32 %v5519, %v5646
    %v5682 = vadd.f32 %v5520, %v5649
    %v5683 = vadd.f32 %v5521, %v5652
    %v5684 = vadd.f32 %v5522, %v5655
    %v5685 = vadd.f32 %v5523, %v5658
    %v5686 = vadd.f32 %v5524, %v5661
    %v5687 = vadd.f32 %v5525, %v5664
    %v5688 = vadd.f32 %v5526, %v5667
    %v5689 = vadd.f32 %v5527, %v5670
    %v5690 = vadd.f32 %v5528, %v5673
    %s5691 = scalar_lea.vmem %s6, 768
    %v5692 = vld [vmem:[%s5691] sm:$0xff]
    %v5693 = vld [vmem:[%s5691 + $0x8] sm:$0xff]
    %v5694 = vld [vmem:[%s5691 + $0x10] sm:$0xff]
    %v5695 = vld [vmem:[%s5691 + $0x18] sm:$0xff]
    %v5696 = vld [vmem:[%s5691 + $0x20] sm:$0xff]
    %v5697 = vld [vmem:[%s5691 + $0x28] sm:$0xff]
    %v5698 = vld [vmem:[%s5691 + $0x30] sm:$0xff]
    %v5699 = vld [vmem:[%s5691 + $0x38] sm:$0xff]
    %v5700 = vld [vmem:[%s5691 + $0x40] sm:$0xff]
    %v5701 = vld [vmem:[%s5691 + $0x48] sm:$0xff]
    %v5702 = vld [vmem:[%s5691 + $0x50] sm:$0xff]
    %v5703 = vld [vmem:[%s5691 + $0x58] sm:$0xff]
    %v5704 = vld [vmem:[%s5691 + $0x60] sm:$0xff]
    %v5705 = vld [vmem:[%s5691 + $0x68] sm:$0xff]
    %v5706 = vld [vmem:[%s5691 + $0x70] sm:$0xff]
    %v5707 = vld [vmem:[%s5691 + $0x78] sm:$0xff]
    %5708 = vrot.lane.b32.xlu0 %v4771, 32
    %v5709 = vpop.permute.xlu0 %5708
    %5710 = vrot.lane.b32.xlu0 %v4772, 32
    %v5711 = vpop.permute.xlu0 %5710
    %5712 = vrot.lane.b32.xlu0 %v4773, 32
    %v5713 = vpop.permute.xlu0 %5712
    %5714 = vrot.lane.b32.xlu0 %v4774, 32
    %v5715 = vpop.permute.xlu0 %5714
    %5716 = vrot.lane.b32.xlu0 %v4775, 32
    %v5717 = vpop.permute.xlu0 %5716
    %v5723 = vsel %vm4812, %v5692, 0
    %v5726 = vsel %vm4812, %v5693, 0
    %v5729 = vsel %vm4812, %v5694, 0
    %v5732 = vsel %vm4812, %v5695, 0
    %v5735 = vsel %vm4812, %v5696, 0
    %v5738 = vsel %vm4812, %v5697, 0
    %v5741 = vsel %vm4812, %v5698, 0
    %v5744 = vsel %vm4812, %v5699, 0
    %v5747 = vsel %vm4812, %v5700, 0
    %v5750 = vsel %vm4812, %v5701, 0
    %v5753 = vsel %vm4812, %v5702, 0
    %v5756 = vsel %vm4812, %v5703, 0
    %v5759 = vsel %vm4812, %v5704, 0
    %v5762 = vsel %vm4812, %v5705, 0
    %v5765 = vsel %vm4812, %v5706, 0
    %v5768 = vsel %vm4812, %v5707, 0
    %v5770 = vsel %vm1536, %v5717, 0
    %5772 = vmatpush.msra.mxu0 0.0
    %5773 = vmatpush.msra.mxu0 0.0
    %5774 = vmatpush.msra.mxu0 0.0
    %5775 = vmatpush.msra.mxu0 0.0
    %5776 = vmatpush.msra.mxu0 0.0
    %5777 = vmatpush.msra.mxu0 0.0
    %5778 = vmatpush.msra.mxu0 0.0
    %5779 = vmatpush.msra.mxu0 0.0
    %5780 = vmatpush.msra.mxu0 0.0
    %5781 = vmatpush.msra.mxu0 0.0
    %5782 = vmatpush.msra.mxu0 0.0
    %5783 = vmatpush.msra.mxu0 %v5770
    %5784 = vmatpush.msra.mxu0 %v5715
    %5785 = vmatpush.msra.mxu0 %v5713
    %5786 = vmatpush.msra.mxu0 %v5711
    %5787 = vmatpush.msra.mxu0 %v5709
    %5788 = vmatmul.f32.gmra.mxu0 %v5723
    %v5789 = vpop.f32.mrf.mxu0
    %v5790 = vadd.f32 0.0, %v5789
    %5791 = vmatmul.f32.gmra.mxu0 %v5726
    %v5792 = vpop.f32.mrf.mxu0
    %v5793 = vadd.f32 0.0, %v5792
    %5794 = vmatmul.f32.gmra.mxu0 %v5729
    %v5795 = vpop.f32.mrf.mxu0
    %v5796 = vadd.f32 0.0, %v5795
    %5797 = vmatmul.f32.gmra.mxu0 %v5732
    %v5798 = vpop.f32.mrf.mxu0
    %v5799 = vadd.f32 0.0, %v5798
    %5800 = vmatmul.f32.gmra.mxu0 %v5735
    %v5801 = vpop.f32.mrf.mxu0
    %v5802 = vadd.f32 0.0, %v5801
    %5803 = vmatmul.f32.gmra.mxu0 %v5738
    %v5804 = vpop.f32.mrf.mxu0
    %v5805 = vadd.f32 0.0, %v5804
    %5806 = vmatmul.f32.gmra.mxu0 %v5741
    %v5807 = vpop.f32.mrf.mxu0
    %v5808 = vadd.f32 0.0, %v5807
    %5809 = vmatmul.f32.gmra.mxu0 %v5744
    %v5810 = vpop.f32.mrf.mxu0
    %v5811 = vadd.f32 0.0, %v5810
    %5812 = vmatmul.f32.gmra.mxu0 %v5747
    %v5813 = vpop.f32.mrf.mxu0
    %v5814 = vadd.f32 0.0, %v5813
    %5815 = vmatmul.f32.gmra.mxu0 %v5750
    %v5816 = vpop.f32.mrf.mxu0
    %v5817 = vadd.f32 0.0, %v5816
    %5818 = vmatmul.f32.gmra.mxu0 %v5753
    %v5819 = vpop.f32.mrf.mxu0
    %v5820 = vadd.f32 0.0, %v5819
    %5821 = vmatmul.f32.gmra.mxu0 %v5756
    %v5822 = vpop.f32.mrf.mxu0
    %v5823 = vadd.f32 0.0, %v5822
    %5824 = vmatmul.f32.gmra.mxu0 %v5759
    %v5825 = vpop.f32.mrf.mxu0
    %v5826 = vadd.f32 0.0, %v5825
    %5827 = vmatmul.f32.gmra.mxu0 %v5762
    %v5828 = vpop.f32.mrf.mxu0
    %v5829 = vadd.f32 0.0, %v5828
    %5830 = vmatmul.f32.gmra.mxu0 %v5765
    %v5831 = vpop.f32.mrf.mxu0
    %v5832 = vadd.f32 0.0, %v5831
    %5833 = vmatmul.f32.gmra.mxu0 %v5768
    %v5834 = vpop.f32.mrf.mxu0
    %v5835 = vadd.f32 0.0, %v5834
    %5836 = vdwg.mxu0
    %v5837 = vadd.f32 %v5675, %v5790
    %v5838 = vadd.f32 %v5676, %v5793
    %v5839 = vadd.f32 %v5677, %v5796
    %v5840 = vadd.f32 %v5678, %v5799
    %v5841 = vadd.f32 %v5679, %v5802
    %v5842 = vadd.f32 %v5680, %v5805
    %v5843 = vadd.f32 %v5681, %v5808
    %v5844 = vadd.f32 %v5682, %v5811
    %v5845 = vadd.f32 %v5683, %v5814
    %v5846 = vadd.f32 %v5684, %v5817
    %v5847 = vadd.f32 %v5685, %v5820
    %v5848 = vadd.f32 %v5686, %v5823
    %v5849 = vadd.f32 %v5687, %v5826
    %v5850 = vadd.f32 %v5688, %v5829
    %v5851 = vadd.f32 %v5689, %v5832
    %v5852 = vadd.f32 %v5690, %v5835
    %s5853 = scalar_lea.vmem %s6, 896
    %v5854 = vld [vmem:[%s5853] sm:$0xff]
    %v5855 = vld [vmem:[%s5853 + $0x8] sm:$0xff]
    %v5856 = vld [vmem:[%s5853 + $0x10] sm:$0xff]
    %v5857 = vld [vmem:[%s5853 + $0x18] sm:$0xff]
    %v5858 = vld [vmem:[%s5853 + $0x20] sm:$0xff]
    %v5859 = vld [vmem:[%s5853 + $0x28] sm:$0xff]
    %v5860 = vld [vmem:[%s5853 + $0x30] sm:$0xff]
    %v5861 = vld [vmem:[%s5853 + $0x38] sm:$0xff]
    %v5862 = vld [vmem:[%s5853 + $0x40] sm:$0xff]
    %v5863 = vld [vmem:[%s5853 + $0x48] sm:$0xff]
    %v5864 = vld [vmem:[%s5853 + $0x50] sm:$0xff]
    %v5865 = vld [vmem:[%s5853 + $0x58] sm:$0xff]
    %v5866 = vld [vmem:[%s5853 + $0x60] sm:$0xff]
    %v5867 = vld [vmem:[%s5853 + $0x68] sm:$0xff]
    %v5868 = vld [vmem:[%s5853 + $0x70] sm:$0xff]
    %v5869 = vld [vmem:[%s5853 + $0x78] sm:$0xff]
    %5870 = vrot.lane.b32.xlu0 %v4771, 16
    %v5871 = vpop.permute.xlu0 %5870
    %5872 = vrot.lane.b32.xlu0 %v4772, 16
    %v5873 = vpop.permute.xlu0 %5872
    %5874 = vrot.lane.b32.xlu0 %v4773, 16
    %v5875 = vpop.permute.xlu0 %5874
    %5876 = vrot.lane.b32.xlu0 %v4774, 16
    %v5877 = vpop.permute.xlu0 %5876
    %5878 = vrot.lane.b32.xlu0 %v4775, 16
    %v5879 = vpop.permute.xlu0 %5878
    %v5885 = vsel %vm4812, %v5854, 0
    %v5888 = vsel %vm4812, %v5855, 0
    %v5891 = vsel %vm4812, %v5856, 0
    %v5894 = vsel %vm4812, %v5857, 0
    %v5897 = vsel %vm4812, %v5858, 0
    %v5900 = vsel %vm4812, %v5859, 0
    %v5903 = vsel %vm4812, %v5860, 0
    %v5906 = vsel %vm4812, %v5861, 0
    %v5909 = vsel %vm4812, %v5862, 0
    %v5912 = vsel %vm4812, %v5863, 0
    %v5915 = vsel %vm4812, %v5864, 0
    %v5918 = vsel %vm4812, %v5865, 0
    %v5921 = vsel %vm4812, %v5866, 0
    %v5924 = vsel %vm4812, %v5867, 0
    %v5927 = vsel %vm4812, %v5868, 0
    %v5930 = vsel %vm4812, %v5869, 0
    %v5932 = vsel %vm1536, %v5879, 0
    %5934 = vmatpush.msra.mxu0 0.0
    %5935 = vmatpush.msra.mxu0 0.0
    %5936 = vmatpush.msra.mxu0 0.0
    %5937 = vmatpush.msra.mxu0 0.0
    %5938 = vmatpush.msra.mxu0 0.0
    %5939 = vmatpush.msra.mxu0 0.0
    %5940 = vmatpush.msra.mxu0 0.0
    %5941 = vmatpush.msra.mxu0 0.0
    %5942 = vmatpush.msra.mxu0 0.0
    %5943 = vmatpush.msra.mxu0 0.0
    %5944 = vmatpush.msra.mxu0 0.0
    %5945 = vmatpush.msra.mxu0 %v5932
    %5946 = vmatpush.msra.mxu0 %v5877
    %5947 = vmatpush.msra.mxu0 %v5875
    %5948 = vmatpush.msra.mxu0 %v5873
    %5949 = vmatpush.msra.mxu0 %v5871
    %5950 = vmatmul.f32.gmra.mxu0 %v5885
    %v5951 = vpop.f32.mrf.mxu0
    %v5952 = vadd.f32 0.0, %v5951
    %5953 = vmatmul.f32.gmra.mxu0 %v5888
    %v5954 = vpop.f32.mrf.mxu0
    %v5955 = vadd.f32 0.0, %v5954
    %5956 = vmatmul.f32.gmra.mxu0 %v5891
    %v5957 = vpop.f32.mrf.mxu0
    %v5958 = vadd.f32 0.0, %v5957
    %5959 = vmatmul.f32.gmra.mxu0 %v5894
    %v5960 = vpop.f32.mrf.mxu0
    %v5961 = vadd.f32 0.0, %v5960
    %5962 = vmatmul.f32.gmra.mxu0 %v5897
    %v5963 = vpop.f32.mrf.mxu0
    %v5964 = vadd.f32 0.0, %v5963
    %5965 = vmatmul.f32.gmra.mxu0 %v5900
    %v5966 = vpop.f32.mrf.mxu0
    %v5967 = vadd.f32 0.0, %v5966
    %5968 = vmatmul.f32.gmra.mxu0 %v5903
    %v5969 = vpop.f32.mrf.mxu0
    %v5970 = vadd.f32 0.0, %v5969
    %5971 = vmatmul.f32.gmra.mxu0 %v5906
    %v5972 = vpop.f32.mrf.mxu0
    %v5973 = vadd.f32 0.0, %v5972
    %5974 = vmatmul.f32.gmra.mxu0 %v5909
    %v5975 = vpop.f32.mrf.mxu0
    %v5976 = vadd.f32 0.0, %v5975
    %5977 = vmatmul.f32.gmra.mxu0 %v5912
    %v5978 = vpop.f32.mrf.mxu0
    %v5979 = vadd.f32 0.0, %v5978
    %5980 = vmatmul.f32.gmra.mxu0 %v5915
    %v5981 = vpop.f32.mrf.mxu0
    %v5982 = vadd.f32 0.0, %v5981
    %5983 = vmatmul.f32.gmra.mxu0 %v5918
    %v5984 = vpop.f32.mrf.mxu0
    %v5985 = vadd.f32 0.0, %v5984
    %5986 = vmatmul.f32.gmra.mxu0 %v5921
    %v5987 = vpop.f32.mrf.mxu0
    %v5988 = vadd.f32 0.0, %v5987
    %5989 = vmatmul.f32.gmra.mxu0 %v5924
    %v5990 = vpop.f32.mrf.mxu0
    %v5991 = vadd.f32 0.0, %v5990
    %5992 = vmatmul.f32.gmra.mxu0 %v5927
    %v5993 = vpop.f32.mrf.mxu0
    %v5994 = vadd.f32 0.0, %v5993
    %5995 = vmatmul.f32.gmra.mxu0 %v5930
    %v5996 = vpop.f32.mrf.mxu0
    %v5997 = vadd.f32 0.0, %v5996
    %5998 = vdwg.mxu0
    %v5999 = vadd.f32 %v5837, %v5952
    %v6000 = vadd.f32 %v5838, %v5955
    %v6001 = vadd.f32 %v5839, %v5958
    %v6002 = vadd.f32 %v5840, %v5961
    %v6003 = vadd.f32 %v5841, %v5964
    %v6004 = vadd.f32 %v5842, %v5967
    %v6005 = vadd.f32 %v5843, %v5970
    %v6006 = vadd.f32 %v5844, %v5973
    %v6007 = vadd.f32 %v5845, %v5976
    %v6008 = vadd.f32 %v5846, %v5979
    %v6009 = vadd.f32 %v5847, %v5982
    %v6010 = vadd.f32 %v5848, %v5985
    %v6011 = vadd.f32 %v5849, %v5988
    %v6012 = vadd.f32 %v5850, %v5991
    %v6013 = vadd.f32 %v5851, %v5994
    %v6014 = vadd.f32 %v5852, %v5997
    %s6015 = scalar_lea.vmem %s6, 1024
    %v6016 = vld [vmem:[%s6015] sm:$0xff]
    %v6017 = vld [vmem:[%s6015 + $0x8] sm:$0xff]
    %v6018 = vld [vmem:[%s6015 + $0x10] sm:$0xff]
    %v6019 = vld [vmem:[%s6015 + $0x18] sm:$0xff]
    %v6020 = vld [vmem:[%s6015 + $0x20] sm:$0xff]
    %v6021 = vld [vmem:[%s6015 + $0x28] sm:$0xff]
    %v6022 = vld [vmem:[%s6015 + $0x30] sm:$0xff]
    %v6023 = vld [vmem:[%s6015 + $0x38] sm:$0xff]
    %v6024 = vld [vmem:[%s6015 + $0x40] sm:$0xff]
    %v6025 = vld [vmem:[%s6015 + $0x48] sm:$0xff]
    %v6026 = vld [vmem:[%s6015 + $0x50] sm:$0xff]
    %v6027 = vld [vmem:[%s6015 + $0x58] sm:$0xff]
    %v6028 = vld [vmem:[%s6015 + $0x60] sm:$0xff]
    %v6029 = vld [vmem:[%s6015 + $0x68] sm:$0xff]
    %v6030 = vld [vmem:[%s6015 + $0x70] sm:$0xff]
    %v6031 = vld [vmem:[%s6015 + $0x78] sm:$0xff]
    %v6032 = vld [vmem:[#allocation3 + $0x8] sm:$0xff]
    %v6033 = vld [vmem:[#allocation3 + $0x18] sm:$0xff]
    %v6034 = vld [vmem:[#allocation3 + $0x28] sm:$0xff]
    %v6035 = vld [vmem:[#allocation3 + $0x38] sm:$0xff]
    %v6036 = vld [vmem:[#allocation3 + $0x48] sm:$0xf]
    %v6038 = vsel %vm4812, %v6016, 0
    %v6041 = vsel %vm4812, %v6017, 0
    %v6044 = vsel %vm4812, %v6018, 0
    %v6047 = vsel %vm4812, %v6019, 0
    %v6050 = vsel %vm4812, %v6020, 0
    %v6053 = vsel %vm4812, %v6021, 0
    %v6056 = vsel %vm4812, %v6022, 0
    %v6059 = vsel %vm4812, %v6023, 0
    %v6062 = vsel %vm4812, %v6024, 0
    %v6065 = vsel %vm4812, %v6025, 0
    %v6068 = vsel %vm4812, %v6026, 0
    %v6071 = vsel %vm4812, %v6027, 0
    %v6074 = vsel %vm4812, %v6028, 0
    %v6077 = vsel %vm4812, %v6029, 0
    %v6080 = vsel %vm4812, %v6030, 0
    %v6083 = vsel %vm4812, %v6031, 0
    %v6086 = vsel %vm1536, %v6036, 0
    %6088 = vmatpush.msra.mxu0 0.0
    %6089 = vmatpush.msra.mxu0 0.0
    %6090 = vmatpush.msra.mxu0 0.0
    %6091 = vmatpush.msra.mxu0 0.0
    %6092 = vmatpush.msra.mxu0 0.0
    %6093 = vmatpush.msra.mxu0 0.0
    %6094 = vmatpush.msra.mxu0 0.0
    %6095 = vmatpush.msra.mxu0 0.0
    %6096 = vmatpush.msra.mxu0 0.0
    %6097 = vmatpush.msra.mxu0 0.0
    %6098 = vmatpush.msra.mxu0 0.0
    %6099 = vmatpush.msra.mxu0 %v6086
    %6100 = vmatpush.msra.mxu0 %v6035
    %6101 = vmatpush.msra.mxu0 %v6034
    %6102 = vmatpush.msra.mxu0 %v6033
    %6103 = vmatpush.msra.mxu0 %v6032
    %6104 = vmatmul.f32.gmra.mxu0 %v6038
    %v6105 = vpop.f32.mrf.mxu0
    %v6106 = vadd.f32 0.0, %v6105
    %6107 = vmatmul.f32.gmra.mxu0 %v6041
    %v6108 = vpop.f32.mrf.mxu0
    %v6109 = vadd.f32 0.0, %v6108
    %6110 = vmatmul.f32.gmra.mxu0 %v6044
    %v6111 = vpop.f32.mrf.mxu0
    %v6112 = vadd.f32 0.0, %v6111
    %6113 = vmatmul.f32.gmra.mxu0 %v6047
    %v6114 = vpop.f32.mrf.mxu0
    %v6115 = vadd.f32 0.0, %v6114
    %6116 = vmatmul.f32.gmra.mxu0 %v6050
    %v6117 = vpop.f32.mrf.mxu0
    %v6118 = vadd.f32 0.0, %v6117
    %6119 = vmatmul.f32.gmra.mxu0 %v6053
    %v6120 = vpop.f32.mrf.mxu0
    %v6121 = vadd.f32 0.0, %v6120
    %6122 = vmatmul.f32.gmra.mxu0 %v6056
    %v6123 = vpop.f32.mrf.mxu0
    %v6124 = vadd.f32 0.0, %v6123
    %6125 = vmatmul.f32.gmra.mxu0 %v6059
    %v6126 = vpop.f32.mrf.mxu0
    %v6127 = vadd.f32 0.0, %v6126
    %6128 = vmatmul.f32.gmra.mxu0 %v6062
    %v6129 = vpop.f32.mrf.mxu0
    %v6130 = vadd.f32 0.0, %v6129
    %6131 = vmatmul.f32.gmra.mxu0 %v6065
    %v6132 = vpop.f32.mrf.mxu0
    %v6133 = vadd.f32 0.0, %v6132
    %6134 = vmatmul.f32.gmra.mxu0 %v6068
    %v6135 = vpop.f32.mrf.mxu0
    %v6136 = vadd.f32 0.0, %v6135
    %6137 = vmatmul.f32.gmra.mxu0 %v6071
    %v6138 = vpop.f32.mrf.mxu0
    %v6139 = vadd.f32 0.0, %v6138
    %6140 = vmatmul.f32.gmra.mxu0 %v6074
    %v6141 = vpop.f32.mrf.mxu0
    %v6142 = vadd.f32 0.0, %v6141
    %6143 = vmatmul.f32.gmra.mxu0 %v6077
    %v6144 = vpop.f32.mrf.mxu0
    %v6145 = vadd.f32 0.0, %v6144
    %6146 = vmatmul.f32.gmra.mxu0 %v6080
    %v6147 = vpop.f32.mrf.mxu0
    %v6148 = vadd.f32 0.0, %v6147
    %6149 = vmatmul.f32.gmra.mxu0 %v6083
    %v6150 = vpop.f32.mrf.mxu0
    %v6151 = vadd.f32 0.0, %v6150
    %6152 = vdwg.mxu0
    %v6153 = vadd.f32 %v5999, %v6106
    %v6154 = vadd.f32 %v6000, %v6109
    %v6155 = vadd.f32 %v6001, %v6112
    %v6156 = vadd.f32 %v6002, %v6115
    %v6157 = vadd.f32 %v6003, %v6118
    %v6158 = vadd.f32 %v6004, %v6121
    %v6159 = vadd.f32 %v6005, %v6124
    %v6160 = vadd.f32 %v6006, %v6127
    %v6161 = vadd.f32 %v6007, %v6130
    %v6162 = vadd.f32 %v6008, %v6133
    %v6163 = vadd.f32 %v6009, %v6136
    %v6164 = vadd.f32 %v6010, %v6139
    %v6165 = vadd.f32 %v6011, %v6142
    %v6166 = vadd.f32 %v6012, %v6145
    %v6167 = vadd.f32 %v6013, %v6148
    %v6168 = vadd.f32 %v6014, %v6151
    %s6169 = scalar_lea.vmem %s6, 1152
    %v6170 = vld [vmem:[%s6169] sm:$0xff]
    %v6171 = vld [vmem:[%s6169 + $0x8] sm:$0xff]
    %v6172 = vld [vmem:[%s6169 + $0x10] sm:$0xff]
    %v6173 = vld [vmem:[%s6169 + $0x18] sm:$0xff]
    %v6174 = vld [vmem:[%s6169 + $0x20] sm:$0xff]
    %v6175 = vld [vmem:[%s6169 + $0x28] sm:$0xff]
    %v6176 = vld [vmem:[%s6169 + $0x30] sm:$0xff]
    %v6177 = vld [vmem:[%s6169 + $0x38] sm:$0xff]
    %v6178 = vld [vmem:[%s6169 + $0x40] sm:$0xff]
    %v6179 = vld [vmem:[%s6169 + $0x48] sm:$0xff]
    %v6180 = vld [vmem:[%s6169 + $0x50] sm:$0xff]
    %v6181 = vld [vmem:[%s6169 + $0x58] sm:$0xff]
    %v6182 = vld [vmem:[%s6169 + $0x60] sm:$0xff]
    %v6183 = vld [vmem:[%s6169 + $0x68] sm:$0xff]
    %v6184 = vld [vmem:[%s6169 + $0x70] sm:$0xff]
    %v6185 = vld [vmem:[%s6169 + $0x78] sm:$0xff]
    %6190 = vrot.lane.b32.xlu0 %v6032, 112
    %v6191 = vpop.permute.xlu0 %6190
    %6192 = vrot.lane.b32.xlu0 %v6033, 112
    %v6193 = vpop.permute.xlu0 %6192
    %6194 = vrot.lane.b32.xlu0 %v6034, 112
    %v6195 = vpop.permute.xlu0 %6194
    %6196 = vrot.lane.b32.xlu0 %v6035, 112
    %v6197 = vpop.permute.xlu0 %6196
    %6198 = vrot.lane.b32.xlu0 %v6036, 112
    %v6199 = vpop.permute.xlu0 %6198
    %v6205 = vsel %vm4812, %v6170, 0
    %v6208 = vsel %vm4812, %v6171, 0
    %v6211 = vsel %vm4812, %v6172, 0
    %v6214 = vsel %vm4812, %v6173, 0
    %v6217 = vsel %vm4812, %v6174, 0
    %v6220 = vsel %vm4812, %v6175, 0
    %v6223 = vsel %vm4812, %v6176, 0
    %v6226 = vsel %vm4812, %v6177, 0
    %v6229 = vsel %vm4812, %v6178, 0
    %v6232 = vsel %vm4812, %v6179, 0
    %v6235 = vsel %vm4812, %v6180, 0
    %v6238 = vsel %vm4812, %v6181, 0
    %v6241 = vsel %vm4812, %v6182, 0
    %v6244 = vsel %vm4812, %v6183, 0
    %v6247 = vsel %vm4812, %v6184, 0
    %v6250 = vsel %vm4812, %v6185, 0
    %v6252 = vsel %vm1536, %v6199, 0
    %6254 = vmatpush.msra.mxu0 0.0
    %6255 = vmatpush.msra.mxu0 0.0
    %6256 = vmatpush.msra.mxu0 0.0
    %6257 = vmatpush.msra.mxu0 0.0
    %6258 = vmatpush.msra.mxu0 0.0
    %6259 = vmatpush.msra.mxu0 0.0
    %6260 = vmatpush.msra.mxu0 0.0
    %6261 = vmatpush.msra.mxu0 0.0
    %6262 = vmatpush.msra.mxu0 0.0
    %6263 = vmatpush.msra.mxu0 0.0
    %6264 = vmatpush.msra.mxu0 0.0
    %6265 = vmatpush.msra.mxu0 %v6252
    %6266 = vmatpush.msra.mxu0 %v6197
    %6267 = vmatpush.msra.mxu0 %v6195
    %6268 = vmatpush.msra.mxu0 %v6193
    %6269 = vmatpush.msra.mxu0 %v6191
    %6270 = vmatmul.f32.gmra.mxu0 %v6205
    %v6271 = vpop.f32.mrf.mxu0
    %v6272 = vadd.f32 0.0, %v6271
    %6273 = vmatmul.f32.gmra.mxu0 %v6208
    %v6274 = vpop.f32.mrf.mxu0
    %v6275 = vadd.f32 0.0, %v6274
    %6276 = vmatmul.f32.gmra.mxu0 %v6211
    %v6277 = vpop.f32.mrf.mxu0
    %v6278 = vadd.f32 0.0, %v6277
    %6279 = vmatmul.f32.gmra.mxu0 %v6214
    %v6280 = vpop.f32.mrf.mxu0
    %v6281 = vadd.f32 0.0, %v6280
    %6282 = vmatmul.f32.gmra.mxu0 %v6217
    %v6283 = vpop.f32.mrf.mxu0
    %v6284 = vadd.f32 0.0, %v6283
    %6285 = vmatmul.f32.gmra.mxu0 %v6220
    %v6286 = vpop.f32.mrf.mxu0
    %v6287 = vadd.f32 0.0, %v6286
    %6288 = vmatmul.f32.gmra.mxu0 %v6223
    %v6289 = vpop.f32.mrf.mxu0
    %v6290 = vadd.f32 0.0, %v6289
    %6291 = vmatmul.f32.gmra.mxu0 %v6226
    %v6292 = vpop.f32.mrf.mxu0
    %v6293 = vadd.f32 0.0, %v6292
    %6294 = vmatmul.f32.gmra.mxu0 %v6229
    %v6295 = vpop.f32.mrf.mxu0
    %v6296 = vadd.f32 0.0, %v6295
    %6297 = vmatmul.f32.gmra.mxu0 %v6232
    %v6298 = vpop.f32.mrf.mxu0
    %v6299 = vadd.f32 0.0, %v6298
    %6300 = vmatmul.f32.gmra.mxu0 %v6235
    %v6301 = vpop.f32.mrf.mxu0
    %v6302 = vadd.f32 0.0, %v6301
    %6303 = vmatmul.f32.gmra.mxu0 %v6238
    %v6304 = vpop.f32.mrf.mxu0
    %v6305 = vadd.f32 0.0, %v6304
    %6306 = vmatmul.f32.gmra.mxu0 %v6241
    %v6307 = vpop.f32.mrf.mxu0
    %v6308 = vadd.f32 0.0, %v6307
    %6309 = vmatmul.f32.gmra.mxu0 %v6244
    %v6310 = vpop.f32.mrf.mxu0
    %v6311 = vadd.f32 0.0, %v6310
    %6312 = vmatmul.f32.gmra.mxu0 %v6247
    %v6313 = vpop.f32.mrf.mxu0
    %v6314 = vadd.f32 0.0, %v6313
    %6315 = vmatmul.f32.gmra.mxu0 %v6250
    %v6316 = vpop.f32.mrf.mxu0
    %v6317 = vadd.f32 0.0, %v6316
    %6318 = vdwg.mxu0
    %v6319 = vadd.f32 %v6153, %v6272
    %v6320 = vadd.f32 %v6154, %v6275
    %v6321 = vadd.f32 %v6155, %v6278
    %v6322 = vadd.f32 %v6156, %v6281
    %v6323 = vadd.f32 %v6157, %v6284
    %v6324 = vadd.f32 %v6158, %v6287
    %v6325 = vadd.f32 %v6159, %v6290
    %v6326 = vadd.f32 %v6160, %v6293
    %v6327 = vadd.f32 %v6161, %v6296
    %v6328 = vadd.f32 %v6162, %v6299
    %v6329 = vadd.f32 %v6163, %v6302
    %v6330 = vadd.f32 %v6164, %v6305
    %v6331 = vadd.f32 %v6165, %v6308
    %v6332 = vadd.f32 %v6166, %v6311
    %v6333 = vadd.f32 %v6167, %v6314
    %v6334 = vadd.f32 %v6168, %v6317
    %s6335 = scalar_lea.vmem %s6, 1280
    %v6336 = vld [vmem:[%s6335] sm:$0xff]
    %v6337 = vld [vmem:[%s6335 + $0x8] sm:$0xff]
    %v6338 = vld [vmem:[%s6335 + $0x10] sm:$0xff]
    %v6339 = vld [vmem:[%s6335 + $0x18] sm:$0xff]
    %v6340 = vld [vmem:[%s6335 + $0x20] sm:$0xff]
    %v6341 = vld [vmem:[%s6335 + $0x28] sm:$0xff]
    %v6342 = vld [vmem:[%s6335 + $0x30] sm:$0xff]
    %v6343 = vld [vmem:[%s6335 + $0x38] sm:$0xff]
    %v6344 = vld [vmem:[%s6335 + $0x40] sm:$0xff]
    %v6345 = vld [vmem:[%s6335 + $0x48] sm:$0xff]
    %v6346 = vld [vmem:[%s6335 + $0x50] sm:$0xff]
    %v6347 = vld [vmem:[%s6335 + $0x58] sm:$0xff]
    %v6348 = vld [vmem:[%s6335 + $0x60] sm:$0xff]
    %v6349 = vld [vmem:[%s6335 + $0x68] sm:$0xff]
    %v6350 = vld [vmem:[%s6335 + $0x70] sm:$0xff]
    %v6351 = vld [vmem:[%s6335 + $0x78] sm:$0xff]
    %6352 = vrot.lane.b32.xlu0 %v6032, 96
    %v6353 = vpop.permute.xlu0 %6352
    %6354 = vrot.lane.b32.xlu0 %v6033, 96
    %v6355 = vpop.permute.xlu0 %6354
    %6356 = vrot.lane.b32.xlu0 %v6034, 96
    %v6357 = vpop.permute.xlu0 %6356
    %6358 = vrot.lane.b32.xlu0 %v6035, 96
    %v6359 = vpop.permute.xlu0 %6358
    %6360 = vrot.lane.b32.xlu0 %v6036, 96
    %v6361 = vpop.permute.xlu0 %6360
    %v6367 = vsel %vm4812, %v6336, 0
    %v6370 = vsel %vm4812, %v6337, 0
    %v6373 = vsel %vm4812, %v6338, 0
    %v6376 = vsel %vm4812, %v6339, 0
    %v6379 = vsel %vm4812, %v6340, 0
    %v6382 = vsel %vm4812, %v6341, 0
    %v6385 = vsel %vm4812, %v6342, 0
    %v6388 = vsel %vm4812, %v6343, 0
    %v6391 = vsel %vm4812, %v6344, 0
    %v6394 = vsel %vm4812, %v6345, 0
    %v6397 = vsel %vm4812, %v6346, 0
    %v6400 = vsel %vm4812, %v6347, 0
    %v6403 = vsel %vm4812, %v6348, 0
    %v6406 = vsel %vm4812, %v6349, 0
    %v6409 = vsel %vm4812, %v6350, 0
    %v6412 = vsel %vm4812, %v6351, 0
    %v6414 = vsel %vm1536, %v6361, 0
    %6416 = vmatpush.msra.mxu0 0.0
    %6417 = vmatpush.msra.mxu0 0.0
    %6418 = vmatpush.msra.mxu0 0.0
    %6419 = vmatpush.msra.mxu0 0.0
    %6420 = vmatpush.msra.mxu0 0.0
    %6421 = vmatpush.msra.mxu0 0.0
    %6422 = vmatpush.msra.mxu0 0.0
    %6423 = vmatpush.msra.mxu0 0.0
    %6424 = vmatpush.msra.mxu0 0.0
    %6425 = vmatpush.msra.mxu0 0.0
    %6426 = vmatpush.msra.mxu0 0.0
    %6427 = vmatpush.msra.mxu0 %v6414
    %6428 = vmatpush.msra.mxu0 %v6359
    %6429 = vmatpush.msra.mxu0 %v6357
    %6430 = vmatpush.msra.mxu0 %v6355
    %6431 = vmatpush.msra.mxu0 %v6353
    %6432 = vmatmul.f32.gmra.mxu0 %v6367
    %v6433 = vpop.f32.mrf.mxu0
    %v6434 = vadd.f32 0.0, %v6433
    %6435 = vmatmul.f32.gmra.mxu0 %v6370
    %v6436 = vpop.f32.mrf.mxu0
    %v6437 = vadd.f32 0.0, %v6436
    %6438 = vmatmul.f32.gmra.mxu0 %v6373
    %v6439 = vpop.f32.mrf.mxu0
    %v6440 = vadd.f32 0.0, %v6439
    %6441 = vmatmul.f32.gmra.mxu0 %v6376
    %v6442 = vpop.f32.mrf.mxu0
    %v6443 = vadd.f32 0.0, %v6442
    %6444 = vmatmul.f32.gmra.mxu0 %v6379
    %v6445 = vpop.f32.mrf.mxu0
    %v6446 = vadd.f32 0.0, %v6445
    %6447 = vmatmul.f32.gmra.mxu0 %v6382
    %v6448 = vpop.f32.mrf.mxu0
    %v6449 = vadd.f32 0.0, %v6448
    %6450 = vmatmul.f32.gmra.mxu0 %v6385
    %v6451 = vpop.f32.mrf.mxu0
    %v6452 = vadd.f32 0.0, %v6451
    %6453 = vmatmul.f32.gmra.mxu0 %v6388
    %v6454 = vpop.f32.mrf.mxu0
    %v6455 = vadd.f32 0.0, %v6454
    %6456 = vmatmul.f32.gmra.mxu0 %v6391
    %v6457 = vpop.f32.mrf.mxu0
    %v6458 = vadd.f32 0.0, %v6457
    %6459 = vmatmul.f32.gmra.mxu0 %v6394
    %v6460 = vpop.f32.mrf.mxu0
    %v6461 = vadd.f32 0.0, %v6460
    %6462 = vmatmul.f32.gmra.mxu0 %v6397
    %v6463 = vpop.f32.mrf.mxu0
    %v6464 = vadd.f32 0.0, %v6463
    %6465 = vmatmul.f32.gmra.mxu0 %v6400
    %v6466 = vpop.f32.mrf.mxu0
    %v6467 = vadd.f32 0.0, %v6466
    %6468 = vmatmul.f32.gmra.mxu0 %v6403
    %v6469 = vpop.f32.mrf.mxu0
    %v6470 = vadd.f32 0.0, %v6469
    %6471 = vmatmul.f32.gmra.mxu0 %v6406
    %v6472 = vpop.f32.mrf.mxu0
    %v6473 = vadd.f32 0.0, %v6472
    %6474 = vmatmul.f32.gmra.mxu0 %v6409
    %v6475 = vpop.f32.mrf.mxu0
    %v6476 = vadd.f32 0.0, %v6475
    %6477 = vmatmul.f32.gmra.mxu0 %v6412
    %v6478 = vpop.f32.mrf.mxu0
    %v6479 = vadd.f32 0.0, %v6478
    %6480 = vdwg.mxu0
    %v6481 = vadd.f32 %v6319, %v6434
    %v6482 = vadd.f32 %v6320, %v6437
    %v6483 = vadd.f32 %v6321, %v6440
    %v6484 = vadd.f32 %v6322, %v6443
    %v6485 = vadd.f32 %v6323, %v6446
    %v6486 = vadd.f32 %v6324, %v6449
    %v6487 = vadd.f32 %v6325, %v6452
    %v6488 = vadd.f32 %v6326, %v6455
    %v6489 = vadd.f32 %v6327, %v6458
    %v6490 = vadd.f32 %v6328, %v6461
    %v6491 = vadd.f32 %v6329, %v6464
    %v6492 = vadd.f32 %v6330, %v6467
    %v6493 = vadd.f32 %v6331, %v6470
    %v6494 = vadd.f32 %v6332, %v6473
    %v6495 = vadd.f32 %v6333, %v6476
    %v6496 = vadd.f32 %v6334, %v6479
    %s6497 = scalar_lea.vmem %s6, 1408
    %v6498 = vld [vmem:[%s6497] sm:$0xff]
    %v6499 = vld [vmem:[%s6497 + $0x8] sm:$0xff]
    %v6500 = vld [vmem:[%s6497 + $0x10] sm:$0xff]
    %v6501 = vld [vmem:[%s6497 + $0x18] sm:$0xff]
    %v6502 = vld [vmem:[%s6497 + $0x20] sm:$0xff]
    %v6503 = vld [vmem:[%s6497 + $0x28] sm:$0xff]
    %v6504 = vld [vmem:[%s6497 + $0x30] sm:$0xff]
    %v6505 = vld [vmem:[%s6497 + $0x38] sm:$0xff]
    %v6506 = vld [vmem:[%s6497 + $0x40] sm:$0xff]
    %v6507 = vld [vmem:[%s6497 + $0x48] sm:$0xff]
    %v6508 = vld [vmem:[%s6497 + $0x50] sm:$0xff]
    %v6509 = vld [vmem:[%s6497 + $0x58] sm:$0xff]
    %v6510 = vld [vmem:[%s6497 + $0x60] sm:$0xff]
    %v6511 = vld [vmem:[%s6497 + $0x68] sm:$0xff]
    %v6512 = vld [vmem:[%s6497 + $0x70] sm:$0xff]
    %v6513 = vld [vmem:[%s6497 + $0x78] sm:$0xff]
    %6514 = vrot.lane.b32.xlu0 %v6032, 80
    %v6515 = vpop.permute.xlu0 %6514
    %6516 = vrot.lane.b32.xlu0 %v6033, 80
    %v6517 = vpop.permute.xlu0 %6516
    %6518 = vrot.lane.b32.xlu0 %v6034, 80
    %v6519 = vpop.permute.xlu0 %6518
    %6520 = vrot.lane.b32.xlu0 %v6035, 80
    %v6521 = vpop.permute.xlu0 %6520
    %6522 = vrot.lane.b32.xlu0 %v6036, 80
    %v6523 = vpop.permute.xlu0 %6522
    %v6529 = vsel %vm4812, %v6498, 0
    %v6532 = vsel %vm4812, %v6499, 0
    %v6535 = vsel %vm4812, %v6500, 0
    %v6538 = vsel %vm4812, %v6501, 0
    %v6541 = vsel %vm4812, %v6502, 0
    %v6544 = vsel %vm4812, %v6503, 0
    %v6547 = vsel %vm4812, %v6504, 0
    %v6550 = vsel %vm4812, %v6505, 0
    %v6553 = vsel %vm4812, %v6506, 0
    %v6556 = vsel %vm4812, %v6507, 0
    %v6559 = vsel %vm4812, %v6508, 0
    %v6562 = vsel %vm4812, %v6509, 0
    %v6565 = vsel %vm4812, %v6510, 0
    %v6568 = vsel %vm4812, %v6511, 0
    %v6571 = vsel %vm4812, %v6512, 0
    %v6574 = vsel %vm4812, %v6513, 0
    %v6576 = vsel %vm1536, %v6523, 0
    %6578 = vmatpush.msra.mxu0 0.0
    %6579 = vmatpush.msra.mxu0 0.0
    %6580 = vmatpush.msra.mxu0 0.0
    %6581 = vmatpush.msra.mxu0 0.0
    %6582 = vmatpush.msra.mxu0 0.0
    %6583 = vmatpush.msra.mxu0 0.0
    %6584 = vmatpush.msra.mxu0 0.0
    %6585 = vmatpush.msra.mxu0 0.0
    %6586 = vmatpush.msra.mxu0 0.0
    %6587 = vmatpush.msra.mxu0 0.0
    %6588 = vmatpush.msra.mxu0 0.0
    %6589 = vmatpush.msra.mxu0 %v6576
    %6590 = vmatpush.msra.mxu0 %v6521
    %6591 = vmatpush.msra.mxu0 %v6519
    %6592 = vmatpush.msra.mxu0 %v6517
    %6593 = vmatpush.msra.mxu0 %v6515
    %6594 = vmatmul.f32.gmra.mxu0 %v6529
    %v6595 = vpop.f32.mrf.mxu0
    %v6596 = vadd.f32 0.0, %v6595
    %6597 = vmatmul.f32.gmra.mxu0 %v6532
    %v6598 = vpop.f32.mrf.mxu0
    %v6599 = vadd.f32 0.0, %v6598
    %6600 = vmatmul.f32.gmra.mxu0 %v6535
    %v6601 = vpop.f32.mrf.mxu0
    %v6602 = vadd.f32 0.0, %v6601
    %6603 = vmatmul.f32.gmra.mxu0 %v6538
    %v6604 = vpop.f32.mrf.mxu0
    %v6605 = vadd.f32 0.0, %v6604
    %6606 = vmatmul.f32.gmra.mxu0 %v6541
    %v6607 = vpop.f32.mrf.mxu0
    %v6608 = vadd.f32 0.0, %v6607
    %6609 = vmatmul.f32.gmra.mxu0 %v6544
    %v6610 = vpop.f32.mrf.mxu0
    %v6611 = vadd.f32 0.0, %v6610
    %6612 = vmatmul.f32.gmra.mxu0 %v6547
    %v6613 = vpop.f32.mrf.mxu0
    %v6614 = vadd.f32 0.0, %v6613
    %6615 = vmatmul.f32.gmra.mxu0 %v6550
    %v6616 = vpop.f32.mrf.mxu0
    %v6617 = vadd.f32 0.0, %v6616
    %6618 = vmatmul.f32.gmra.mxu0 %v6553
    %v6619 = vpop.f32.mrf.mxu0
    %v6620 = vadd.f32 0.0, %v6619
    %6621 = vmatmul.f32.gmra.mxu0 %v6556
    %v6622 = vpop.f32.mrf.mxu0
    %v6623 = vadd.f32 0.0, %v6622
    %6624 = vmatmul.f32.gmra.mxu0 %v6559
    %v6625 = vpop.f32.mrf.mxu0
    %v6626 = vadd.f32 0.0, %v6625
    %6627 = vmatmul.f32.gmra.mxu0 %v6562
    %v6628 = vpop.f32.mrf.mxu0
    %v6629 = vadd.f32 0.0, %v6628
    %6630 = vmatmul.f32.gmra.mxu0 %v6565
    %v6631 = vpop.f32.mrf.mxu0
    %v6632 = vadd.f32 0.0, %v6631
    %6633 = vmatmul.f32.gmra.mxu0 %v6568
    %v6634 = vpop.f32.mrf.mxu0
    %v6635 = vadd.f32 0.0, %v6634
    %6636 = vmatmul.f32.gmra.mxu0 %v6571
    %v6637 = vpop.f32.mrf.mxu0
    %v6638 = vadd.f32 0.0, %v6637
    %6639 = vmatmul.f32.gmra.mxu0 %v6574
    %v6640 = vpop.f32.mrf.mxu0
    %v6641 = vadd.f32 0.0, %v6640
    %6642 = vdwg.mxu0
    %v6643 = vadd.f32 %v6481, %v6596
    %v6644 = vadd.f32 %v6482, %v6599
    %v6645 = vadd.f32 %v6483, %v6602
    %v6646 = vadd.f32 %v6484, %v6605
    %v6647 = vadd.f32 %v6485, %v6608
    %v6648 = vadd.f32 %v6486, %v6611
    %v6649 = vadd.f32 %v6487, %v6614
    %v6650 = vadd.f32 %v6488, %v6617
    %v6651 = vadd.f32 %v6489, %v6620
    %v6652 = vadd.f32 %v6490, %v6623
    %v6653 = vadd.f32 %v6491, %v6626
    %v6654 = vadd.f32 %v6492, %v6629
    %v6655 = vadd.f32 %v6493, %v6632
    %v6656 = vadd.f32 %v6494, %v6635
    %v6657 = vadd.f32 %v6495, %v6638
    %v6658 = vadd.f32 %v6496, %v6641
    %s6659 = scalar_lea.vmem %s6, 1536
    %v6660 = vld [vmem:[%s6659] sm:$0xff]
    %v6661 = vld [vmem:[%s6659 + $0x8] sm:$0xff]
    %v6662 = vld [vmem:[%s6659 + $0x10] sm:$0xff]
    %v6663 = vld [vmem:[%s6659 + $0x18] sm:$0xff]
    %v6664 = vld [vmem:[%s6659 + $0x20] sm:$0xff]
    %v6665 = vld [vmem:[%s6659 + $0x28] sm:$0xff]
    %v6666 = vld [vmem:[%s6659 + $0x30] sm:$0xff]
    %v6667 = vld [vmem:[%s6659 + $0x38] sm:$0xff]
    %v6668 = vld [vmem:[%s6659 + $0x40] sm:$0xff]
    %v6669 = vld [vmem:[%s6659 + $0x48] sm:$0xff]
    %v6670 = vld [vmem:[%s6659 + $0x50] sm:$0xff]
    %v6671 = vld [vmem:[%s6659 + $0x58] sm:$0xff]
    %v6672 = vld [vmem:[%s6659 + $0x60] sm:$0xff]
    %v6673 = vld [vmem:[%s6659 + $0x68] sm:$0xff]
    %v6674 = vld [vmem:[%s6659 + $0x70] sm:$0xff]
    %v6675 = vld [vmem:[%s6659 + $0x78] sm:$0xff]
    %6676 = vrot.lane.b32.xlu0 %v6032, 64
    %v6677 = vpop.permute.xlu0 %6676
    %6678 = vrot.lane.b32.xlu0 %v6033, 64
    %v6679 = vpop.permute.xlu0 %6678
    %6680 = vrot.lane.b32.xlu0 %v6034, 64
    %v6681 = vpop.permute.xlu0 %6680
    %6682 = vrot.lane.b32.xlu0 %v6035, 64
    %v6683 = vpop.permute.xlu0 %6682
    %6684 = vrot.lane.b32.xlu0 %v6036, 64
    %v6685 = vpop.permute.xlu0 %6684
    %v6691 = vsel %vm4812, %v6660, 0
    %v6694 = vsel %vm4812, %v6661, 0
    %v6697 = vsel %vm4812, %v6662, 0
    %v6700 = vsel %vm4812, %v6663, 0
    %v6703 = vsel %vm4812, %v6664, 0
    %v6706 = vsel %vm4812, %v6665, 0
    %v6709 = vsel %vm4812, %v6666, 0
    %v6712 = vsel %vm4812, %v6667, 0
    %v6715 = vsel %vm4812, %v6668, 0
    %v6718 = vsel %vm4812, %v6669, 0
    %v6721 = vsel %vm4812, %v6670, 0
    %v6724 = vsel %vm4812, %v6671, 0
    %v6727 = vsel %vm4812, %v6672, 0
    %v6730 = vsel %vm4812, %v6673, 0
    %v6733 = vsel %vm4812, %v6674, 0
    %v6736 = vsel %vm4812, %v6675, 0
    %v6738 = vsel %vm1536, %v6685, 0
    %6740 = vmatpush.msra.mxu0 0.0
    %6741 = vmatpush.msra.mxu0 0.0
    %6742 = vmatpush.msra.mxu0 0.0
    %6743 = vmatpush.msra.mxu0 0.0
    %6744 = vmatpush.msra.mxu0 0.0
    %6745 = vmatpush.msra.mxu0 0.0
    %6746 = vmatpush.msra.mxu0 0.0
    %6747 = vmatpush.msra.mxu0 0.0
    %6748 = vmatpush.msra.mxu0 0.0
    %6749 = vmatpush.msra.mxu0 0.0
    %6750 = vmatpush.msra.mxu0 0.0
    %6751 = vmatpush.msra.mxu0 %v6738
    %6752 = vmatpush.msra.mxu0 %v6683
    %6753 = vmatpush.msra.mxu0 %v6681
    %6754 = vmatpush.msra.mxu0 %v6679
    %6755 = vmatpush.msra.mxu0 %v6677
    %6756 = vmatmul.f32.gmra.mxu0 %v6691
    %v6757 = vpop.f32.mrf.mxu0
    %v6758 = vadd.f32 0.0, %v6757
    %6759 = vmatmul.f32.gmra.mxu0 %v6694
    %v6760 = vpop.f32.mrf.mxu0
    %v6761 = vadd.f32 0.0, %v6760
    %6762 = vmatmul.f32.gmra.mxu0 %v6697
    %v6763 = vpop.f32.mrf.mxu0
    %v6764 = vadd.f32 0.0, %v6763
    %6765 = vmatmul.f32.gmra.mxu0 %v6700
    %v6766 = vpop.f32.mrf.mxu0
    %v6767 = vadd.f32 0.0, %v6766
    %6768 = vmatmul.f32.gmra.mxu0 %v6703
    %v6769 = vpop.f32.mrf.mxu0
    %v6770 = vadd.f32 0.0, %v6769
    %6771 = vmatmul.f32.gmra.mxu0 %v6706
    %v6772 = vpop.f32.mrf.mxu0
    %v6773 = vadd.f32 0.0, %v6772
    %6774 = vmatmul.f32.gmra.mxu0 %v6709
    %v6775 = vpop.f32.mrf.mxu0
    %v6776 = vadd.f32 0.0, %v6775
    %6777 = vmatmul.f32.gmra.mxu0 %v6712
    %v6778 = vpop.f32.mrf.mxu0
    %v6779 = vadd.f32 0.0, %v6778
    %6780 = vmatmul.f32.gmra.mxu0 %v6715
    %v6781 = vpop.f32.mrf.mxu0
    %v6782 = vadd.f32 0.0, %v6781
    %6783 = vmatmul.f32.gmra.mxu0 %v6718
    %v6784 = vpop.f32.mrf.mxu0
    %v6785 = vadd.f32 0.0, %v6784
    %6786 = vmatmul.f32.gmra.mxu0 %v6721
    %v6787 = vpop.f32.mrf.mxu0
    %v6788 = vadd.f32 0.0, %v6787
    %6789 = vmatmul.f32.gmra.mxu0 %v6724
    %v6790 = vpop.f32.mrf.mxu0
    %v6791 = vadd.f32 0.0, %v6790
    %6792 = vmatmul.f32.gmra.mxu0 %v6727
    %v6793 = vpop.f32.mrf.mxu0
    %v6794 = vadd.f32 0.0, %v6793
    %6795 = vmatmul.f32.gmra.mxu0 %v6730
    %v6796 = vpop.f32.mrf.mxu0
    %v6797 = vadd.f32 0.0, %v6796
    %6798 = vmatmul.f32.gmra.mxu0 %v6733
    %v6799 = vpop.f32.mrf.mxu0
    %v6800 = vadd.f32 0.0, %v6799
    %6801 = vmatmul.f32.gmra.mxu0 %v6736
    %v6802 = vpop.f32.mrf.mxu0
    %v6803 = vadd.f32 0.0, %v6802
    %6804 = vdwg.mxu0
    %v6805 = vadd.f32 %v6643, %v6758
    %v6806 = vadd.f32 %v6644, %v6761
    %v6807 = vadd.f32 %v6645, %v6764
    %v6808 = vadd.f32 %v6646, %v6767
    %v6809 = vadd.f32 %v6647, %v6770
    %v6810 = vadd.f32 %v6648, %v6773
    %v6811 = vadd.f32 %v6649, %v6776
    %v6812 = vadd.f32 %v6650, %v6779
    %v6813 = vadd.f32 %v6651, %v6782
    %v6814 = vadd.f32 %v6652, %v6785
    %v6815 = vadd.f32 %v6653, %v6788
    %v6816 = vadd.f32 %v6654, %v6791
    %v6817 = vadd.f32 %v6655, %v6794
    %v6818 = vadd.f32 %v6656, %v6797
    %v6819 = vadd.f32 %v6657, %v6800
    %v6820 = vadd.f32 %v6658, %v6803
    %s6821 = scalar_lea.vmem %s6, 1664
    %v6822 = vld [vmem:[%s6821] sm:$0xff]
    %v6823 = vld [vmem:[%s6821 + $0x8] sm:$0xff]
    %v6824 = vld [vmem:[%s6821 + $0x10] sm:$0xff]
    %v6825 = vld [vmem:[%s6821 + $0x18] sm:$0xff]
    %v6826 = vld [vmem:[%s6821 + $0x20] sm:$0xff]
    %v6827 = vld [vmem:[%s6821 + $0x28] sm:$0xff]
    %v6828 = vld [vmem:[%s6821 + $0x30] sm:$0xff]
    %v6829 = vld [vmem:[%s6821 + $0x38] sm:$0xff]
    %v6830 = vld [vmem:[%s6821 + $0x40] sm:$0xff]
    %v6831 = vld [vmem:[%s6821 + $0x48] sm:$0xff]
    %v6832 = vld [vmem:[%s6821 + $0x50] sm:$0xff]
    %v6833 = vld [vmem:[%s6821 + $0x58] sm:$0xff]
    %v6834 = vld [vmem:[%s6821 + $0x60] sm:$0xff]
    %v6835 = vld [vmem:[%s6821 + $0x68] sm:$0xff]
    %v6836 = vld [vmem:[%s6821 + $0x70] sm:$0xff]
    %v6837 = vld [vmem:[%s6821 + $0x78] sm:$0xff]
    %6838 = vrot.lane.b32.xlu0 %v6032, 48
    %v6839 = vpop.permute.xlu0 %6838
    %6840 = vrot.lane.b32.xlu0 %v6033, 48
    %v6841 = vpop.permute.xlu0 %6840
    %6842 = vrot.lane.b32.xlu0 %v6034, 48
    %v6843 = vpop.permute.xlu0 %6842
    %6844 = vrot.lane.b32.xlu0 %v6035, 48
    %v6845 = vpop.permute.xlu0 %6844
    %6846 = vrot.lane.b32.xlu0 %v6036, 48
    %v6847 = vpop.permute.xlu0 %6846
    %v6853 = vsel %vm4812, %v6822, 0
    %v6856 = vsel %vm4812, %v6823, 0
    %v6859 = vsel %vm4812, %v6824, 0
    %v6862 = vsel %vm4812, %v6825, 0
    %v6865 = vsel %vm4812, %v6826, 0
    %v6868 = vsel %vm4812, %v6827, 0
    %v6871 = vsel %vm4812, %v6828, 0
    %v6874 = vsel %vm4812, %v6829, 0
    %v6877 = vsel %vm4812, %v6830, 0
    %v6880 = vsel %vm4812, %v6831, 0
    %v6883 = vsel %vm4812, %v6832, 0
    %v6886 = vsel %vm4812, %v6833, 0
    %v6889 = vsel %vm4812, %v6834, 0
    %v6892 = vsel %vm4812, %v6835, 0
    %v6895 = vsel %vm4812, %v6836, 0
    %v6898 = vsel %vm4812, %v6837, 0
    %v6900 = vsel %vm1536, %v6847, 0
    %6902 = vmatpush.msra.mxu0 0.0
    %6903 = vmatpush.msra.mxu0 0.0
    %6904 = vmatpush.msra.mxu0 0.0
    %6905 = vmatpush.msra.mxu0 0.0
    %6906 = vmatpush.msra.mxu0 0.0
    %6907 = vmatpush.msra.mxu0 0.0
    %6908 = vmatpush.msra.mxu0 0.0
    %6909 = vmatpush.msra.mxu0 0.0
    %6910 = vmatpush.msra.mxu0 0.0
    %6911 = vmatpush.msra.mxu0 0.0
    %6912 = vmatpush.msra.mxu0 0.0
    %6913 = vmatpush.msra.mxu0 %v6900
    %6914 = vmatpush.msra.mxu0 %v6845
    %6915 = vmatpush.msra.mxu0 %v6843
    %6916 = vmatpush.msra.mxu0 %v6841
    %6917 = vmatpush.msra.mxu0 %v6839
    %6918 = vmatmul.f32.gmra.mxu0 %v6853
    %v6919 = vpop.f32.mrf.mxu0
    %v6920 = vadd.f32 0.0, %v6919
    %6921 = vmatmul.f32.gmra.mxu0 %v6856
    %v6922 = vpop.f32.mrf.mxu0
    %v6923 = vadd.f32 0.0, %v6922
    %6924 = vmatmul.f32.gmra.mxu0 %v6859
    %v6925 = vpop.f32.mrf.mxu0
    %v6926 = vadd.f32 0.0, %v6925
    %6927 = vmatmul.f32.gmra.mxu0 %v6862
    %v6928 = vpop.f32.mrf.mxu0
    %v6929 = vadd.f32 0.0, %v6928
    %6930 = vmatmul.f32.gmra.mxu0 %v6865
    %v6931 = vpop.f32.mrf.mxu0
    %v6932 = vadd.f32 0.0, %v6931
    %6933 = vmatmul.f32.gmra.mxu0 %v6868
    %v6934 = vpop.f32.mrf.mxu0
    %v6935 = vadd.f32 0.0, %v6934
    %6936 = vmatmul.f32.gmra.mxu0 %v6871
    %v6937 = vpop.f32.mrf.mxu0
    %v6938 = vadd.f32 0.0, %v6937
    %6939 = vmatmul.f32.gmra.mxu0 %v6874
    %v6940 = vpop.f32.mrf.mxu0
    %v6941 = vadd.f32 0.0, %v6940
    %6942 = vmatmul.f32.gmra.mxu0 %v6877
    %v6943 = vpop.f32.mrf.mxu0
    %v6944 = vadd.f32 0.0, %v6943
    %6945 = vmatmul.f32.gmra.mxu0 %v6880
    %v6946 = vpop.f32.mrf.mxu0
    %v6947 = vadd.f32 0.0, %v6946
    %6948 = vmatmul.f32.gmra.mxu0 %v6883
    %v6949 = vpop.f32.mrf.mxu0
    %v6950 = vadd.f32 0.0, %v6949
    %6951 = vmatmul.f32.gmra.mxu0 %v6886
    %v6952 = vpop.f32.mrf.mxu0
    %v6953 = vadd.f32 0.0, %v6952
    %6954 = vmatmul.f32.gmra.mxu0 %v6889
    %v6955 = vpop.f32.mrf.mxu0
    %v6956 = vadd.f32 0.0, %v6955
    %6957 = vmatmul.f32.gmra.mxu0 %v6892
    %v6958 = vpop.f32.mrf.mxu0
    %v6959 = vadd.f32 0.0, %v6958
    %6960 = vmatmul.f32.gmra.mxu0 %v6895
    %v6961 = vpop.f32.mrf.mxu0
    %v6962 = vadd.f32 0.0, %v6961
    %6963 = vmatmul.f32.gmra.mxu0 %v6898
    %v6964 = vpop.f32.mrf.mxu0
    %v6965 = vadd.f32 0.0, %v6964
    %6966 = vdwg.mxu0
    %v6967 = vadd.f32 %v6805, %v6920
    %v6968 = vadd.f32 %v6806, %v6923
    %v6969 = vadd.f32 %v6807, %v6926
    %v6970 = vadd.f32 %v6808, %v6929
    %v6971 = vadd.f32 %v6809, %v6932
    %v6972 = vadd.f32 %v6810, %v6935
    %v6973 = vadd.f32 %v6811, %v6938
    %v6974 = vadd.f32 %v6812, %v6941
    %v6975 = vadd.f32 %v6813, %v6944
    %v6976 = vadd.f32 %v6814, %v6947
    %v6977 = vadd.f32 %v6815, %v6950
    %v6978 = vadd.f32 %v6816, %v6953
    %v6979 = vadd.f32 %v6817, %v6956
    %v6980 = vadd.f32 %v6818, %v6959
    %v6981 = vadd.f32 %v6819, %v6962
    %v6982 = vadd.f32 %v6820, %v6965
    %s6983 = scalar_lea.vmem %s6, 1792
    %v6984 = vld [vmem:[%s6983] sm:$0xff]
    %v6985 = vld [vmem:[%s6983 + $0x8] sm:$0xff]
    %v6986 = vld [vmem:[%s6983 + $0x10] sm:$0xff]
    %v6987 = vld [vmem:[%s6983 + $0x18] sm:$0xff]
    %v6988 = vld [vmem:[%s6983 + $0x20] sm:$0xff]
    %v6989 = vld [vmem:[%s6983 + $0x28] sm:$0xff]
    %v6990 = vld [vmem:[%s6983 + $0x30] sm:$0xff]
    %v6991 = vld [vmem:[%s6983 + $0x38] sm:$0xff]
    %v6992 = vld [vmem:[%s6983 + $0x40] sm:$0xff]
    %v6993 = vld [vmem:[%s6983 + $0x48] sm:$0xff]
    %v6994 = vld [vmem:[%s6983 + $0x50] sm:$0xff]
    %v6995 = vld [vmem:[%s6983 + $0x58] sm:$0xff]
    %v6996 = vld [vmem:[%s6983 + $0x60] sm:$0xff]
    %v6997 = vld [vmem:[%s6983 + $0x68] sm:$0xff]
    %v6998 = vld [vmem:[%s6983 + $0x70] sm:$0xff]
    %v6999 = vld [vmem:[%s6983 + $0x78] sm:$0xff]
    %7000 = vrot.lane.b32.xlu0 %v6032, 32
    %v7001 = vpop.permute.xlu0 %7000
    %7002 = vrot.lane.b32.xlu0 %v6033, 32
    %v7003 = vpop.permute.xlu0 %7002
    %7004 = vrot.lane.b32.xlu0 %v6034, 32
    %v7005 = vpop.permute.xlu0 %7004
    %7006 = vrot.lane.b32.xlu0 %v6035, 32
    %v7007 = vpop.permute.xlu0 %7006
    %7008 = vrot.lane.b32.xlu0 %v6036, 32
    %v7009 = vpop.permute.xlu0 %7008
    %v7015 = vsel %vm4812, %v6984, 0
    %v7018 = vsel %vm4812, %v6985, 0
    %v7021 = vsel %vm4812, %v6986, 0
    %v7024 = vsel %vm4812, %v6987, 0
    %v7027 = vsel %vm4812, %v6988, 0
    %v7030 = vsel %vm4812, %v6989, 0
    %v7033 = vsel %vm4812, %v6990, 0
    %v7036 = vsel %vm4812, %v6991, 0
    %v7039 = vsel %vm4812, %v6992, 0
    %v7042 = vsel %vm4812, %v6993, 0
    %v7045 = vsel %vm4812, %v6994, 0
    %v7048 = vsel %vm4812, %v6995, 0
    %v7051 = vsel %vm4812, %v6996, 0
    %v7054 = vsel %vm4812, %v6997, 0
    %v7057 = vsel %vm4812, %v6998, 0
    %v7060 = vsel %vm4812, %v6999, 0
    %v7062 = vsel %vm1536, %v7009, 0
    %7064 = vmatpush.msra.mxu0 0.0
    %7065 = vmatpush.msra.mxu0 0.0
    %7066 = vmatpush.msra.mxu0 0.0
    %7067 = vmatpush.msra.mxu0 0.0
    %7068 = vmatpush.msra.mxu0 0.0
    %7069 = vmatpush.msra.mxu0 0.0
    %7070 = vmatpush.msra.mxu0 0.0
    %7071 = vmatpush.msra.mxu0 0.0
    %7072 = vmatpush.msra.mxu0 0.0
    %7073 = vmatpush.msra.mxu0 0.0
    %7074 = vmatpush.msra.mxu0 0.0
    %7075 = vmatpush.msra.mxu0 %v7062
    %7076 = vmatpush.msra.mxu0 %v7007
    %7077 = vmatpush.msra.mxu0 %v7005
    %7078 = vmatpush.msra.mxu0 %v7003
    %7079 = vmatpush.msra.mxu0 %v7001
    %7080 = vmatmul.f32.gmra.mxu0 %v7015
    %v7081 = vpop.f32.mrf.mxu0
    %v7082 = vadd.f32 0.0, %v7081
    %7083 = vmatmul.f32.gmra.mxu0 %v7018
    %v7084 = vpop.f32.mrf.mxu0
    %v7085 = vadd.f32 0.0, %v7084
    %7086 = vmatmul.f32.gmra.mxu0 %v7021
    %v7087 = vpop.f32.mrf.mxu0
    %v7088 = vadd.f32 0.0, %v7087
    %7089 = vmatmul.f32.gmra.mxu0 %v7024
    %v7090 = vpop.f32.mrf.mxu0
    %v7091 = vadd.f32 0.0, %v7090
    %7092 = vmatmul.f32.gmra.mxu0 %v7027
    %v7093 = vpop.f32.mrf.mxu0
    %v7094 = vadd.f32 0.0, %v7093
    %7095 = vmatmul.f32.gmra.mxu0 %v7030
    %v7096 = vpop.f32.mrf.mxu0
    %v7097 = vadd.f32 0.0, %v7096
    %7098 = vmatmul.f32.gmra.mxu0 %v7033
    %v7099 = vpop.f32.mrf.mxu0
    %v7100 = vadd.f32 0.0, %v7099
    %7101 = vmatmul.f32.gmra.mxu0 %v7036
    %v7102 = vpop.f32.mrf.mxu0
    %v7103 = vadd.f32 0.0, %v7102
    %7104 = vmatmul.f32.gmra.mxu0 %v7039
    %v7105 = vpop.f32.mrf.mxu0
    %v7106 = vadd.f32 0.0, %v7105
    %7107 = vmatmul.f32.gmra.mxu0 %v7042
    %v7108 = vpop.f32.mrf.mxu0
    %v7109 = vadd.f32 0.0, %v7108
    %7110 = vmatmul.f32.gmra.mxu0 %v7045
    %v7111 = vpop.f32.mrf.mxu0
    %v7112 = vadd.f32 0.0, %v7111
    %7113 = vmatmul.f32.gmra.mxu0 %v7048
    %v7114 = vpop.f32.mrf.mxu0
    %v7115 = vadd.f32 0.0, %v7114
    %7116 = vmatmul.f32.gmra.mxu0 %v7051
    %v7117 = vpop.f32.mrf.mxu0
    %v7118 = vadd.f32 0.0, %v7117
    %7119 = vmatmul.f32.gmra.mxu0 %v7054
    %v7120 = vpop.f32.mrf.mxu0
    %v7121 = vadd.f32 0.0, %v7120
    %7122 = vmatmul.f32.gmra.mxu0 %v7057
    %v7123 = vpop.f32.mrf.mxu0
    %v7124 = vadd.f32 0.0, %v7123
    %7125 = vmatmul.f32.gmra.mxu0 %v7060
    %v7126 = vpop.f32.mrf.mxu0
    %v7127 = vadd.f32 0.0, %v7126
    %7128 = vdwg.mxu0
    %v7129 = vadd.f32 %v6967, %v7082
    %v7130 = vadd.f32 %v6968, %v7085
    %v7131 = vadd.f32 %v6969, %v7088
    %v7132 = vadd.f32 %v6970, %v7091
    %v7133 = vadd.f32 %v6971, %v7094
    %v7134 = vadd.f32 %v6972, %v7097
    %v7135 = vadd.f32 %v6973, %v7100
    %v7136 = vadd.f32 %v6974, %v7103
    %v7137 = vadd.f32 %v6975, %v7106
    %v7138 = vadd.f32 %v6976, %v7109
    %v7139 = vadd.f32 %v6977, %v7112
    %v7140 = vadd.f32 %v6978, %v7115
    %v7141 = vadd.f32 %v6979, %v7118
    %v7142 = vadd.f32 %v6980, %v7121
    %v7143 = vadd.f32 %v6981, %v7124
    %v7144 = vadd.f32 %v6982, %v7127
    %s7145 = scalar_lea.vmem %s6, 1920
    %v7146 = vld [vmem:[%s7145] sm:$0xff]
    %v7147 = vld [vmem:[%s7145 + $0x8] sm:$0xff]
    %v7148 = vld [vmem:[%s7145 + $0x10] sm:$0xff]
    %v7149 = vld [vmem:[%s7145 + $0x18] sm:$0xff]
    %v7150 = vld [vmem:[%s7145 + $0x20] sm:$0xff]
    %v7151 = vld [vmem:[%s7145 + $0x28] sm:$0xff]
    %v7152 = vld [vmem:[%s7145 + $0x30] sm:$0xff]
    %v7153 = vld [vmem:[%s7145 + $0x38] sm:$0xff]
    %v7154 = vld [vmem:[%s7145 + $0x40] sm:$0xff]
    %v7155 = vld [vmem:[%s7145 + $0x48] sm:$0xff]
    %v7156 = vld [vmem:[%s7145 + $0x50] sm:$0xff]
    %v7157 = vld [vmem:[%s7145 + $0x58] sm:$0xff]
    %v7158 = vld [vmem:[%s7145 + $0x60] sm:$0xff]
    %v7159 = vld [vmem:[%s7145 + $0x68] sm:$0xff]
    %v7160 = vld [vmem:[%s7145 + $0x70] sm:$0xff]
    %v7161 = vld [vmem:[%s7145 + $0x78] sm:$0xff]
    %7162 = vrot.lane.b32.xlu0 %v6032, 16
    %v7163 = vpop.permute.xlu0 %7162
    %7164 = vrot.lane.b32.xlu0 %v6033, 16
    %v7165 = vpop.permute.xlu0 %7164
    %7166 = vrot.lane.b32.xlu0 %v6034, 16
    %v7167 = vpop.permute.xlu0 %7166
    %7168 = vrot.lane.b32.xlu0 %v6035, 16
    %v7169 = vpop.permute.xlu0 %7168
    %7170 = vrot.lane.b32.xlu0 %v6036, 16
    %v7171 = vpop.permute.xlu0 %7170
    %v7177 = vsel %vm4812, %v7146, 0
    %v7180 = vsel %vm4812, %v7147, 0
    %v7183 = vsel %vm4812, %v7148, 0
    %v7186 = vsel %vm4812, %v7149, 0
    %v7189 = vsel %vm4812, %v7150, 0
    %v7192 = vsel %vm4812, %v7151, 0
    %v7195 = vsel %vm4812, %v7152, 0
    %v7198 = vsel %vm4812, %v7153, 0
    %v7201 = vsel %vm4812, %v7154, 0
    %v7204 = vsel %vm4812, %v7155, 0
    %v7207 = vsel %vm4812, %v7156, 0
    %v7210 = vsel %vm4812, %v7157, 0
    %v7213 = vsel %vm4812, %v7158, 0
    %v7216 = vsel %vm4812, %v7159, 0
    %v7219 = vsel %vm4812, %v7160, 0
    %v7222 = vsel %vm4812, %v7161, 0
    %v7224 = vsel %vm1536, %v7171, 0
    %7226 = vmatpush.msra.mxu0 0.0
    %7227 = vmatpush.msra.mxu0 0.0
    %7228 = vmatpush.msra.mxu0 0.0
    %7229 = vmatpush.msra.mxu0 0.0
    %7230 = vmatpush.msra.mxu0 0.0
    %7231 = vmatpush.msra.mxu0 0.0
    %7232 = vmatpush.msra.mxu0 0.0
    %7233 = vmatpush.msra.mxu0 0.0
    %7234 = vmatpush.msra.mxu0 0.0
    %7235 = vmatpush.msra.mxu0 0.0
    %7236 = vmatpush.msra.mxu0 0.0
    %7237 = vmatpush.msra.mxu0 %v7224
    %7238 = vmatpush.msra.mxu0 %v7169
    %7239 = vmatpush.msra.mxu0 %v7167
    %7240 = vmatpush.msra.mxu0 %v7165
    %7241 = vmatpush.msra.mxu0 %v7163
    %7242 = vmatmul.f32.gmra.mxu0 %v7177
    %v7243 = vpop.f32.mrf.mxu0
    %v7244 = vadd.f32 0.0, %v7243
    %7245 = vmatmul.f32.gmra.mxu0 %v7180
    %v7246 = vpop.f32.mrf.mxu0
    %v7247 = vadd.f32 0.0, %v7246
    %7248 = vmatmul.f32.gmra.mxu0 %v7183
    %v7249 = vpop.f32.mrf.mxu0
    %v7250 = vadd.f32 0.0, %v7249
    %7251 = vmatmul.f32.gmra.mxu0 %v7186
    %v7252 = vpop.f32.mrf.mxu0
    %v7253 = vadd.f32 0.0, %v7252
    %7254 = vmatmul.f32.gmra.mxu0 %v7189
    %v7255 = vpop.f32.mrf.mxu0
    %v7256 = vadd.f32 0.0, %v7255
    %7257 = vmatmul.f32.gmra.mxu0 %v7192
    %v7258 = vpop.f32.mrf.mxu0
    %v7259 = vadd.f32 0.0, %v7258
    %7260 = vmatmul.f32.gmra.mxu0 %v7195
    %v7261 = vpop.f32.mrf.mxu0
    %v7262 = vadd.f32 0.0, %v7261
    %7263 = vmatmul.f32.gmra.mxu0 %v7198
    %v7264 = vpop.f32.mrf.mxu0
    %v7265 = vadd.f32 0.0, %v7264
    %7266 = vmatmul.f32.gmra.mxu0 %v7201
    %v7267 = vpop.f32.mrf.mxu0
    %v7268 = vadd.f32 0.0, %v7267
    %7269 = vmatmul.f32.gmra.mxu0 %v7204
    %v7270 = vpop.f32.mrf.mxu0
    %v7271 = vadd.f32 0.0, %v7270
    %7272 = vmatmul.f32.gmra.mxu0 %v7207
    %v7273 = vpop.f32.mrf.mxu0
    %v7274 = vadd.f32 0.0, %v7273
    %7275 = vmatmul.f32.gmra.mxu0 %v7210
    %v7276 = vpop.f32.mrf.mxu0
    %v7277 = vadd.f32 0.0, %v7276
    %7278 = vmatmul.f32.gmra.mxu0 %v7213
    %v7279 = vpop.f32.mrf.mxu0
    %v7280 = vadd.f32 0.0, %v7279
    %7281 = vmatmul.f32.gmra.mxu0 %v7216
    %v7282 = vpop.f32.mrf.mxu0
    %v7283 = vadd.f32 0.0, %v7282
    %7284 = vmatmul.f32.gmra.mxu0 %v7219
    %v7285 = vpop.f32.mrf.mxu0
    %v7286 = vadd.f32 0.0, %v7285
    %7287 = vmatmul.f32.gmra.mxu0 %v7222
    %v7288 = vpop.f32.mrf.mxu0
    %v7289 = vadd.f32 0.0, %v7288
    %7290 = vdwg.mxu0
    %v7291 = vadd.f32 %v7129, %v7244
    %v7292 = vadd.f32 %v7130, %v7247
    %v7293 = vadd.f32 %v7131, %v7250
    %v7294 = vadd.f32 %v7132, %v7253
    %v7295 = vadd.f32 %v7133, %v7256
    %v7296 = vadd.f32 %v7134, %v7259
    %v7297 = vadd.f32 %v7135, %v7262
    %v7298 = vadd.f32 %v7136, %v7265
    %v7299 = vadd.f32 %v7137, %v7268
    %v7300 = vadd.f32 %v7138, %v7271
    %v7301 = vadd.f32 %v7139, %v7274
    %v7302 = vadd.f32 %v7140, %v7277
    %v7303 = vadd.f32 %v7141, %v7280
    %v7304 = vadd.f32 %v7142, %v7283
    %v7305 = vadd.f32 %v7143, %v7286
    %v7306 = vadd.f32 %v7144, %v7289
    %v7307 = vld [vmem:[%s7] sm:$0xff]
    %v7308 = vld [vmem:[%s7 + $0x8] sm:$0xff]
    %v7309 = vld [vmem:[%s8] sm:$0xff]
    %v7310 = vld [vmem:[%s8 + $0x8] sm:$0xff]
    %vm7311 = vcmask 130048
    %v7313 = vsel %vm7311, %v7307, 0
    %v7316 = vsel %vm7311, %v7308, 0
    %v7319 = vsel %vm7311, %v7291, 0
    %v7322 = vsel %vm7311, %v7292, 0
    %v7325 = vsel %vm7311, %v7293, 0
    %v7328 = vsel %vm7311, %v7294, 0
    %v7331 = vsel %vm7311, %v7295, 0
    %v7334 = vsel %vm7311, %v7296, 0
    %v7337 = vsel %vm7311, %v7297, 0
    %v7340 = vsel %vm7311, %v7298, 0
    %v7343 = vsel %vm7311, %v7299, 0
    %v7346 = vsel %vm7311, %v7300, 0
    %v7349 = vsel %vm7311, %v7301, 0
    %v7352 = vsel %vm7311, %v7302, 0
    %v7355 = vsel %vm7311, %v7303, 0
    %v7358 = vsel %vm7311, %v7304, 0
    %v7361 = vsel %vm7311, %v7305, 0
    %v7364 = vsel %vm7311, %v7306, 0
    %7366 = vmatpush.xpose.msra.mxu0 %v7364
    %7367 = vmatpush.xpose.msra.mxu0 %v7361
    %7368 = vmatpush.xpose.msra.mxu0 %v7358
    %7369 = vmatpush.xpose.msra.mxu0 %v7355
    %7370 = vmatpush.xpose.msra.mxu0 %v7352
    %7371 = vmatpush.xpose.msra.mxu0 %v7349
    %7372 = vmatpush.xpose.msra.mxu0 %v7346
    %7373 = vmatpush.xpose.msra.mxu0 %v7343
    %7374 = vmatpush.xpose.msra.mxu0 %v7340
    %7375 = vmatpush.xpose.msra.mxu0 %v7337
    %7376 = vmatpush.xpose.msra.mxu0 %v7334
    %7377 = vmatpush.xpose.msra.mxu0 %v7331
    %7378 = vmatpush.xpose.msra.mxu0 %v7328
    %7379 = vmatpush.xpose.msra.mxu0 %v7325
    %7380 = vmatpush.xpose.msra.mxu0 %v7322
    %7381 = vmatpush.xpose.msra.mxu0 %v7319
    %7382 = vmatmul.f32.gmra.mxu0 %v7313
    %v7383 = vpop.f32.mrf.mxu0
    %v7384 = vadd.f32 %v7309, %v7383
    %7385 = vmatmul.f32.gmra.mxu0 %v7316
    %v7386 = vpop.f32.mrf.mxu0
    %v7387 = vadd.f32 %v7310, %v7386
    %7388 = vdwg.mxu0
    %7389 = vst [vmem:[#allocation4] sm:$0xff] %v7384
    %7390 = vst [vmem:[#allocation4 + $0x8] sm:$0xff] %v7387
    %v7391 = vld [vmem:[%s9] sm:$0xff]
    %v7392 = vld [vmem:[%s9 + $0x8] sm:$0xff]
    %v7393 = vld [vmem:[%s9 + $0x10] sm:$0xff]
    %v7394 = vld [vmem:[%s9 + $0x18] sm:$0xff]
    %v7395 = vld [vmem:[%s10] sm:$0x1]
    %v7396 = vld [vmem:[#allocation4] sm:$0x3]
    %v7398 = vperm.slane %v7395, 0
    %vm7400 = vcmask 261120
    %v7402 = vsel %vm7400, 0.0, 0
    %7404 = vmatpush.msra.mxu0 0.0
    %7405 = vmatpush.msra.mxu0 0.0
    %7406 = vmatpush.msra.mxu0 0.0
    %7407 = vmatpush.msra.mxu0 0.0
    %7408 = vmatpush.msra.mxu0 0.0
    %7409 = vmatpush.msra.mxu0 0.0
    %7410 = vmatpush.msra.mxu0 0.0
    %7411 = vmatpush.msra.mxu0 0.0
    %7412 = vmatpush.msra.mxu0 0.0
    %7413 = vmatpush.msra.mxu0 0.0
    %7414 = vmatpush.msra.mxu0 0.0
    %7415 = vmatpush.msra.mxu0 0.0
    %7416 = vmatpush.msra.mxu0 %v7394
    %7417 = vmatpush.msra.mxu0 %v7393
    %7418 = vmatpush.msra.mxu0 %v7392
    %7419 = vmatpush.msra.mxu0 %v7391
    %7420 = vmatmul.f32.gmra.mxu0 %v7402
    %v7421 = vpop.f32.mrf.mxu0
    %v7422 = vadd.f32 %v7398, %v7421
    %7423 = vdwg.mxu0
    %v7424 = vadd.f32 %v7396, %v7422
    %v7425 = vxor.u32 %v7424, 2147483648
    %v7426 = vmul.f32 %v7425, 1.442695
    %v7427 = vpow.pop %v7426
    %v7428 = vadd.f32 %v7427, 1.0
    %v7429 = vrcp.pop %v7428
    %v7430 = vmul.f32 %v7428, %v7429
    %v7431 = vsub.f32 1.0, %v7430
    %v7432 = vmul.f32 %v7429, %v7431
    %v7433 = vadd.f32 %v7429, %v7432
    %vm7434 = vweird.f32 %v7428
    %vm7435 = vweird.f32 %v7429
    %vm7436 = vmor %vm7434, %vm7435
    %v7437 = vsel %vm7436, %v7429, %v7433
    %v7438 = vand.u32 2147483647, %v7428
    %vm7439 = vcmp.eq.f32.partialorder %v7438, 8.507059e+37
    %v7440 = vand.u32 %v7428, 2147483648
    %v7441 = vor.u32 1.1754944e-38, %v7440
    %v7442 = vsel %vm7439, %v7441, %v7437
    %v7443 = vmul.f32 1.0, %v7442
    %7445 = vrot.lane.b32.xlu0 %v7422, 64
    %v7446 = vpop.permute.xlu0 %7445
    %v7448 = vmul.f32 %v7443, %v7446
    %7450 = vrot.lane.b32.xlu0 %v7448, 64
    %v7451 = vpop.permute.xlu0 %7450
    %v7453 = vadd.f32 %v7396, %v7451
    %v7454 = vtanh.pop %v7453
    %v7455 = vsub.f32 1.0, %v7443
    %7457 = vrot.lane.b32.xlu0 %v7454, 96
    %v7458 = vpop.permute.xlu0 %7457
    %v7460 = vmul.f32 %v7455, %v7458
    %v7461 = vmul.f32 %v7443, 0.0
    %v7462 = vadd.f32 %v7460, %v7461
    %v7463 = vld [vmem:[#allocation4 + $0x2] sm:$0x3]
    %7465 = vrot.lane.b32.xlu0 %v7462, 96
    %v7466 = vpop.permute.xlu0 %7465
    %v7467 = vsel %vm7400, %v7466, 0
    %7469 = vmatpush.msra.mxu0 0.0
    %7470 = vmatpush.msra.mxu0 0.0
    %7471 = vmatpush.msra.mxu0 0.0
    %7472 = vmatpush.msra.mxu0 0.0
    %7473 = vmatpush.msra.mxu0 0.0
    %7474 = vmatpush.msra.mxu0 0.0
    %7475 = vmatpush.msra.mxu0 0.0
    %7476 = vmatpush.msra.mxu0 0.0
    %7477 = vmatpush.msra.mxu0 0.0
    %7478 = vmatpush.msra.mxu0 0.0
    %7479 = vmatpush.msra.mxu0 0.0
    %7480 = vmatpush.msra.mxu0 0.0
    %7481 = vmatpush.msra.mxu0 %v7394
    %7482 = vmatpush.msra.mxu0 %v7393
    %7483 = vmatpush.msra.mxu0 %v7392
    %7484 = vmatpush.msra.mxu0 %v7391
    %7485 = vmatmul.f32.gmra.mxu0 %v7467
    %v7486 = vpop.f32.mrf.mxu0
    %v7487 = vadd.f32 %v7398, %v7486
    %7488 = vdwg.mxu0
    %v7489 = vadd.f32 %v7463, %v7487
    %v7490 = vxor.u32 %v7489, 2147483648
    %v7491 = vmul.f32 %v7490, 1.442695
    %v7492 = vpow.pop %v7491
    %v7493 = vadd.f32 %v7492, 1.0
    %v7494 = vrcp.pop %v7493
    %v7495 = vmul.f32 %v7493, %v7494
    %v7496 = vsub.f32 1.0, %v7495
    %v7497 = vmul.f32 %v7494, %v7496
    %v7498 = vadd.f32 %v7494, %v7497
    %vm7499 = vweird.f32 %v7493
    %vm7500 = vweird.f32 %v7494
    %vm7501 = vmor %vm7499, %vm7500
    %v7502 = vsel %vm7501, %v7494, %v7498
    %v7503 = vand.u32 2147483647, %v7493
    %vm7504 = vcmp.eq.f32.partialorder %v7503, 8.507059e+37
    %v7505 = vand.u32 %v7493, 2147483648
    %v7506 = vor.u32 1.1754944e-38, %v7505
    %v7507 = vsel %vm7504, %v7506, %v7502
    %v7508 = vmul.f32 1.0, %v7507
    %7510 = vrot.lane.b32.xlu0 %v7487, 64
    %v7511 = vpop.permute.xlu0 %7510
    %v7513 = vmul.f32 %v7508, %v7511
    %7515 = vrot.lane.b32.xlu0 %v7513, 64
    %v7516 = vpop.permute.xlu0 %7515
    %v7518 = vadd.f32 %v7463, %v7516
    %v7519 = vtanh.pop %v7518
    %v7520 = vsub.f32 1.0, %v7508
    %7522 = vrot.lane.b32.xlu0 %v7519, 96
    %v7523 = vpop.permute.xlu0 %7522
    %v7525 = vmul.f32 %v7520, %v7523
    %v7526 = vmul.f32 %v7508, %v7462
    %v7527 = vadd.f32 %v7525, %v7526
    %v7528 = vld [vmem:[#allocation4 + $0x4] sm:$0x3]
    %7530 = vrot.lane.b32.xlu0 %v7527, 96
    %v7531 = vpop.permute.xlu0 %7530
    %v7532 = vsel %vm7400, %v7531, 0
    %7534 = vmatpush.msra.mxu0 0.0
    %7535 = vmatpush.msra.mxu0 0.0
    %7536 = vmatpush.msra.mxu0 0.0
    %7537 = vmatpush.msra.mxu0 0.0
    %7538 = vmatpush.msra.mxu0 0.0
    %7539 = vmatpush.msra.mxu0 0.0
    %7540 = vmatpush.msra.mxu0 0.0
    %7541 = vmatpush.msra.mxu0 0.0
    %7542 = vmatpush.msra.mxu0 0.0
    %7543 = vmatpush.msra.mxu0 0.0
    %7544 = vmatpush.msra.mxu0 0.0
    %7545 = vmatpush.msra.mxu0 0.0
    %7546 = vmatpush.msra.mxu0 %v7394
    %7547 = vmatpush.msra.mxu0 %v7393
    %7548 = vmatpush.msra.mxu0 %v7392
    %7549 = vmatpush.msra.mxu0 %v7391
    %7550 = vmatmul.f32.gmra.mxu0 %v7532
    %v7551 = vpop.f32.mrf.mxu0
    %v7552 = vadd.f32 %v7398, %v7551
    %7553 = vdwg.mxu0
    %v7554 = vadd.f32 %v7528, %v7552
    %v7555 = vxor.u32 %v7554, 2147483648
    %v7556 = vmul.f32 %v7555, 1.442695
    %v7557 = vpow.pop %v7556
    %v7558 = vadd.f32 %v7557, 1.0
    %v7559 = vrcp.pop %v7558
    %v7560 = vmul.f32 %v7558, %v7559
    %v7561 = vsub.f32 1.0, %v7560
    %v7562 = vmul.f32 %v7559, %v7561
    %v7563 = vadd.f32 %v7559, %v7562
    %vm7564 = vweird.f32 %v7558
    %vm7565 = vweird.f32 %v7559
    %vm7566 = vmor %vm7564, %vm7565
    %v7567 = vsel %vm7566, %v7559, %v7563
    %v7568 = vand.u32 2147483647, %v7558
    %vm7569 = vcmp.eq.f32.partialorder %v7568, 8.507059e+37
    %v7570 = vand.u32 %v7558, 2147483648
    %v7571 = vor.u32 1.1754944e-38, %v7570
    %v7572 = vsel %vm7569, %v7571, %v7567
    %v7573 = vmul.f32 1.0, %v7572
    %7575 = vrot.lane.b32.xlu0 %v7552, 64
    %v7576 = vpop.permute.xlu0 %7575
    %v7578 = vmul.f32 %v7573, %v7576
    %7580 = vrot.lane.b32.xlu0 %v7578, 64
    %v7581 = vpop.permute.xlu0 %7580
    %v7583 = vadd.f32 %v7528, %v7581
    %v7584 = vtanh.pop %v7583
    %v7585 = vsub.f32 1.0, %v7573
    %7587 = vrot.lane.b32.xlu0 %v7584, 96
    %v7588 = vpop.permute.xlu0 %7587
    %v7590 = vmul.f32 %v7585, %v7588
    %v7591 = vmul.f32 %v7573, %v7527
    %v7592 = vadd.f32 %v7590, %v7591
    %v7593 = vld [vmem:[#allocation4 + $0x6] sm:$0x3]
    %7595 = vrot.lane.b32.xlu0 %v7592, 96
    %v7596 = vpop.permute.xlu0 %7595
    %v7597 = vsel %vm7400, %v7596, 0
    %7599 = vmatpush.msra.mxu0 0.0
    %7600 = vmatpush.msra.mxu0 0.0
    %7601 = vmatpush.msra.mxu0 0.0
    %7602 = vmatpush.msra.mxu0 0.0
    %7603 = vmatpush.msra.mxu0 0.0
    %7604 = vmatpush.msra.mxu0 0.0
    %7605 = vmatpush.msra.mxu0 0.0
    %7606 = vmatpush.msra.mxu0 0.0
    %7607 = vmatpush.msra.mxu0 0.0
    %7608 = vmatpush.msra.mxu0 0.0
    %7609 = vmatpush.msra.mxu0 0.0
    %7610 = vmatpush.msra.mxu0 0.0
    %7611 = vmatpush.msra.mxu0 %v7394
    %7612 = vmatpush.msra.mxu0 %v7393
    %7613 = vmatpush.msra.mxu0 %v7392
    %7614 = vmatpush.msra.mxu0 %v7391
    %7615 = vmatmul.f32.gmra.mxu0 %v7597
    %v7616 = vpop.f32.mrf.mxu0
    %v7617 = vadd.f32 %v7398, %v7616
    %7618 = vdwg.mxu0
    %v7619 = vadd.f32 %v7593, %v7617
    %v7620 = vxor.u32 %v7619, 2147483648
    %v7621 = vmul.f32 %v7620, 1.442695
    %v7622 = vpow.pop %v7621
    %v7623 = vadd.f32 %v7622, 1.0
    %v7624 = vrcp.pop %v7623
    %v7625 = vmul.f32 %v7623, %v7624
    %v7626 = vsub.f32 1.0, %v7625
    %v7627 = vmul.f32 %v7624, %v7626
    %v7628 = vadd.f32 %v7624, %v7627
    %vm7629 = vweird.f32 %v7623
    %vm7630 = vweird.f32 %v7624
    %vm7631 = vmor %vm7629, %vm7630
    %v7632 = vsel %vm7631, %v7624, %v7628
    %v7633 = vand.u32 2147483647, %v7623
    %vm7634 = vcmp.eq.f32.partialorder %v7633, 8.507059e+37
    %v7635 = vand.u32 %v7623, 2147483648
    %v7636 = vor.u32 1.1754944e-38, %v7635
    %v7637 = vsel %vm7634, %v7636, %v7632
    %v7638 = vmul.f32 1.0, %v7637
    %7640 = vrot.lane.b32.xlu0 %v7617, 64
    %v7641 = vpop.permute.xlu0 %7640
    %v7643 = vmul.f32 %v7638, %v7641
    %7645 = vrot.lane.b32.xlu0 %v7643, 64
    %v7646 = vpop.permute.xlu0 %7645
    %v7648 = vadd.f32 %v7593, %v7646
    %v7649 = vtanh.pop %v7648
    %v7650 = vsub.f32 1.0, %v7638
    %7652 = vrot.lane.b32.xlu0 %v7649, 96
    %v7653 = vpop.permute.xlu0 %7652
    %v7655 = vmul.f32 %v7650, %v7653
    %v7656 = vmul.f32 %v7638, %v7592
    %v7657 = vadd.f32 %v7655, %v7656
    %v7658 = vld [vmem:[#allocation4 + $0x8] sm:$0x3]
    %7660 = vrot.lane.b32.xlu0 %v7657, 96
    %v7661 = vpop.permute.xlu0 %7660
    %v7662 = vsel %vm7400, %v7661, 0
    %7664 = vmatpush.msra.mxu0 0.0
    %7665 = vmatpush.msra.mxu0 0.0
    %7666 = vmatpush.msra.mxu0 0.0
    %7667 = vmatpush.msra.mxu0 0.0
    %7668 = vmatpush.msra.mxu0 0.0
    %7669 = vmatpush.msra.mxu0 0.0
    %7670 = vmatpush.msra.mxu0 0.0
    %7671 = vmatpush.msra.mxu0 0.0
    %7672 = vmatpush.msra.mxu0 0.0
    %7673 = vmatpush.msra.mxu0 0.0
    %7674 = vmatpush.msra.mxu0 0.0
    %7675 = vmatpush.msra.mxu0 0.0
    %7676 = vmatpush.msra.mxu0 %v7394
    %7677 = vmatpush.msra.mxu0 %v7393
    %7678 = vmatpush.msra.mxu0 %v7392
    %7679 = vmatpush.msra.mxu0 %v7391
    %7680 = vmatmul.f32.gmra.mxu0 %v7662
    %v7681 = vpop.f32.mrf.mxu0
    %v7682 = vadd.f32 %v7398, %v7681
    %7683 = vdwg.mxu0
    %v7684 = vadd.f32 %v7658, %v7682
    %v7685 = vxor.u32 %v7684, 2147483648
    %v7686 = vmul.f32 %v7685, 1.442695
    %v7687 = vpow.pop %v7686
    %v7688 = vadd.f32 %v7687, 1.0
    %v7689 = vrcp.pop %v7688
    %v7690 = vmul.f32 %v7688, %v7689
    %v7691 = vsub.f32 1.0, %v7690
    %v7692 = vmul.f32 %v7689, %v7691
    %v7693 = vadd.f32 %v7689, %v7692
    %vm7694 = vweird.f32 %v7688
    %vm7695 = vweird.f32 %v7689
    %vm7696 = vmor %vm7694, %vm7695
    %v7697 = vsel %vm7696, %v7689, %v7693
    %v7698 = vand.u32 2147483647, %v7688
    %vm7699 = vcmp.eq.f32.partialorder %v7698, 8.507059e+37
    %v7700 = vand.u32 %v7688, 2147483648
    %v7701 = vor.u32 1.1754944e-38, %v7700
    %v7702 = vsel %vm7699, %v7701, %v7697
    %v7703 = vmul.f32 1.0, %v7702
    %7705 = vrot.lane.b32.xlu0 %v7682, 64
    %v7706 = vpop.permute.xlu0 %7705
    %v7708 = vmul.f32 %v7703, %v7706
    %7710 = vrot.lane.b32.xlu0 %v7708, 64
    %v7711 = vpop.permute.xlu0 %7710
    %v7713 = vadd.f32 %v7658, %v7711
    %v7714 = vtanh.pop %v7713
    %v7715 = vsub.f32 1.0, %v7703
    %7717 = vrot.lane.b32.xlu0 %v7714, 96
    %v7718 = vpop.permute.xlu0 %7717
    %v7720 = vmul.f32 %v7715, %v7718
    %v7721 = vmul.f32 %v7703, %v7657
    %v7722 = vadd.f32 %v7720, %v7721
    %v7723 = vld [vmem:[#allocation4 + $0xa] sm:$0x3]
    %7725 = vrot.lane.b32.xlu0 %v7722, 96
    %v7726 = vpop.permute.xlu0 %7725
    %v7727 = vsel %vm7400, %v7726, 0
    %7729 = vmatpush.msra.mxu0 0.0
    %7730 = vmatpush.msra.mxu0 0.0
    %7731 = vmatpush.msra.mxu0 0.0
    %7732 = vmatpush.msra.mxu0 0.0
    %7733 = vmatpush.msra.mxu0 0.0
    %7734 = vmatpush.msra.mxu0 0.0
    %7735 = vmatpush.msra.mxu0 0.0
    %7736 = vmatpush.msra.mxu0 0.0
    %7737 = vmatpush.msra.mxu0 0.0
    %7738 = vmatpush.msra.mxu0 0.0
    %7739 = vmatpush.msra.mxu0 0.0
    %7740 = vmatpush.msra.mxu0 0.0
    %7741 = vmatpush.msra.mxu0 %v7394
    %7742 = vmatpush.msra.mxu0 %v7393
    %7743 = vmatpush.msra.mxu0 %v7392
    %7744 = vmatpush.msra.mxu0 %v7391
    %7745 = vmatmul.f32.gmra.mxu0 %v7727
    %v7746 = vpop.f32.mrf.mxu0
    %v7747 = vadd.f32 %v7398, %v7746
    %7748 = vdwg.mxu0
    %v7749 = vadd.f32 %v7723, %v7747
    %v7750 = vxor.u32 %v7749, 2147483648
    %v7751 = vmul.f32 %v7750, 1.442695
    %v7752 = vpow.pop %v7751
    %v7753 = vadd.f32 %v7752, 1.0
    %v7754 = vrcp.pop %v7753
    %v7755 = vmul.f32 %v7753, %v7754
    %v7756 = vsub.f32 1.0, %v7755
    %v7757 = vmul.f32 %v7754, %v7756
    %v7758 = vadd.f32 %v7754, %v7757
    %vm7759 = vweird.f32 %v7753
    %vm7760 = vweird.f32 %v7754
    %vm7761 = vmor %vm7759, %vm7760
    %v7762 = vsel %vm7761, %v7754, %v7758
    %v7763 = vand.u32 2147483647, %v7753
    %vm7764 = vcmp.eq.f32.partialorder %v7763, 8.507059e+37
    %v7765 = vand.u32 %v7753, 2147483648
    %v7766 = vor.u32 1.1754944e-38, %v7765
    %v7767 = vsel %vm7764, %v7766, %v7762
    %v7768 = vmul.f32 1.0, %v7767
    %7770 = vrot.lane.b32.xlu0 %v7747, 64
    %v7771 = vpop.permute.xlu0 %7770
    %v7773 = vmul.f32 %v7768, %v7771
    %7775 = vrot.lane.b32.xlu0 %v7773, 64
    %v7776 = vpop.permute.xlu0 %7775
    %v7778 = vadd.f32 %v7723, %v7776
    %v7779 = vtanh.pop %v7778
    %v7780 = vsub.f32 1.0, %v7768
    %7782 = vrot.lane.b32.xlu0 %v7779, 96
    %v7783 = vpop.permute.xlu0 %7782
    %v7785 = vmul.f32 %v7780, %v7783
    %v7786 = vmul.f32 %v7768, %v7722
    %v7787 = vadd.f32 %v7785, %v7786
    %v7788 = vld [vmem:[#allocation4 + $0xc] sm:$0x3]
    %7790 = vrot.lane.b32.xlu0 %v7787, 96
    %v7791 = vpop.permute.xlu0 %7790
    %v7792 = vsel %vm7400, %v7791, 0
    %7794 = vmatpush.msra.mxu0 0.0
    %7795 = vmatpush.msra.mxu0 0.0
    %7796 = vmatpush.msra.mxu0 0.0
    %7797 = vmatpush.msra.mxu0 0.0
    %7798 = vmatpush.msra.mxu0 0.0
    %7799 = vmatpush.msra.mxu0 0.0
    %7800 = vmatpush.msra.mxu0 0.0
    %7801 = vmatpush.msra.mxu0 0.0
    %7802 = vmatpush.msra.mxu0 0.0
    %7803 = vmatpush.msra.mxu0 0.0
    %7804 = vmatpush.msra.mxu0 0.0
    %7805 = vmatpush.msra.mxu0 0.0
    %7806 = vmatpush.msra.mxu0 %v7394
    %7807 = vmatpush.msra.mxu0 %v7393
    %7808 = vmatpush.msra.mxu0 %v7392
    %7809 = vmatpush.msra.mxu0 %v7391
    %7810 = vmatmul.f32.gmra.mxu0 %v7792
    %v7811 = vpop.f32.mrf.mxu0
    %v7812 = vadd.f32 %v7398, %v7811
    %7813 = vdwg.mxu0
    %v7814 = vadd.f32 %v7788, %v7812
    %v7815 = vxor.u32 %v7814, 2147483648
    %v7816 = vmul.f32 %v7815, 1.442695
    %v7817 = vpow.pop %v7816
    %v7818 = vadd.f32 %v7817, 1.0
    %v7819 = vrcp.pop %v7818
    %v7820 = vmul.f32 %v7818, %v7819
    %v7821 = vsub.f32 1.0, %v7820
    %v7822 = vmul.f32 %v7819, %v7821
    %v7823 = vadd.f32 %v7819, %v7822
    %vm7824 = vweird.f32 %v7818
    %vm7825 = vweird.f32 %v7819
    %vm7826 = vmor %vm7824, %vm7825
    %v7827 = vsel %vm7826, %v7819, %v7823
    %v7828 = vand.u32 2147483647, %v7818
    %vm7829 = vcmp.eq.f32.partialorder %v7828, 8.507059e+37
    %v7830 = vand.u32 %v7818, 2147483648
    %v7831 = vor.u32 1.1754944e-38, %v7830
    %v7832 = vsel %vm7829, %v7831, %v7827
    %v7833 = vmul.f32 1.0, %v7832
    %7835 = vrot.lane.b32.xlu0 %v7812, 64
    %v7836 = vpop.permute.xlu0 %7835
    %v7838 = vmul.f32 %v7833, %v7836
    %7840 = vrot.lane.b32.xlu0 %v7838, 64
    %v7841 = vpop.permute.xlu0 %7840
    %v7843 = vadd.f32 %v7788, %v7841
    %v7844 = vtanh.pop %v7843
    %v7845 = vsub.f32 1.0, %v7833
    %7847 = vrot.lane.b32.xlu0 %v7844, 96
    %v7848 = vpop.permute.xlu0 %7847
    %v7850 = vmul.f32 %v7845, %v7848
    %v7851 = vmul.f32 %v7833, %v7787
    %v7852 = vadd.f32 %v7850, %v7851
    %v7853 = vld [vmem:[#allocation4 + $0xe] sm:$0x3]
    %7855 = vrot.lane.b32.xlu0 %v7852, 96
    %v7856 = vpop.permute.xlu0 %7855
    %v7857 = vsel %vm7400, %v7856, 0
    %7859 = vmatpush.msra.mxu0 0.0
    %7860 = vmatpush.msra.mxu0 0.0
    %7861 = vmatpush.msra.mxu0 0.0
    %7862 = vmatpush.msra.mxu0 0.0
    %7863 = vmatpush.msra.mxu0 0.0
    %7864 = vmatpush.msra.mxu0 0.0
    %7865 = vmatpush.msra.mxu0 0.0
    %7866 = vmatpush.msra.mxu0 0.0
    %7867 = vmatpush.msra.mxu0 0.0
    %7868 = vmatpush.msra.mxu0 0.0
    %7869 = vmatpush.msra.mxu0 0.0
    %7870 = vmatpush.msra.mxu0 0.0
    %7871 = vmatpush.msra.mxu0 %v7394
    %7872 = vmatpush.msra.mxu0 %v7393
    %7873 = vmatpush.msra.mxu0 %v7392
    %7874 = vmatpush.msra.mxu0 %v7391
    %7875 = vmatmul.f32.gmra.mxu0 %v7857
    %v7876 = vpop.f32.mrf.mxu0
    %v7877 = vadd.f32 %v7398, %v7876
    %7878 = vdwg.mxu0
    %v7879 = vadd.f32 %v7853, %v7877
    %v7880 = vxor.u32 %v7879, 2147483648
    %v7881 = vmul.f32 %v7880, 1.442695
    %v7882 = vpow.pop %v7881
    %v7883 = vadd.f32 %v7882, 1.0
    %v7884 = vrcp.pop %v7883
    %v7885 = vmul.f32 %v7883, %v7884
    %v7886 = vsub.f32 1.0, %v7885
    %v7887 = vmul.f32 %v7884, %v7886
    %v7888 = vadd.f32 %v7884, %v7887
    %vm7889 = vweird.f32 %v7883
    %vm7890 = vweird.f32 %v7884
    %vm7891 = vmor %vm7889, %vm7890
    %v7892 = vsel %vm7891, %v7884, %v7888
    %v7893 = vand.u32 2147483647, %v7883
    %vm7894 = vcmp.eq.f32.partialorder %v7893, 8.507059e+37
    %v7895 = vand.u32 %v7883, 2147483648
    %v7896 = vor.u32 1.1754944e-38, %v7895
    %v7897 = vsel %vm7894, %v7896, %v7892
    %v7898 = vmul.f32 1.0, %v7897
    %7900 = vrot.lane.b32.xlu0 %v7877, 64
    %v7901 = vpop.permute.xlu0 %7900
    %v7903 = vmul.f32 %v7898, %v7901
    %7905 = vrot.lane.b32.xlu0 %v7903, 64
    %v7906 = vpop.permute.xlu0 %7905
    %v7908 = vadd.f32 %v7853, %v7906
    %v7909 = vtanh.pop %v7908
    %v7910 = vsub.f32 1.0, %v7898
    %7912 = vrot.lane.b32.xlu0 %v7909, 96
    %v7913 = vpop.permute.xlu0 %7912
    %v7915 = vmul.f32 %v7910, %v7913
    %v7916 = vmul.f32 %v7898, %v7852
    %v7917 = vadd.f32 %v7915, %v7916
    %7919 = vrot.lane.b32.xlu0 %v7917, 96
    %v7920 = vpop.permute.xlu0 %7919
    %vm7922 = vcmask 254976
    %7923 = vst.msk [vmem:[#allocation5] sm:$0x3] %vm7922, %v7920
    // Predicated region
    $region46: #{forward.1} parent=1 // pred_check
      _
    $region47: #{forward.1} parent=1 // pred_check_branch
      %7925 = sbr.rel (0) target = $region49
    $region48: #{forward.1} parent=1 // pred_region
      %7927 = vsyncadd [#allocation6], 0
      %s7929 = sshll.u32 [#allocation5], 4
      %s7930 = int_to_ptr.vmem [resolvable:$true] %s7929
      %s7931 = sshll.u32 %s11, 4
      %s7932 = int_to_ptr.hbm [resolvable:$true] %s7931
      %7934 = dma.vmem_to_hbm [thread:$0]  %s7930, 32, %s7932, [#allocation6]
    $region49: #{forward.1} parent=1 // pred_fallthru
      _
    // Predicated region
    $region50: #{forward.1} parent=1 // pred_check
      _
    $region51: #{forward.1} parent=1 // pred_check_branch
      %7936 = sbr.rel (0) target = $region53
    $region52: #{forward.1} parent=1 // pred_region
      %7938 = dma.done [#allocation6], 32
    $region53: #{forward.1} parent=1 // pred_fallthru
      _
    %7939 = vsyncpa [#allocation6], 1

</llo_original>
